<compile_context>
chip_gen: v6e
topology: v6e:2x2x1
jax: 0.10.0
libtpu: 0.0.40
codegen_flags: <defaults>
</compile_context>

<pallas_src>
import numpy as np
import jax
import jax.numpy as jnp
from jax import lax
from jax.experimental import pallas as pl
from jax.experimental.pallas import tpu as pltpu

# ---- constants matching the PyTorch module -------------------------------
AUDIO_LENGTH = 65526          # only used by the skipped (eval-only) istft branch
HOP_LENGTH = 256
K = 10.0
N_FFT = 1022
N_PAD = 1024                  # MXU/lane-aligned frame length (2 zero DFT rows appended)
N_FREQ = N_FFT // 2 + 1       # 512 one-sided frequency bins
F_HALF = N_FREQ // 2          # 256 bins after the spm[:, ::2] decimation
N_SOURCES = 2
EPS = float(np.finfo(np.float32).eps)
HIDDEN = 256                  # surrogate-UNet hidden width
TRAINING = True               # nn.Module default; `not self.training` branch skipped

# Frequency permutation: even bins first, then odd bins, so `[:, ::2]` becomes
# a contiguous lane-aligned slice.
_FREQ_PERM = np.concatenate([np.arange(0, N_FREQ, 2), np.arange(1, N_FREQ, 2)])
_FREQ_INV_PERM = np.argsort(_FREQ_PERM).astype(np.int32)


def _pick_vmem_limit():
    """Per-generation scoped-VMEM budget: ~3/4 of physical, capped at 64 MiB.

    v5e/v6e (128 MiB physical) -> 64 MiB; v7x (64 MiB physical) -> 48 MiB.
    """
    cap = 128 * 1024 * 1024
    try:
        cap = int(pltpu.get_tpu_info().vmem_capacity_bytes)
    except Exception:
        pass
    return min(64 * 1024 * 1024, max(32 * 1024 * 1024, (cap * 3) // 4))


_VMEM_LIMIT = _pick_vmem_limit()


def _resident_spec(block_shape, index_map):
    """BlockSpec for a constant-index_map operand: single-buffered.

    The block never changes across grid steps, so double buffering only wastes
    VMEM.  Falls back to the default pipelining if this build rejects it.
    """
    try:
        return pl.BlockSpec(block_shape, index_map, pipeline_mode=pl.Buffered(1))
    except Exception:
        return pl.BlockSpec(block_shape, index_map)


# ---------------------------------------------------------------------------
# Pallas kernels
# ---------------------------------------------------------------------------
def _stft_kernel(frames_ref, dft_hi_ref, dft_lo_ref, out_ref):
    """STFT tile: bf16 frames @ (bf16 hi/lo windowed-DFT pair), f32 accumulation."""
    f = frames_ref[0]                                             # (tm, N_PAD) bf16
    out_ref[0] = (jnp.dot(f, dft_hi_ref[...], preferred_element_type=jnp.float32)
                  + jnp.dot(f, dft_lo_ref[...], preferred_element_type=jnp.float32))


def _pallas_stft(frames, dft_hi, dft_lo):
    """frames: (B, T, N_PAD) bf16 -> (B, T, 2*N_FREQ) f32 = [real | imag] (permuted)."""
    B, T, _ = frames.shape
    if T % 256 == 0:
        tm = 256               # big tiles: amortize per-step overhead, ~1 MB DMAs
    elif T % 128 == 0:
        tm = 128
    else:
        tm = T                 # small/odd T (demo sizes): single full-T tile
    grid = (B, T // tm)
    return pl.pallas_call(
        _stft_kernel,
        grid_spec=pltpu.PrefetchScalarGridSpec(
            num_scalar_prefetch=0,
            grid=grid,
            in_specs=[
                pl.BlockSpec((1, tm, N_PAD), lambda b, t: (b, t, 0)),
                _resident_spec((N_PAD, 2 * N_FREQ), lambda b, t: (0, 0)),  # DFT hi
                _resident_spec((N_PAD, 2 * N_FREQ), lambda b, t: (0, 0)),  # DFT lo
            ],
            out_specs=pl.BlockSpec((1, tm, 2 * N_FREQ), lambda b, t: (b, t, 0)),
        ),
        out_shape=jax.ShapeDtypeStruct((B, T, 2 * N_FREQ), jnp.float32),
        compiler_params=pltpu.CompilerParams(
            dimension_semantics=("parallel", "parallel"),
            vmem_limit_bytes=_VMEM_LIMIT),
    )(frames, dft_hi, dft_lo)


def _pallas_fused(sp, coef, film, w1, w2, b2):
    """Fused remix + decimation + surrogate UNet + masks + per-batch loss partials.

    sp:   (B, T, 2*N_FREQ) [real|imag], permuted freqs
    coef: (B,) float32 remix coefficients (scalar-prefetched into SMEM)
    film: (B, 1, HIDDEN) precomputed FiLM term (emb @ we + b1)
    """
    B, T, _ = sp.shape
    inv_src = 1.0 / N_SOURCES

    def kernel(coef_ref, sp_ref, flip_ref, film_ref, w1_ref, w2_ref, b2_ref,
               mix_ref, logit_ref, lm_ref, gt_ref, loss_ref):
        b = pl.program_id(0)

        s = sp_ref[0]                         # (T, 2*N_FREQ)
        fl = flip_ref[0]                      # flipped-batch spectrum
        c = coef_ref[b]                       # scalar remix coefficient

        sr = s[:, :N_FREQ]
        si = s[:, N_FREQ:]
        mr = (sr + fl[:, :N_FREQ] * c) * inv_src
        mi = (si + fl[:, N_FREQ:] * c) * inv_src

        # contiguous "::2" decimation (even freqs are the first F_HALF columns)
        sr_h = sr[:, :F_HALF]
        si_h = si[:, :F_HALF]
        mr_h = mr[:, :F_HALF]
        mi_h = mi[:, :F_HALF]

        # weight = clamp(log1p(|sp_mix|), 1e-3, 10)  (computed BEFORE eps is added)
        mag = jnp.sqrt(mr_h * mr_h + mi_h * mi_h)
        weight = jnp.clip(jnp.log(1.0 + mag), 0.001, 10.0)

        # complex gt mask: view_as_real(spm / (sp_mix + eps)) / n_sources, K*tanh.
        dr = mr_h + EPS                       # torch adds the real eps to real part only
        den = jnp.maximum(dr * dr + mi_h * mi_h, 1e-30)   # floor keeps loss finite
        inv_den = 1.0 / den                   # exact reciprocal (do NOT approx)
        gr = (sr_h * dr + si_h * mi_h) * (inv_den * inv_src)
        gi = (si_h * dr - sr_h * mi_h) * (inv_den * inv_src)
        gt_r = K * jnp.tanh(gr)
        gt_i = K * jnp.tanh(gi)

        # surrogate UNet: FiLM-conditioned MLP (bf16 MXU inputs, f32 accumulation).
        # TODO(synk): the real UNet class is not defined in model.py; this is a
        # deterministic stand-in with the same (B,2,F,T)+(B,256)->(B,2,F,T) contract.
        h = (jnp.dot(mr_h.astype(jnp.bfloat16), w1_ref[:F_HALF, :],
                     preferred_element_type=jnp.float32)
             + jnp.dot(mi_h.astype(jnp.bfloat16), w1_ref[F_HALF:, :],
                       preferred_element_type=jnp.float32))
        h = jnp.tanh(h + film_ref[0])                       # FiLM term (hoisted matmul)
        # TODO(synk): on v6e/v7x the EUP-bound tanh region could run in bf16 for
        # ~2x rate; kept f32 so the same kernel is optimal-safe on v5e.
        logits = jnp.dot(h.astype(jnp.bfloat16), w2_ref[...],
                         preferred_element_type=jnp.float32) + b2_ref[...]
        lm = K * jnp.tanh(logits)

        # lane-dense output stores (eps folded into the even-frequency real part,
        # matching torch's in-place `sp_mix += eps` through the ::2 view).
        mix_ref[0, :, :F_HALF] = dr
        mix_ref[0, :, F_HALF:N_FREQ] = mr[:, F_HALF:]
        mix_ref[0, :, N_FREQ:] = mi
        logit_ref[0] = logits
        lm_ref[0] = lm
        gt_ref[0, :, :F_HALF] = gt_r
        gt_ref[0, :, F_HALF:] = gt_i

        # per-batch weighted-MSE partial sum (no cross-step state -> megacore OK)
        lm_r = lm[:, :F_HALF]
        lm_i = lm[:, F_HALF:]
        sq = weight * ((lm_r - gt_r) ** 2 + (lm_i - gt_i) ** 2)   # (T, F_HALF)
        col = jnp.sum(sq, axis=1, keepdims=True)                  # (T, 1)
        loss_ref[0] = jnp.sum(col, axis=0, keepdims=True)         # (1, 1)

    # TODO(synk): for B > 2 the flipped spectrum doubles input DMA; a flip-pair
    # grid (B/2 steps, both elements per step) would halve it.
    # TODO(synk): for very long audio (T >> 256) this kernel should also tile T
    # (grid=(B, T//tt)) to bound per-step VMEM on v7x.
    grid_spec = pltpu.PrefetchScalarGridSpec(
        num_scalar_prefetch=1,                 # coef lands in SMEM
        grid=(B,),
        in_specs=[
            pl.BlockSpec((1, T, 2 * N_FREQ), lambda b, c: (b, 0, 0)),          # spm
            pl.BlockSpec((1, T, 2 * N_FREQ), lambda b, c: (B - 1 - b, 0, 0)),  # spm.flip(0)
            pl.BlockSpec((1, 1, HIDDEN), lambda b, c: (b, 0, 0)),              # film
            _resident_spec((2 * F_HALF, HIDDEN), lambda b, c: (0, 0)),         # w1
            _resident_spec((HIDDEN, 2 * F_HALF), lambda b, c: (0, 0)),         # w2
            _resident_spec((1, 2 * F_HALF), lambda b, c: (0, 0)),              # b2
        ],
        out_specs=(
            pl.BlockSpec((1, T, 2 * N_FREQ), lambda b, c: (b, 0, 0)),   # mix (with eps)
            pl.BlockSpec((1, T, 2 * F_HALF), lambda b, c: (b, 0, 0)),   # logits
            pl.BlockSpec((1, T, 2 * F_HALF), lambda b, c: (b, 0, 0)),   # K*tanh(logits)
            pl.BlockSpec((1, T, 2 * F_HALF), lambda b, c: (b, 0, 0)),   # gt mask
            pl.BlockSpec((1, 1, 1), lambda b, c: (b, 0, 0)),            # loss partials
        ),
    )
    out_shapes = (
        jax.ShapeDtypeStruct((B, T, 2 * N_FREQ), jnp.float32),
        jax.ShapeDtypeStruct((B, T, 2 * F_HALF), jnp.float32),
        jax.ShapeDtypeStruct((B, T, 2 * F_HALF), jnp.float32),
        jax.ShapeDtypeStruct((B, T, 2 * F_HALF), jnp.float32),
        jax.ShapeDtypeStruct((B, 1, 1), jnp.float32),
    )
    return pl.pallas_call(
        kernel,
        grid_spec=grid_spec,
        out_shape=out_shapes,
        compiler_params=pltpu.CompilerParams(
            dimension_semantics=("parallel",),   # no loss carry -> shardable on v7x megacore
            vmem_limit_bytes=_VMEM_LIMIT),
    )(coef, sp, sp, film, w1, w2, b2)


# ---------------------------------------------------------------------------
# Glue: framing, windowed-DFT tables, parameter init, forward
# ---------------------------------------------------------------------------
def _windowed_dft_tables():
    """Hann-windowed, even-first-permuted [cos | -sin] DFT, K padded to 1024.

    Returned as a bf16 hi/lo pair: hi + lo ~= f32 table, so two bf16 MXU passes
    recover near-f32 accuracy (the f32 spectrum accuracy feeds the gt-mask
    complex division downstream).
    """
    n = np.arange(N_FFT, dtype=np.float64)
    win = 0.5 * (1.0 - np.cos(2.0 * np.pi * n / N_FFT))          # periodic hann (torch default)
    f = _FREQ_PERM[None, :].astype(np.float64)
    ang = 2.0 * np.pi * n[:, None] * f / N_FFT
    m = np.concatenate([np.cos(ang), -np.sin(ang)], axis=1) * win[:, None]
    m_pad = np.zeros((N_PAD, 2 * N_FREQ), np.float64)
    m_pad[:N_FFT] = m                                            # 2 zero tail rows
    m32 = jnp.asarray(m_pad, jnp.float32)
    hi = m32.astype(jnp.bfloat16)
    lo = (m32 - hi.astype(jnp.float32)).astype(jnp.bfloat16)
    return hi, lo


def _frame_signal(audio):
    """torch.stft-style centered reflect-padded framing. (B, L) -> (B, T, N_PAD) bf16.

    Each frame carries 2 extra trailing samples that hit the zero-padded DFT rows,
    so they never influence the spectrum.  Frames are stored bf16 (they are cast
    to bf16 for the MXU anyway), halving the intermediate HBM traffic.
    """
    pad_l = N_FFT // 2
    pad_r = pad_l + (N_PAD - N_FFT)
    x = jnp.pad(audio, ((0, 0), (pad_l, pad_r)), mode="reflect")
    n_frames = 1 + audio.shape[1] // HOP_LENGTH
    idx = jnp.arange(n_frames)[:, None] * HOP_LENGTH + jnp.arange(N_PAD)[None, :]
    # TODO(synk): streaming HOP-strided spans straight into the STFT kernel via
    # manual make_async_copy would remove this ~4x-expanded frames round trip.
    return x[:, idx].astype(jnp.bfloat16)


def init_params(key):
    ks = jax.random.split(key, 3)
    scale = 0.05
    dft_hi, dft_lo = _windowed_dft_tables()
    return {
        "dft_hi": dft_hi,
        "dft_lo": dft_lo,
        # surrogate-UNet weights; matmul operands stored bf16 (f32 accumulation)
        "w1": (scale * jax.random.normal(ks[0], (2 * F_HALF, HIDDEN), jnp.float32)
               ).astype(jnp.bfloat16),
        "we": scale * jax.random.normal(ks[1], (256, HIDDEN), jnp.float32),
        "b1": jnp.zeros((1, HIDDEN), jnp.float32),
        "w2": (scale * jax.random.normal(ks[2], (HIDDEN, 2 * F_HALF), jnp.float32)
               ).astype(jnp.bfloat16),
        "b2": jnp.zeros((1, 2 * F_HALF), jnp.float32),
    }


def separator_forward(params, inputs, key, training=TRAINING):
    audio = inputs["audio"]        # (B, L)
    emb = inputs["embedding"]      # (B, 256)
    B = audio.shape[0]

    # ---- wav2sp: STFT via Pallas (window folded into resident bf16 DFT pair) --
    frames = _frame_signal(audio)                                  # (B, T, N_PAD) bf16
    T = frames.shape[1]
    sp = _pallas_stft(frames, params["dft_hi"], params["dft_lo"])  # (B, T, 2*N_FREQ)

    # ---- random remix coefficient (scalar per batch element, SMEM prefetch) ---
    remix_coef = 0.5 if training else 1.0
    coef = (jax.random.uniform(key, (B,)) < remix_coef).astype(jnp.float32)

    # ---- FiLM term hoisted out of the per-frame UNet matmul -------------------
    film = (jnp.dot(emb, params["we"]) + params["b1"]).reshape(B, 1, HIDDEN)

    # ---- fused remix + decimation + surrogate UNet + masks + loss partials ----
    mix, logits, lm, gt, loss_part = _pallas_fused(
        sp, coef, film, params["w1"], params["w2"], params["b2"])
    loss = jnp.sum(loss_part) / float(B * T * F_HALF * 2)

    # ---- convert back to the PyTorch output conventions -----------------------
    # TODO(synk): the logits_mask transpose could be folded into the fused kernel
    # on the idle XLU; kept in XLA for lowering robustness across generations.
    logits_mask = jnp.transpose(logits.reshape(B, T, 2, F_HALF), (0, 2, 3, 1))  # (B,2,F/2,T)
    loss_mask = jnp.transpose(lm.reshape(B, T, 2, F_HALF), (0, 3, 1, 2))        # (B,F/2,T,2)
    gt_mask = jnp.transpose(gt.reshape(B, T, 2, F_HALF), (0, 3, 1, 2))          # (B,F/2,T,2)

    inv = jnp.asarray(_FREQ_INV_PERM)
    mix_r = jnp.take(mix[..., :N_FREQ], inv, axis=-1)   # un-permute to natural freq order
    mix_i = jnp.take(mix[..., N_FREQ:], inv, axis=-1)
    mix_sp = lax.complex(jnp.transpose(mix_r, (0, 2, 1)),
                         jnp.transpose(mix_i, (0, 2, 1)))   # (B, N_FREQ, T) complex64

    output = {
        "logits_mask": logits_mask,
        "inference_mask": None,           # eval-only branch (module in training mode)
        "loss_mask": loss_mask,
        "gt_mask": gt_mask,
        "estimated_sp": None,             # eval-only branch
        "estimated_wav": None,            # eval-only branch
        "loss": loss,
        "mix_sp": mix_sp,
    }
    # TODO(synk): the `not self.training` branch (sp2wav / istft / raw_mix_wav)
    # is never executed in training mode and is therefore not implemented here.
    return output


if __name__ == "__main__":
    key = jax.random.PRNGKey(0)
    k_audio, k_emb, k_coef, k_params = jax.random.split(key, 4)
    B, L = 2, 4096                     # small demo length (module uses 65526)
    inputs = {
        "audio": 0.1 * jax.random.normal(k_audio, (B, L), jnp.float32),
        "embedding": jax.random.normal(k_emb, (B, 256), jnp.float32),
    }
    params = init_params(k_params)
    fwd = jax.jit(separator_forward)
    out = fwd(params, inputs, k_coef)
    jax.block_until_ready(out)
    T = 1 + L // HOP_LENGTH
    assert out["logits_mask"].shape == (B, 2, F_HALF, T)
    assert out["loss_mask"].shape == (B, F_HALF, T, 2)
    assert out["gt_mask"].shape == out["loss_mask"].shape
    assert out["mix_sp"].shape == (B, N_FREQ, T)
    assert out["mix_sp"].dtype == jnp.complex64
    assert np.isfinite(float(out["loss"]))
    print("KERNEL_OK")
</pallas_src>

<mosaic_0001>
module attributes {stable_mosaic.version = 11 : i64} {
  func.func @_stft_kernel(%arg0: i32, %arg1: i32, %arg2: memref<1x17x1024xbf16, #tpu.memory_space<vmem>>, %arg3: memref<1024x1024xbf16, #tpu.memory_space<vmem>>, %arg4: memref<1024x1024xbf16, #tpu.memory_space<vmem>>, %arg5: memref<1x17x1024xf32, #tpu.memory_space<vmem>>) attributes {dimension_semantics = [#tpu.dimension_semantics<parallel>, #tpu.dimension_semantics<parallel>], iteration_bounds = array<i64: 2, 1>, scalar_prefetch = 0 : i64, scratch_operands = 0 : i64, tpu.core_type = #tpu.core_type<tc>, window_params = [{transform_indices = @transform_0, window_bounds = array<i64: 1, 17, 1024>}, {pipeline_mode = #tpu.pipeline_mode<synchronous>, transform_indices = @transform_1, window_bounds = array<i64: 1024, 1024>}, {pipeline_mode = #tpu.pipeline_mode<synchronous>, transform_indices = @transform_2, window_bounds = array<i64: 1024, 1024>}, {transform_indices = @transform_3, window_bounds = array<i64: 1, 17, 1024>}]} {
    %c0 = arith.constant 0 : index
    %c0_0 = arith.constant 0 : index
    %c0_1 = arith.constant 0 : index
    %0 = vector.load %arg2[%c0, %c0_0, %c0_1] : memref<1x17x1024xbf16, #tpu.memory_space<vmem>>, vector<1x17x1024xbf16>
    %1 = vector.shape_cast %0 : vector<1x17x1024xbf16> to vector<17x1024xbf16>
    %c0_2 = arith.constant 0 : index
    %c0_3 = arith.constant 0 : index
    %2 = vector.load %arg3[%c0_2, %c0_3] : memref<1024x1024xbf16, #tpu.memory_space<vmem>>, vector<1024x1024xbf16>
    %cst = arith.constant dense<0.000000e+00> : vector<17x1024xf32>
    %3 = tpu.matmul %1, %2, %cst {dimension_numbers = #tpu.dot_dimension_numbers<[1], [0], [0], [1], [0, 0, 1, 1], [], []>} : vector<17x1024xbf16>, vector<1024x1024xbf16>, vector<17x1024xf32> -> vector<17x1024xf32>
    %c0_4 = arith.constant 0 : index
    %c0_5 = arith.constant 0 : index
    %4 = vector.load %arg4[%c0_4, %c0_5] : memref<1024x1024xbf16, #tpu.memory_space<vmem>>, vector<1024x1024xbf16>
    %cst_6 = arith.constant dense<0.000000e+00> : vector<17x1024xf32>
    %5 = tpu.matmul %1, %4, %cst_6 {dimension_numbers = #tpu.dot_dimension_numbers<[1], [0], [0], [1], [0, 0, 1, 1], [], []>} : vector<17x1024xbf16>, vector<1024x1024xbf16>, vector<17x1024xf32> -> vector<17x1024xf32>
    %6 = arith.addf %3, %5 : vector<17x1024xf32>
    %c0_7 = arith.constant 0 : index
    %c0_8 = arith.constant 0 : index
    %c0_9 = arith.constant 0 : index
    %7 = vector.load %arg5[%c0_7, %c0_8, %c0_9] : memref<1x17x1024xf32, #tpu.memory_space<vmem>>, vector<1x17x1024xf32>
    %8 = vector.shape_cast %7 : vector<1x17x1024xf32> to vector<17x1024xf32>
    %9 = vector.shape_cast %6 : vector<17x1024xf32> to vector<1x17x1024xf32>
    tpu.vector_store %arg5[%c0_7, %c0_8, %c0_9], %9 {strides = array<i32>} : memref<1x17x1024xf32, #tpu.memory_space<vmem>>, vector<1x17x1024xf32>,
    return
  }
  func.func @transform_0(%arg0: i32, %arg1: i32) -> (i32, i32, i32) {
    %c0_i32 = arith.constant 0 : i32
    %c0_i32_0 = arith.constant 0 : i32
    return %arg0, %arg1, %c0_i32 : i32, i32, i32
  }
  func.func @transform_1(%arg0: i32, %arg1: i32) -> (i32, i32) {
    %c0_i32 = arith.constant 0 : i32
    %c0_i32_0 = arith.constant 0 : i32
    %c0_i32_1 = arith.constant 0 : i32
    return %c0_i32, %c0_i32_0 : i32, i32
  }
  func.func @transform_2(%arg0: i32, %arg1: i32) -> (i32, i32) {
    %c0_i32 = arith.constant 0 : i32
    %c0_i32_0 = arith.constant 0 : i32
    %c0_i32_1 = arith.constant 0 : i32
    return %c0_i32, %c0_i32_0 : i32, i32
  }
  func.func @transform_3(%arg0: i32, %arg1: i32) -> (i32, i32, i32) {
    %c0_i32 = arith.constant 0 : i32
    %c0_i32_0 = arith.constant 0 : i32
    return %arg0, %arg1, %c0_i32 : i32, i32, i32
  }
}

module attributes {stable_mosaic.version = 11 : i64} {
  func.func @kernel(%arg0: i32, %arg1: memref<2xf32, #tpu.memory_space<smem>>, %arg2: memref<1x17x1024xf32, #tpu.memory_space<vmem>>, %arg3: memref<1x17x1024xf32, #tpu.memory_space<vmem>>, %arg4: memref<1x1x256xf32, #tpu.memory_space<vmem>>, %arg5: memref<512x256xbf16, #tpu.memory_space<vmem>>, %arg6: memref<256x512xbf16, #tpu.memory_space<vmem>>, %arg7: memref<1x512xf32, #tpu.memory_space<vmem>>, %arg8: memref<1x17x1024xf32, #tpu.memory_space<vmem>>, %arg9: memref<1x17x512xf32, #tpu.memory_space<vmem>>, %arg10: memref<1x17x512xf32, #tpu.memory_space<vmem>>, %arg11: memref<1x17x512xf32, #tpu.memory_space<vmem>>, %arg12: memref<1x1x1xf32, #tpu.memory_space<vmem>>) attributes {dimension_semantics = [#tpu.dimension_semantics<parallel>], iteration_bounds = array<i64: 2>, scalar_prefetch = 1 : i64, scratch_operands = 0 : i64, tpu.core_type = #tpu.core_type<tc>, window_params = [{transform_indices = @transform_0, window_bounds = array<i64: 1, 17, 1024>}, {transform_indices = @transform_1, window_bounds = array<i64: 1, 17, 1024>}, {transform_indices = @transform_2, window_bounds = array<i64: 1, 1, 256>}, {pipeline_mode = #tpu.pipeline_mode<synchronous>, transform_indices = @transform_3, window_bounds = array<i64: 512, 256>}, {pipeline_mode = #tpu.pipeline_mode<synchronous>, transform_indices = @transform_4, window_bounds = array<i64: 256, 512>}, {pipeline_mode = #tpu.pipeline_mode<synchronous>, transform_indices = @transform_5, window_bounds = array<i64: 1, 512>}, {transform_indices = @transform_6, window_bounds = array<i64: 1, 17, 1024>}, {transform_indices = @transform_7, window_bounds = array<i64: 1, 17, 512>}, {transform_indices = @transform_8, window_bounds = array<i64: 1, 17, 512>}, {transform_indices = @transform_9, window_bounds = array<i64: 1, 17, 512>}, {transform_indices = @transform_10, window_bounds = array<i64: 1, 1, 1>}]} {
    %c0 = arith.constant 0 : index
    %c0_0 = arith.constant 0 : index
    %c0_1 = arith.constant 0 : index
    %0 = vector.load %arg2[%c0, %c0_0, %c0_1] : memref<1x17x1024xf32, #tpu.memory_space<vmem>>, vector<1x17x1024xf32>
    %1 = vector.shape_cast %0 : vector<1x17x1024xf32> to vector<17x1024xf32>
    %c0_2 = arith.constant 0 : index
    %c0_3 = arith.constant 0 : index
    %c0_4 = arith.constant 0 : index
    %2 = vector.load %arg3[%c0_2, %c0_3, %c0_4] : memref<1x17x1024xf32, #tpu.memory_space<vmem>>, vector<1x17x1024xf32>
    %3 = vector.shape_cast %2 : vector<1x17x1024xf32> to vector<17x1024xf32>
    %4 = arith.index_cast %arg0 : i32 to index
    %5 = memref.load %arg1[%4] : memref<2xf32, #tpu.memory_space<smem>>
    %6 = vector.extract_strided_slice %1 {offsets = [0, 0], sizes = [17, 512], strides = [1, 1]} : vector<17x1024xf32> to vector<17x512xf32>
    %7 = vector.extract_strided_slice %1 {offsets = [0, 512], sizes = [17, 512], strides = [1, 1]} : vector<17x1024xf32> to vector<17x512xf32>
    %8 = vector.extract_strided_slice %3 {offsets = [0, 0], sizes = [17, 512], strides = [1, 1]} : vector<17x1024xf32> to vector<17x512xf32>
    %9 = vector.broadcast %5 : f32 to vector<17x512xf32>
    %10 = arith.mulf %8, %9 : vector<17x512xf32>
    %11 = arith.addf %6, %10 : vector<17x512xf32>
    %cst = arith.constant 5.000000e-01 : f32
    %12 = vector.broadcast %cst : f32 to vector<17x512xf32>
    %13 = arith.mulf %11, %12 : vector<17x512xf32>
    %14 = vector.extract_strided_slice %3 {offsets = [0, 512], sizes = [17, 512], strides = [1, 1]} : vector<17x1024xf32> to vector<17x512xf32>
    %15 = vector.broadcast %5 : f32 to vector<17x512xf32>
    %16 = arith.mulf %14, %15 : vector<17x512xf32>
    %17 = arith.addf %7, %16 : vector<17x512xf32>
    %cst_5 = arith.constant 5.000000e-01 : f32
    %18 = vector.broadcast %cst_5 : f32 to vector<17x512xf32>
    %19 = arith.mulf %17, %18 : vector<17x512xf32>
    %20 = vector.extract_strided_slice %6 {offsets = [0, 0], sizes = [17, 256], strides = [1, 1]} : vector<17x512xf32> to vector<17x256xf32>
    %21 = vector.extract_strided_slice %7 {offsets = [0, 0], sizes = [17, 256], strides = [1, 1]} : vector<17x512xf32> to vector<17x256xf32>
    %22 = vector.extract_strided_slice %13 {offsets = [0, 0], sizes = [17, 256], strides = [1, 1]} : vector<17x512xf32> to vector<17x256xf32>
    %23 = vector.extract_strided_slice %19 {offsets = [0, 0], sizes = [17, 256], strides = [1, 1]} : vector<17x512xf32> to vector<17x256xf32>
    %24 = arith.mulf %22, %22 : vector<17x256xf32>
    %25 = arith.mulf %23, %23 : vector<17x256xf32>
    %26 = arith.addf %24, %25 : vector<17x256xf32>
    %27 = math.sqrt %26 : vector<17x256xf32>
    %cst_6 = arith.constant 1.000000e+00 : f32
    %28 = vector.broadcast %cst_6 : f32 to vector<17x256xf32>
    %29 = arith.addf %28, %27 : vector<17x256xf32>
    %30 = math.log %29 : vector<17x256xf32>
    %cst_7 = arith.constant 1.000000e-03 : f32
    %cst_8 = arith.constant 1.000000e+01 : f32
    %31 = vector.broadcast %cst_7 : f32 to vector<17x256xf32>
    %32 = arith.maximumf %31, %30 : vector<17x256xf32>
    %33 = vector.broadcast %cst_8 : f32 to vector<17x256xf32>
    %34 = arith.minimumf %33, %32 : vector<17x256xf32>
    %cst_9 = arith.constant 1.1920929E-7 : f32
    %35 = vector.broadcast %cst_9 : f32 to vector<17x256xf32>
    %36 = arith.addf %22, %35 : vector<17x256xf32>
    %37 = arith.mulf %36, %36 : vector<17x256xf32>
    %38 = arith.mulf %23, %23 : vector<17x256xf32>
    %39 = arith.addf %37, %38 : vector<17x256xf32>
    %cst_10 = arith.constant 1.000000e-30 : f32
    %40 = vector.broadcast %cst_10 : f32 to vector<17x256xf32>
    %41 = arith.maximumf %39, %40 : vector<17x256xf32>
    %cst_11 = arith.constant 1.000000e+00 : f32
    %42 = vector.broadcast %cst_11 : f32 to vector<17x256xf32>
    %43 = arith.divf %42, %41 : vector<17x256xf32>
    %44 = arith.mulf %20, %36 : vector<17x256xf32>
    %45 = arith.mulf %21, %23 : vector<17x256xf32>
    %46 = arith.addf %44, %45 : vector<17x256xf32>
    %cst_12 = arith.constant 5.000000e-01 : f32
    %47 = vector.broadcast %cst_12 : f32 to vector<17x256xf32>
    %48 = arith.mulf %43, %47 : vector<17x256xf32>
    %49 = arith.mulf %46, %48 : vector<17x256xf32>
    %50 = arith.mulf %21, %36 : vector<17x256xf32>
    %51 = arith.mulf %20, %23 : vector<17x256xf32>
    %52 = arith.subf %50, %51 : vector<17x256xf32>
    %cst_13 = arith.constant 5.000000e-01 : f32
    %53 = vector.broadcast %cst_13 : f32 to vector<17x256xf32>
    %54 = arith.mulf %43, %53 : vector<17x256xf32>
    %55 = arith.mulf %52, %54 : vector<17x256xf32>
    %56 = math.tanh %49 : vector<17x256xf32>
    %cst_14 = arith.constant 1.000000e+01 : f32
    %57 = vector.broadcast %cst_14 : f32 to vector<17x256xf32>
    %58 = arith.mulf %57, %56 : vector<17x256xf32>
    %59 = math.tanh %55 : vector<17x256xf32>
    %cst_15 = arith.constant 1.000000e+01 : f32
    %60 = vector.broadcast %cst_15 : f32 to vector<17x256xf32>
    %61 = arith.mulf %60, %59 : vector<17x256xf32>
    %62 = arith.truncf %22 : vector<17x256xf32> to vector<17x256xbf16>
    %c0_16 = arith.constant 0 : index
    %c0_17 = arith.constant 0 : index
    %63 = vector.load %arg5[%c0_16, %c0_17] : memref<512x256xbf16, #tpu.memory_space<vmem>>, vector<256x256xbf16>
    %cst_18 = arith.constant dense<0.000000e+00> : vector<17x256xf32>
    %64 = tpu.matmul %62, %63, %cst_18 {dimension_numbers = #tpu.dot_dimension_numbers<[1], [0], [0], [1], [0, 0, 1, 1], [], []>} : vector<17x256xbf16>, vector<256x256xbf16>, vector<17x256xf32> -> vector<17x256xf32>
    %65 = arith.truncf %23 : vector<17x256xf32> to vector<17x256xbf16>
    %c256 = arith.constant 256 : index
    %c0_19 = arith.constant 0 : index
    %66 = vector.load %arg5[%c256, %c0_19] : memref<512x256xbf16, #tpu.memory_space<vmem>>, vector<256x256xbf16>
    %cst_20 = arith.constant dense<0.000000e+00> : vector<17x256xf32>
    %67 = tpu.matmul %65, %66, %cst_20 {dimension_numbers = #tpu.dot_dimension_numbers<[1], [0], [0], [1], [0, 0, 1, 1], [], []>} : vector<17x256xbf16>, vector<256x256xbf16>, vector<17x256xf32> -> vector<17x256xf32>
    %68 = arith.addf %64, %67 : vector<17x256xf32>
    %c0_21 = arith.constant 0 : index
    %c0_22 = arith.constant 0 : index
    %c0_23 = arith.constant 0 : index
    %69 = vector.load %arg4[%c0_21, %c0_22, %c0_23] : memref<1x1x256xf32, #tpu.memory_space<vmem>>, vector<1x1x256xf32>
    %70 = vector.shape_cast %69 : vector<1x1x256xf32> to vector<1x256xf32>
    %71 = vector.broadcast %70 : vector<1x256xf32> to vector<17x256xf32>
    %72 = arith.addf %68, %71 : vector<17x256xf32>
    %73 = math.tanh %72 : vector<17x256xf32>
    %74 = arith.truncf %73 : vector<17x256xf32> to vector<17x256xbf16>
    %c0_24 = arith.constant 0 : index
    %c0_25 = arith.constant 0 : index
    %75 = vector.load %arg6[%c0_24, %c0_25] : memref<256x512xbf16, #tpu.memory_space<vmem>>, vector<256x512xbf16>
    %cst_26 = arith.constant dense<0.000000e+00> : vector<17x512xf32>
    %76 = tpu.matmul %74, %75, %cst_26 {dimension_numbers = #tpu.dot_dimension_numbers<[1], [0], [0], [1], [0, 0, 1, 1], [], []>} : vector<17x256xbf16>, vector<256x512xbf16>, vector<17x512xf32> -> vector<17x512xf32>
    %c0_27 = arith.constant 0 : index
    %c0_28 = arith.constant 0 : index
    %77 = vector.load %arg7[%c0_27, %c0_28] : memref<1x512xf32, #tpu.memory_space<vmem>>, vector<1x512xf32>
    %78 = vector.broadcast %77 : vector<1x512xf32> to vector<17x512xf32>
    %79 = arith.addf %76, %78 : vector<17x512xf32>
    %80 = math.tanh %79 : vector<17x512xf32>
    %cst_29 = arith.constant 1.000000e+01 : f32
    %81 = vector.broadcast %cst_29 : f32 to vector<17x512xf32>
    %82 = arith.mulf %81, %80 : vector<17x512xf32>
    %c0_30 = arith.constant 0 : index
    %c0_31 = arith.constant 0 : index
    %c0_32 = arith.constant 0 : index
    %83 = vector.load %arg8[%c0_30, %c0_31, %c0_32] : memref<1x17x1024xf32, #tpu.memory_space<vmem>>, vector<1x17x256xf32>
    %84 = vector.shape_cast %83 : vector<1x17x256xf32> to vector<17x256xf32>
    %85 = vector.shape_cast %36 : vector<17x256xf32> to vector<1x17x256xf32>
    tpu.vector_store %arg8[%c0_30, %c0_31, %c0_32], %85 {strides = array<i32>} : memref<1x17x1024xf32, #tpu.memory_space<vmem>>, vector<1x17x256xf32>,
    %86 = vector.extract_strided_slice %13 {offsets = [0, 256], sizes = [17, 256], strides = [1, 1]} : vector<17x512xf32> to vector<17x256xf32>
    %c0_33 = arith.constant 0 : index
    %c0_34 = arith.constant 0 : index
    %c256_35 = arith.constant 256 : index
    %87 = vector.load %arg8[%c0_33, %c0_34, %c256_35] : memref<1x17x1024xf32, #tpu.memory_space<vmem>>, vector<1x17x256xf32>
    %88 = vector.shape_cast %87 : vector<1x17x256xf32> to vector<17x256xf32>
    %89 = vector.shape_cast %86 : vector<17x256xf32> to vector<1x17x256xf32>
    tpu.vector_store %arg8[%c0_33, %c0_34, %c256_35], %89 {strides = array<i32>} : memref<1x17x1024xf32, #tpu.memory_space<vmem>>, vector<1x17x256xf32>,
    %c0_36 = arith.constant 0 : index
    %c0_37 = arith.constant 0 : index
    %c512 = arith.constant 512 : index
    %90 = vector.load %arg8[%c0_36, %c0_37, %c512] : memref<1x17x1024xf32, #tpu.memory_space<vmem>>, vector<1x17x512xf32>
    %91 = vector.shape_cast %90 : vector<1x17x512xf32> to vector<17x512xf32>
    %92 = vector.shape_cast %19 : vector<17x512xf32> to vector<1x17x512xf32>
    tpu.vector_store %arg8[%c0_36, %c0_37, %c512], %92 {strides = array<i32>} : memref<1x17x1024xf32, #tpu.memory_space<vmem>>, vector<1x17x512xf32>,
    %c0_38 = arith.constant 0 : index
    %c0_39 = arith.constant 0 : index
    %c0_40 = arith.constant 0 : index
    %93 = vector.load %arg9[%c0_38, %c0_39, %c0_40] : memref<1x17x512xf32, #tpu.memory_space<vmem>>, vector<1x17x512xf32>
    %94 = vector.shape_cast %93 : vector<1x17x512xf32> to vector<17x512xf32>
    %95 = vector.shape_cast %79 : vector<17x512xf32> to vector<1x17x512xf32>
    tpu.vector_store %arg9[%c0_38, %c0_39, %c0_40], %95 {strides = array<i32>} : memref<1x17x512xf32, #tpu.memory_space<vmem>>, vector<1x17x512xf32>,
    %c0_41 = arith.constant 0 : index
    %c0_42 = arith.constant 0 : index
    %c0_43 = arith.constant 0 : index
    %96 = vector.load %arg10[%c0_41, %c0_42, %c0_43] : memref<1x17x512xf32, #tpu.memory_space<vmem>>, vector<1x17x512xf32>
    %97 = vector.shape_cast %96 : vector<1x17x512xf32> to vector<17x512xf32>
    %98 = vector.shape_cast %82 : vector<17x512xf32> to vector<1x17x512xf32>
    tpu.vector_store %arg10[%c0_41, %c0_42, %c0_43], %98 {strides = array<i32>} : memref<1x17x512xf32, #tpu.memory_space<vmem>>, vector<1x17x512xf32>,
    %c0_44 = arith.constant 0 : index
    %c0_45 = arith.constant 0 : index
    %c0_46 = arith.constant 0 : index
    %99 = vector.load %arg11[%c0_44, %c0_45, %c0_46] : memref<1x17x512xf32, #tpu.memory_space<vmem>>, vector<1x17x256xf32>
    %100 = vector.shape_cast %99 : vector<1x17x256xf32> to vector<17x256xf32>
    %101 = vector.shape_cast %58 : vector<17x256xf32> to vector<1x17x256xf32>
    tpu.vector_store %arg11[%c0_44, %c0_45, %c0_46], %101 {strides = array<i32>} : memref<1x17x512xf32, #tpu.memory_space<vmem>>, vector<1x17x256xf32>,
    %c0_47 = arith.constant 0 : index
    %c0_48 = arith.constant 0 : index
    %c256_49 = arith.constant 256 : index
    %102 = vector.load %arg11[%c0_47, %c0_48, %c256_49] : memref<1x17x512xf32, #tpu.memory_space<vmem>>, vector<1x17x256xf32>
    %103 = vector.shape_cast %102 : vector<1x17x256xf32> to vector<17x256xf32>
    %104 = vector.shape_cast %61 : vector<17x256xf32> to vector<1x17x256xf32>
    tpu.vector_store %arg11[%c0_47, %c0_48, %c256_49], %104 {strides = array<i32>} : memref<1x17x512xf32, #tpu.memory_space<vmem>>, vector<1x17x256xf32>,
    %105 = vector.extract_strided_slice %82 {offsets = [0, 0], sizes = [17, 256], strides = [1, 1]} : vector<17x512xf32> to vector<17x256xf32>
    %106 = vector.extract_strided_slice %82 {offsets = [0, 256], sizes = [17, 256], strides = [1, 1]} : vector<17x512xf32> to vector<17x256xf32>
    %107 = arith.subf %105, %58 : vector<17x256xf32>
    %108 = arith.mulf %107, %107 : vector<17x256xf32>
    %109 = arith.subf %106, %61 : vector<17x256xf32>
    %110 = arith.mulf %109, %109 : vector<17x256xf32>
    %111 = arith.addf %108, %110 : vector<17x256xf32>
    %112 = arith.mulf %34, %111 : vector<17x256xf32>
    %cst_50 = arith.constant dense<0.000000e+00> : vector<17xf32>
    %113 = vector.multi_reduction <add>, %112, %cst_50 [1] : vector<17x256xf32> to vector<17xf32>
    %114 = vector.shape_cast %113 : vector<17xf32> to vector<17x1xf32>
    %cst_51 = arith.constant dense<0.000000e+00> : vector<1xf32>
    %115 = vector.multi_reduction <add>, %114, %cst_51 [0] : vector<17x1xf32> to vector<1xf32>
    %116 = vector.shape_cast %115 : vector<1xf32> to vector<1x1xf32>
    %c0_52 = arith.constant 0 : index
    %c0_53 = arith.constant 0 : index
    %c0_54 = arith.constant 0 : index
    %117 = vector.load %arg12[%c0_52, %c0_53, %c0_54] : memref<1x1x1xf32, #tpu.memory_space<vmem>>, vector<1x1x1xf32>
    %118 = vector.shape_cast %117 : vector<1x1x1xf32> to vector<1x1xf32>
    %119 = vector.shape_cast %116 : vector<1x1xf32> to vector<1x1x1xf32>
    tpu.vector_store %arg12[%c0_52, %c0_53, %c0_54], %119 {strides = array<i32>} : memref<1x1x1xf32, #tpu.memory_space<vmem>>, vector<1x1x1xf32>,
    return
  }
  func.func @transform_0(%arg0: i32, %arg1: memref<2xf32, #tpu.memory_space<smem>>) -> (i32, i32, i32) {
    %c0_i32 = arith.constant 0 : i32
    %c0_i32_0 = arith.constant 0 : i32
    %c0_i32_1 = arith.constant 0 : i32
    return %arg0, %c0_i32, %c0_i32_0 : i32, i32, i32
  }
  func.func @transform_1(%arg0: i32, %arg1: memref<2xf32, #tpu.memory_space<smem>>) -> (i32, i32, i32) {
    %c1_i32 = arith.constant 1 : i32
    %0 = arith.subi %c1_i32, %arg0 : i32
    %c0_i32 = arith.constant 0 : i32
    %c0_i32_0 = arith.constant 0 : i32
    %c0_i32_1 = arith.constant 0 : i32
    return %0, %c0_i32, %c0_i32_0 : i32, i32, i32
  }
  func.func @transform_2(%arg0: i32, %arg1: memref<2xf32, #tpu.memory_space<smem>>) -> (i32, i32, i32) {
    %c0_i32 = arith.constant 0 : i32
    %c0_i32_0 = arith.constant 0 : i32
    %c0_i32_1 = arith.constant 0 : i32
    return %arg0, %c0_i32, %c0_i32_0 : i32, i32, i32
  }
  func.func @transform_3(%arg0: i32, %arg1: memref<2xf32, #tpu.memory_space<smem>>) -> (i32, i32) {
    %c0_i32 = arith.constant 0 : i32
    %c0_i32_0 = arith.constant 0 : i32
    %c0_i32_1 = arith.constant 0 : i32
    return %c0_i32, %c0_i32_0 : i32, i32
  }
  func.func @transform_4(%arg0: i32, %arg1: memref<2xf32, #tpu.memory_space<smem>>) -> (i32, i32) {
    %c0_i32 = arith.constant 0 : i32
    %c0_i32_0 = arith.constant 0 : i32
    %c0_i32_1 = arith.constant 0 : i32
    return %c0_i32, %c0_i32_0 : i32, i32
  }
  func.func @transform_5(%arg0: i32, %arg1: memref<2xf32, #tpu.memory_space<smem>>) -> (i32, i32) {
    %c0_i32 = arith.constant 0 : i32
    %c0_i32_0 = arith.constant 0 : i32
    %c0_i32_1 = arith.constant 0 : i32
    return %c0_i32, %c0_i32_0 : i32, i32
  }
  func.func @transform_6(%arg0: i32, %arg1: memref<2xf32, #tpu.memory_space<smem>>) -> (i32, i32, i32) {
    %c0_i32 = arith.constant 0 : i32
    %c0_i32_0 = arith.constant 0 : i32
    %c0_i32_1 = arith.constant 0 : i32
    return %arg0, %c0_i32, %c0_i32_0 : i32, i32, i32
  }
  func.func @transform_7(%arg0: i32, %arg1: memref<2xf32, #tpu.memory_space<smem>>) -> (i32, i32, i32) {
    %c0_i32 = arith.constant 0 : i32
    %c0_i32_0 = arith.constant 0 : i32
    %c0_i32_1 = arith.constant 0 : i32
    return %arg0, %c0_i32, %c0_i32_0 : i32, i32, i32
  }
  func.func @transform_8(%arg0: i32, %arg1: memref<2xf32, #tpu.memory_space<smem>>) -> (i32, i32, i32) {
    %c0_i32 = arith.constant 0 : i32
    %c0_i32_0 = arith.constant 0 : i32
    %c0_i32_1 = arith.constant 0 : i32
    return %arg0, %c0_i32, %c0_i32_0 : i32, i32, i32
  }
  func.func @transform_9(%arg0: i32, %arg1: memref<2xf32, #tpu.memory_space<smem>>) -> (i32, i32, i32) {
    %c0_i32 = arith.constant 0 : i32
    %c0_i32_0 = arith.constant 0 : i32
    %c0_i32_1 = arith.constant 0 : i32
    return %arg0, %c0_i32, %c0_i32_0 : i32, i32, i32
  }
  func.func @transform_10(%arg0: i32, %arg1: memref<2xf32, #tpu.memory_space<smem>>) -> (i32, i32, i32) {
    %c0_i32 = arith.constant 0 : i32
    %c0_i32_0 = arith.constant 0 : i32
    %c0_i32_1 = arith.constant 0 : i32
    return %arg0, %c0_i32, %c0_i32_0 : i32, i32, i32
  }
}

</mosaic_0001>

<llo_original>
// kernel: reverse.1
$region0: #{reverse.1}
  %s0 = inlined_call_operand.vmem [shape: bf16[2,640], index: 0, kind: input, shape index: {}]
  %s1 = inlined_call_operand.vmem [shape: bf16[2,640], index: 1, kind: output, shape index: {}]
  %v2 = vlaneseq
  %v3 = vsub.s32 127, %v2
  %4 = vset.pattern.permute.xlu0 %v3
  $region1: #{reverse.1} parent=0
    #allocation0 [shape = 'u8[4096]{0}', space=vmem, size = 0x1000, scoped, tag = 'operand span for operand 0']
    #allocation1 [shape = 'u8[1024]{0}', space=vmem, size = 0x400, scoped, tag = 'packed  for operand 0']
    #allocation2 [shape = 'u8[4096]{0}', space=vmem, size = 0x1000, scoped, tag = 'operand span for operand 1']
    #allocation3 [shape = 'u8[1024]{0}', space=vmem, size = 0x400, scoped, tag = 'packed  for operand 1']
    loop: start=0, step=1, limit=7
    $region2: #{reverse.1} parent=1 // loop_pre_header
      _
    $region3: #{reverse.1} parent=1 // loop_header
      %s6 = sphi 0, %s10
      %p7 = scmp.ge.s32.totalorder %s6, 7
      %s13 = sphi 0, %s25
      %s14 = sphi 0, %s21
      %s15 = sphi 0, %s13
      %s16 = sphi 0, %s14
      %s17 = sphi 0, %s15
      %s18 = sphi 0, %s16
    $region4: #{reverse.1} parent=1 // loop_header_branch
      %9 = sbr.rel (%p7) target = $region8
    $region5: #{reverse.1} parent=1 // loop_body
      %s11 = ssub.s32 %s6, 1
      %s12 = ssub.s32 %s6, 2
      %s19 = sadd.s32 1, %s14
      %p20 = scmp.ge.s32.totalorder %s19, 5
      %s21 = scalar_select %p20, 0, %s19
      %s22 = sadd.s32 1, %s13
      %s23 = scalar_select %p20, %s22, %s13
      %p24 = scmp.ge.s32.totalorder %s23, 1
      %s25 = scalar_select %p24, 0, %s23
      %p26 = scmp.le.s32.totalorder 1, %s6
      %p27 = scmp.lt.s32.totalorder %s6, 6
      %p28 = pnand %p26, %p27
      %p29 = pneg %p28
      // Predicated region
      $region9: #{reverse.1} parent=5 // pred_check
        _
      $region10: #{reverse.1} parent=5 // pred_check_branch
        %31 = sbr.rel (%p28) target = $region12
      $region11: #{reverse.1} parent=5 // pred_region
        %s32 = ssub.s32 %s6, 1
      $region12: #{reverse.1} parent=5 // pred_fallthru
        _
      %p33 = scmp.lt.s32.totalorder %s6, 5
      // Predicated region
      $region13: #{reverse.1} parent=5 // pred_check
        %p34 = pneg %p33
      $region14: #{reverse.1} parent=5 // pred_check_branch
        %36 = sbr.rel (%p34) target = $region16
      $region15: #{reverse.1} parent=5 // pred_region
        %s37 = sand.u32 %s6, 1
        %s38 = sand.u32 %s6, 1
        %s39 = scalar_lea.vmem [#allocation1], %s38
        %s40 = ssub.s32 4, %s14
        %s41 = smul.addr %s13, 5
        %s42 = sadd.s32 %s40, %s41
        %s43 = scalar_lea.vmem %s0, %s42
        // Predicated region
        $region17: #{reverse.1} parent=15 // pred_check
          _
        $region18: #{reverse.1} parent=15 // pred_check_branch
          %45 = sbr.rel (0) target = $region20
        $region19: #{reverse.1} parent=15 // pred_region
          // Predicated region
          $region21: #{reverse.1} parent=19 // pred_check
            _
          $region22: #{reverse.1} parent=19 // pred_check_branch
            %47 = sbr.rel target = $region24
          $region23: #{reverse.1} parent=19 // pred_region
            // Predicated region
            $region36: #{reverse.1} parent=23 // pred_check
              _
            $region37: #{reverse.1} parent=23 // pred_check_branch
              %63 = sbr.rel (0) target = $region39
            $region38: #{reverse.1} parent=23 // pred_region
              %s65 = ssub.s32 2, 1
              loop: start=0, step=1, limit=1
              $region40: #{reverse.1} parent=38 // loop_pre_header
                _
              $region41: #{reverse.1} parent=38 // loop_header
                %s67 = sphi 0, %s71
                %p68 = scmp.ge.s32.totalorder %s67, 1
                %s72 = sphi %s43, %s43
                %s73 = sphi %s39, %s39
              $region42: #{reverse.1} parent=38 // loop_header_branch
                %70 = sbr.rel (%p68) target = $region46
              $region43: #{reverse.1} parent=38 // loop_body
                %v74 = vld [vmem:[%s72] sm:%s65]
                %75 = vst [vmem:[%s73] sm:%s65] %v74
              $region44: #{reverse.1} parent=38 // loop_footer
                %s71 = sadd.s32 1, %s67
              $region45: #{reverse.1} parent=38 // loop_footer_branch
                %66 = sbr.rel target = $region41
              $region46: #{reverse.1} parent=38 // loop_exit
                _
            $region39: #{reverse.1} parent=23 // pred_fallthru
              _
          $region24: #{reverse.1} parent=19 // pred_fallthru
            _
          // Predicated region
          $region25: #{reverse.1} parent=19 // pred_check
            _
          $region26: #{reverse.1} parent=19 // pred_check_branch
            %49 = sbr.rel (0) target = $region28
          $region27: #{reverse.1} parent=19 // pred_region
            %s51 = ssub.s32 2, 1
            loop: start=0, step=1, limit=1
            $region29: #{reverse.1} parent=27 // loop_pre_header
              _
            $region30: #{reverse.1} parent=27 // loop_header
              %s53 = sphi 0, %s57
              %p54 = scmp.ge.s32.totalorder %s53, 1
              %s58 = sphi %s43, %s43
              %s59 = sphi %s39, %s39
            $region31: #{reverse.1} parent=27 // loop_header_branch
              %56 = sbr.rel (%p54) target = $region35
            $region32: #{reverse.1} parent=27 // loop_body
              %v60 = vld [vmem:[%s58] sm:%s51]
              %61 = vst [vmem:[%s59] sm:%s51] %v60
            $region33: #{reverse.1} parent=27 // loop_footer
              %s57 = sadd.s32 1, %s53
            $region34: #{reverse.1} parent=27 // loop_footer_branch
              %52 = sbr.rel target = $region30
            $region35: #{reverse.1} parent=27 // loop_exit
              _
          $region28: #{reverse.1} parent=19 // pred_fallthru
            _
        $region20: #{reverse.1} parent=15 // pred_fallthru
          _
        %76 = vnop
      $region16: #{reverse.1} parent=5 // pred_fallthru
        _
      %p77 = scmp.le.s32.totalorder 1, %s6
      %p78 = scmp.lt.s32.totalorder %s6, 6
      %p79 = pnand %p77, %p78
      %p80 = pneg %p79
      // Predicated region
      $region47: #{reverse.1} parent=5 // pred_check
        _
      $region48: #{reverse.1} parent=5 // pred_check_branch
        %82 = sbr.rel (%p79) target = $region50
      $region49: #{reverse.1} parent=5 // pred_region
        %s83 = ssub.s32 %s6, 1
        %s84 = sand.u32 %s11, 1
        %s85 = sand.u32 %s11, 1
        %s86 = scalar_lea.vmem [#allocation1], %s85
        %s87 = sand.u32 %s11, 1
        %s88 = sand.u32 %s11, 1
        %s89 = scalar_lea.vmem [#allocation1], %s88
        %s90 = sand.u32 %s11, 1
        %s91 = sand.u32 %s11, 1
        %s92 = scalar_lea.vmem [#allocation3], %s91
        %s94 = smul.u32 1, 2
        %s95 = sshll.u32 1, %s94
        %s96 = ssub.s32 %s95, 1
        %s97 = sshrl.u32 %s96, 1
        %s98 = sor.u32 %s96, %s97
        %s99 = sand.u32 %s98, 85
        %s100 = sshrl.u32 %s99, 1
        %s101 = sor.u32 %s99, %s100
        %s102 = sand.u32 51, %s101
        %s103 = sshrl.u32 %s102, 2
        %s104 = sor.u32 %s102, %s103
        %s105 = sand.u32 15, %s104
        %v106 = vld [vmem:[%s89] sm:%s105]
        %v107 = vunpack.c.l.bf16 %v106
        %v108 = vunpack.c.h.bf16 %v106
        %109 = vst [vmem:[#allocation0] sm:%s96] %v107
        %s110 = ssub.s32 4, %s16
        %v111 = vld [vmem:[#allocation0] sm:$0xff]
        %112 = vperm.xlu0 %4, %v111
        %v113 = vpop.permute.xlu0 %112
        %114 = vst [vmem:[#allocation2] sm:$0xff] %v113
        %s116 = smul.u32 1, 2
        %s117 = sshll.u32 1, %s116
        %s118 = ssub.s32 %s117, 1
        %s119 = sshrl.u32 %s116, 1
        %v120 = vld [vmem:[#allocation2] sm:%s118]
        %v121 = vpack.c.bf16 0.0, %v120
        %s122 = sshll.u32 1, %s119
        %s123 = ssub.s32 %s122, 1
        %124 = vst [vmem:[%s92] sm:%s123] %v121
        %s125 = sand.u32 %s11, 1
        %s126 = sand.u32 %s11, 1
        %s127 = scalar_lea.vmem [#allocation3], %s126
        %s128 = smul.addr %s15, 5
        %s129 = sadd.s32 %s16, %s128
        %s130 = scalar_lea.vmem %s1, %s129
        // Predicated region
        $region51: #{reverse.1} parent=49 // pred_check
          _
        $region52: #{reverse.1} parent=49 // pred_check_branch
          %132 = sbr.rel (0) target = $region54
        $region53: #{reverse.1} parent=49 // pred_region
          // Predicated region
          $region55: #{reverse.1} parent=53 // pred_check
            _
          $region56: #{reverse.1} parent=53 // pred_check_branch
            %134 = sbr.rel target = $region58
          $region57: #{reverse.1} parent=53 // pred_region
            // Predicated region
            $region70: #{reverse.1} parent=57 // pred_check
              _
            $region71: #{reverse.1} parent=57 // pred_check_branch
              %150 = sbr.rel (0) target = $region73
            $region72: #{reverse.1} parent=57 // pred_region
              %s152 = ssub.s32 2, 1
              loop: start=0, step=1, limit=1
              $region74: #{reverse.1} parent=72 // loop_pre_header
                _
              $region75: #{reverse.1} parent=72 // loop_header
                %s154 = sphi 0, %s158
                %p155 = scmp.ge.s32.totalorder %s154, 1
                %s159 = sphi %s127, %s127
                %s160 = sphi %s130, %s130
              $region76: #{reverse.1} parent=72 // loop_header_branch
                %157 = sbr.rel (%p155) target = $region80
              $region77: #{reverse.1} parent=72 // loop_body
                %v161 = vld [vmem:[%s159] sm:%s152]
                %162 = vst [vmem:[%s160] sm:%s152] %v161
              $region78: #{reverse.1} parent=72 // loop_footer
                %s158 = sadd.s32 1, %s154
              $region79: #{reverse.1} parent=72 // loop_footer_branch
                %153 = sbr.rel target = $region75
              $region80: #{reverse.1} parent=72 // loop_exit
                _
            $region73: #{reverse.1} parent=57 // pred_fallthru
              _
          $region58: #{reverse.1} parent=53 // pred_fallthru
            _
          // Predicated region
          $region59: #{reverse.1} parent=53 // pred_check
            _
          $region60: #{reverse.1} parent=53 // pred_check_branch
            %136 = sbr.rel (0) target = $region62
          $region61: #{reverse.1} parent=53 // pred_region
            %s138 = ssub.s32 2, 1
            loop: start=0, step=1, limit=1
            $region63: #{reverse.1} parent=61 // loop_pre_header
              _
            $region64: #{reverse.1} parent=61 // loop_header
              %s140 = sphi 0, %s144
              %p141 = scmp.ge.s32.totalorder %s140, 1
              %s145 = sphi %s127, %s127
              %s146 = sphi %s130, %s130
            $region65: #{reverse.1} parent=61 // loop_header_branch
              %143 = sbr.rel (%p141) target = $region69
            $region66: #{reverse.1} parent=61 // loop_body
              %v147 = vld [vmem:[%s145] sm:%s138]
              %148 = vst [vmem:[%s146] sm:%s138] %v147
            $region67: #{reverse.1} parent=61 // loop_footer
              %s144 = sadd.s32 1, %s140
            $region68: #{reverse.1} parent=61 // loop_footer_branch
              %139 = sbr.rel target = $region64
            $region69: #{reverse.1} parent=61 // loop_exit
              _
          $region62: #{reverse.1} parent=53 // pred_fallthru
            _
        $region54: #{reverse.1} parent=49 // pred_fallthru
          _
        %163 = vnop
      $region50: #{reverse.1} parent=5 // pred_fallthru
        _
      %p164 = scmp.le.s32.totalorder 2, %s6
      // Predicated region
      $region81: #{reverse.1} parent=5 // pred_check
        %p165 = pneg %p164
      $region82: #{reverse.1} parent=5 // pred_check_branch
        %167 = sbr.rel (%p165) target = $region84
      $region83: #{reverse.1} parent=5 // pred_region
        %s168 = ssub.s32 %s6, 2
        %s169 = sand.u32 %s12, 1
        %s170 = sand.u32 %s12, 1
        %s171 = scalar_lea.vmem [#allocation3], %s170
      $region84: #{reverse.1} parent=5 // pred_fallthru
        _
    $region6: #{reverse.1} parent=1 // loop_footer
      %s10 = sadd.s32 1, %s6
    $region7: #{reverse.1} parent=1 // loop_footer_branch
      %5 = sbr.rel target = $region3
    $region8: #{reverse.1} parent=1 // loop_exit
      _

// kernel: reverse
$region0: #{reverse}
  %s0 = inlined_call_operand.vmem [shape: bf16[2,512], index: 0, kind: input, shape index: {}]
  %s1 = inlined_call_operand.vmem [shape: bf16[2,512], index: 1, kind: output, shape index: {}]
  %v2 = vlaneseq
  %v3 = vsub.s32 127, %v2
  %4 = vset.pattern.permute.xlu0 %v3
  $region1: #{reverse} parent=0
    #allocation0 [shape = 'u8[4096]{0}', space=vmem, size = 0x1000, scoped, tag = 'operand span for operand 0']
    #allocation1 [shape = 'u8[1024]{0}', space=vmem, size = 0x400, scoped, tag = 'packed  for operand 0']
    #allocation2 [shape = 'u8[4096]{0}', space=vmem, size = 0x1000, scoped, tag = 'operand span for operand 1']
    #allocation3 [shape = 'u8[1024]{0}', space=vmem, size = 0x400, scoped, tag = 'packed  for operand 1']
    loop: start=0, step=1, limit=6
    $region2: #{reverse} parent=1 // loop_pre_header
      _
    $region3: #{reverse} parent=1 // loop_header
      %s6 = sphi 0, %s10
      %p7 = scmp.ge.s32.totalorder %s6, 6
      %s13 = sphi 0, %s25
      %s14 = sphi 0, %s21
      %s15 = sphi 0, %s13
      %s16 = sphi 0, %s14
      %s17 = sphi 0, %s15
      %s18 = sphi 0, %s16
    $region4: #{reverse} parent=1 // loop_header_branch
      %9 = sbr.rel (%p7) target = $region8
    $region5: #{reverse} parent=1 // loop_body
      %s11 = ssub.s32 %s6, 1
      %s12 = ssub.s32 %s6, 2
      %s19 = sadd.s32 1, %s14
      %p20 = scmp.ge.s32.totalorder %s19, 4
      %s21 = scalar_select %p20, 0, %s19
      %s22 = sadd.s32 1, %s13
      %s23 = scalar_select %p20, %s22, %s13
      %p24 = scmp.ge.s32.totalorder %s23, 1
      %s25 = scalar_select %p24, 0, %s23
      %p26 = scmp.le.s32.totalorder 1, %s6
      %p27 = scmp.lt.s32.totalorder %s6, 5
      %p28 = pnand %p26, %p27
      %p29 = pneg %p28
      // Predicated region
      $region9: #{reverse} parent=5 // pred_check
        _
      $region10: #{reverse} parent=5 // pred_check_branch
        %31 = sbr.rel (%p28) target = $region12
      $region11: #{reverse} parent=5 // pred_region
        %s32 = ssub.s32 %s6, 1
      $region12: #{reverse} parent=5 // pred_fallthru
        _
      %p33 = scmp.lt.s32.totalorder %s6, 4
      // Predicated region
      $region13: #{reverse} parent=5 // pred_check
        %p34 = pneg %p33
      $region14: #{reverse} parent=5 // pred_check_branch
        %36 = sbr.rel (%p34) target = $region16
      $region15: #{reverse} parent=5 // pred_region
        %s37 = sand.u32 %s6, 1
        %s38 = sand.u32 %s6, 1
        %s39 = scalar_lea.vmem [#allocation1], %s38
        %s40 = ssub.s32 3, %s14
        %s41 = smul.addr %s13, 4
        %s42 = sadd.s32 %s40, %s41
        %s43 = scalar_lea.vmem %s0, %s42
        // Predicated region
        $region17: #{reverse} parent=15 // pred_check
          _
        $region18: #{reverse} parent=15 // pred_check_branch
          %45 = sbr.rel (0) target = $region20
        $region19: #{reverse} parent=15 // pred_region
          // Predicated region
          $region21: #{reverse} parent=19 // pred_check
            _
          $region22: #{reverse} parent=19 // pred_check_branch
            %47 = sbr.rel target = $region24
          $region23: #{reverse} parent=19 // pred_region
            // Predicated region
            $region36: #{reverse} parent=23 // pred_check
              _
            $region37: #{reverse} parent=23 // pred_check_branch
              %63 = sbr.rel (0) target = $region39
            $region38: #{reverse} parent=23 // pred_region
              %s65 = ssub.s32 2, 1
              loop: start=0, step=1, limit=1
              $region40: #{reverse} parent=38 // loop_pre_header
                _
              $region41: #{reverse} parent=38 // loop_header
                %s67 = sphi 0, %s71
                %p68 = scmp.ge.s32.totalorder %s67, 1
                %s72 = sphi %s43, %s43
                %s73 = sphi %s39, %s39
              $region42: #{reverse} parent=38 // loop_header_branch
                %70 = sbr.rel (%p68) target = $region46
              $region43: #{reverse} parent=38 // loop_body
                %v74 = vld [vmem:[%s72] sm:%s65]
                %75 = vst [vmem:[%s73] sm:%s65] %v74
              $region44: #{reverse} parent=38 // loop_footer
                %s71 = sadd.s32 1, %s67
              $region45: #{reverse} parent=38 // loop_footer_branch
                %66 = sbr.rel target = $region41
              $region46: #{reverse} parent=38 // loop_exit
                _
            $region39: #{reverse} parent=23 // pred_fallthru
              _
          $region24: #{reverse} parent=19 // pred_fallthru
            _
          // Predicated region
          $region25: #{reverse} parent=19 // pred_check
            _
          $region26: #{reverse} parent=19 // pred_check_branch
            %49 = sbr.rel (0) target = $region28
          $region27: #{reverse} parent=19 // pred_region
            %s51 = ssub.s32 2, 1
            loop: start=0, step=1, limit=1
            $region29: #{reverse} parent=27 // loop_pre_header
              _
            $region30: #{reverse} parent=27 // loop_header
              %s53 = sphi 0, %s57
              %p54 = scmp.ge.s32.totalorder %s53, 1
              %s58 = sphi %s43, %s43
              %s59 = sphi %s39, %s39
            $region31: #{reverse} parent=27 // loop_header_branch
              %56 = sbr.rel (%p54) target = $region35
            $region32: #{reverse} parent=27 // loop_body
              %v60 = vld [vmem:[%s58] sm:%s51]
              %61 = vst [vmem:[%s59] sm:%s51] %v60
            $region33: #{reverse} parent=27 // loop_footer
              %s57 = sadd.s32 1, %s53
            $region34: #{reverse} parent=27 // loop_footer_branch
              %52 = sbr.rel target = $region30
            $region35: #{reverse} parent=27 // loop_exit
              _
          $region28: #{reverse} parent=19 // pred_fallthru
            _
        $region20: #{reverse} parent=15 // pred_fallthru
          _
        %76 = vnop
      $region16: #{reverse} parent=5 // pred_fallthru
        _
      %p77 = scmp.le.s32.totalorder 1, %s6
      %p78 = scmp.lt.s32.totalorder %s6, 5
      %p79 = pnand %p77, %p78
      %p80 = pneg %p79
      // Predicated region
      $region47: #{reverse} parent=5 // pred_check
        _
      $region48: #{reverse} parent=5 // pred_check_branch
        %82 = sbr.rel (%p79) target = $region50
      $region49: #{reverse} parent=5 // pred_region
        %s83 = ssub.s32 %s6, 1
        %s84 = sand.u32 %s11, 1
        %s85 = sand.u32 %s11, 1
        %s86 = scalar_lea.vmem [#allocation1], %s85
        %s87 = sand.u32 %s11, 1
        %s88 = sand.u32 %s11, 1
        %s89 = scalar_lea.vmem [#allocation1], %s88
        %s90 = sand.u32 %s11, 1
        %s91 = sand.u32 %s11, 1
        %s92 = scalar_lea.vmem [#allocation3], %s91
        %s94 = smul.u32 1, 2
        %s95 = sshll.u32 1, %s94
        %s96 = ssub.s32 %s95, 1
        %s97 = sshrl.u32 %s96, 1
        %s98 = sor.u32 %s96, %s97
        %s99 = sand.u32 %s98, 85
        %s100 = sshrl.u32 %s99, 1
        %s101 = sor.u32 %s99, %s100
        %s102 = sand.u32 51, %s101
        %s103 = sshrl.u32 %s102, 2
        %s104 = sor.u32 %s102, %s103
        %s105 = sand.u32 15, %s104
        %v106 = vld [vmem:[%s89] sm:%s105]
        %v107 = vunpack.c.l.bf16 %v106
        %v108 = vunpack.c.h.bf16 %v106
        %109 = vst [vmem:[#allocation0] sm:%s96] %v107
        %s110 = ssub.s32 3, %s16
        %v111 = vld [vmem:[#allocation0] sm:$0xff]
        %112 = vperm.xlu0 %4, %v111
        %v113 = vpop.permute.xlu0 %112
        %114 = vst [vmem:[#allocation2] sm:$0xff] %v113
        %s116 = smul.u32 1, 2
        %s117 = sshll.u32 1, %s116
        %s118 = ssub.s32 %s117, 1
        %s119 = sshrl.u32 %s116, 1
        %v120 = vld [vmem:[#allocation2] sm:%s118]
        %v121 = vpack.c.bf16 0.0, %v120
        %s122 = sshll.u32 1, %s119
        %s123 = ssub.s32 %s122, 1
        %124 = vst [vmem:[%s92] sm:%s123] %v121
        %s125 = sand.u32 %s11, 1
        %s126 = sand.u32 %s11, 1
        %s127 = scalar_lea.vmem [#allocation3], %s126
        %s128 = smul.addr %s15, 4
        %s129 = sadd.s32 %s16, %s128
        %s130 = scalar_lea.vmem %s1, %s129
        // Predicated region
        $region51: #{reverse} parent=49 // pred_check
          _
        $region52: #{reverse} parent=49 // pred_check_branch
          %132 = sbr.rel (0) target = $region54
        $region53: #{reverse} parent=49 // pred_region
          // Predicated region
          $region55: #{reverse} parent=53 // pred_check
            _
          $region56: #{reverse} parent=53 // pred_check_branch
            %134 = sbr.rel target = $region58
          $region57: #{reverse} parent=53 // pred_region
            // Predicated region
            $region70: #{reverse} parent=57 // pred_check
              _
            $region71: #{reverse} parent=57 // pred_check_branch
              %150 = sbr.rel (0) target = $region73
            $region72: #{reverse} parent=57 // pred_region
              %s152 = ssub.s32 2, 1
              loop: start=0, step=1, limit=1
              $region74: #{reverse} parent=72 // loop_pre_header
                _
              $region75: #{reverse} parent=72 // loop_header
                %s154 = sphi 0, %s158
                %p155 = scmp.ge.s32.totalorder %s154, 1
                %s159 = sphi %s127, %s127
                %s160 = sphi %s130, %s130
              $region76: #{reverse} parent=72 // loop_header_branch
                %157 = sbr.rel (%p155) target = $region80
              $region77: #{reverse} parent=72 // loop_body
                %v161 = vld [vmem:[%s159] sm:%s152]
                %162 = vst [vmem:[%s160] sm:%s152] %v161
              $region78: #{reverse} parent=72 // loop_footer
                %s158 = sadd.s32 1, %s154
              $region79: #{reverse} parent=72 // loop_footer_branch
                %153 = sbr.rel target = $region75
              $region80: #{reverse} parent=72 // loop_exit
                _
            $region73: #{reverse} parent=57 // pred_fallthru
              _
          $region58: #{reverse} parent=53 // pred_fallthru
            _
          // Predicated region
          $region59: #{reverse} parent=53 // pred_check
            _
          $region60: #{reverse} parent=53 // pred_check_branch
            %136 = sbr.rel (0) target = $region62
          $region61: #{reverse} parent=53 // pred_region
            %s138 = ssub.s32 2, 1
            loop: start=0, step=1, limit=1
            $region63: #{reverse} parent=61 // loop_pre_header
              _
            $region64: #{reverse} parent=61 // loop_header
              %s140 = sphi 0, %s144
              %p141 = scmp.ge.s32.totalorder %s140, 1
              %s145 = sphi %s127, %s127
              %s146 = sphi %s130, %s130
            $region65: #{reverse} parent=61 // loop_header_branch
              %143 = sbr.rel (%p141) target = $region69
            $region66: #{reverse} parent=61 // loop_body
              %v147 = vld [vmem:[%s145] sm:%s138]
              %148 = vst [vmem:[%s146] sm:%s138] %v147
            $region67: #{reverse} parent=61 // loop_footer
              %s144 = sadd.s32 1, %s140
            $region68: #{reverse} parent=61 // loop_footer_branch
              %139 = sbr.rel target = $region64
            $region69: #{reverse} parent=61 // loop_exit
              _
          $region62: #{reverse} parent=53 // pred_fallthru
            _
        $region54: #{reverse} parent=49 // pred_fallthru
          _
        %163 = vnop
      $region50: #{reverse} parent=5 // pred_fallthru
        _
      %p164 = scmp.le.s32.totalorder 2, %s6
      // Predicated region
      $region81: #{reverse} parent=5 // pred_check
        %p165 = pneg %p164
      $region82: #{reverse} parent=5 // pred_check_branch
        %167 = sbr.rel (%p165) target = $region84
      $region83: #{reverse} parent=5 // pred_region
        %s168 = ssub.s32 %s6, 2
        %s169 = sand.u32 %s12, 1
        %s170 = sand.u32 %s12, 1
        %s171 = scalar_lea.vmem [#allocation3], %s170
      $region84: #{reverse} parent=5 // pred_fallthru
        _
    $region6: #{reverse} parent=1 // loop_footer
      %s10 = sadd.s32 1, %s6
    $region7: #{reverse} parent=1 // loop_footer_branch
      %5 = sbr.rel target = $region3
    $region8: #{reverse} parent=1 // loop_exit
      _

// kernel: custom-call
$region0: #{custom-call}
  %s0 = inlined_call_operand.vmem [shape: f32[2,512,17], index: 0, kind: input, shape index: {}]
  %s1 = inlined_call_operand.vmem [shape: f32[2,512,17], index: 1, kind: input, shape index: {}]
  %s2 = inlined_call_operand.vmem [shape: c64[2,512,17], index: 2, kind: output, shape index: {}]
  %s4 = scalar_lea.vmem %s2, 1024
  %v5 = vld [vmem:[%s0] sm:$0xff]
  %6 = vst [vmem:[%s2] sm:$0xff] %v5
  %s7 = scalar_lea.vmem %s2, 8
  %s8 = scalar_lea.vmem %s0, 8
  %v9 = vld [vmem:[%s8] sm:$0xff]
  %10 = vst [vmem:[%s7] sm:$0xff] %v9
  %s11 = scalar_lea.vmem %s2, 16
  %s12 = scalar_lea.vmem %s0, 16
  %v13 = vld [vmem:[%s12] sm:$0xff]
  %14 = vst [vmem:[%s11] sm:$0xff] %v13
  %s15 = scalar_lea.vmem %s2, 24
  %s16 = scalar_lea.vmem %s0, 24
  %v17 = vld [vmem:[%s16] sm:$0xff]
  %18 = vst [vmem:[%s15] sm:$0xff] %v17
  %s19 = scalar_lea.vmem %s2, 32
  %s20 = scalar_lea.vmem %s0, 32
  %v21 = vld [vmem:[%s20] sm:$0xff]
  %22 = vst [vmem:[%s19] sm:$0xff] %v21
  %s23 = scalar_lea.vmem %s2, 40
  %s24 = scalar_lea.vmem %s0, 40
  %v25 = vld [vmem:[%s24] sm:$0xff]
  %26 = vst [vmem:[%s23] sm:$0xff] %v25
  %s27 = scalar_lea.vmem %s2, 48
  %s28 = scalar_lea.vmem %s0, 48
  %v29 = vld [vmem:[%s28] sm:$0xff]
  %30 = vst [vmem:[%s27] sm:$0xff] %v29
  %s31 = scalar_lea.vmem %s2, 56
  %s32 = scalar_lea.vmem %s0, 56
  %v33 = vld [vmem:[%s32] sm:$0xff]
  %34 = vst [vmem:[%s31] sm:$0xff] %v33
  %s35 = scalar_lea.vmem %s2, 64
  %s36 = scalar_lea.vmem %s0, 64
  %v37 = vld [vmem:[%s36] sm:$0xff]
  %38 = vst [vmem:[%s35] sm:$0xff] %v37
  %s39 = scalar_lea.vmem %s2, 72
  %s40 = scalar_lea.vmem %s0, 72
  %v41 = vld [vmem:[%s40] sm:$0xff]
  %42 = vst [vmem:[%s39] sm:$0xff] %v41
  %s43 = scalar_lea.vmem %s2, 80
  %s44 = scalar_lea.vmem %s0, 80
  %v45 = vld [vmem:[%s44] sm:$0xff]
  %46 = vst [vmem:[%s43] sm:$0xff] %v45
  %s47 = scalar_lea.vmem %s2, 88
  %s48 = scalar_lea.vmem %s0, 88
  %v49 = vld [vmem:[%s48] sm:$0xff]
  %50 = vst [vmem:[%s47] sm:$0xff] %v49
  %s51 = scalar_lea.vmem %s2, 96
  %s52 = scalar_lea.vmem %s0, 96
  %v53 = vld [vmem:[%s52] sm:$0xff]
  %54 = vst [vmem:[%s51] sm:$0xff] %v53
  %s55 = scalar_lea.vmem %s2, 104
  %s56 = scalar_lea.vmem %s0, 104
  %v57 = vld [vmem:[%s56] sm:$0xff]
  %58 = vst [vmem:[%s55] sm:$0xff] %v57
  %s59 = scalar_lea.vmem %s2, 112
  %s60 = scalar_lea.vmem %s0, 112
  %v61 = vld [vmem:[%s60] sm:$0xff]
  %62 = vst [vmem:[%s59] sm:$0xff] %v61
  %s63 = scalar_lea.vmem %s2, 120
  %s64 = scalar_lea.vmem %s0, 120
  %v65 = vld [vmem:[%s64] sm:$0xff]
  %66 = vst [vmem:[%s63] sm:$0xff] %v65
  %s67 = scalar_lea.vmem %s2, 128
  %s68 = scalar_lea.vmem %s0, 128
  %v69 = vld [vmem:[%s68] sm:$0xff]
  %70 = vst [vmem:[%s67] sm:$0xff] %v69
  %s71 = scalar_lea.vmem %s2, 136
  %s72 = scalar_lea.vmem %s0, 136
  %v73 = vld [vmem:[%s72] sm:$0xff]
  %74 = vst [vmem:[%s71] sm:$0xff] %v73
  %s75 = scalar_lea.vmem %s2, 144
  %s76 = scalar_lea.vmem %s0, 144
  %v77 = vld [vmem:[%s76] sm:$0xff]
  %78 = vst [vmem:[%s75] sm:$0xff] %v77
  %s79 = scalar_lea.vmem %s2, 152
  %s80 = scalar_lea.vmem %s0, 152
  %v81 = vld [vmem:[%s80] sm:$0xff]
  %82 = vst [vmem:[%s79] sm:$0xff] %v81
  %s83 = scalar_lea.vmem %s2, 160
  %s84 = scalar_lea.vmem %s0, 160
  %v85 = vld [vmem:[%s84] sm:$0xff]
  %86 = vst [vmem:[%s83] sm:$0xff] %v85
  %s87 = scalar_lea.vmem %s2, 168
  %s88 = scalar_lea.vmem %s0, 168
  %v89 = vld [vmem:[%s88] sm:$0xff]
  %90 = vst [vmem:[%s87] sm:$0xff] %v89
  %s91 = scalar_lea.vmem %s2, 176
  %s92 = scalar_lea.vmem %s0, 176
  %v93 = vld [vmem:[%s92] sm:$0xff]
  %94 = vst [vmem:[%s91] sm:$0xff] %v93
  %s95 = scalar_lea.vmem %s2, 184
  %s96 = scalar_lea.vmem %s0, 184
  %v97 = vld [vmem:[%s96] sm:$0xff]
  %98 = vst [vmem:[%s95] sm:$0xff] %v97
  %s99 = scalar_lea.vmem %s2, 192
  %s100 = scalar_lea.vmem %s0, 192
  %v101 = vld [vmem:[%s100] sm:$0xff]
  %102 = vst [vmem:[%s99] sm:$0xff] %v101
  %s103 = scalar_lea.vmem %s2, 200
  %s104 = scalar_lea.vmem %s0, 200
  %v105 = vld [vmem:[%s104] sm:$0xff]
  %106 = vst [vmem:[%s103] sm:$0xff] %v105
  %s107 = scalar_lea.vmem %s2, 208
  %s108 = scalar_lea.vmem %s0, 208
  %v109 = vld [vmem:[%s108] sm:$0xff]
  %110 = vst [vmem:[%s107] sm:$0xff] %v109
  %s111 = scalar_lea.vmem %s2, 216
  %s112 = scalar_lea.vmem %s0, 216
  %v113 = vld [vmem:[%s112] sm:$0xff]
  %114 = vst [vmem:[%s111] sm:$0xff] %v113
  %s115 = scalar_lea.vmem %s2, 224
  %s116 = scalar_lea.vmem %s0, 224
  %v117 = vld [vmem:[%s116] sm:$0xff]
  %118 = vst [vmem:[%s115] sm:$0xff] %v117
  %s119 = scalar_lea.vmem %s2, 232
  %s120 = scalar_lea.vmem %s0, 232
  %v121 = vld [vmem:[%s120] sm:$0xff]
  %122 = vst [vmem:[%s119] sm:$0xff] %v121
  %s123 = scalar_lea.vmem %s2, 240
  %s124 = scalar_lea.vmem %s0, 240
  %v125 = vld [vmem:[%s124] sm:$0xff]
  %126 = vst [vmem:[%s123] sm:$0xff] %v125
  %s127 = scalar_lea.vmem %s2, 248
  %s128 = scalar_lea.vmem %s0, 248
  %v129 = vld [vmem:[%s128] sm:$0xff]
  %130 = vst [vmem:[%s127] sm:$0xff] %v129
  %s131 = scalar_lea.vmem %s2, 256
  %s132 = scalar_lea.vmem %s0, 256
  %v133 = vld [vmem:[%s132] sm:$0xff]
  %134 = vst [vmem:[%s131] sm:$0xff] %v133
  %s135 = scalar_lea.vmem %s2, 264
  %s136 = scalar_lea.vmem %s0, 264
  %v137 = vld [vmem:[%s136] sm:$0xff]
  %138 = vst [vmem:[%s135] sm:$0xff] %v137
  %s139 = scalar_lea.vmem %s2, 272
  %s140 = scalar_lea.vmem %s0, 272
  %v141 = vld [vmem:[%s140] sm:$0xff]
  %142 = vst [vmem:[%s139] sm:$0xff] %v141
  %s143 = scalar_lea.vmem %s2, 280
  %s144 = scalar_lea.vmem %s0, 280
  %v145 = vld [vmem:[%s144] sm:$0xff]
  %146 = vst [vmem:[%s143] sm:$0xff] %v145
  %s147 = scalar_lea.vmem %s2, 288
  %s148 = scalar_lea.vmem %s0, 288
  %v149 = vld [vmem:[%s148] sm:$0xff]
  %150 = vst [vmem:[%s147] sm:$0xff] %v149
  %s151 = scalar_lea.vmem %s2, 296
  %s152 = scalar_lea.vmem %s0, 296
  %v153 = vld [vmem:[%s152] sm:$0xff]
  %154 = vst [vmem:[%s151] sm:$0xff] %v153
  %s155 = scalar_lea.vmem %s2, 304
  %s156 = scalar_lea.vmem %s0, 304
  %v157 = vld [vmem:[%s156] sm:$0xff]
  %158 = vst [vmem:[%s155] sm:$0xff] %v157
  %s159 = scalar_lea.vmem %s2, 312
  %s160 = scalar_lea.vmem %s0, 312
  %v161 = vld [vmem:[%s160] sm:$0xff]
  %162 = vst [vmem:[%s159] sm:$0xff] %v161
  %s163 = scalar_lea.vmem %s2, 320
  %s164 = scalar_lea.vmem %s0, 320
  %v165 = vld [vmem:[%s164] sm:$0xff]
  %166 = vst [vmem:[%s163] sm:$0xff] %v165
  %s167 = scalar_lea.vmem %s2, 328
  %s168 = scalar_lea.vmem %s0, 328
  %v169 = vld [vmem:[%s168] sm:$0xff]
  %170 = vst [vmem:[%s167] sm:$0xff] %v169
  %s171 = scalar_lea.vmem %s2, 336
  %s172 = scalar_lea.vmem %s0, 336
  %v173 = vld [vmem:[%s172] sm:$0xff]
  %174 = vst [vmem:[%s171] sm:$0xff] %v173
  %s175 = scalar_lea.vmem %s2, 344
  %s176 = scalar_lea.vmem %s0, 344
  %v177 = vld [vmem:[%s176] sm:$0xff]
  %178 = vst [vmem:[%s175] sm:$0xff] %v177
  %s179 = scalar_lea.vmem %s2, 352
  %s180 = scalar_lea.vmem %s0, 352
  %v181 = vld [vmem:[%s180] sm:$0xff]
  %182 = vst [vmem:[%s179] sm:$0xff] %v181
  %s183 = scalar_lea.vmem %s2, 360
  %s184 = scalar_lea.vmem %s0, 360
  %v185 = vld [vmem:[%s184] sm:$0xff]
  %186 = vst [vmem:[%s183] sm:$0xff] %v185
  %s187 = scalar_lea.vmem %s2, 368
  %s188 = scalar_lea.vmem %s0, 368
  %v189 = vld [vmem:[%s188] sm:$0xff]
  %190 = vst [vmem:[%s187] sm:$0xff] %v189
  %s191 = scalar_lea.vmem %s2, 376
  %s192 = scalar_lea.vmem %s0, 376
  %v193 = vld [vmem:[%s192] sm:$0xff]
  %194 = vst [vmem:[%s191] sm:$0xff] %v193
  %s195 = scalar_lea.vmem %s2, 384
  %s196 = scalar_lea.vmem %s0, 384
  %v197 = vld [vmem:[%s196] sm:$0xff]
  %198 = vst [vmem:[%s195] sm:$0xff] %v197
  %s199 = scalar_lea.vmem %s2, 392
  %s200 = scalar_lea.vmem %s0, 392
  %v201 = vld [vmem:[%s200] sm:$0xff]
  %202 = vst [vmem:[%s199] sm:$0xff] %v201
  %s203 = scalar_lea.vmem %s2, 400
  %s204 = scalar_lea.vmem %s0, 400
  %v205 = vld [vmem:[%s204] sm:$0xff]
  %206 = vst [vmem:[%s203] sm:$0xff] %v205
  %s207 = scalar_lea.vmem %s2, 408
  %s208 = scalar_lea.vmem %s0, 408
  %v209 = vld [vmem:[%s208] sm:$0xff]
  %210 = vst [vmem:[%s207] sm:$0xff] %v209
  %s211 = scalar_lea.vmem %s2, 416
  %s212 = scalar_lea.vmem %s0, 416
  %v213 = vld [vmem:[%s212] sm:$0xff]
  %214 = vst [vmem:[%s211] sm:$0xff] %v213
  %s215 = scalar_lea.vmem %s2, 424
  %s216 = scalar_lea.vmem %s0, 424
  %v217 = vld [vmem:[%s216] sm:$0xff]
  %218 = vst [vmem:[%s215] sm:$0xff] %v217
  %s219 = scalar_lea.vmem %s2, 432
  %s220 = scalar_lea.vmem %s0, 432
  %v221 = vld [vmem:[%s220] sm:$0xff]
  %222 = vst [vmem:[%s219] sm:$0xff] %v221
  %s223 = scalar_lea.vmem %s2, 440
  %s224 = scalar_lea.vmem %s0, 440
  %v225 = vld [vmem:[%s224] sm:$0xff]
  %226 = vst [vmem:[%s223] sm:$0xff] %v225
  %s227 = scalar_lea.vmem %s2, 448
  %s228 = scalar_lea.vmem %s0, 448
  %v229 = vld [vmem:[%s228] sm:$0xff]
  %230 = vst [vmem:[%s227] sm:$0xff] %v229
  %s231 = scalar_lea.vmem %s2, 456
  %s232 = scalar_lea.vmem %s0, 456
  %v233 = vld [vmem:[%s232] sm:$0xff]
  %234 = vst [vmem:[%s231] sm:$0xff] %v233
  %s235 = scalar_lea.vmem %s2, 464
  %s236 = scalar_lea.vmem %s0, 464
  %v237 = vld [vmem:[%s236] sm:$0xff]
  %238 = vst [vmem:[%s235] sm:$0xff] %v237
  %s239 = scalar_lea.vmem %s2, 472
  %s240 = scalar_lea.vmem %s0, 472
  %v241 = vld [vmem:[%s240] sm:$0xff]
  %242 = vst [vmem:[%s239] sm:$0xff] %v241
  %s243 = scalar_lea.vmem %s2, 480
  %s244 = scalar_lea.vmem %s0, 480
  %v245 = vld [vmem:[%s244] sm:$0xff]
  %246 = vst [vmem:[%s243] sm:$0xff] %v245
  %s247 = scalar_lea.vmem %s2, 488
  %s248 = scalar_lea.vmem %s0, 488
  %v249 = vld [vmem:[%s248] sm:$0xff]
  %250 = vst [vmem:[%s247] sm:$0xff] %v249
  %s251 = scalar_lea.vmem %s2, 496
  %s252 = scalar_lea.vmem %s0, 496
  %v253 = vld [vmem:[%s252] sm:$0xff]
  %254 = vst [vmem:[%s251] sm:$0xff] %v253
  %s255 = scalar_lea.vmem %s2, 504
  %s256 = scalar_lea.vmem %s0, 504
  %v257 = vld [vmem:[%s256] sm:$0xff]
  %258 = vst [vmem:[%s255] sm:$0xff] %v257
  %s259 = scalar_lea.vmem %s2, 512
  %s260 = scalar_lea.vmem %s0, 512
  %v261 = vld [vmem:[%s260] sm:$0xff]
  %262 = vst [vmem:[%s259] sm:$0xff] %v261
  %s263 = scalar_lea.vmem %s2, 520
  %s264 = scalar_lea.vmem %s0, 520
  %v265 = vld [vmem:[%s264] sm:$0xff]
  %266 = vst [vmem:[%s263] sm:$0xff] %v265
  %s267 = scalar_lea.vmem %s2, 528
  %s268 = scalar_lea.vmem %s0, 528
  %v269 = vld [vmem:[%s268] sm:$0xff]
  %270 = vst [vmem:[%s267] sm:$0xff] %v269
  %s271 = scalar_lea.vmem %s2, 536
  %s272 = scalar_lea.vmem %s0, 536
  %v273 = vld [vmem:[%s272] sm:$0xff]
  %274 = vst [vmem:[%s271] sm:$0xff] %v273
  %s275 = scalar_lea.vmem %s2, 544
  %s276 = scalar_lea.vmem %s0, 544
  %v277 = vld [vmem:[%s276] sm:$0xff]
  %278 = vst [vmem:[%s275] sm:$0xff] %v277
  %s279 = scalar_lea.vmem %s2, 552
  %s280 = scalar_lea.vmem %s0, 552
  %v281 = vld [vmem:[%s280] sm:$0xff]
  %282 = vst [vmem:[%s279] sm:$0xff] %v281
  %s283 = scalar_lea.vmem %s2, 560
  %s284 = scalar_lea.vmem %s0, 560
  %v285 = vld [vmem:[%s284] sm:$0xff]
  %286 = vst [vmem:[%s283] sm:$0xff] %v285
  %s287 = scalar_lea.vmem %s2, 568
  %s288 = scalar_lea.vmem %s0, 568
  %v289 = vld [vmem:[%s288] sm:$0xff]
  %290 = vst [vmem:[%s287] sm:$0xff] %v289
  %s291 = scalar_lea.vmem %s2, 576
  %s292 = scalar_lea.vmem %s0, 576
  %v293 = vld [vmem:[%s292] sm:$0xff]
  %294 = vst [vmem:[%s291] sm:$0xff] %v293
  %s295 = scalar_lea.vmem %s2, 584
  %s296 = scalar_lea.vmem %s0, 584
  %v297 = vld [vmem:[%s296] sm:$0xff]
  %298 = vst [vmem:[%s295] sm:$0xff] %v297
  %s299 = scalar_lea.vmem %s2, 592
  %s300 = scalar_lea.vmem %s0, 592
  %v301 = vld [vmem:[%s300] sm:$0xff]
  %302 = vst [vmem:[%s299] sm:$0xff] %v301
  %s303 = scalar_lea.vmem %s2, 600
  %s304 = scalar_lea.vmem %s0, 600
  %v305 = vld [vmem:[%s304] sm:$0xff]
  %306 = vst [vmem:[%s303] sm:$0xff] %v305
  %s307 = scalar_lea.vmem %s2, 608
  %s308 = scalar_lea.vmem %s0, 608
  %v309 = vld [vmem:[%s308] sm:$0xff]
  %310 = vst [vmem:[%s307] sm:$0xff] %v309
  %s311 = scalar_lea.vmem %s2, 616
  %s312 = scalar_lea.vmem %s0, 616
  %v313 = vld [vmem:[%s312] sm:$0xff]
  %314 = vst [vmem:[%s311] sm:$0xff] %v313
  %s315 = scalar_lea.vmem %s2, 624
  %s316 = scalar_lea.vmem %s0, 624
  %v317 = vld [vmem:[%s316] sm:$0xff]
  %318 = vst [vmem:[%s315] sm:$0xff] %v317
  %s319 = scalar_lea.vmem %s2, 632
  %s320 = scalar_lea.vmem %s0, 632
  %v321 = vld [vmem:[%s320] sm:$0xff]
  %322 = vst [vmem:[%s319] sm:$0xff] %v321
  %s323 = scalar_lea.vmem %s2, 640
  %s324 = scalar_lea.vmem %s0, 640
  %v325 = vld [vmem:[%s324] sm:$0xff]
  %326 = vst [vmem:[%s323] sm:$0xff] %v325
  %s327 = scalar_lea.vmem %s2, 648
  %s328 = scalar_lea.vmem %s0, 648
  %v329 = vld [vmem:[%s328] sm:$0xff]
  %330 = vst [vmem:[%s327] sm:$0xff] %v329
  %s331 = scalar_lea.vmem %s2, 656
  %s332 = scalar_lea.vmem %s0, 656
  %v333 = vld [vmem:[%s332] sm:$0xff]
  %334 = vst [vmem:[%s331] sm:$0xff] %v333
  %s335 = scalar_lea.vmem %s2, 664
  %s336 = scalar_lea.vmem %s0, 664
  %v337 = vld [vmem:[%s336] sm:$0xff]
  %338 = vst [vmem:[%s335] sm:$0xff] %v337
  %s339 = scalar_lea.vmem %s2, 672
  %s340 = scalar_lea.vmem %s0, 672
  %v341 = vld [vmem:[%s340] sm:$0xff]
  %342 = vst [vmem:[%s339] sm:$0xff] %v341
  %s343 = scalar_lea.vmem %s2, 680
  %s344 = scalar_lea.vmem %s0, 680
  %v345 = vld [vmem:[%s344] sm:$0xff]
  %346 = vst [vmem:[%s343] sm:$0xff] %v345
  %s347 = scalar_lea.vmem %s2, 688
  %s348 = scalar_lea.vmem %s0, 688
  %v349 = vld [vmem:[%s348] sm:$0xff]
  %350 = vst [vmem:[%s347] sm:$0xff] %v349
  %s351 = scalar_lea.vmem %s2, 696
  %s352 = scalar_lea.vmem %s0, 696
  %v353 = vld [vmem:[%s352] sm:$0xff]
  %354 = vst [vmem:[%s351] sm:$0xff] %v353
  %s355 = scalar_lea.vmem %s2, 704
  %s356 = scalar_lea.vmem %s0, 704
  %v357 = vld [vmem:[%s356] sm:$0xff]
  %358 = vst [vmem:[%s355] sm:$0xff] %v357
  %s359 = scalar_lea.vmem %s2, 712
  %s360 = scalar_lea.vmem %s0, 712
  %v361 = vld [vmem:[%s360] sm:$0xff]
  %362 = vst [vmem:[%s359] sm:$0xff] %v361
  %s363 = scalar_lea.vmem %s2, 720
  %s364 = scalar_lea.vmem %s0, 720
  %v365 = vld [vmem:[%s364] sm:$0xff]
  %366 = vst [vmem:[%s363] sm:$0xff] %v365
  %s367 = scalar_lea.vmem %s2, 728
  %s368 = scalar_lea.vmem %s0, 728
  %v369 = vld [vmem:[%s368] sm:$0xff]
  %370 = vst [vmem:[%s367] sm:$0xff] %v369
  %s371 = scalar_lea.vmem %s2, 736
  %s372 = scalar_lea.vmem %s0, 736
  %v373 = vld [vmem:[%s372] sm:$0xff]
  %374 = vst [vmem:[%s371] sm:$0xff] %v373
  %s375 = scalar_lea.vmem %s2, 744
  %s376 = scalar_lea.vmem %s0, 744
  %v377 = vld [vmem:[%s376] sm:$0xff]
  %378 = vst [vmem:[%s375] sm:$0xff] %v377
  %s379 = scalar_lea.vmem %s2, 752
  %s380 = scalar_lea.vmem %s0, 752
  %v381 = vld [vmem:[%s380] sm:$0xff]
  %382 = vst [vmem:[%s379] sm:$0xff] %v381
  %s383 = scalar_lea.vmem %s2, 760
  %s384 = scalar_lea.vmem %s0, 760
  %v385 = vld [vmem:[%s384] sm:$0xff]
  %386 = vst [vmem:[%s383] sm:$0xff] %v385
  %s387 = scalar_lea.vmem %s2, 768
  %s388 = scalar_lea.vmem %s0, 768
  %v389 = vld [vmem:[%s388] sm:$0xff]
  %390 = vst [vmem:[%s387] sm:$0xff] %v389
  %s391 = scalar_lea.vmem %s2, 776
  %s392 = scalar_lea.vmem %s0, 776
  %v393 = vld [vmem:[%s392] sm:$0xff]
  %394 = vst [vmem:[%s391] sm:$0xff] %v393
  %s395 = scalar_lea.vmem %s2, 784
  %s396 = scalar_lea.vmem %s0, 784
  %v397 = vld [vmem:[%s396] sm:$0xff]
  %398 = vst [vmem:[%s395] sm:$0xff] %v397
  %s399 = scalar_lea.vmem %s2, 792
  %s400 = scalar_lea.vmem %s0, 792
  %v401 = vld [vmem:[%s400] sm:$0xff]
  %402 = vst [vmem:[%s399] sm:$0xff] %v401
  %s403 = scalar_lea.vmem %s2, 800
  %s404 = scalar_lea.vmem %s0, 800
  %v405 = vld [vmem:[%s404] sm:$0xff]
  %406 = vst [vmem:[%s403] sm:$0xff] %v405
  %s407 = scalar_lea.vmem %s2, 808
  %s408 = scalar_lea.vmem %s0, 808
  %v409 = vld [vmem:[%s408] sm:$0xff]
  %410 = vst [vmem:[%s407] sm:$0xff] %v409
  %s411 = scalar_lea.vmem %s2, 816
  %s412 = scalar_lea.vmem %s0, 816
  %v413 = vld [vmem:[%s412] sm:$0xff]
  %414 = vst [vmem:[%s411] sm:$0xff] %v413
  %s415 = scalar_lea.vmem %s2, 824
  %s416 = scalar_lea.vmem %s0, 824
  %v417 = vld [vmem:[%s416] sm:$0xff]
  %418 = vst [vmem:[%s415] sm:$0xff] %v417
  %s419 = scalar_lea.vmem %s2, 832
  %s420 = scalar_lea.vmem %s0, 832
  %v421 = vld [vmem:[%s420] sm:$0xff]
  %422 = vst [vmem:[%s419] sm:$0xff] %v421
  %s423 = scalar_lea.vmem %s2, 840
  %s424 = scalar_lea.vmem %s0, 840
  %v425 = vld [vmem:[%s424] sm:$0xff]
  %426 = vst [vmem:[%s423] sm:$0xff] %v425
  %s427 = scalar_lea.vmem %s2, 848
  %s428 = scalar_lea.vmem %s0, 848
  %v429 = vld [vmem:[%s428] sm:$0xff]
  %430 = vst [vmem:[%s427] sm:$0xff] %v429
  %s431 = scalar_lea.vmem %s2, 856
  %s432 = scalar_lea.vmem %s0, 856
  %v433 = vld [vmem:[%s432] sm:$0xff]
  %434 = vst [vmem:[%s431] sm:$0xff] %v433
  %s435 = scalar_lea.vmem %s2, 864
  %s436 = scalar_lea.vmem %s0, 864
  %v437 = vld [vmem:[%s436] sm:$0xff]
  %438 = vst [vmem:[%s435] sm:$0xff] %v437
  %s439 = scalar_lea.vmem %s2, 872
  %s440 = scalar_lea.vmem %s0, 872
  %v441 = vld [vmem:[%s440] sm:$0xff]
  %442 = vst [vmem:[%s439] sm:$0xff] %v441
  %s443 = scalar_lea.vmem %s2, 880
  %s444 = scalar_lea.vmem %s0, 880
  %v445 = vld [vmem:[%s444] sm:$0xff]
  %446 = vst [vmem:[%s443] sm:$0xff] %v445
  %s447 = scalar_lea.vmem %s2, 888
  %s448 = scalar_lea.vmem %s0, 888
  %v449 = vld [vmem:[%s448] sm:$0xff]
  %450 = vst [vmem:[%s447] sm:$0xff] %v449
  %s451 = scalar_lea.vmem %s2, 896
  %s452 = scalar_lea.vmem %s0, 896
  %v453 = vld [vmem:[%s452] sm:$0xff]
  %454 = vst [vmem:[%s451] sm:$0xff] %v453
  %s455 = scalar_lea.vmem %s2, 904
  %s456 = scalar_lea.vmem %s0, 904
  %v457 = vld [vmem:[%s456] sm:$0xff]
  %458 = vst [vmem:[%s455] sm:$0xff] %v457
  %s459 = scalar_lea.vmem %s2, 912
  %s460 = scalar_lea.vmem %s0, 912
  %v461 = vld [vmem:[%s460] sm:$0xff]
  %462 = vst [vmem:[%s459] sm:$0xff] %v461
  %s463 = scalar_lea.vmem %s2, 920
  %s464 = scalar_lea.vmem %s0, 920
  %v465 = vld [vmem:[%s464] sm:$0xff]
  %466 = vst [vmem:[%s463] sm:$0xff] %v465
  %s467 = scalar_lea.vmem %s2, 928
  %s468 = scalar_lea.vmem %s0, 928
  %v469 = vld [vmem:[%s468] sm:$0xff]
  %470 = vst [vmem:[%s467] sm:$0xff] %v469
  %s471 = scalar_lea.vmem %s2, 936
  %s472 = scalar_lea.vmem %s0, 936
  %v473 = vld [vmem:[%s472] sm:$0xff]
  %474 = vst [vmem:[%s471] sm:$0xff] %v473
  %s475 = scalar_lea.vmem %s2, 944
  %s476 = scalar_lea.vmem %s0, 944
  %v477 = vld [vmem:[%s476] sm:$0xff]
  %478 = vst [vmem:[%s475] sm:$0xff] %v477
  %s479 = scalar_lea.vmem %s2, 952
  %s480 = scalar_lea.vmem %s0, 952
  %v481 = vld [vmem:[%s480] sm:$0xff]
  %482 = vst [vmem:[%s479] sm:$0xff] %v481
  %s483 = scalar_lea.vmem %s2, 960
  %s484 = scalar_lea.vmem %s0, 960
  %v485 = vld [vmem:[%s484] sm:$0xff]
  %486 = vst [vmem:[%s483] sm:$0xff] %v485
  %s487 = scalar_lea.vmem %s2, 968
  %s488 = scalar_lea.vmem %s0, 968
  %v489 = vld [vmem:[%s488] sm:$0xff]
  %490 = vst [vmem:[%s487] sm:$0xff] %v489
  %s491 = scalar_lea.vmem %s2, 976
  %s492 = scalar_lea.vmem %s0, 976
  %v493 = vld [vmem:[%s492] sm:$0xff]
  %494 = vst [vmem:[%s491] sm:$0xff] %v493
  %s495 = scalar_lea.vmem %s2, 984
  %s496 = scalar_lea.vmem %s0, 984
  %v497 = vld [vmem:[%s496] sm:$0xff]
  %498 = vst [vmem:[%s495] sm:$0xff] %v497
  %s499 = scalar_lea.vmem %s2, 992
  %s500 = scalar_lea.vmem %s0, 992
  %v501 = vld [vmem:[%s500] sm:$0xff]
  %502 = vst [vmem:[%s499] sm:$0xff] %v501
  %s503 = scalar_lea.vmem %s2, 1000
  %s504 = scalar_lea.vmem %s0, 1000
  %v505 = vld [vmem:[%s504] sm:$0xff]
  %506 = vst [vmem:[%s503] sm:$0xff] %v505
  %s507 = scalar_lea.vmem %s2, 1008
  %s508 = scalar_lea.vmem %s0, 1008
  %v509 = vld [vmem:[%s508] sm:$0xff]
  %510 = vst [vmem:[%s507] sm:$0xff] %v509
  %s511 = scalar_lea.vmem %s2, 1016
  %s512 = scalar_lea.vmem %s0, 1016
  %v513 = vld [vmem:[%s512] sm:$0xff]
  %514 = vst [vmem:[%s511] sm:$0xff] %v513
  %v515 = vld [vmem:[%s1] sm:$0xff]
  %516 = vst [vmem:[%s4] sm:$0xff] %v515
  %s517 = scalar_lea.vmem %s4, 8
  %s518 = scalar_lea.vmem %s1, 8
  %v519 = vld [vmem:[%s518] sm:$0xff]
  %520 = vst [vmem:[%s517] sm:$0xff] %v519
  %s521 = scalar_lea.vmem %s4, 16
  %s522 = scalar_lea.vmem %s1, 16
  %v523 = vld [vmem:[%s522] sm:$0xff]
  %524 = vst [vmem:[%s521] sm:$0xff] %v523
  %s525 = scalar_lea.vmem %s4, 24
  %s526 = scalar_lea.vmem %s1, 24
  %v527 = vld [vmem:[%s526] sm:$0xff]
  %528 = vst [vmem:[%s525] sm:$0xff] %v527
  %s529 = scalar_lea.vmem %s4, 32
  %s530 = scalar_lea.vmem %s1, 32
  %v531 = vld [vmem:[%s530] sm:$0xff]
  %532 = vst [vmem:[%s529] sm:$0xff] %v531
  %s533 = scalar_lea.vmem %s4, 40
  %s534 = scalar_lea.vmem %s1, 40
  %v535 = vld [vmem:[%s534] sm:$0xff]
  %536 = vst [vmem:[%s533] sm:$0xff] %v535
  %s537 = scalar_lea.vmem %s4, 48
  %s538 = scalar_lea.vmem %s1, 48
  %v539 = vld [vmem:[%s538] sm:$0xff]
  %540 = vst [vmem:[%s537] sm:$0xff] %v539
  %s541 = scalar_lea.vmem %s4, 56
  %s542 = scalar_lea.vmem %s1, 56
  %v543 = vld [vmem:[%s542] sm:$0xff]
  %544 = vst [vmem:[%s541] sm:$0xff] %v543
  %s545 = scalar_lea.vmem %s4, 64
  %s546 = scalar_lea.vmem %s1, 64
  %v547 = vld [vmem:[%s546] sm:$0xff]
  %548 = vst [vmem:[%s545] sm:$0xff] %v547
  %s549 = scalar_lea.vmem %s4, 72
  %s550 = scalar_lea.vmem %s1, 72
  %v551 = vld [vmem:[%s550] sm:$0xff]
  %552 = vst [vmem:[%s549] sm:$0xff] %v551
  %s553 = scalar_lea.vmem %s4, 80
  %s554 = scalar_lea.vmem %s1, 80
  %v555 = vld [vmem:[%s554] sm:$0xff]
  %556 = vst [vmem:[%s553] sm:$0xff] %v555
  %s557 = scalar_lea.vmem %s4, 88
  %s558 = scalar_lea.vmem %s1, 88
  %v559 = vld [vmem:[%s558] sm:$0xff]
  %560 = vst [vmem:[%s557] sm:$0xff] %v559
  %s561 = scalar_lea.vmem %s4, 96
  %s562 = scalar_lea.vmem %s1, 96
  %v563 = vld [vmem:[%s562] sm:$0xff]
  %564 = vst [vmem:[%s561] sm:$0xff] %v563
  %s565 = scalar_lea.vmem %s4, 104
  %s566 = scalar_lea.vmem %s1, 104
  %v567 = vld [vmem:[%s566] sm:$0xff]
  %568 = vst [vmem:[%s565] sm:$0xff] %v567
  %s569 = scalar_lea.vmem %s4, 112
  %s570 = scalar_lea.vmem %s1, 112
  %v571 = vld [vmem:[%s570] sm:$0xff]
  %572 = vst [vmem:[%s569] sm:$0xff] %v571
  %s573 = scalar_lea.vmem %s4, 120
  %s574 = scalar_lea.vmem %s1, 120
  %v575 = vld [vmem:[%s574] sm:$0xff]
  %576 = vst [vmem:[%s573] sm:$0xff] %v575
  %s577 = scalar_lea.vmem %s4, 128
  %s578 = scalar_lea.vmem %s1, 128
  %v579 = vld [vmem:[%s578] sm:$0xff]
  %580 = vst [vmem:[%s577] sm:$0xff] %v579
  %s581 = scalar_lea.vmem %s4, 136
  %s582 = scalar_lea.vmem %s1, 136
  %v583 = vld [vmem:[%s582] sm:$0xff]
  %584 = vst [vmem:[%s581] sm:$0xff] %v583
  %s585 = scalar_lea.vmem %s4, 144
  %s586 = scalar_lea.vmem %s1, 144
  %v587 = vld [vmem:[%s586] sm:$0xff]
  %588 = vst [vmem:[%s585] sm:$0xff] %v587
  %s589 = scalar_lea.vmem %s4, 152
  %s590 = scalar_lea.vmem %s1, 152
  %v591 = vld [vmem:[%s590] sm:$0xff]
  %592 = vst [vmem:[%s589] sm:$0xff] %v591
  %s593 = scalar_lea.vmem %s4, 160
  %s594 = scalar_lea.vmem %s1, 160
  %v595 = vld [vmem:[%s594] sm:$0xff]
  %596 = vst [vmem:[%s593] sm:$0xff] %v595
  %s597 = scalar_lea.vmem %s4, 168
  %s598 = scalar_lea.vmem %s1, 168
  %v599 = vld [vmem:[%s598] sm:$0xff]
  %600 = vst [vmem:[%s597] sm:$0xff] %v599
  %s601 = scalar_lea.vmem %s4, 176
  %s602 = scalar_lea.vmem %s1, 176
  %v603 = vld [vmem:[%s602] sm:$0xff]
  %604 = vst [vmem:[%s601] sm:$0xff] %v603
  %s605 = scalar_lea.vmem %s4, 184
  %s606 = scalar_lea.vmem %s1, 184
  %v607 = vld [vmem:[%s606] sm:$0xff]
  %608 = vst [vmem:[%s605] sm:$0xff] %v607
  %s609 = scalar_lea.vmem %s4, 192
  %s610 = scalar_lea.vmem %s1, 192
  %v611 = vld [vmem:[%s610] sm:$0xff]
  %612 = vst [vmem:[%s609] sm:$0xff] %v611
  %s613 = scalar_lea.vmem %s4, 200
  %s614 = scalar_lea.vmem %s1, 200
  %v615 = vld [vmem:[%s614] sm:$0xff]
  %616 = vst [vmem:[%s613] sm:$0xff] %v615
  %s617 = scalar_lea.vmem %s4, 208
  %s618 = scalar_lea.vmem %s1, 208
  %v619 = vld [vmem:[%s618] sm:$0xff]
  %620 = vst [vmem:[%s617] sm:$0xff] %v619
  %s621 = scalar_lea.vmem %s4, 216
  %s622 = scalar_lea.vmem %s1, 216
  %v623 = vld [vmem:[%s622] sm:$0xff]
  %624 = vst [vmem:[%s621] sm:$0xff] %v623
  %s625 = scalar_lea.vmem %s4, 224
  %s626 = scalar_lea.vmem %s1, 224
  %v627 = vld [vmem:[%s626] sm:$0xff]
  %628 = vst [vmem:[%s625] sm:$0xff] %v627
  %s629 = scalar_lea.vmem %s4, 232
  %s630 = scalar_lea.vmem %s1, 232
  %v631 = vld [vmem:[%s630] sm:$0xff]
  %632 = vst [vmem:[%s629] sm:$0xff] %v631
  %s633 = scalar_lea.vmem %s4, 240
  %s634 = scalar_lea.vmem %s1, 240
  %v635 = vld [vmem:[%s634] sm:$0xff]
  %636 = vst [vmem:[%s633] sm:$0xff] %v635
  %s637 = scalar_lea.vmem %s4, 248
  %s638 = scalar_lea.vmem %s1, 248
  %v639 = vld [vmem:[%s638] sm:$0xff]
  %640 = vst [vmem:[%s637] sm:$0xff] %v639
  %s641 = scalar_lea.vmem %s4, 256
  %s642 = scalar_lea.vmem %s1, 256
  %v643 = vld [vmem:[%s642] sm:$0xff]
  %644 = vst [vmem:[%s641] sm:$0xff] %v643
  %s645 = scalar_lea.vmem %s4, 264
  %s646 = scalar_lea.vmem %s1, 264
  %v647 = vld [vmem:[%s646] sm:$0xff]
  %648 = vst [vmem:[%s645] sm:$0xff] %v647
  %s649 = scalar_lea.vmem %s4, 272
  %s650 = scalar_lea.vmem %s1, 272
  %v651 = vld [vmem:[%s650] sm:$0xff]
  %652 = vst [vmem:[%s649] sm:$0xff] %v651
  %s653 = scalar_lea.vmem %s4, 280
  %s654 = scalar_lea.vmem %s1, 280
  %v655 = vld [vmem:[%s654] sm:$0xff]
  %656 = vst [vmem:[%s653] sm:$0xff] %v655
  %s657 = scalar_lea.vmem %s4, 288
  %s658 = scalar_lea.vmem %s1, 288
  %v659 = vld [vmem:[%s658] sm:$0xff]
  %660 = vst [vmem:[%s657] sm:$0xff] %v659
  %s661 = scalar_lea.vmem %s4, 296
  %s662 = scalar_lea.vmem %s1, 296
  %v663 = vld [vmem:[%s662] sm:$0xff]
  %664 = vst [vmem:[%s661] sm:$0xff] %v663
  %s665 = scalar_lea.vmem %s4, 304
  %s666 = scalar_lea.vmem %s1, 304
  %v667 = vld [vmem:[%s666] sm:$0xff]
  %668 = vst [vmem:[%s665] sm:$0xff] %v667
  %s669 = scalar_lea.vmem %s4, 312
  %s670 = scalar_lea.vmem %s1, 312
  %v671 = vld [vmem:[%s670] sm:$0xff]
  %672 = vst [vmem:[%s669] sm:$0xff] %v671
  %s673 = scalar_lea.vmem %s4, 320
  %s674 = scalar_lea.vmem %s1, 320
  %v675 = vld [vmem:[%s674] sm:$0xff]
  %676 = vst [vmem:[%s673] sm:$0xff] %v675
  %s677 = scalar_lea.vmem %s4, 328
  %s678 = scalar_lea.vmem %s1, 328
  %v679 = vld [vmem:[%s678] sm:$0xff]
  %680 = vst [vmem:[%s677] sm:$0xff] %v679
  %s681 = scalar_lea.vmem %s4, 336
  %s682 = scalar_lea.vmem %s1, 336
  %v683 = vld [vmem:[%s682] sm:$0xff]
  %684 = vst [vmem:[%s681] sm:$0xff] %v683
  %s685 = scalar_lea.vmem %s4, 344
  %s686 = scalar_lea.vmem %s1, 344
  %v687 = vld [vmem:[%s686] sm:$0xff]
  %688 = vst [vmem:[%s685] sm:$0xff] %v687
  %s689 = scalar_lea.vmem %s4, 352
  %s690 = scalar_lea.vmem %s1, 352
  %v691 = vld [vmem:[%s690] sm:$0xff]
  %692 = vst [vmem:[%s689] sm:$0xff] %v691
  %s693 = scalar_lea.vmem %s4, 360
  %s694 = scalar_lea.vmem %s1, 360
  %v695 = vld [vmem:[%s694] sm:$0xff]
  %696 = vst [vmem:[%s693] sm:$0xff] %v695
  %s697 = scalar_lea.vmem %s4, 368
  %s698 = scalar_lea.vmem %s1, 368
  %v699 = vld [vmem:[%s698] sm:$0xff]
  %700 = vst [vmem:[%s697] sm:$0xff] %v699
  %s701 = scalar_lea.vmem %s4, 376
  %s702 = scalar_lea.vmem %s1, 376
  %v703 = vld [vmem:[%s702] sm:$0xff]
  %704 = vst [vmem:[%s701] sm:$0xff] %v703
  %s705 = scalar_lea.vmem %s4, 384
  %s706 = scalar_lea.vmem %s1, 384
  %v707 = vld [vmem:[%s706] sm:$0xff]
  %708 = vst [vmem:[%s705] sm:$0xff] %v707
  %s709 = scalar_lea.vmem %s4, 392
  %s710 = scalar_lea.vmem %s1, 392
  %v711 = vld [vmem:[%s710] sm:$0xff]
  %712 = vst [vmem:[%s709] sm:$0xff] %v711
  %s713 = scalar_lea.vmem %s4, 400
  %s714 = scalar_lea.vmem %s1, 400
  %v715 = vld [vmem:[%s714] sm:$0xff]
  %716 = vst [vmem:[%s713] sm:$0xff] %v715
  %s717 = scalar_lea.vmem %s4, 408
  %s718 = scalar_lea.vmem %s1, 408
  %v719 = vld [vmem:[%s718] sm:$0xff]
  %720 = vst [vmem:[%s717] sm:$0xff] %v719
  %s721 = scalar_lea.vmem %s4, 416
  %s722 = scalar_lea.vmem %s1, 416
  %v723 = vld [vmem:[%s722] sm:$0xff]
  %724 = vst [vmem:[%s721] sm:$0xff] %v723
  %s725 = scalar_lea.vmem %s4, 424
  %s726 = scalar_lea.vmem %s1, 424
  %v727 = vld [vmem:[%s726] sm:$0xff]
  %728 = vst [vmem:[%s725] sm:$0xff] %v727
  %s729 = scalar_lea.vmem %s4, 432
  %s730 = scalar_lea.vmem %s1, 432
  %v731 = vld [vmem:[%s730] sm:$0xff]
  %732 = vst [vmem:[%s729] sm:$0xff] %v731
  %s733 = scalar_lea.vmem %s4, 440
  %s734 = scalar_lea.vmem %s1, 440
  %v735 = vld [vmem:[%s734] sm:$0xff]
  %736 = vst [vmem:[%s733] sm:$0xff] %v735
  %s737 = scalar_lea.vmem %s4, 448
  %s738 = scalar_lea.vmem %s1, 448
  %v739 = vld [vmem:[%s738] sm:$0xff]
  %740 = vst [vmem:[%s737] sm:$0xff] %v739
  %s741 = scalar_lea.vmem %s4, 456
  %s742 = scalar_lea.vmem %s1, 456
  %v743 = vld [vmem:[%s742] sm:$0xff]
  %744 = vst [vmem:[%s741] sm:$0xff] %v743
  %s745 = scalar_lea.vmem %s4, 464
  %s746 = scalar_lea.vmem %s1, 464
  %v747 = vld [vmem:[%s746] sm:$0xff]
  %748 = vst [vmem:[%s745] sm:$0xff] %v747
  %s749 = scalar_lea.vmem %s4, 472
  %s750 = scalar_lea.vmem %s1, 472
  %v751 = vld [vmem:[%s750] sm:$0xff]
  %752 = vst [vmem:[%s749] sm:$0xff] %v751
  %s753 = scalar_lea.vmem %s4, 480
  %s754 = scalar_lea.vmem %s1, 480
  %v755 = vld [vmem:[%s754] sm:$0xff]
  %756 = vst [vmem:[%s753] sm:$0xff] %v755
  %s757 = scalar_lea.vmem %s4, 488
  %s758 = scalar_lea.vmem %s1, 488
  %v759 = vld [vmem:[%s758] sm:$0xff]
  %760 = vst [vmem:[%s757] sm:$0xff] %v759
  %s761 = scalar_lea.vmem %s4, 496
  %s762 = scalar_lea.vmem %s1, 496
  %v763 = vld [vmem:[%s762] sm:$0xff]
  %764 = vst [vmem:[%s761] sm:$0xff] %v763
  %s765 = scalar_lea.vmem %s4, 504
  %s766 = scalar_lea.vmem %s1, 504
  %v767 = vld [vmem:[%s766] sm:$0xff]
  %768 = vst [vmem:[%s765] sm:$0xff] %v767
  %s769 = scalar_lea.vmem %s4, 512
  %s770 = scalar_lea.vmem %s1, 512
  %v771 = vld [vmem:[%s770] sm:$0xff]
  %772 = vst [vmem:[%s769] sm:$0xff] %v771
  %s773 = scalar_lea.vmem %s4, 520
  %s774 = scalar_lea.vmem %s1, 520
  %v775 = vld [vmem:[%s774] sm:$0xff]
  %776 = vst [vmem:[%s773] sm:$0xff] %v775
  %s777 = scalar_lea.vmem %s4, 528
  %s778 = scalar_lea.vmem %s1, 528
  %v779 = vld [vmem:[%s778] sm:$0xff]
  %780 = vst [vmem:[%s777] sm:$0xff] %v779
  %s781 = scalar_lea.vmem %s4, 536
  %s782 = scalar_lea.vmem %s1, 536
  %v783 = vld [vmem:[%s782] sm:$0xff]
  %784 = vst [vmem:[%s781] sm:$0xff] %v783
  %s785 = scalar_lea.vmem %s4, 544
  %s786 = scalar_lea.vmem %s1, 544
  %v787 = vld [vmem:[%s786] sm:$0xff]
  %788 = vst [vmem:[%s785] sm:$0xff] %v787
  %s789 = scalar_lea.vmem %s4, 552
  %s790 = scalar_lea.vmem %s1, 552
  %v791 = vld [vmem:[%s790] sm:$0xff]
  %792 = vst [vmem:[%s789] sm:$0xff] %v791
  %s793 = scalar_lea.vmem %s4, 560
  %s794 = scalar_lea.vmem %s1, 560
  %v795 = vld [vmem:[%s794] sm:$0xff]
  %796 = vst [vmem:[%s793] sm:$0xff] %v795
  %s797 = scalar_lea.vmem %s4, 568
  %s798 = scalar_lea.vmem %s1, 568
  %v799 = vld [vmem:[%s798] sm:$0xff]
  %800 = vst [vmem:[%s797] sm:$0xff] %v799
  %s801 = scalar_lea.vmem %s4, 576
  %s802 = scalar_lea.vmem %s1, 576
  %v803 = vld [vmem:[%s802] sm:$0xff]
  %804 = vst [vmem:[%s801] sm:$0xff] %v803
  %s805 = scalar_lea.vmem %s4, 584
  %s806 = scalar_lea.vmem %s1, 584
  %v807 = vld [vmem:[%s806] sm:$0xff]
  %808 = vst [vmem:[%s805] sm:$0xff] %v807
  %s809 = scalar_lea.vmem %s4, 592
  %s810 = scalar_lea.vmem %s1, 592
  %v811 = vld [vmem:[%s810] sm:$0xff]
  %812 = vst [vmem:[%s809] sm:$0xff] %v811
  %s813 = scalar_lea.vmem %s4, 600
  %s814 = scalar_lea.vmem %s1, 600
  %v815 = vld [vmem:[%s814] sm:$0xff]
  %816 = vst [vmem:[%s813] sm:$0xff] %v815
  %s817 = scalar_lea.vmem %s4, 608
  %s818 = scalar_lea.vmem %s1, 608
  %v819 = vld [vmem:[%s818] sm:$0xff]
  %820 = vst [vmem:[%s817] sm:$0xff] %v819
  %s821 = scalar_lea.vmem %s4, 616
  %s822 = scalar_lea.vmem %s1, 616
  %v823 = vld [vmem:[%s822] sm:$0xff]
  %824 = vst [vmem:[%s821] sm:$0xff] %v823
  %s825 = scalar_lea.vmem %s4, 624
  %s826 = scalar_lea.vmem %s1, 624
  %v827 = vld [vmem:[%s826] sm:$0xff]
  %828 = vst [vmem:[%s825] sm:$0xff] %v827
  %s829 = scalar_lea.vmem %s4, 632
  %s830 = scalar_lea.vmem %s1, 632
  %v831 = vld [vmem:[%s830] sm:$0xff]
  %832 = vst [vmem:[%s829] sm:$0xff] %v831
  %s833 = scalar_lea.vmem %s4, 640
  %s834 = scalar_lea.vmem %s1, 640
  %v835 = vld [vmem:[%s834] sm:$0xff]
  %836 = vst [vmem:[%s833] sm:$0xff] %v835
  %s837 = scalar_lea.vmem %s4, 648
  %s838 = scalar_lea.vmem %s1, 648
  %v839 = vld [vmem:[%s838] sm:$0xff]
  %840 = vst [vmem:[%s837] sm:$0xff] %v839
  %s841 = scalar_lea.vmem %s4, 656
  %s842 = scalar_lea.vmem %s1, 656
  %v843 = vld [vmem:[%s842] sm:$0xff]
  %844 = vst [vmem:[%s841] sm:$0xff] %v843
  %s845 = scalar_lea.vmem %s4, 664
  %s846 = scalar_lea.vmem %s1, 664
  %v847 = vld [vmem:[%s846] sm:$0xff]
  %848 = vst [vmem:[%s845] sm:$0xff] %v847
  %s849 = scalar_lea.vmem %s4, 672
  %s850 = scalar_lea.vmem %s1, 672
  %v851 = vld [vmem:[%s850] sm:$0xff]
  %852 = vst [vmem:[%s849] sm:$0xff] %v851
  %s853 = scalar_lea.vmem %s4, 680
  %s854 = scalar_lea.vmem %s1, 680
  %v855 = vld [vmem:[%s854] sm:$0xff]
  %856 = vst [vmem:[%s853] sm:$0xff] %v855
  %s857 = scalar_lea.vmem %s4, 688
  %s858 = scalar_lea.vmem %s1, 688
  %v859 = vld [vmem:[%s858] sm:$0xff]
  %860 = vst [vmem:[%s857] sm:$0xff] %v859
  %s861 = scalar_lea.vmem %s4, 696
  %s862 = scalar_lea.vmem %s1, 696
  %v863 = vld [vmem:[%s862] sm:$0xff]
  %864 = vst [vmem:[%s861] sm:$0xff] %v863
  %s865 = scalar_lea.vmem %s4, 704
  %s866 = scalar_lea.vmem %s1, 704
  %v867 = vld [vmem:[%s866] sm:$0xff]
  %868 = vst [vmem:[%s865] sm:$0xff] %v867
  %s869 = scalar_lea.vmem %s4, 712
  %s870 = scalar_lea.vmem %s1, 712
  %v871 = vld [vmem:[%s870] sm:$0xff]
  %872 = vst [vmem:[%s869] sm:$0xff] %v871
  %s873 = scalar_lea.vmem %s4, 720
  %s874 = scalar_lea.vmem %s1, 720
  %v875 = vld [vmem:[%s874] sm:$0xff]
  %876 = vst [vmem:[%s873] sm:$0xff] %v875
  %s877 = scalar_lea.vmem %s4, 728
  %s878 = scalar_lea.vmem %s1, 728
  %v879 = vld [vmem:[%s878] sm:$0xff]
  %880 = vst [vmem:[%s877] sm:$0xff] %v879
  %s881 = scalar_lea.vmem %s4, 736
  %s882 = scalar_lea.vmem %s1, 736
  %v883 = vld [vmem:[%s882] sm:$0xff]
  %884 = vst [vmem:[%s881] sm:$0xff] %v883
  %s885 = scalar_lea.vmem %s4, 744
  %s886 = scalar_lea.vmem %s1, 744
  %v887 = vld [vmem:[%s886] sm:$0xff]
  %888 = vst [vmem:[%s885] sm:$0xff] %v887
  %s889 = scalar_lea.vmem %s4, 752
  %s890 = scalar_lea.vmem %s1, 752
  %v891 = vld [vmem:[%s890] sm:$0xff]
  %892 = vst [vmem:[%s889] sm:$0xff] %v891
  %s893 = scalar_lea.vmem %s4, 760
  %s894 = scalar_lea.vmem %s1, 760
  %v895 = vld [vmem:[%s894] sm:$0xff]
  %896 = vst [vmem:[%s893] sm:$0xff] %v895
  %s897 = scalar_lea.vmem %s4, 768
  %s898 = scalar_lea.vmem %s1, 768
  %v899 = vld [vmem:[%s898] sm:$0xff]
  %900 = vst [vmem:[%s897] sm:$0xff] %v899
  %s901 = scalar_lea.vmem %s4, 776
  %s902 = scalar_lea.vmem %s1, 776
  %v903 = vld [vmem:[%s902] sm:$0xff]
  %904 = vst [vmem:[%s901] sm:$0xff] %v903
  %s905 = scalar_lea.vmem %s4, 784
  %s906 = scalar_lea.vmem %s1, 784
  %v907 = vld [vmem:[%s906] sm:$0xff]
  %908 = vst [vmem:[%s905] sm:$0xff] %v907
  %s909 = scalar_lea.vmem %s4, 792
  %s910 = scalar_lea.vmem %s1, 792
  %v911 = vld [vmem:[%s910] sm:$0xff]
  %912 = vst [vmem:[%s909] sm:$0xff] %v911
  %s913 = scalar_lea.vmem %s4, 800
  %s914 = scalar_lea.vmem %s1, 800
  %v915 = vld [vmem:[%s914] sm:$0xff]
  %916 = vst [vmem:[%s913] sm:$0xff] %v915
  %s917 = scalar_lea.vmem %s4, 808
  %s918 = scalar_lea.vmem %s1, 808
  %v919 = vld [vmem:[%s918] sm:$0xff]
  %920 = vst [vmem:[%s917] sm:$0xff] %v919
  %s921 = scalar_lea.vmem %s4, 816
  %s922 = scalar_lea.vmem %s1, 816
  %v923 = vld [vmem:[%s922] sm:$0xff]
  %924 = vst [vmem:[%s921] sm:$0xff] %v923
  %s925 = scalar_lea.vmem %s4, 824
  %s926 = scalar_lea.vmem %s1, 824
  %v927 = vld [vmem:[%s926] sm:$0xff]
  %928 = vst [vmem:[%s925] sm:$0xff] %v927
  %s929 = scalar_lea.vmem %s4, 832
  %s930 = scalar_lea.vmem %s1, 832
  %v931 = vld [vmem:[%s930] sm:$0xff]
  %932 = vst [vmem:[%s929] sm:$0xff] %v931
  %s933 = scalar_lea.vmem %s4, 840
  %s934 = scalar_lea.vmem %s1, 840
  %v935 = vld [vmem:[%s934] sm:$0xff]
  %936 = vst [vmem:[%s933] sm:$0xff] %v935
  %s937 = scalar_lea.vmem %s4, 848
  %s938 = scalar_lea.vmem %s1, 848
  %v939 = vld [vmem:[%s938] sm:$0xff]
  %940 = vst [vmem:[%s937] sm:$0xff] %v939
  %s941 = scalar_lea.vmem %s4, 856
  %s942 = scalar_lea.vmem %s1, 856
  %v943 = vld [vmem:[%s942] sm:$0xff]
  %944 = vst [vmem:[%s941] sm:$0xff] %v943
  %s945 = scalar_lea.vmem %s4, 864
  %s946 = scalar_lea.vmem %s1, 864
  %v947 = vld [vmem:[%s946] sm:$0xff]
  %948 = vst [vmem:[%s945] sm:$0xff] %v947
  %s949 = scalar_lea.vmem %s4, 872
  %s950 = scalar_lea.vmem %s1, 872
  %v951 = vld [vmem:[%s950] sm:$0xff]
  %952 = vst [vmem:[%s949] sm:$0xff] %v951
  %s953 = scalar_lea.vmem %s4, 880
  %s954 = scalar_lea.vmem %s1, 880
  %v955 = vld [vmem:[%s954] sm:$0xff]
  %956 = vst [vmem:[%s953] sm:$0xff] %v955
  %s957 = scalar_lea.vmem %s4, 888
  %s958 = scalar_lea.vmem %s1, 888
  %v959 = vld [vmem:[%s958] sm:$0xff]
  %960 = vst [vmem:[%s957] sm:$0xff] %v959
  %s961 = scalar_lea.vmem %s4, 896
  %s962 = scalar_lea.vmem %s1, 896
  %v963 = vld [vmem:[%s962] sm:$0xff]
  %964 = vst [vmem:[%s961] sm:$0xff] %v963
  %s965 = scalar_lea.vmem %s4, 904
  %s966 = scalar_lea.vmem %s1, 904
  %v967 = vld [vmem:[%s966] sm:$0xff]
  %968 = vst [vmem:[%s965] sm:$0xff] %v967
  %s969 = scalar_lea.vmem %s4, 912
  %s970 = scalar_lea.vmem %s1, 912
  %v971 = vld [vmem:[%s970] sm:$0xff]
  %972 = vst [vmem:[%s969] sm:$0xff] %v971
  %s973 = scalar_lea.vmem %s4, 920
  %s974 = scalar_lea.vmem %s1, 920
  %v975 = vld [vmem:[%s974] sm:$0xff]
  %976 = vst [vmem:[%s973] sm:$0xff] %v975
  %s977 = scalar_lea.vmem %s4, 928
  %s978 = scalar_lea.vmem %s1, 928
  %v979 = vld [vmem:[%s978] sm:$0xff]
  %980 = vst [vmem:[%s977] sm:$0xff] %v979
  %s981 = scalar_lea.vmem %s4, 936
  %s982 = scalar_lea.vmem %s1, 936
  %v983 = vld [vmem:[%s982] sm:$0xff]
  %984 = vst [vmem:[%s981] sm:$0xff] %v983
  %s985 = scalar_lea.vmem %s4, 944
  %s986 = scalar_lea.vmem %s1, 944
  %v987 = vld [vmem:[%s986] sm:$0xff]
  %988 = vst [vmem:[%s985] sm:$0xff] %v987
  %s989 = scalar_lea.vmem %s4, 952
  %s990 = scalar_lea.vmem %s1, 952
  %v991 = vld [vmem:[%s990] sm:$0xff]
  %992 = vst [vmem:[%s989] sm:$0xff] %v991
  %s993 = scalar_lea.vmem %s4, 960
  %s994 = scalar_lea.vmem %s1, 960
  %v995 = vld [vmem:[%s994] sm:$0xff]
  %996 = vst [vmem:[%s993] sm:$0xff] %v995
  %s997 = scalar_lea.vmem %s4, 968
  %s998 = scalar_lea.vmem %s1, 968
  %v999 = vld [vmem:[%s998] sm:$0xff]
  %1000 = vst [vmem:[%s997] sm:$0xff] %v999
  %s1001 = scalar_lea.vmem %s4, 976
  %s1002 = scalar_lea.vmem %s1, 976
  %v1003 = vld [vmem:[%s1002] sm:$0xff]
  %1004 = vst [vmem:[%s1001] sm:$0xff] %v1003
  %s1005 = scalar_lea.vmem %s4, 984
  %s1006 = scalar_lea.vmem %s1, 984
  %v1007 = vld [vmem:[%s1006] sm:$0xff]
  %1008 = vst [vmem:[%s1005] sm:$0xff] %v1007
  %s1009 = scalar_lea.vmem %s4, 992
  %s1010 = scalar_lea.vmem %s1, 992
  %v1011 = vld [vmem:[%s1010] sm:$0xff]
  %1012 = vst [vmem:[%s1009] sm:$0xff] %v1011
  %s1013 = scalar_lea.vmem %s4, 1000
  %s1014 = scalar_lea.vmem %s1, 1000
  %v1015 = vld [vmem:[%s1014] sm:$0xff]
  %1016 = vst [vmem:[%s1013] sm:$0xff] %v1015
  %s1017 = scalar_lea.vmem %s4, 1008
  %s1018 = scalar_lea.vmem %s1, 1008
  %v1019 = vld [vmem:[%s1018] sm:$0xff]
  %1020 = vst [vmem:[%s1017] sm:$0xff] %v1019
  %s1021 = scalar_lea.vmem %s4, 1016
  %s1022 = scalar_lea.vmem %s1, 1016
  %v1023 = vld [vmem:[%s1022] sm:$0xff]
  %1024 = vst [vmem:[%s1021] sm:$0xff] %v1023

// kernel: separator_forward.3
$region0: #{separator_forward.3}
  #allocation0 [shape = 'u32[]', space=smem, size = 0x4, offset = 0x4, fixed_abs, tag = 'smem constant byte address 0x4 - core index']
  #allocation1 [shape = 'u32[144,128]{1,0:T(1,128)}', space=vmem, size = 0x12000, scoped, tag = 'internal scratch']
  #allocation2 [shape = 's32[1]{0}', space=sflag, size = 0x4, scoped, tag = 'scoped memory for separator_forward.3']
  #allocation3 [shape = 'u8[512]{0}', space=smem, size = 0x200, scoped, tag = 'prefetched SMEM operand 0']
  %s0 = inlined_call_operand.vmem [shape: f32[2], index: 0, kind: input, shape index: {}]
  %s1 = inlined_call_operand.vmem [shape: f32[2,17,1024], index: 1, kind: input, shape index: {}, may-alias: {1,2}]
  %s2 = inlined_call_operand.vmem [shape: f32[2,17,1024], index: 2, kind: input, shape index: {}, may-alias: {1,2}]
  %s3 = inlined_call_operand.vmem [shape: f32[2,1,256], index: 3, kind: input, shape index: {}]
  %s4 = inlined_call_operand.vmem [shape: bf16[512,256], index: 4, kind: input, shape index: {}]
  %s5 = inlined_call_operand.vmem [shape: bf16[256,512], index: 5, kind: input, shape index: {}]
  %s6 = inlined_call_operand.vmem [shape: f32[1,512], index: 6, kind: input, shape index: {}]
  %s7 = inlined_call_operand.vmem [shape: f32[2,17,1024], index: 7, kind: output, shape index: {0}]
  %s8 = inlined_call_operand.vmem [shape: f32[2,17,512], index: 8, kind: output, shape index: {1}]
  %s9 = inlined_call_operand.vmem [shape: f32[2,17,512], index: 9, kind: output, shape index: {2}]
  %s10 = inlined_call_operand.vmem [shape: f32[2,17,512], index: 10, kind: output, shape index: {3}]
  %s11 = inlined_call_operand.vmem [shape: f32[2,1,1], index: 11, kind: output, shape index: {4}]
  %12 = xla_tuple %s7, %s8, %s9, %s10, %s11
  %s13 = sld [smem:[#allocation0]]
  $region89: #{separator_forward.3} parent=0
    _
  %s15 = ssub.s32 1, %s13
  %s16 = scalar_select 0, %s15, %s13
  %s17 = sshll.u32 %s0, 4
  %s18 = int_to_ptr.vmem [resolvable:$true] %s17
  %20 = dma.vmem_to_smem %s18, 16, [#allocation3], [#allocation2]
  %21 = dma.done [#allocation2], 16
  %22 = sfence
  loop: start=0, step=1, limit=4
  $region2: #{separator_forward.3} parent=0 // loop_pre_header
    _
  $region3: #{separator_forward.3} parent=0 // loop_header
    %s24 = sphi 0, %s28
    %p25 = scmp.ge.s32.totalorder %s24, 4
    %s34 = sphi 0, %s36
    %s37 = sphi 0, %s34
    %s38 = sphi 0, %s37
    %s54 = sphi 0, %s38
    %s62 = sphi 0, %s64
    %s65 = sphi 0, %s62
    %s66 = sphi 0, %s65
    %s82 = sphi 0, %s66
    %s88 = sphi 0, %s90
    %s91 = sphi 0, %s88
    %s92 = sphi 0, %s91
    %s108 = sphi 0, %s92
    %s112 = sphi 0, %s112
    %s114 = sphi 0, %s112
    %s115 = sphi 0, %s114
    %s129 = sphi 0, %s115
    %s133 = sphi 0, %s133
    %s135 = sphi 0, %s133
    %s136 = sphi 0, %s135
    %s150 = sphi 0, %s136
    %s154 = sphi 0, %s154
    %s156 = sphi 0, %s154
    %s157 = sphi 0, %s156
    %s171 = sphi 0, %s157
    %s177 = sphi 0, %s179
    %s180 = sphi 0, %s177
    %s181 = sphi 0, %s180
    %s197 = sphi 0, %s181
    %s203 = sphi 0, %s205
    %s206 = sphi 0, %s203
    %s207 = sphi 0, %s206
    %s223 = sphi 0, %s207
    %s229 = sphi 0, %s231
    %s232 = sphi 0, %s229
    %s233 = sphi 0, %s232
    %s249 = sphi 0, %s233
    %s255 = sphi 0, %s257
    %s258 = sphi 0, %s255
    %s259 = sphi 0, %s258
    %s275 = sphi 0, %s259
    %s281 = sphi 0, %s283
    %s284 = sphi 0, %s281
    %s285 = sphi 0, %s284
    %s301 = sphi 0, %s285
  $region4: #{separator_forward.3} parent=0 // loop_header_branch
    %27 = sbr.rel (%p25) target = $region8
  $region5: #{separator_forward.3} parent=0 // loop_body
    %s29 = ssub.s32 %s24, 1
    %s30 = ssub.s32 %s24, 2
    %s31 = sadd.s32 %s24, 1
    %s32 = ssub.s32 %s24, %s31
    %p33 = scmp.eq.s32.totalorder %s32, 0
    %s35 = sadd.s32 %s34, 1
    %s36 = scalar_select %p33, %s34, %s35
    %p39 = pneg %p33
    %p40 = scmp.eq.s32.totalorder %s24, 1
    %p41 = por %p39, %p40
    %p42 = scmp.ne.s32.totalorder %s34, %s37
    %p43 = scmp.eq.s32.totalorder %s24, 0
    %p44 = por %p42, %p43
    %p45 = scmp.ne.s32.totalorder %s34, %s37
    %p46 = scmp.eq.s32.totalorder %s29, 1
    %p47 = por %p45, %p46
    %p48 = scmp.ne.s32.totalorder %s37, %s38
    %p49 = scmp.eq.s32.totalorder %s29, 0
    %p50 = por %p48, %p49
    %p51 = scmp.ne.s32.totalorder %s37, %s38
    %p52 = scmp.eq.s32.totalorder %s30, 1
    %p53 = por %p51, %p52
    %p55 = scmp.ne.s32.totalorder %s38, %s54
    %p56 = scmp.eq.s32.totalorder %s30, 0
    %p57 = por %p55, %p56
    %s58 = ssub.s32 1, %s24
    %s59 = ssub.s32 1, %s31
    %s60 = ssub.s32 %s58, %s59
    %p61 = scmp.eq.s32.totalorder %s60, 0
    %s63 = sadd.s32 %s62, 1
    %s64 = scalar_select %p61, %s62, %s63
    %p67 = pneg %p61
    %p68 = scmp.eq.s32.totalorder %s24, 1
    %p69 = por %p67, %p68
    %p70 = scmp.ne.s32.totalorder %s62, %s65
    %p71 = scmp.eq.s32.totalorder %s24, 0
    %p72 = por %p70, %p71
    %p73 = scmp.ne.s32.totalorder %s62, %s65
    %p74 = scmp.eq.s32.totalorder %s29, 1
    %p75 = por %p73, %p74
    %p76 = scmp.ne.s32.totalorder %s65, %s66
    %p77 = scmp.eq.s32.totalorder %s29, 0
    %p78 = por %p76, %p77
    %p79 = scmp.ne.s32.totalorder %s65, %s66
    %p80 = scmp.eq.s32.totalorder %s30, 1
    %p81 = por %p79, %p80
    %p83 = scmp.ne.s32.totalorder %s66, %s82
    %p84 = scmp.eq.s32.totalorder %s30, 0
    %p85 = por %p83, %p84
    %s86 = ssub.s32 %s24, %s31
    %p87 = scmp.eq.s32.totalorder %s86, 0
    %s89 = sadd.s32 %s88, 1
    %s90 = scalar_select %p87, %s88, %s89
    %p93 = pneg %p87
    %p94 = scmp.eq.s32.totalorder %s24, 1
    %p95 = por %p93, %p94
    %p96 = scmp.ne.s32.totalorder %s88, %s91
    %p97 = scmp.eq.s32.totalorder %s24, 0
    %p98 = por %p96, %p97
    %p99 = scmp.ne.s32.totalorder %s88, %s91
    %p100 = scmp.eq.s32.totalorder %s29, 1
    %p101 = por %p99, %p100
    %p102 = scmp.ne.s32.totalorder %s91, %s92
    %p103 = scmp.eq.s32.totalorder %s29, 0
    %p104 = por %p102, %p103
    %p105 = scmp.ne.s32.totalorder %s91, %s92
    %p106 = scmp.eq.s32.totalorder %s30, 1
    %p107 = por %p105, %p106
    %p109 = scmp.ne.s32.totalorder %s92, %s108
    %p110 = scmp.eq.s32.totalorder %s30, 0
    %p111 = por %p109, %p110
    %s113 = sadd.s32 %s112, 1
    %p116 = scmp.eq.s32.totalorder %s24, 1
    %p117 = scmp.ne.s32.totalorder %s112, %s114
    %p118 = scmp.eq.s32.totalorder %s24, 0
    %p119 = por %p117, %p118
    %p120 = scmp.ne.s32.totalorder %s112, %s114
    %p121 = scmp.eq.s32.totalorder %s29, 1
    %p122 = por %p120, %p121
    %p123 = scmp.ne.s32.totalorder %s114, %s115
    %p124 = scmp.eq.s32.totalorder %s29, 0
    %p125 = por %p123, %p124
    %p126 = scmp.ne.s32.totalorder %s114, %s115
    %p127 = scmp.eq.s32.totalorder %s30, 1
    %p128 = por %p126, %p127
    %p130 = scmp.ne.s32.totalorder %s115, %s129
    %p131 = scmp.eq.s32.totalorder %s30, 0
    %p132 = por %p130, %p131
    %s134 = sadd.s32 %s133, 1
    %p137 = scmp.eq.s32.totalorder %s24, 1
    %p138 = scmp.ne.s32.totalorder %s133, %s135
    %p139 = scmp.eq.s32.totalorder %s24, 0
    %p140 = por %p138, %p139
    %p141 = scmp.ne.s32.totalorder %s133, %s135
    %p142 = scmp.eq.s32.totalorder %s29, 1
    %p143 = por %p141, %p142
    %p144 = scmp.ne.s32.totalorder %s135, %s136
    %p145 = scmp.eq.s32.totalorder %s29, 0
    %p146 = por %p144, %p145
    %p147 = scmp.ne.s32.totalorder %s135, %s136
    %p148 = scmp.eq.s32.totalorder %s30, 1
    %p149 = por %p147, %p148
    %p151 = scmp.ne.s32.totalorder %s136, %s150
    %p152 = scmp.eq.s32.totalorder %s30, 0
    %p153 = por %p151, %p152
    %s155 = sadd.s32 %s154, 1
    %p158 = scmp.eq.s32.totalorder %s24, 1
    %p159 = scmp.ne.s32.totalorder %s154, %s156
    %p160 = scmp.eq.s32.totalorder %s24, 0
    %p161 = por %p159, %p160
    %p162 = scmp.ne.s32.totalorder %s154, %s156
    %p163 = scmp.eq.s32.totalorder %s29, 1
    %p164 = por %p162, %p163
    %p165 = scmp.ne.s32.totalorder %s156, %s157
    %p166 = scmp.eq.s32.totalorder %s29, 0
    %p167 = por %p165, %p166
    %p168 = scmp.ne.s32.totalorder %s156, %s157
    %p169 = scmp.eq.s32.totalorder %s30, 1
    %p170 = por %p168, %p169
    %p172 = scmp.ne.s32.totalorder %s157, %s171
    %p173 = scmp.eq.s32.totalorder %s30, 0
    %p174 = por %p172, %p173
    %s175 = ssub.s32 %s24, %s31
    %p176 = scmp.eq.s32.totalorder %s175, 0
    %s178 = sadd.s32 %s177, 1
    %s179 = scalar_select %p176, %s177, %s178
    %p182 = pneg %p176
    %p183 = scmp.eq.s32.totalorder %s24, 1
    %p184 = por %p182, %p183
    %p185 = scmp.ne.s32.totalorder %s177, %s180
    %p186 = scmp.eq.s32.totalorder %s24, 0
    %p187 = por %p185, %p186
    %p188 = scmp.ne.s32.totalorder %s177, %s180
    %p189 = scmp.eq.s32.totalorder %s29, 1
    %p190 = por %p188, %p189
    %p191 = scmp.ne.s32.totalorder %s180, %s181
    %p192 = scmp.eq.s32.totalorder %s29, 0
    %p193 = por %p191, %p192
    %p194 = scmp.ne.s32.totalorder %s180, %s181
    %p195 = scmp.eq.s32.totalorder %s30, 1
    %p196 = por %p194, %p195
    %p198 = scmp.ne.s32.totalorder %s181, %s197
    %p199 = scmp.eq.s32.totalorder %s30, 0
    %p200 = por %p198, %p199
    %s201 = ssub.s32 %s24, %s31
    %p202 = scmp.eq.s32.totalorder %s201, 0
    %s204 = sadd.s32 %s203, 1
    %s205 = scalar_select %p202, %s203, %s204
    %p208 = pneg %p202
    %p209 = scmp.eq.s32.totalorder %s24, 1
    %p210 = por %p208, %p209
    %p211 = scmp.ne.s32.totalorder %s203, %s206
    %p212 = scmp.eq.s32.totalorder %s24, 0
    %p213 = por %p211, %p212
    %p214 = scmp.ne.s32.totalorder %s203, %s206
    %p215 = scmp.eq.s32.totalorder %s29, 1
    %p216 = por %p214, %p215
    %p217 = scmp.ne.s32.totalorder %s206, %s207
    %p218 = scmp.eq.s32.totalorder %s29, 0
    %p219 = por %p217, %p218
    %p220 = scmp.ne.s32.totalorder %s206, %s207
    %p221 = scmp.eq.s32.totalorder %s30, 1
    %p222 = por %p220, %p221
    %p224 = scmp.ne.s32.totalorder %s207, %s223
    %p225 = scmp.eq.s32.totalorder %s30, 0
    %p226 = por %p224, %p225
    %s227 = ssub.s32 %s24, %s31
    %p228 = scmp.eq.s32.totalorder %s227, 0
    %s230 = sadd.s32 %s229, 1
    %s231 = scalar_select %p228, %s229, %s230
    %p234 = pneg %p228
    %p235 = scmp.eq.s32.totalorder %s24, 1
    %p236 = por %p234, %p235
    %p237 = scmp.ne.s32.totalorder %s229, %s232
    %p238 = scmp.eq.s32.totalorder %s24, 0
    %p239 = por %p237, %p238
    %p240 = scmp.ne.s32.totalorder %s229, %s232
    %p241 = scmp.eq.s32.totalorder %s29, 1
    %p242 = por %p240, %p241
    %p243 = scmp.ne.s32.totalorder %s232, %s233
    %p244 = scmp.eq.s32.totalorder %s29, 0
    %p245 = por %p243, %p244
    %p246 = scmp.ne.s32.totalorder %s232, %s233
    %p247 = scmp.eq.s32.totalorder %s30, 1
    %p248 = por %p246, %p247
    %p250 = scmp.ne.s32.totalorder %s233, %s249
    %p251 = scmp.eq.s32.totalorder %s30, 0
    %p252 = por %p250, %p251
    %s253 = ssub.s32 %s24, %s31
    %p254 = scmp.eq.s32.totalorder %s253, 0
    %s256 = sadd.s32 %s255, 1
    %s257 = scalar_select %p254, %s255, %s256
    %p260 = pneg %p254
    %p261 = scmp.eq.s32.totalorder %s24, 1
    %p262 = por %p260, %p261
    %p263 = scmp.ne.s32.totalorder %s255, %s258
    %p264 = scmp.eq.s32.totalorder %s24, 0
    %p265 = por %p263, %p264
    %p266 = scmp.ne.s32.totalorder %s255, %s258
    %p267 = scmp.eq.s32.totalorder %s29, 1
    %p268 = por %p266, %p267
    %p269 = scmp.ne.s32.totalorder %s258, %s259
    %p270 = scmp.eq.s32.totalorder %s29, 0
    %p271 = por %p269, %p270
    %p272 = scmp.ne.s32.totalorder %s258, %s259
    %p273 = scmp.eq.s32.totalorder %s30, 1
    %p274 = por %p272, %p273
    %p276 = scmp.ne.s32.totalorder %s259, %s275
    %p277 = scmp.eq.s32.totalorder %s30, 0
    %p278 = por %p276, %p277
    %s279 = ssub.s32 %s24, %s31
    %p280 = scmp.eq.s32.totalorder %s279, 0
    %s282 = sadd.s32 %s281, 1
    %s283 = scalar_select %p280, %s281, %s282
    %p286 = pneg %p280
    %p287 = scmp.eq.s32.totalorder %s24, 1
    %p288 = por %p286, %p287
    %p289 = scmp.ne.s32.totalorder %s281, %s284
    %p290 = scmp.eq.s32.totalorder %s24, 0
    %p291 = por %p289, %p290
    %p292 = scmp.ne.s32.totalorder %s281, %s284
    %p293 = scmp.eq.s32.totalorder %s29, 1
    %p294 = por %p292, %p293
    %p295 = scmp.ne.s32.totalorder %s284, %s285
    %p296 = scmp.eq.s32.totalorder %s29, 0
    %p297 = por %p295, %p296
    %p298 = scmp.ne.s32.totalorder %s284, %s285
    %p299 = scmp.eq.s32.totalorder %s30, 1
    %p300 = por %p298, %p299
    %p302 = scmp.ne.s32.totalorder %s285, %s301
    %p303 = scmp.eq.s32.totalorder %s30, 0
    %p304 = por %p302, %p303
    %p305 = scmp.le.s32.totalorder 1, %s24
    %p306 = scmp.lt.s32.totalorder %s24, 3
    %p307 = pnand %p305, %p306
    %p308 = pneg %p307
    // Predicated region
    $region9: #{separator_forward.3} parent=5 // pred_check
      _
    $region10: #{separator_forward.3} parent=5 // pred_check_branch
      %310 = sbr.rel (%p307) target = $region12
    $region11: #{separator_forward.3} parent=5 // pred_region
      %s311 = ssub.s32 %s24, 1
      // Predicated region
      $region13: #{separator_forward.3} parent=11 // pred_check
        %p312 = pneg %p125
      $region14: #{separator_forward.3} parent=11 // pred_check_branch
        %314 = sbr.rel (%p312) target = $region16
      $region15: #{separator_forward.3} parent=11 // pred_region
        _
      $region16: #{separator_forward.3} parent=11 // pred_fallthru
        _
      // Predicated region
      $region17: #{separator_forward.3} parent=11 // pred_check
        %p315 = pneg %p146
      $region18: #{separator_forward.3} parent=11 // pred_check_branch
        %317 = sbr.rel (%p315) target = $region20
      $region19: #{separator_forward.3} parent=11 // pred_region
        _
      $region20: #{separator_forward.3} parent=11 // pred_fallthru
        _
      // Predicated region
      $region21: #{separator_forward.3} parent=11 // pred_check
        %p318 = pneg %p167
      $region22: #{separator_forward.3} parent=11 // pred_check_branch
        %320 = sbr.rel (%p318) target = $region24
      $region23: #{separator_forward.3} parent=11 // pred_region
        _
      $region24: #{separator_forward.3} parent=11 // pred_fallthru
        _
    $region12: #{separator_forward.3} parent=5 // pred_fallthru
      _
    %p321 = scmp.lt.s32.totalorder %s24, 2
    // Predicated region
    $region25: #{separator_forward.3} parent=5 // pred_check
      %p322 = pneg %p321
    $region26: #{separator_forward.3} parent=5 // pred_check_branch
      %324 = sbr.rel (%p322) target = $region28
    $region27: #{separator_forward.3} parent=5 // pred_region
      // Predicated region
      $region29: #{separator_forward.3} parent=27 // pred_check
        %p325 = pneg %p44
      $region30: #{separator_forward.3} parent=27 // pred_check_branch
        %327 = sbr.rel (%p325) target = $region32
      $region31: #{separator_forward.3} parent=27 // pred_region
        %p328 = scmp.lt.s32.totalorder %s24, 1
        %s329 = scalar_select %p328, %s24, 1
        %s330 = smul.addr %s329, 24
        %s331 = smul.addr %s330, 8
        %s332 = scalar_lea.vmem %s1, %s331
      $region32: #{separator_forward.3} parent=27 // pred_fallthru
        _
      // Predicated region
      $region33: #{separator_forward.3} parent=27 // pred_check
        %p333 = pneg %p72
      $region34: #{separator_forward.3} parent=27 // pred_check_branch
        %335 = sbr.rel (%p333) target = $region36
      $region35: #{separator_forward.3} parent=27 // pred_region
        %s336 = ssub.s32 1, %s24
        %p337 = scmp.lt.s32.totalorder %s336, 1
        %s338 = scalar_select %p337, %s336, 1
        %s339 = smul.addr %s338, 24
        %s340 = smul.addr %s339, 8
        %s341 = scalar_lea.vmem %s2, %s340
        %s342 = ssub.s32 1, %s24
      $region36: #{separator_forward.3} parent=27 // pred_fallthru
        _
      // Predicated region
      $region37: #{separator_forward.3} parent=27 // pred_check
        %p343 = pneg %p98
      $region38: #{separator_forward.3} parent=27 // pred_check_branch
        %345 = sbr.rel (%p343) target = $region40
      $region39: #{separator_forward.3} parent=27 // pred_region
        %p346 = scmp.lt.s32.totalorder %s24, 1
        %s347 = scalar_select %p346, %s24, 1
        %s348 = smul.addr %s347, 2
        %s349 = scalar_lea.vmem %s3, %s348
      $region40: #{separator_forward.3} parent=27 // pred_fallthru
        _
    $region28: #{separator_forward.3} parent=5 // pred_fallthru
      _
    %p350 = scmp.le.s32.totalorder 1, %s24
    %p351 = scmp.lt.s32.totalorder %s24, 3
    %p352 = pnand %p350, %p351
    %p353 = pneg %p352
    // Predicated region
    $region41: #{separator_forward.3} parent=5 // pred_check
      _
    $region42: #{separator_forward.3} parent=5 // pred_check_branch
      %355 = sbr.rel (%p352) target = $region44
    $region43: #{separator_forward.3} parent=5 // pred_region
      %s356 = ssub.s32 %s24, 1
      %p357 = scmp.lt.s32.totalorder %s29, 1
      %s358 = scalar_select %p357, %s29, 1
      %s359 = smul.addr %s358, 24
      %s360 = smul.addr %s359, 8
      %s361 = scalar_lea.vmem %s1, %s360
      %p362 = pneg %p50
      %p363 = pneg %p47
      %s364 = ssub.s32 1, %s29
      %p365 = scmp.lt.s32.totalorder %s364, 1
      %s366 = scalar_select %p365, %s364, 1
      %s367 = smul.addr %s366, 24
      %s368 = smul.addr %s367, 8
      %s369 = scalar_lea.vmem %s2, %s368
      %p370 = pneg %p78
      %p371 = pneg %p75
      %p372 = scmp.lt.s32.totalorder %s29, 1
      %s373 = scalar_select %p372, %s29, 1
      %s374 = smul.addr %s373, 2
      %s375 = scalar_lea.vmem %s3, %s374
      %p376 = pneg %p104
      %p377 = pneg %p101
      %p378 = pneg %p125
      %p379 = pneg %p122
      %p380 = pneg %p146
      %p381 = pneg %p143
      %p382 = pneg %p167
      %p383 = pneg %p164
      %p384 = pneg %p193
      %p385 = pneg %p190
      %p386 = scmp.lt.s32.totalorder %s29, 1
      %s387 = scalar_select %p386, %s29, 1
      %s388 = smul.addr %s387, 24
      %s389 = smul.addr %s388, 8
      %s390 = scalar_lea.vmem %s7, %s389
      %p391 = pneg %p219
      %p392 = pneg %p216
      %p393 = scmp.lt.s32.totalorder %s29, 1
      %s394 = scalar_select %p393, %s29, 1
      %s395 = smul.addr %s394, 12
      %s396 = smul.addr %s395, 8
      %s397 = scalar_lea.vmem %s8, %s396
      %p398 = pneg %p245
      %p399 = pneg %p242
      %p400 = scmp.lt.s32.totalorder %s29, 1
      %s401 = scalar_select %p400, %s29, 1
      %s402 = smul.addr %s401, 12
      %s403 = smul.addr %s402, 8
      %s404 = scalar_lea.vmem %s9, %s403
      %p405 = pneg %p271
      %p406 = pneg %p268
      %p407 = scmp.lt.s32.totalorder %s29, 1
      %s408 = scalar_select %p407, %s29, 1
      %s409 = smul.addr %s408, 12
      %s410 = smul.addr %s409, 8
      %s411 = scalar_lea.vmem %s10, %s410
      %p412 = pneg %p297
      %p413 = pneg %p294
      %p414 = scmp.lt.s32.totalorder %s29, 1
      %s415 = scalar_select %p414, %s29, 1
      %s416 = scalar_lea.vmem %s11, %s415
      %p417 = scmp.lt.s32.totalorder %s29, 1
      %s418 = scalar_select %p417, %s29, 1
      %s419 = smul.addr %s418, 24
      %s420 = smul.addr %s419, 8
      %s421 = scalar_lea.vmem %s1, %s420
      %s422 = ssub.s32 1, %s29
      %p423 = scmp.lt.s32.totalorder %s422, 1
      %s424 = scalar_select %p423, %s422, 1
      %s425 = smul.addr %s424, 24
      %s426 = smul.addr %s425, 8
      %s427 = scalar_lea.vmem %s2, %s426
      %s428 = ssub.s32 1, %s29
      %p429 = scmp.lt.s32.totalorder %s29, 1
      %s430 = scalar_select %p429, %s29, 1
      %s431 = smul.addr %s430, 2
      %s432 = scalar_lea.vmem %s3, %s431
      %p433 = scmp.lt.s32.totalorder %s29, 1
      %s434 = scalar_select %p433, %s29, 1
      %s435 = smul.addr %s434, 24
      %s436 = smul.addr %s435, 8
      %s437 = scalar_lea.vmem %s7, %s436
      %p438 = scmp.lt.s32.totalorder %s29, 1
      %s439 = scalar_select %p438, %s29, 1
      %s440 = smul.addr %s439, 12
      %s441 = smul.addr %s440, 8
      %s442 = scalar_lea.vmem %s8, %s441
      %p443 = scmp.lt.s32.totalorder %s29, 1
      %s444 = scalar_select %p443, %s29, 1
      %s445 = smul.addr %s444, 12
      %s446 = smul.addr %s445, 8
      %s447 = scalar_lea.vmem %s9, %s446
      %p448 = scmp.lt.s32.totalorder %s29, 1
      %s449 = scalar_select %p448, %s29, 1
      %s450 = smul.addr %s449, 12
      %s451 = smul.addr %s450, 8
      %s452 = scalar_lea.vmem %s10, %s451
      %p453 = scmp.lt.s32.totalorder %s29, 1
      %s454 = scalar_select %p453, %s29, 1
      %s455 = scalar_lea.vmem %s11, %s454
      %v456 = vld [vmem:[%s421] sm:$0xff]
      %v457 = vld [vmem:[%s421 + $0x8] sm:$0xff]
      %v458 = vld [vmem:[%s421 + $0x10] sm:$0xff]
      %v459 = vld [vmem:[%s421 + $0x18] sm:$0xff]
      %v460 = vld [vmem:[%s421 + $0x20] sm:$0xff]
      %v461 = vld [vmem:[%s421 + $0x28] sm:$0xff]
      %v462 = vld [vmem:[%s421 + $0x30] sm:$0xff]
      %v463 = vld [vmem:[%s421 + $0x38] sm:$0xff]
      %v464 = vld [vmem:[%s421 + $0x40] sm:$0xff]
      %v465 = vld [vmem:[%s421 + $0x48] sm:$0xff]
      %v466 = vld [vmem:[%s421 + $0x50] sm:$0xff]
      %v467 = vld [vmem:[%s421 + $0x58] sm:$0xff]
      %v468 = vld [vmem:[%s421 + $0x60] sm:$0xff]
      %v469 = vld [vmem:[%s421 + $0x68] sm:$0xff]
      %v470 = vld [vmem:[%s421 + $0x70] sm:$0xff]
      %v471 = vld [vmem:[%s421 + $0x78] sm:$0xff]
      %v472 = vld [vmem:[%s421 + $0x80] sm:$0x1]
      %v473 = vld [vmem:[%s421 + $0x88] sm:$0x1]
      %v474 = vld [vmem:[%s421 + $0x90] sm:$0x1]
      %v475 = vld [vmem:[%s421 + $0x98] sm:$0x1]
      %v476 = vld [vmem:[%s421 + $0xa0] sm:$0x1]
      %v477 = vld [vmem:[%s421 + $0xa8] sm:$0x1]
      %v478 = vld [vmem:[%s421 + $0xb0] sm:$0x1]
      %v479 = vld [vmem:[%s421 + $0xb8] sm:$0x1]
      %v480 = vld [vmem:[%s427] sm:$0xff]
      %v481 = vld [vmem:[%s427 + $0x8] sm:$0xff]
      %v482 = vld [vmem:[%s427 + $0x10] sm:$0xff]
      %v483 = vld [vmem:[%s427 + $0x18] sm:$0xff]
      %v484 = vld [vmem:[%s427 + $0x20] sm:$0xff]
      %v485 = vld [vmem:[%s427 + $0x28] sm:$0xff]
      %v486 = vld [vmem:[%s427 + $0x30] sm:$0xff]
      %v487 = vld [vmem:[%s427 + $0x38] sm:$0xff]
      %v488 = vld [vmem:[%s427 + $0x40] sm:$0xff]
      %v489 = vld [vmem:[%s427 + $0x48] sm:$0xff]
      %v490 = vld [vmem:[%s427 + $0x50] sm:$0xff]
      %v491 = vld [vmem:[%s427 + $0x58] sm:$0xff]
      %v492 = vld [vmem:[%s427 + $0x60] sm:$0xff]
      %v493 = vld [vmem:[%s427 + $0x68] sm:$0xff]
      %v494 = vld [vmem:[%s427 + $0x70] sm:$0xff]
      %v495 = vld [vmem:[%s427 + $0x78] sm:$0xff]
      %v496 = vld [vmem:[%s427 + $0x80] sm:$0x1]
      %v497 = vld [vmem:[%s427 + $0x88] sm:$0x1]
      %v498 = vld [vmem:[%s427 + $0x90] sm:$0x1]
      %v499 = vld [vmem:[%s427 + $0x98] sm:$0x1]
      %v500 = vld [vmem:[%s427 + $0xa0] sm:$0x1]
      %v501 = vld [vmem:[%s427 + $0xa8] sm:$0x1]
      %v502 = vld [vmem:[%s427 + $0xb0] sm:$0x1]
      %v503 = vld [vmem:[%s427 + $0xb8] sm:$0x1]
      %s504 = sld [smem:[#allocation3 + %s29]]
      %v505 = vstv %s504
      %v506 = vmul.f32 %v480, %v505
      %v507 = vmul.f32 %v481, %v505
      %v508 = vmul.f32 %v482, %v505
      %v509 = vmul.f32 %v483, %v505
      %v510 = vmul.f32 %v488, %v505
      %v511 = vmul.f32 %v489, %v505
      %v512 = vmul.f32 %v490, %v505
      %v513 = vmul.f32 %v491, %v505
      %v514 = vmul.f32 %v496, %v505
      %v515 = vmul.f32 %v497, %v505
      %v516 = vmul.f32 %v498, %v505
      %v517 = vmul.f32 %v499, %v505
      %v518 = vadd.f32 %v456, %v506
      %v519 = vadd.f32 %v457, %v507
      %v520 = vadd.f32 %v458, %v508
      %v521 = vadd.f32 %v459, %v509
      %v522 = vadd.f32 %v464, %v510
      %v523 = vadd.f32 %v465, %v511
      %v524 = vadd.f32 %v466, %v512
      %v525 = vadd.f32 %v467, %v513
      %v526 = vadd.f32 %v472, %v514
      %v527 = vadd.f32 %v473, %v515
      %v528 = vadd.f32 %v474, %v516
      %v529 = vadd.f32 %v475, %v517
      %v530 = vmul.f32 %v518, 0.5
      %v531 = vmul.f32 %v519, 0.5
      %v532 = vmul.f32 %v520, 0.5
      %v533 = vmul.f32 %v521, 0.5
      %v534 = vmul.f32 %v522, 0.5
      %v535 = vmul.f32 %v523, 0.5
      %v536 = vmul.f32 %v524, 0.5
      %v537 = vmul.f32 %v525, 0.5
      %v538 = vmul.f32 %v526, 0.5
      %v539 = vmul.f32 %v527, 0.5
      %v540 = vmul.f32 %v528, 0.5
      %v541 = vmul.f32 %v529, 0.5
      %v542 = vmul.f32 %v484, %v505
      %v543 = vmul.f32 %v485, %v505
      %v544 = vmul.f32 %v486, %v505
      %v545 = vmul.f32 %v487, %v505
      %v546 = vmul.f32 %v492, %v505
      %v547 = vmul.f32 %v493, %v505
      %v548 = vmul.f32 %v494, %v505
      %v549 = vmul.f32 %v495, %v505
      %v550 = vmul.f32 %v500, %v505
      %v551 = vmul.f32 %v501, %v505
      %v552 = vmul.f32 %v502, %v505
      %v553 = vmul.f32 %v503, %v505
      %v554 = vadd.f32 %v460, %v542
      %v555 = vadd.f32 %v461, %v543
      %v556 = vadd.f32 %v462, %v544
      %v557 = vadd.f32 %v463, %v545
      %v558 = vadd.f32 %v468, %v546
      %v559 = vadd.f32 %v469, %v547
      %v560 = vadd.f32 %v470, %v548
      %v561 = vadd.f32 %v471, %v549
      %v562 = vadd.f32 %v476, %v550
      %v563 = vadd.f32 %v477, %v551
      %v564 = vadd.f32 %v478, %v552
      %v565 = vadd.f32 %v479, %v553
      %v566 = vmul.f32 %v554, 0.5
      %v567 = vmul.f32 %v555, 0.5
      %v568 = vmul.f32 %v556, 0.5
      %v569 = vmul.f32 %v557, 0.5
      %v570 = vmul.f32 %v558, 0.5
      %v571 = vmul.f32 %v559, 0.5
      %v572 = vmul.f32 %v560, 0.5
      %v573 = vmul.f32 %v561, 0.5
      %v574 = vmul.f32 %v562, 0.5
      %v575 = vmul.f32 %v563, 0.5
      %v576 = vmul.f32 %v564, 0.5
      %v577 = vmul.f32 %v565, 0.5
      %v578 = vmul.f32 %v530, %v530
      %v579 = vmul.f32 %v531, %v531
      %v580 = vmul.f32 %v534, %v534
      %v581 = vmul.f32 %v535, %v535
      %v582 = vmul.f32 %v538, %v538
      %v583 = vmul.f32 %v539, %v539
      %v584 = vmul.f32 %v566, %v566
      %v585 = vmul.f32 %v567, %v567
      %v586 = vmul.f32 %v570, %v570
      %v587 = vmul.f32 %v571, %v571
      %v588 = vmul.f32 %v574, %v574
      %v589 = vmul.f32 %v575, %v575
      %v590 = vadd.f32 %v578, %v584
      %v591 = vadd.f32 %v579, %v585
      %v592 = vadd.f32 %v580, %v586
      %v593 = vadd.f32 %v581, %v587
      %v594 = vadd.f32 %v582, %v588
      %v595 = vadd.f32 %v583, %v589
      %v596 = vrsqrt.pop %v590
      %v597 = vmul.f32 %v590, %v596
      %vm598 = vcmp.eq.f32.partialorder %v590, inf
      %v599 = vsel %vm598, %v590, %v597
      %vm600 = vcmp.eq.f32.partialorder %v590, 0.0
      %v601 = vand.u32 %v590, 2147483648
      %v602 = vsel %vm600, %v601, %v599
      %v603 = vrsqrt.pop %v591
      %v604 = vmul.f32 %v591, %v603
      %vm605 = vcmp.eq.f32.partialorder %v591, inf
      %v606 = vsel %vm605, %v591, %v604
      %vm607 = vcmp.eq.f32.partialorder %v591, 0.0
      %v608 = vand.u32 %v591, 2147483648
      %v609 = vsel %vm607, %v608, %v606
      %v610 = vrsqrt.pop %v592
      %v611 = vmul.f32 %v592, %v610
      %vm612 = vcmp.eq.f32.partialorder %v592, inf
      %v613 = vsel %vm612, %v592, %v611
      %vm614 = vcmp.eq.f32.partialorder %v592, 0.0
      %v615 = vand.u32 %v592, 2147483648
      %v616 = vsel %vm614, %v615, %v613
      %v617 = vrsqrt.pop %v593
      %v618 = vmul.f32 %v593, %v617
      %vm619 = vcmp.eq.f32.partialorder %v593, inf
      %v620 = vsel %vm619, %v593, %v618
      %vm621 = vcmp.eq.f32.partialorder %v593, 0.0
      %v622 = vand.u32 %v593, 2147483648
      %v623 = vsel %vm621, %v622, %v620
      %v624 = vrsqrt.pop %v594
      %v625 = vmul.f32 %v594, %v624
      %vm626 = vcmp.eq.f32.partialorder %v594, inf
      %v627 = vsel %vm626, %v594, %v625
      %vm628 = vcmp.eq.f32.partialorder %v594, 0.0
      %v629 = vand.u32 %v594, 2147483648
      %v630 = vsel %vm628, %v629, %v627
      %v631 = vrsqrt.pop %v595
      %v632 = vmul.f32 %v595, %v631
      %vm633 = vcmp.eq.f32.partialorder %v595, inf
      %v634 = vsel %vm633, %v595, %v632
      %vm635 = vcmp.eq.f32.partialorder %v595, 0.0
      %v636 = vand.u32 %v595, 2147483648
      %v637 = vsel %vm635, %v636, %v634
      %v638 = vadd.f32 %v602, 1.0
      %v639 = vadd.f32 %v609, 1.0
      %v640 = vadd.f32 %v616, 1.0
      %v641 = vadd.f32 %v623, 1.0
      %v642 = vadd.f32 %v630, 1.0
      %v643 = vadd.f32 %v637, 1.0
      %v644 = vlog2.pop %v638
      %v645 = vmul.f32 %v644, 0.6931472
      %v646 = vlog2.pop %v639
      %v647 = vmul.f32 %v646, 0.6931472
      %v648 = vlog2.pop %v640
      %v649 = vmul.f32 %v648, 0.6931472
      %v650 = vlog2.pop %v641
      %v651 = vmul.f32 %v650, 0.6931472
      %v652 = vlog2.pop %v642
      %v653 = vmul.f32 %v652, 0.6931472
      %v654 = vlog2.pop %v643
      %v655 = vmul.f32 %v654, 0.6931472
      %v656 = vmax.f32 %v645, 0.001
      %v657 = vmax.f32 %v647, 0.001
      %v658 = vmax.f32 %v649, 0.001
      %v659 = vmax.f32 %v651, 0.001
      %v660 = vmax.f32 %v653, 0.001
      %v661 = vmax.f32 %v655, 0.001
      %v662 = vmin.f32 %v656, 10.0
      %v663 = vmin.f32 %v657, 10.0
      %v664 = vmin.f32 %v658, 10.0
      %v665 = vmin.f32 %v659, 10.0
      %v666 = vmin.f32 %v660, 10.0
      %v667 = vmin.f32 %v661, 10.0
      %v668 = vadd.f32 %v530, 1.1920929e-07
      %v669 = vadd.f32 %v531, 1.1920929e-07
      %v670 = vadd.f32 %v534, 1.1920929e-07
      %v671 = vadd.f32 %v535, 1.1920929e-07
      %v672 = vadd.f32 %v538, 1.1920929e-07
      %v673 = vadd.f32 %v539, 1.1920929e-07
      %v674 = vmul.f32 %v668, %v668
      %v675 = vmul.f32 %v669, %v669
      %v676 = vmul.f32 %v670, %v670
      %v677 = vmul.f32 %v671, %v671
      %v678 = vmul.f32 %v672, %v672
      %v679 = vmul.f32 %v673, %v673
      %v680 = vadd.f32 %v674, %v584
      %v681 = vadd.f32 %v675, %v585
      %v682 = vadd.f32 %v676, %v586
      %v683 = vadd.f32 %v677, %v587
      %v684 = vadd.f32 %v678, %v588
      %v685 = vadd.f32 %v679, %v589
      %v686 = vmax.f32 %v680, 1e-30
      %v687 = vmax.f32 %v681, 1e-30
      %v688 = vmax.f32 %v682, 1e-30
      %v689 = vmax.f32 %v683, 1e-30
      %v690 = vmax.f32 %v684, 1e-30
      %v691 = vmax.f32 %v685, 1e-30
      %v692 = vrcp.pop %v686
      %v693 = vmul.f32 1.0, %v692
      %v694 = vrcp.pop %v687
      %v695 = vmul.f32 1.0, %v694
      %v696 = vrcp.pop %v688
      %v697 = vmul.f32 1.0, %v696
      %v698 = vrcp.pop %v689
      %v699 = vmul.f32 1.0, %v698
      %v700 = vrcp.pop %v690
      %v701 = vmul.f32 1.0, %v700
      %v702 = vrcp.pop %v691
      %v703 = vmul.f32 1.0, %v702
      %v704 = vmul.f32 %v456, %v668
      %v705 = vmul.f32 %v457, %v669
      %v706 = vmul.f32 %v464, %v670
      %v707 = vmul.f32 %v465, %v671
      %v708 = vmul.f32 %v472, %v672
      %v709 = vmul.f32 %v473, %v673
      %v710 = vmul.f32 %v460, %v566
      %v711 = vmul.f32 %v461, %v567
      %v712 = vmul.f32 %v468, %v570
      %v713 = vmul.f32 %v469, %v571
      %v714 = vmul.f32 %v476, %v574
      %v715 = vmul.f32 %v477, %v575
      %v716 = vadd.f32 %v704, %v710
      %v717 = vadd.f32 %v705, %v711
      %v718 = vadd.f32 %v706, %v712
      %v719 = vadd.f32 %v707, %v713
      %v720 = vadd.f32 %v708, %v714
      %v721 = vadd.f32 %v709, %v715
      %v722 = vmul.f32 %v693, 0.5
      %v723 = vmul.f32 %v695, 0.5
      %v724 = vmul.f32 %v697, 0.5
      %v725 = vmul.f32 %v699, 0.5
      %v726 = vmul.f32 %v701, 0.5
      %v727 = vmul.f32 %v703, 0.5
      %v728 = vmul.f32 %v716, %v722
      %v729 = vmul.f32 %v717, %v723
      %v730 = vmul.f32 %v718, %v724
      %v731 = vmul.f32 %v719, %v725
      %v732 = vmul.f32 %v720, %v726
      %v733 = vmul.f32 %v721, %v727
      %v734 = vmul.f32 %v460, %v668
      %v735 = vmul.f32 %v461, %v669
      %v736 = vmul.f32 %v468, %v670
      %v737 = vmul.f32 %v469, %v671
      %v738 = vmul.f32 %v476, %v672
      %v739 = vmul.f32 %v477, %v673
      %v740 = vmul.f32 %v456, %v566
      %v741 = vmul.f32 %v457, %v567
      %v742 = vmul.f32 %v464, %v570
      %v743 = vmul.f32 %v465, %v571
      %v744 = vmul.f32 %v472, %v574
      %v745 = vmul.f32 %v473, %v575
      %v746 = vsub.f32 %v734, %v740
      %v747 = vsub.f32 %v735, %v741
      %v748 = vsub.f32 %v736, %v742
      %v749 = vsub.f32 %v737, %v743
      %v750 = vsub.f32 %v738, %v744
      %v751 = vsub.f32 %v739, %v745
      %v752 = vmul.f32 %v746, %v722
      %v753 = vmul.f32 %v747, %v723
      %v754 = vmul.f32 %v748, %v724
      %v755 = vmul.f32 %v749, %v725
      %v756 = vmul.f32 %v750, %v726
      %v757 = vmul.f32 %v751, %v727
      %v758 = vtanh.pop %v728
      %v759 = vtanh.pop %v729
      %v760 = vtanh.pop %v730
      %v761 = vtanh.pop %v731
      %v762 = vtanh.pop %v732
      %v763 = vtanh.pop %v733
      %v764 = vmul.f32 %v758, 10.0
      %v765 = vmul.f32 %v759, 10.0
      %v766 = vmul.f32 %v760, 10.0
      %v767 = vmul.f32 %v761, 10.0
      %v768 = vmul.f32 %v762, 10.0
      %v769 = vmul.f32 %v763, 10.0
      %v770 = vtanh.pop %v752
      %v771 = vtanh.pop %v753
      %v772 = vtanh.pop %v754
      %v773 = vtanh.pop %v755
      %v774 = vtanh.pop %v756
      %v775 = vtanh.pop %v757
      %v776 = vmul.f32 %v770, 10.0
      %v777 = vmul.f32 %v771, 10.0
      %v778 = vmul.f32 %v772, 10.0
      %v779 = vmul.f32 %v773, 10.0
      %v780 = vmul.f32 %v774, 10.0
      %v781 = vmul.f32 %v775, 10.0
      %v782 = vpack.c.bf16 %v534, %v530
      %v783 = vpack.c.bf16 %v535, %v531
      %v784 = vpack.c.bf16 %v538, %v538
      %v785 = vpack.c.bf16 %v539, %v539
      %v786 = vld [vmem:[%s4] sm:$0xff]
      %v787 = vld [vmem:[%s4 + $0x8] sm:$0xff]
      %v788 = vld [vmem:[%s4 + $0x10] sm:$0xff]
      %v789 = vld [vmem:[%s4 + $0x18] sm:$0xff]
      %v790 = vld [vmem:[%s4 + $0x20] sm:$0xff]
      %v791 = vld [vmem:[%s4 + $0x28] sm:$0xff]
      %v792 = vld [vmem:[%s4 + $0x30] sm:$0xff]
      %v793 = vld [vmem:[%s4 + $0x38] sm:$0xff]
      %v794 = vld [vmem:[%s4 + $0x40] sm:$0xff]
      %v795 = vld [vmem:[%s4 + $0x48] sm:$0xff]
      %v796 = vld [vmem:[%s4 + $0x50] sm:$0xff]
      %v797 = vld [vmem:[%s4 + $0x58] sm:$0xff]
      %v798 = vld [vmem:[%s4 + $0x60] sm:$0xff]
      %v799 = vld [vmem:[%s4 + $0x68] sm:$0xff]
      %v800 = vld [vmem:[%s4 + $0x70] sm:$0xff]
      %v801 = vld [vmem:[%s4 + $0x78] sm:$0xff]
      %v802 = vld [vmem:[%s4 + $0x80] sm:$0xff]
      %v803 = vld [vmem:[%s4 + $0x88] sm:$0xff]
      %v804 = vld [vmem:[%s4 + $0x90] sm:$0xff]
      %v805 = vld [vmem:[%s4 + $0x98] sm:$0xff]
      %v806 = vld [vmem:[%s4 + $0xa0] sm:$0xff]
      %v807 = vld [vmem:[%s4 + $0xa8] sm:$0xff]
      %v808 = vld [vmem:[%s4 + $0xb0] sm:$0xff]
      %v809 = vld [vmem:[%s4 + $0xb8] sm:$0xff]
      %v810 = vld [vmem:[%s4 + $0xc0] sm:$0xff]
      %v811 = vld [vmem:[%s4 + $0xc8] sm:$0xff]
      %v812 = vld [vmem:[%s4 + $0xd0] sm:$0xff]
      %v813 = vld [vmem:[%s4 + $0xd8] sm:$0xff]
      %v814 = vld [vmem:[%s4 + $0xe0] sm:$0xff]
      %v815 = vld [vmem:[%s4 + $0xe8] sm:$0xff]
      %v816 = vld [vmem:[%s4 + $0xf0] sm:$0xff]
      %v817 = vld [vmem:[%s4 + $0xf8] sm:$0xff]
      %v818 = vpack.c.bf16 %v570, %v566
      %v819 = vpack.c.bf16 %v571, %v567
      %v820 = vpack.c.bf16 %v574, %v574
      %v821 = vpack.c.bf16 %v575, %v575
      %v822 = vld [vmem:[%s4 + $0x100] sm:$0xff]
      %v823 = vld [vmem:[%s4 + $0x108] sm:$0xff]
      %v824 = vld [vmem:[%s4 + $0x110] sm:$0xff]
      %v825 = vld [vmem:[%s4 + $0x118] sm:$0xff]
      %v826 = vld [vmem:[%s4 + $0x120] sm:$0xff]
      %v827 = vld [vmem:[%s4 + $0x128] sm:$0xff]
      %v828 = vld [vmem:[%s4 + $0x130] sm:$0xff]
      %v829 = vld [vmem:[%s4 + $0x138] sm:$0xff]
      %v830 = vld [vmem:[%s4 + $0x140] sm:$0xff]
      %v831 = vld [vmem:[%s4 + $0x148] sm:$0xff]
      %v832 = vld [vmem:[%s4 + $0x150] sm:$0xff]
      %v833 = vld [vmem:[%s4 + $0x158] sm:$0xff]
      %v834 = vld [vmem:[%s4 + $0x160] sm:$0xff]
      %v835 = vld [vmem:[%s4 + $0x168] sm:$0xff]
      %v836 = vld [vmem:[%s4 + $0x170] sm:$0xff]
      %v837 = vld [vmem:[%s4 + $0x178] sm:$0xff]
      %v838 = vld [vmem:[%s4 + $0x180] sm:$0xff]
      %v839 = vld [vmem:[%s4 + $0x188] sm:$0xff]
      %v840 = vld [vmem:[%s4 + $0x190] sm:$0xff]
      %v841 = vld [vmem:[%s4 + $0x198] sm:$0xff]
      %v842 = vld [vmem:[%s4 + $0x1a0] sm:$0xff]
      %v843 = vld [vmem:[%s4 + $0x1a8] sm:$0xff]
      %v844 = vld [vmem:[%s4 + $0x1b0] sm:$0xff]
      %v845 = vld [vmem:[%s4 + $0x1b8] sm:$0xff]
      %v846 = vld [vmem:[%s4 + $0x1c0] sm:$0xff]
      %v847 = vld [vmem:[%s4 + $0x1c8] sm:$0xff]
      %v848 = vld [vmem:[%s4 + $0x1d0] sm:$0xff]
      %v849 = vld [vmem:[%s4 + $0x1d8] sm:$0xff]
      %v850 = vld [vmem:[%s4 + $0x1e0] sm:$0xff]
      %v851 = vld [vmem:[%s4 + $0x1e8] sm:$0xff]
      %v852 = vld [vmem:[%s4 + $0x1f0] sm:$0xff]
      %v853 = vld [vmem:[%s4 + $0x1f8] sm:$0xff]
      %v886 = vunpack.c.l.b16 %v822
      %v887 = vunpack.c.h.b16 %v822
      %v888 = vunpack.c.l.b16 %v823
      %v889 = vunpack.c.h.b16 %v823
      %v890 = vunpack.c.l.b16 %v824
      %v891 = vunpack.c.h.b16 %v824
      %v892 = vunpack.c.l.b16 %v825
      %v893 = vunpack.c.h.b16 %v825
      %v894 = vunpack.c.l.b16 %v826
      %v895 = vunpack.c.h.b16 %v826
      %v896 = vunpack.c.l.b16 %v827
      %v897 = vunpack.c.h.b16 %v827
      %v898 = vunpack.c.l.b16 %v828
      %v899 = vunpack.c.h.b16 %v828
      %v900 = vunpack.c.l.b16 %v829
      %v901 = vunpack.c.h.b16 %v829
      %v902 = vunpack.c.l.b16 %v830
      %v903 = vunpack.c.h.b16 %v830
      %v904 = vunpack.c.l.b16 %v831
      %v905 = vunpack.c.h.b16 %v831
      %v906 = vunpack.c.l.b16 %v832
      %v907 = vunpack.c.h.b16 %v832
      %v908 = vunpack.c.l.b16 %v833
      %v909 = vunpack.c.h.b16 %v833
      %v910 = vunpack.c.l.b16 %v834
      %v911 = vunpack.c.h.b16 %v834
      %v912 = vunpack.c.l.b16 %v835
      %v913 = vunpack.c.h.b16 %v835
      %v914 = vunpack.c.l.b16 %v836
      %v915 = vunpack.c.h.b16 %v836
      %v916 = vunpack.c.l.b16 %v837
      %v917 = vunpack.c.h.b16 %v837
      %v918 = vunpack.c.l.b16 %v838
      %v919 = vunpack.c.h.b16 %v838
      %v920 = vunpack.c.l.b16 %v839
      %v921 = vunpack.c.h.b16 %v839
      %v922 = vunpack.c.l.b16 %v840
      %v923 = vunpack.c.h.b16 %v840
      %v924 = vunpack.c.l.b16 %v841
      %v925 = vunpack.c.h.b16 %v841
      %v926 = vunpack.c.l.b16 %v842
      %v927 = vunpack.c.h.b16 %v842
      %v928 = vunpack.c.l.b16 %v843
      %v929 = vunpack.c.h.b16 %v843
      %v930 = vunpack.c.l.b16 %v844
      %v931 = vunpack.c.h.b16 %v844
      %v932 = vunpack.c.l.b16 %v845
      %v933 = vunpack.c.h.b16 %v845
      %v934 = vunpack.c.l.b16 %v846
      %v935 = vunpack.c.h.b16 %v846
      %v936 = vunpack.c.l.b16 %v847
      %v937 = vunpack.c.h.b16 %v847
      %v938 = vunpack.c.l.b16 %v848
      %v939 = vunpack.c.h.b16 %v848
      %v940 = vunpack.c.l.b16 %v849
      %v941 = vunpack.c.h.b16 %v849
      %v942 = vunpack.c.l.b16 %v850
      %v943 = vunpack.c.h.b16 %v850
      %v944 = vunpack.c.l.b16 %v851
      %v945 = vunpack.c.h.b16 %v851
      %v946 = vunpack.c.l.b16 %v852
      %v947 = vunpack.c.h.b16 %v852
      %v948 = vunpack.c.l.b16 %v853
      %v949 = vunpack.c.h.b16 %v853
      %v950 = vpack.c.b16 %v888, %v886
      %v951 = vpack.c.b16 %v889, %v887
      %v952 = vpack.c.b16 %v892, %v890
      %v953 = vpack.c.b16 %v893, %v891
      %v954 = vpack.c.b16 %v896, %v894
      %v955 = vpack.c.b16 %v897, %v895
      %v956 = vpack.c.b16 %v900, %v898
      %v957 = vpack.c.b16 %v901, %v899
      %v958 = vpack.c.b16 %v904, %v902
      %v959 = vpack.c.b16 %v905, %v903
      %v960 = vpack.c.b16 %v908, %v906
      %v961 = vpack.c.b16 %v909, %v907
      %v962 = vpack.c.b16 %v912, %v910
      %v963 = vpack.c.b16 %v913, %v911
      %v964 = vpack.c.b16 %v916, %v914
      %v965 = vpack.c.b16 %v917, %v915
      %v966 = vpack.c.b16 %v920, %v918
      %v967 = vpack.c.b16 %v921, %v919
      %v968 = vpack.c.b16 %v924, %v922
      %v969 = vpack.c.b16 %v925, %v923
      %v970 = vpack.c.b16 %v928, %v926
      %v971 = vpack.c.b16 %v929, %v927
      %v972 = vpack.c.b16 %v932, %v930
      %v973 = vpack.c.b16 %v933, %v931
      %v974 = vpack.c.b16 %v936, %v934
      %v975 = vpack.c.b16 %v937, %v935
      %v976 = vpack.c.b16 %v940, %v938
      %v977 = vpack.c.b16 %v941, %v939
      %v978 = vpack.c.b16 %v944, %v942
      %v979 = vpack.c.b16 %v945, %v943
      %v980 = vpack.c.b16 %v948, %v946
      %v981 = vpack.c.b16 %v949, %v947
      %1014 = vmatprep.subr.bf16.mxu0 %v965
      %1015 = vmatpush1.bf16.msra.mxu0 %v964
      %1016 = vmatprep.subr.bf16.mxu0 %v963
      %1017 = vmatpush1.bf16.msra.mxu0 %v962
      %1018 = vmatprep.subr.bf16.mxu0 %v961
      %1019 = vmatpush1.bf16.msra.mxu0 %v960
      %1020 = vmatprep.subr.bf16.mxu0 %v959
      %1021 = vmatpush1.bf16.msra.mxu0 %v958
      %1022 = vmatprep.subr.bf16.mxu0 %v957
      %1023 = vmatpush1.bf16.msra.mxu0 %v956
      %1024 = vmatprep.subr.bf16.mxu0 %v955
      %1025 = vmatpush1.bf16.msra.mxu0 %v954
      %1026 = vmatprep.subr.bf16.mxu0 %v953
      %1027 = vmatpush1.bf16.msra.mxu0 %v952
      %1028 = vmatprep.subr.bf16.mxu0 %v951
      %1029 = vmatpush1.bf16.msra.mxu0 %v950
      %1030 = vmatprep.subr.bf16.mxu0 %v981
      %1031 = vmatpush2.bf16.msra.mxu0 %v980
      %1032 = vmatprep.subr.bf16.mxu0 %v979
      %1033 = vmatpush2.bf16.msra.mxu0 %v978
      %1034 = vmatprep.subr.bf16.mxu0 %v977
      %1035 = vmatpush2.bf16.msra.mxu0 %v976
      %1036 = vmatprep.subr.bf16.mxu0 %v975
      %1037 = vmatpush2.bf16.msra.mxu0 %v974
      %1038 = vmatprep.subr.bf16.mxu0 %v973
      %1039 = vmatpush2.bf16.msra.mxu0 %v972
      %1040 = vmatprep.subr.bf16.mxu0 %v971
      %1041 = vmatpush2.bf16.msra.mxu0 %v970
      %1042 = vmatprep.subr.bf16.mxu0 %v969
      %1043 = vmatpush2.bf16.msra.mxu0 %v968
      %1044 = vmatprep.subr.bf16.mxu0 %v967
      %1045 = vmatpush2.bf16.msra.mxu0 %v966
      %1046 = vmatprep.mubr.bf16.mxu0 %v819
      %1047 = vmatmul.mubr.bf16.gmra.mxu0 %v818
      %v1048 = vpop.f32.mrf.mxu0
      %v1049 = vadd.f32 0.0, %v1048
      %v1050 = vpop.f32.mrf.mxu0
      %v1051 = vadd.f32 0.0, %v1050
      %v1052 = vpop.f32.mrf.mxu0
      %v1053 = vadd.f32 0.0, %v1052
      %v1054 = vpop.f32.mrf.mxu0
      %v1055 = vadd.f32 0.0, %v1054
      %1056 = vmatprep.mubr.bf16.mxu0 %v821
      %1057 = vmatmul.mubr.bf16.gmra.mxu0 %v820
      %v1058 = vpop.f32.mrf.mxu0
      %v1059 = vadd.f32 0.0, %v1058
      %v1060 = vpop.f32.mrf.mxu0
      %v1061 = vadd.f32 0.0, %v1060
      %v1062 = vpop.f32.mrf.mxu0
      %v1063 = vpop.f32.mrf.mxu0
      %1064 = vdwg.mxu0
      %v1097 = vunpack.c.l.b16 %v786
      %v1098 = vunpack.c.h.b16 %v786
      %v1099 = vunpack.c.l.b16 %v787
      %v1100 = vunpack.c.h.b16 %v787
      %v1101 = vunpack.c.l.b16 %v788
      %v1102 = vunpack.c.h.b16 %v788
      %v1103 = vunpack.c.l.b16 %v789
      %v1104 = vunpack.c.h.b16 %v789
      %v1105 = vunpack.c.l.b16 %v790
      %v1106 = vunpack.c.h.b16 %v790
      %v1107 = vunpack.c.l.b16 %v791
      %v1108 = vunpack.c.h.b16 %v791
      %v1109 = vunpack.c.l.b16 %v792
      %v1110 = vunpack.c.h.b16 %v792
      %v1111 = vunpack.c.l.b16 %v793
      %v1112 = vunpack.c.h.b16 %v793
      %v1113 = vunpack.c.l.b16 %v794
      %v1114 = vunpack.c.h.b16 %v794
      %v1115 = vunpack.c.l.b16 %v795
      %v1116 = vunpack.c.h.b16 %v795
      %v1117 = vunpack.c.l.b16 %v796
      %v1118 = vunpack.c.h.b16 %v796
      %v1119 = vunpack.c.l.b16 %v797
      %v1120 = vunpack.c.h.b16 %v797
      %v1121 = vunpack.c.l.b16 %v798
      %v1122 = vunpack.c.h.b16 %v798
      %v1123 = vunpack.c.l.b16 %v799
      %v1124 = vunpack.c.h.b16 %v799
      %v1125 = vunpack.c.l.b16 %v800
      %v1126 = vunpack.c.h.b16 %v800
      %v1127 = vunpack.c.l.b16 %v801
      %v1128 = vunpack.c.h.b16 %v801
      %v1129 = vunpack.c.l.b16 %v802
      %v1130 = vunpack.c.h.b16 %v802
      %v1131 = vunpack.c.l.b16 %v803
      %v1132 = vunpack.c.h.b16 %v803
      %v1133 = vunpack.c.l.b16 %v804
      %v1134 = vunpack.c.h.b16 %v804
      %v1135 = vunpack.c.l.b16 %v805
      %v1136 = vunpack.c.h.b16 %v805
      %v1137 = vunpack.c.l.b16 %v806
      %v1138 = vunpack.c.h.b16 %v806
      %v1139 = vunpack.c.l.b16 %v807
      %v1140 = vunpack.c.h.b16 %v807
      %v1141 = vunpack.c.l.b16 %v808
      %v1142 = vunpack.c.h.b16 %v808
      %v1143 = vunpack.c.l.b16 %v809
      %v1144 = vunpack.c.h.b16 %v809
      %v1145 = vunpack.c.l.b16 %v810
      %v1146 = vunpack.c.h.b16 %v810
      %v1147 = vunpack.c.l.b16 %v811
      %v1148 = vunpack.c.h.b16 %v811
      %v1149 = vunpack.c.l.b16 %v812
      %v1150 = vunpack.c.h.b16 %v812
      %v1151 = vunpack.c.l.b16 %v813
      %v1152 = vunpack.c.h.b16 %v813
      %v1153 = vunpack.c.l.b16 %v814
      %v1154 = vunpack.c.h.b16 %v814
      %v1155 = vunpack.c.l.b16 %v815
      %v1156 = vunpack.c.h.b16 %v815
      %v1157 = vunpack.c.l.b16 %v816
      %v1158 = vunpack.c.h.b16 %v816
      %v1159 = vunpack.c.l.b16 %v817
      %v1160 = vunpack.c.h.b16 %v817
      %v1161 = vpack.c.b16 %v1099, %v1097
      %v1162 = vpack.c.b16 %v1100, %v1098
      %v1163 = vpack.c.b16 %v1103, %v1101
      %v1164 = vpack.c.b16 %v1104, %v1102
      %v1165 = vpack.c.b16 %v1107, %v1105
      %v1166 = vpack.c.b16 %v1108, %v1106
      %v1167 = vpack.c.b16 %v1111, %v1109
      %v1168 = vpack.c.b16 %v1112, %v1110
      %v1169 = vpack.c.b16 %v1115, %v1113
      %v1170 = vpack.c.b16 %v1116, %v1114
      %v1171 = vpack.c.b16 %v1119, %v1117
      %v1172 = vpack.c.b16 %v1120, %v1118
      %v1173 = vpack.c.b16 %v1123, %v1121
      %v1174 = vpack.c.b16 %v1124, %v1122
      %v1175 = vpack.c.b16 %v1127, %v1125
      %v1176 = vpack.c.b16 %v1128, %v1126
      %v1177 = vpack.c.b16 %v1131, %v1129
      %v1178 = vpack.c.b16 %v1132, %v1130
      %v1179 = vpack.c.b16 %v1135, %v1133
      %v1180 = vpack.c.b16 %v1136, %v1134
      %v1181 = vpack.c.b16 %v1139, %v1137
      %v1182 = vpack.c.b16 %v1140, %v1138
      %v1183 = vpack.c.b16 %v1143, %v1141
      %v1184 = vpack.c.b16 %v1144, %v1142
      %v1185 = vpack.c.b16 %v1147, %v1145
      %v1186 = vpack.c.b16 %v1148, %v1146
      %v1187 = vpack.c.b16 %v1151, %v1149
      %v1188 = vpack.c.b16 %v1152, %v1150
      %v1189 = vpack.c.b16 %v1155, %v1153
      %v1190 = vpack.c.b16 %v1156, %v1154
      %v1191 = vpack.c.b16 %v1159, %v1157
      %v1192 = vpack.c.b16 %v1160, %v1158
      %1225 = vmatprep.subr.bf16.mxu0 %v1176
      %1226 = vmatpush1.bf16.msra.mxu0 %v1175
      %1227 = vmatprep.subr.bf16.mxu0 %v1174
      %1228 = vmatpush1.bf16.msra.mxu0 %v1173
      %1229 = vmatprep.subr.bf16.mxu0 %v1172
      %1230 = vmatpush1.bf16.msra.mxu0 %v1171
      %1231 = vmatprep.subr.bf16.mxu0 %v1170
      %1232 = vmatpush1.bf16.msra.mxu0 %v1169
      %1233 = vmatprep.subr.bf16.mxu0 %v1168
      %1234 = vmatpush1.bf16.msra.mxu0 %v1167
      %1235 = vmatprep.subr.bf16.mxu0 %v1166
      %1236 = vmatpush1.bf16.msra.mxu0 %v1165
      %1237 = vmatprep.subr.bf16.mxu0 %v1164
      %1238 = vmatpush1.bf16.msra.mxu0 %v1163
      %1239 = vmatprep.subr.bf16.mxu0 %v1162
      %1240 = vmatpush1.bf16.msra.mxu0 %v1161
      %1241 = vmatprep.subr.bf16.mxu0 %v1192
      %1242 = vmatpush2.bf16.msra.mxu0 %v1191
      %1243 = vmatprep.subr.bf16.mxu0 %v1190
      %1244 = vmatpush2.bf16.msra.mxu0 %v1189
      %1245 = vmatprep.subr.bf16.mxu0 %v1188
      %1246 = vmatpush2.bf16.msra.mxu0 %v1187
      %1247 = vmatprep.subr.bf16.mxu0 %v1186
      %1248 = vmatpush2.bf16.msra.mxu0 %v1185
      %1249 = vmatprep.subr.bf16.mxu0 %v1184
      %1250 = vmatpush2.bf16.msra.mxu0 %v1183
      %1251 = vmatprep.subr.bf16.mxu0 %v1182
      %1252 = vmatpush2.bf16.msra.mxu0 %v1181
      %1253 = vmatprep.subr.bf16.mxu0 %v1180
      %1254 = vmatpush2.bf16.msra.mxu0 %v1179
      %1255 = vmatprep.subr.bf16.mxu0 %v1178
      %1256 = vmatpush2.bf16.msra.mxu0 %v1177
      %1257 = vmatprep.mubr.bf16.mxu0 %v783
      %1258 = vmatmul.mubr.bf16.gmra.mxu0 %v782
      %v1259 = vpop.f32.mrf.mxu0
      %v1260 = vadd.f32 %v1049, %v1259
      %v1261 = vpop.f32.mrf.mxu0
      %v1262 = vadd.f32 %v1051, %v1261
      %v1263 = vpop.f32.mrf.mxu0
      %v1264 = vadd.f32 %v1053, %v1263
      %v1265 = vpop.f32.mrf.mxu0
      %v1266 = vadd.f32 %v1055, %v1265
      %1267 = vmatprep.mubr.bf16.mxu0 %v785
      %1268 = vmatmul.mubr.bf16.gmra.mxu0 %v784
      %v1269 = vpop.f32.mrf.mxu0
      %v1270 = vadd.f32 %v1059, %v1269
      %v1271 = vpop.f32.mrf.mxu0
      %v1272 = vadd.f32 %v1061, %v1271
      %v1273 = vpop.f32.mrf.mxu0
      %v1274 = vpop.f32.mrf.mxu0
      %1275 = vdwg.mxu0
      %v1276 = vld [vmem:[%s432] sm:$0x3]
      %v1278 = vlaneseq
      %v1279 = vshrl.u32 %v1278, 7
      %v1280 = vsub.s32 0, %v1279
      %v1281 = vrot.slane %v1276, %v1280
      %v1282 = vlaneseq
      %v1283 = vshrl.u32 %v1282, 7
      %v1284 = vsub.s32 1, %v1283
      %v1285 = vrot.slane %v1276, %v1284
      %v1288 = vadd.f32 %v1260, %v1281
      %v1289 = vadd.f32 %v1262, %v1285
      %v1290 = vadd.f32 %v1264, %v1281
      %v1291 = vadd.f32 %v1266, %v1285
      %v1292 = vadd.f32 %v1270, %v1281
      %v1293 = vadd.f32 %v1272, %v1285
      %v1294 = vtanh.pop %v1288
      %v1295 = vtanh.pop %v1289
      %v1296 = vtanh.pop %v1290
      %v1297 = vtanh.pop %v1291
      %v1298 = vtanh.pop %v1292
      %v1299 = vtanh.pop %v1293
      %v1300 = vpack.c.bf16 %v1296, %v1294
      %v1301 = vpack.c.bf16 %v1297, %v1295
      %v1302 = vpack.c.bf16 %v1298, %v1298
      %v1303 = vpack.c.bf16 %v1299, %v1299
      %v1304 = vld [vmem:[%s5] sm:$0xff]
      %v1305 = vld [vmem:[%s5 + $0x8] sm:$0xff]
      %v1306 = vld [vmem:[%s5 + $0x10] sm:$0xff]
      %v1307 = vld [vmem:[%s5 + $0x18] sm:$0xff]
      %v1308 = vld [vmem:[%s5 + $0x20] sm:$0xff]
      %v1309 = vld [vmem:[%s5 + $0x28] sm:$0xff]
      %v1310 = vld [vmem:[%s5 + $0x30] sm:$0xff]
      %v1311 = vld [vmem:[%s5 + $0x38] sm:$0xff]
      %v1312 = vld [vmem:[%s5 + $0x40] sm:$0xff]
      %v1313 = vld [vmem:[%s5 + $0x48] sm:$0xff]
      %v1314 = vld [vmem:[%s5 + $0x50] sm:$0xff]
      %v1315 = vld [vmem:[%s5 + $0x58] sm:$0xff]
      %v1316 = vld [vmem:[%s5 + $0x60] sm:$0xff]
      %v1317 = vld [vmem:[%s5 + $0x68] sm:$0xff]
      %v1318 = vld [vmem:[%s5 + $0x70] sm:$0xff]
      %v1319 = vld [vmem:[%s5 + $0x78] sm:$0xff]
      %v1320 = vld [vmem:[%s5 + $0x80] sm:$0xff]
      %v1321 = vld [vmem:[%s5 + $0x88] sm:$0xff]
      %v1322 = vld [vmem:[%s5 + $0x90] sm:$0xff]
      %v1323 = vld [vmem:[%s5 + $0x98] sm:$0xff]
      %v1324 = vld [vmem:[%s5 + $0xa0] sm:$0xff]
      %v1325 = vld [vmem:[%s5 + $0xa8] sm:$0xff]
      %v1326 = vld [vmem:[%s5 + $0xb0] sm:$0xff]
      %v1327 = vld [vmem:[%s5 + $0xb8] sm:$0xff]
      %v1328 = vld [vmem:[%s5 + $0xc0] sm:$0xff]
      %v1329 = vld [vmem:[%s5 + $0xc8] sm:$0xff]
      %v1330 = vld [vmem:[%s5 + $0xd0] sm:$0xff]
      %v1331 = vld [vmem:[%s5 + $0xd8] sm:$0xff]
      %v1332 = vld [vmem:[%s5 + $0xe0] sm:$0xff]
      %v1333 = vld [vmem:[%s5 + $0xe8] sm:$0xff]
      %v1334 = vld [vmem:[%s5 + $0xf0] sm:$0xff]
      %v1335 = vld [vmem:[%s5 + $0xf8] sm:$0xff]
      %v1336 = vld [vmem:[%s5 + $0x100] sm:$0xff]
      %v1337 = vld [vmem:[%s5 + $0x108] sm:$0xff]
      %v1338 = vld [vmem:[%s5 + $0x110] sm:$0xff]
      %v1339 = vld [vmem:[%s5 + $0x118] sm:$0xff]
      %v1340 = vld [vmem:[%s5 + $0x120] sm:$0xff]
      %v1341 = vld [vmem:[%s5 + $0x128] sm:$0xff]
      %v1342 = vld [vmem:[%s5 + $0x130] sm:$0xff]
      %v1343 = vld [vmem:[%s5 + $0x138] sm:$0xff]
      %v1344 = vld [vmem:[%s5 + $0x140] sm:$0xff]
      %v1345 = vld [vmem:[%s5 + $0x148] sm:$0xff]
      %v1346 = vld [vmem:[%s5 + $0x150] sm:$0xff]
      %v1347 = vld [vmem:[%s5 + $0x158] sm:$0xff]
      %v1348 = vld [vmem:[%s5 + $0x160] sm:$0xff]
      %v1349 = vld [vmem:[%s5 + $0x168] sm:$0xff]
      %v1350 = vld [vmem:[%s5 + $0x170] sm:$0xff]
      %v1351 = vld [vmem:[%s5 + $0x178] sm:$0xff]
      %v1352 = vld [vmem:[%s5 + $0x180] sm:$0xff]
      %v1353 = vld [vmem:[%s5 + $0x188] sm:$0xff]
      %v1354 = vld [vmem:[%s5 + $0x190] sm:$0xff]
      %v1355 = vld [vmem:[%s5 + $0x198] sm:$0xff]
      %v1356 = vld [vmem:[%s5 + $0x1a0] sm:$0xff]
      %v1357 = vld [vmem:[%s5 + $0x1a8] sm:$0xff]
      %v1358 = vld [vmem:[%s5 + $0x1b0] sm:$0xff]
      %v1359 = vld [vmem:[%s5 + $0x1b8] sm:$0xff]
      %v1360 = vld [vmem:[%s5 + $0x1c0] sm:$0xff]
      %v1361 = vld [vmem:[%s5 + $0x1c8] sm:$0xff]
      %v1362 = vld [vmem:[%s5 + $0x1d0] sm:$0xff]
      %v1363 = vld [vmem:[%s5 + $0x1d8] sm:$0xff]
      %v1364 = vld [vmem:[%s5 + $0x1e0] sm:$0xff]
      %v1365 = vld [vmem:[%s5 + $0x1e8] sm:$0xff]
      %v1366 = vld [vmem:[%s5 + $0x1f0] sm:$0xff]
      %v1367 = vld [vmem:[%s5 + $0x1f8] sm:$0xff]
      %v1368 = vld [vmem:[%s6] sm:$0xf]
      %v1370 = vlaneseq
      %v1371 = vshrl.u32 %v1370, 7
      %v1372 = vsub.s32 0, %v1371
      %v1373 = vrot.slane %v1368, %v1372
      %v1374 = vlaneseq
      %v1375 = vshrl.u32 %v1374, 7
      %v1376 = vsub.s32 1, %v1375
      %v1377 = vrot.slane %v1368, %v1376
      %v1378 = vlaneseq
      %v1379 = vshrl.u32 %v1378, 7
      %v1380 = vsub.s32 2, %v1379
      %v1381 = vrot.slane %v1368, %v1380
      %v1382 = vlaneseq
      %v1383 = vshrl.u32 %v1382, 7
      %v1384 = vsub.s32 3, %v1383
      %v1385 = vrot.slane %v1368, %v1384
      %v1454 = vunpack.c.l.b16 %v1304
      %v1455 = vunpack.c.h.b16 %v1304
      %v1456 = vunpack.c.l.b16 %v1305
      %v1457 = vunpack.c.h.b16 %v1305
      %v1458 = vunpack.c.l.b16 %v1306
      %v1459 = vunpack.c.h.b16 %v1306
      %v1460 = vunpack.c.l.b16 %v1307
      %v1461 = vunpack.c.h.b16 %v1307
      %v1462 = vunpack.c.l.b16 %v1308
      %v1463 = vunpack.c.h.b16 %v1308
      %v1464 = vunpack.c.l.b16 %v1309
      %v1465 = vunpack.c.h.b16 %v1309
      %v1466 = vunpack.c.l.b16 %v1310
      %v1467 = vunpack.c.h.b16 %v1310
      %v1468 = vunpack.c.l.b16 %v1311
      %v1469 = vunpack.c.h.b16 %v1311
      %v1470 = vunpack.c.l.b16 %v1312
      %v1471 = vunpack.c.h.b16 %v1312
      %v1472 = vunpack.c.l.b16 %v1313
      %v1473 = vunpack.c.h.b16 %v1313
      %v1474 = vunpack.c.l.b16 %v1314
      %v1475 = vunpack.c.h.b16 %v1314
      %v1476 = vunpack.c.l.b16 %v1315
      %v1477 = vunpack.c.h.b16 %v1315
      %v1478 = vunpack.c.l.b16 %v1316
      %v1479 = vunpack.c.h.b16 %v1316
      %v1480 = vunpack.c.l.b16 %v1317
      %v1481 = vunpack.c.h.b16 %v1317
      %v1482 = vunpack.c.l.b16 %v1318
      %v1483 = vunpack.c.h.b16 %v1318
      %v1484 = vunpack.c.l.b16 %v1319
      %v1485 = vunpack.c.h.b16 %v1319
      %v1486 = vunpack.c.l.b16 %v1320
      %v1487 = vunpack.c.h.b16 %v1320
      %v1488 = vunpack.c.l.b16 %v1321
      %v1489 = vunpack.c.h.b16 %v1321
      %v1490 = vunpack.c.l.b16 %v1322
      %v1491 = vunpack.c.h.b16 %v1322
      %v1492 = vunpack.c.l.b16 %v1323
      %v1493 = vunpack.c.h.b16 %v1323
      %v1494 = vunpack.c.l.b16 %v1324
      %v1495 = vunpack.c.h.b16 %v1324
      %v1496 = vunpack.c.l.b16 %v1325
      %v1497 = vunpack.c.h.b16 %v1325
      %v1498 = vunpack.c.l.b16 %v1326
      %v1499 = vunpack.c.h.b16 %v1326
      %v1500 = vunpack.c.l.b16 %v1327
      %v1501 = vunpack.c.h.b16 %v1327
      %v1502 = vunpack.c.l.b16 %v1328
      %v1503 = vunpack.c.h.b16 %v1328
      %v1504 = vunpack.c.l.b16 %v1329
      %v1505 = vunpack.c.h.b16 %v1329
      %v1506 = vunpack.c.l.b16 %v1330
      %v1507 = vunpack.c.h.b16 %v1330
      %v1508 = vunpack.c.l.b16 %v1331
      %v1509 = vunpack.c.h.b16 %v1331
      %v1510 = vunpack.c.l.b16 %v1332
      %v1511 = vunpack.c.h.b16 %v1332
      %v1512 = vunpack.c.l.b16 %v1333
      %v1513 = vunpack.c.h.b16 %v1333
      %v1514 = vunpack.c.l.b16 %v1334
      %v1515 = vunpack.c.h.b16 %v1334
      %v1516 = vunpack.c.l.b16 %v1335
      %v1517 = vunpack.c.h.b16 %v1335
      %v1518 = vunpack.c.l.b16 %v1336
      %v1519 = vunpack.c.h.b16 %v1336
      %v1520 = vunpack.c.l.b16 %v1337
      %v1521 = vunpack.c.h.b16 %v1337
      %v1522 = vunpack.c.l.b16 %v1338
      %v1523 = vunpack.c.h.b16 %v1338
      %v1524 = vunpack.c.l.b16 %v1339
      %v1525 = vunpack.c.h.b16 %v1339
      %v1526 = vunpack.c.l.b16 %v1340
      %v1527 = vunpack.c.h.b16 %v1340
      %v1528 = vunpack.c.l.b16 %v1341
      %v1529 = vunpack.c.h.b16 %v1341
      %v1530 = vunpack.c.l.b16 %v1342
      %v1531 = vunpack.c.h.b16 %v1342
      %v1532 = vunpack.c.l.b16 %v1343
      %v1533 = vunpack.c.h.b16 %v1343
      %v1534 = vunpack.c.l.b16 %v1344
      %v1535 = vunpack.c.h.b16 %v1344
      %v1536 = vunpack.c.l.b16 %v1345
      %v1537 = vunpack.c.h.b16 %v1345
      %v1538 = vunpack.c.l.b16 %v1346
      %v1539 = vunpack.c.h.b16 %v1346
      %v1540 = vunpack.c.l.b16 %v1347
      %v1541 = vunpack.c.h.b16 %v1347
      %v1542 = vunpack.c.l.b16 %v1348
      %v1543 = vunpack.c.h.b16 %v1348
      %v1544 = vunpack.c.l.b16 %v1349
      %v1545 = vunpack.c.h.b16 %v1349
      %v1546 = vunpack.c.l.b16 %v1350
      %v1547 = vunpack.c.h.b16 %v1350
      %v1548 = vunpack.c.l.b16 %v1351
      %v1549 = vunpack.c.h.b16 %v1351
      %v1550 = vunpack.c.l.b16 %v1352
      %v1551 = vunpack.c.h.b16 %v1352
      %v1552 = vunpack.c.l.b16 %v1353
      %v1553 = vunpack.c.h.b16 %v1353
      %v1554 = vunpack.c.l.b16 %v1354
      %v1555 = vunpack.c.h.b16 %v1354
      %v1556 = vunpack.c.l.b16 %v1355
      %v1557 = vunpack.c.h.b16 %v1355
      %v1558 = vunpack.c.l.b16 %v1356
      %v1559 = vunpack.c.h.b16 %v1356
      %v1560 = vunpack.c.l.b16 %v1357
      %v1561 = vunpack.c.h.b16 %v1357
      %v1562 = vunpack.c.l.b16 %v1358
      %v1563 = vunpack.c.h.b16 %v1358
      %v1564 = vunpack.c.l.b16 %v1359
      %v1565 = vunpack.c.h.b16 %v1359
      %v1566 = vunpack.c.l.b16 %v1360
      %v1567 = vunpack.c.h.b16 %v1360
      %v1568 = vunpack.c.l.b16 %v1361
      %v1569 = vunpack.c.h.b16 %v1361
      %v1570 = vunpack.c.l.b16 %v1362
      %v1571 = vunpack.c.h.b16 %v1362
      %v1572 = vunpack.c.l.b16 %v1363
      %v1573 = vunpack.c.h.b16 %v1363
      %v1574 = vunpack.c.l.b16 %v1364
      %v1575 = vunpack.c.h.b16 %v1364
      %v1576 = vunpack.c.l.b16 %v1365
      %v1577 = vunpack.c.h.b16 %v1365
      %v1578 = vunpack.c.l.b16 %v1366
      %v1579 = vunpack.c.h.b16 %v1366
      %v1580 = vunpack.c.l.b16 %v1367
      %v1581 = vunpack.c.h.b16 %v1367
      %v1582 = vpack.c.b16 %v1458, %v1454
      %v1583 = vpack.c.b16 %v1459, %v1455
      %v1584 = vpack.c.b16 %v1460, %v1456
      %v1585 = vpack.c.b16 %v1461, %v1457
      %v1586 = vpack.c.b16 %v1466, %v1462
      %v1587 = vpack.c.b16 %v1467, %v1463
      %v1588 = vpack.c.b16 %v1468, %v1464
      %v1589 = vpack.c.b16 %v1469, %v1465
      %v1590 = vpack.c.b16 %v1474, %v1470
      %v1591 = vpack.c.b16 %v1475, %v1471
      %v1592 = vpack.c.b16 %v1476, %v1472
      %v1593 = vpack.c.b16 %v1477, %v1473
      %v1594 = vpack.c.b16 %v1482, %v1478
      %v1595 = vpack.c.b16 %v1483, %v1479
      %v1596 = vpack.c.b16 %v1484, %v1480
      %v1597 = vpack.c.b16 %v1485, %v1481
      %v1598 = vpack.c.b16 %v1490, %v1486
      %v1599 = vpack.c.b16 %v1491, %v1487
      %v1600 = vpack.c.b16 %v1492, %v1488
      %v1601 = vpack.c.b16 %v1493, %v1489
      %v1602 = vpack.c.b16 %v1498, %v1494
      %v1603 = vpack.c.b16 %v1499, %v1495
      %v1604 = vpack.c.b16 %v1500, %v1496
      %v1605 = vpack.c.b16 %v1501, %v1497
      %v1606 = vpack.c.b16 %v1506, %v1502
      %v1607 = vpack.c.b16 %v1507, %v1503
      %v1608 = vpack.c.b16 %v1508, %v1504
      %v1609 = vpack.c.b16 %v1509, %v1505
      %v1610 = vpack.c.b16 %v1514, %v1510
      %v1611 = vpack.c.b16 %v1515, %v1511
      %v1612 = vpack.c.b16 %v1516, %v1512
      %v1613 = vpack.c.b16 %v1517, %v1513
      %v1614 = vpack.c.b16 %v1522, %v1518
      %v1615 = vpack.c.b16 %v1523, %v1519
      %v1616 = vpack.c.b16 %v1524, %v1520
      %v1617 = vpack.c.b16 %v1525, %v1521
      %v1618 = vpack.c.b16 %v1530, %v1526
      %v1619 = vpack.c.b16 %v1531, %v1527
      %v1620 = vpack.c.b16 %v1532, %v1528
      %v1621 = vpack.c.b16 %v1533, %v1529
      %v1622 = vpack.c.b16 %v1538, %v1534
      %v1623 = vpack.c.b16 %v1539, %v1535
      %v1624 = vpack.c.b16 %v1540, %v1536
      %v1625 = vpack.c.b16 %v1541, %v1537
      %v1626 = vpack.c.b16 %v1546, %v1542
      %v1627 = vpack.c.b16 %v1547, %v1543
      %v1628 = vpack.c.b16 %v1548, %v1544
      %v1629 = vpack.c.b16 %v1549, %v1545
      %v1630 = vpack.c.b16 %v1554, %v1550
      %v1631 = vpack.c.b16 %v1555, %v1551
      %v1632 = vpack.c.b16 %v1556, %v1552
      %v1633 = vpack.c.b16 %v1557, %v1553
      %v1634 = vpack.c.b16 %v1562, %v1558
      %v1635 = vpack.c.b16 %v1563, %v1559
      %v1636 = vpack.c.b16 %v1564, %v1560
      %v1637 = vpack.c.b16 %v1565, %v1561
      %v1638 = vpack.c.b16 %v1570, %v1566
      %v1639 = vpack.c.b16 %v1571, %v1567
      %v1640 = vpack.c.b16 %v1572, %v1568
      %v1641 = vpack.c.b16 %v1573, %v1569
      %v1642 = vpack.c.b16 %v1578, %v1574
      %v1643 = vpack.c.b16 %v1579, %v1575
      %v1644 = vpack.c.b16 %v1580, %v1576
      %v1645 = vpack.c.b16 %v1581, %v1577
      %1710 = vmatprep.subr.bf16.mxu0 %v1611
      %1711 = vmatpush1.bf16.msra.mxu0 %v1610
      %1712 = vmatprep.subr.bf16.mxu0 %v1607
      %1713 = vmatpush1.bf16.msra.mxu0 %v1606
      %1714 = vmatprep.subr.bf16.mxu0 %v1603
      %1715 = vmatpush1.bf16.msra.mxu0 %v1602
      %1716 = vmatprep.subr.bf16.mxu0 %v1599
      %1717 = vmatpush1.bf16.msra.mxu0 %v1598
      %1718 = vmatprep.subr.bf16.mxu0 %v1595
      %1719 = vmatpush1.bf16.msra.mxu0 %v1594
      %1720 = vmatprep.subr.bf16.mxu0 %v1591
      %1721 = vmatpush1.bf16.msra.mxu0 %v1590
      %1722 = vmatprep.subr.bf16.mxu0 %v1587
      %1723 = vmatpush1.bf16.msra.mxu0 %v1586
      %1724 = vmatprep.subr.bf16.mxu0 %v1583
      %1725 = vmatpush1.bf16.msra.mxu0 %v1582
      %1726 = vmatprep.subr.bf16.mxu0 %v1643
      %1727 = vmatpush2.bf16.msra.mxu0 %v1642
      %1728 = vmatprep.subr.bf16.mxu0 %v1639
      %1729 = vmatpush2.bf16.msra.mxu0 %v1638
      %1730 = vmatprep.subr.bf16.mxu0 %v1635
      %1731 = vmatpush2.bf16.msra.mxu0 %v1634
      %1732 = vmatprep.subr.bf16.mxu0 %v1631
      %1733 = vmatpush2.bf16.msra.mxu0 %v1630
      %1734 = vmatprep.subr.bf16.mxu0 %v1627
      %1735 = vmatpush2.bf16.msra.mxu0 %v1626
      %1736 = vmatprep.subr.bf16.mxu0 %v1623
      %1737 = vmatpush2.bf16.msra.mxu0 %v1622
      %1738 = vmatprep.subr.bf16.mxu0 %v1619
      %1739 = vmatpush2.bf16.msra.mxu0 %v1618
      %1740 = vmatprep.subr.bf16.mxu0 %v1615
      %1741 = vmatpush2.bf16.msra.mxu0 %v1614
      %1742 = vmatprep.mubr.bf16.mxu0 %v1301
      %1743 = vmatmul.mubr.bf16.gmra.mxu0 %v1300
      %v1744 = vpop.f32.mrf.mxu0
      %v1745 = vadd.f32 %v1373, %v1744
      %v1746 = vpop.f32.mrf.mxu0
      %v1747 = vadd.f32 %v1377, %v1746
      %v1748 = vpop.f32.mrf.mxu0
      %v1749 = vadd.f32 %v1373, %v1748
      %v1750 = vpop.f32.mrf.mxu0
      %v1751 = vadd.f32 %v1377, %v1750
      %1752 = vmatprep.mubr.bf16.mxu0 %v1303
      %1753 = vmatmul.mubr.bf16.gmra.mxu0 %v1302
      %v1754 = vpop.f32.mrf.mxu0
      %v1755 = vadd.f32 %v1373, %v1754
      %v1756 = vpop.f32.mrf.mxu0
      %v1757 = vadd.f32 %v1377, %v1756
      %v1758 = vpop.f32.mrf.mxu0
      %v1759 = vpop.f32.mrf.mxu0
      %1760 = vdwg.mxu0
      %1761 = vmatprep.subr.bf16.mxu0 %v1613
      %1762 = vmatpush1.bf16.msra.mxu0 %v1612
      %1763 = vmatprep.subr.bf16.mxu0 %v1609
      %1764 = vmatpush1.bf16.msra.mxu0 %v1608
      %1765 = vmatprep.subr.bf16.mxu0 %v1605
      %1766 = vmatpush1.bf16.msra.mxu0 %v1604
      %1767 = vmatprep.subr.bf16.mxu0 %v1601
      %1768 = vmatpush1.bf16.msra.mxu0 %v1600
      %1769 = vmatprep.subr.bf16.mxu0 %v1597
      %1770 = vmatpush1.bf16.msra.mxu0 %v1596
      %1771 = vmatprep.subr.bf16.mxu0 %v1593
      %1772 = vmatpush1.bf16.msra.mxu0 %v1592
      %1773 = vmatprep.subr.bf16.mxu0 %v1589
      %1774 = vmatpush1.bf16.msra.mxu0 %v1588
      %1775 = vmatprep.subr.bf16.mxu0 %v1585
      %1776 = vmatpush1.bf16.msra.mxu0 %v1584
      %1777 = vmatprep.subr.bf16.mxu0 %v1645
      %1778 = vmatpush2.bf16.msra.mxu0 %v1644
      %1779 = vmatprep.subr.bf16.mxu0 %v1641
      %1780 = vmatpush2.bf16.msra.mxu0 %v1640
      %1781 = vmatprep.subr.bf16.mxu0 %v1637
      %1782 = vmatpush2.bf16.msra.mxu0 %v1636
      %1783 = vmatprep.subr.bf16.mxu0 %v1633
      %1784 = vmatpush2.bf16.msra.mxu0 %v1632
      %1785 = vmatprep.subr.bf16.mxu0 %v1629
      %1786 = vmatpush2.bf16.msra.mxu0 %v1628
      %1787 = vmatprep.subr.bf16.mxu0 %v1625
      %1788 = vmatpush2.bf16.msra.mxu0 %v1624
      %1789 = vmatprep.subr.bf16.mxu0 %v1621
      %1790 = vmatpush2.bf16.msra.mxu0 %v1620
      %1791 = vmatprep.subr.bf16.mxu0 %v1617
      %1792 = vmatpush2.bf16.msra.mxu0 %v1616
      %1793 = vmatprep.mubr.bf16.mxu0 %v1301
      %1794 = vmatmul.mubr.bf16.gmra.mxu0 %v1300
      %v1795 = vpop.f32.mrf.mxu0
      %v1796 = vadd.f32 %v1381, %v1795
      %v1797 = vpop.f32.mrf.mxu0
      %v1798 = vadd.f32 %v1385, %v1797
      %v1799 = vpop.f32.mrf.mxu0
      %v1800 = vadd.f32 %v1381, %v1799
      %v1801 = vpop.f32.mrf.mxu0
      %v1802 = vadd.f32 %v1385, %v1801
      %1803 = vmatprep.mubr.bf16.mxu0 %v1303
      %1804 = vmatmul.mubr.bf16.gmra.mxu0 %v1302
      %v1805 = vpop.f32.mrf.mxu0
      %v1806 = vadd.f32 %v1381, %v1805
      %v1807 = vpop.f32.mrf.mxu0
      %v1808 = vadd.f32 %v1385, %v1807
      %v1809 = vpop.f32.mrf.mxu0
      %v1810 = vpop.f32.mrf.mxu0
      %1811 = vdwg.mxu0
      %v1812 = vtanh.pop %v1745
      %v1813 = vtanh.pop %v1747
      %v1814 = vtanh.pop %v1796
      %v1815 = vtanh.pop %v1798
      %v1816 = vtanh.pop %v1749
      %v1817 = vtanh.pop %v1751
      %v1818 = vtanh.pop %v1800
      %v1819 = vtanh.pop %v1802
      %v1820 = vtanh.pop %v1755
      %v1821 = vtanh.pop %v1757
      %v1822 = vtanh.pop %v1806
      %v1823 = vtanh.pop %v1808
      %v1824 = vmul.f32 %v1812, 10.0
      %v1825 = vmul.f32 %v1813, 10.0
      %v1826 = vmul.f32 %v1814, 10.0
      %v1827 = vmul.f32 %v1815, 10.0
      %v1828 = vmul.f32 %v1816, 10.0
      %v1829 = vmul.f32 %v1817, 10.0
      %v1830 = vmul.f32 %v1818, 10.0
      %v1831 = vmul.f32 %v1819, 10.0
      %v1832 = vmul.f32 %v1820, 10.0
      %v1833 = vmul.f32 %v1821, 10.0
      %v1834 = vmul.f32 %v1822, 10.0
      %v1835 = vmul.f32 %v1823, 10.0
      %1836 = vst [vmem:[%s437] sm:$0xff] %v668
      %1837 = vst [vmem:[%s437 + $0x8] sm:$0xff] %v669
      %1838 = vst [vmem:[%s437 + $0x40] sm:$0xff] %v670
      %1839 = vst [vmem:[%s437 + $0x48] sm:$0xff] %v671
      %1840 = vst [vmem:[%s437 + $0x80] sm:$0x1] %v672
      %1841 = vst [vmem:[%s437 + $0x88] sm:$0x1] %v673
      %1842 = vst [vmem:[%s437 + $0x10] sm:$0xff] %v532
      %1843 = vst [vmem:[%s437 + $0x18] sm:$0xff] %v533
      %1844 = vst [vmem:[%s437 + $0x50] sm:$0xff] %v536
      %1845 = vst [vmem:[%s437 + $0x58] sm:$0xff] %v537
      %1846 = vst [vmem:[%s437 + $0x90] sm:$0x1] %v540
      %1847 = vst [vmem:[%s437 + $0x98] sm:$0x1] %v541
      %1848 = vst [vmem:[%s437 + $0x20] sm:$0xff] %v566
      %1849 = vst [vmem:[%s437 + $0x28] sm:$0xff] %v567
      %1850 = vst [vmem:[%s437 + $0x30] sm:$0xff] %v568
      %1851 = vst [vmem:[%s437 + $0x38] sm:$0xff] %v569
      %1852 = vst [vmem:[%s437 + $0x60] sm:$0xff] %v570
      %1853 = vst [vmem:[%s437 + $0x68] sm:$0xff] %v571
      %1854 = vst [vmem:[%s437 + $0x70] sm:$0xff] %v572
      %1855 = vst [vmem:[%s437 + $0x78] sm:$0xff] %v573
      %1856 = vst [vmem:[%s437 + $0xa0] sm:$0x1] %v574
      %1857 = vst [vmem:[%s437 + $0xa8] sm:$0x1] %v575
      %1858 = vst [vmem:[%s437 + $0xb0] sm:$0x1] %v576
      %1859 = vst [vmem:[%s437 + $0xb8] sm:$0x1] %v577
      %1860 = vst [vmem:[%s442] sm:$0xff] %v1745
      %1861 = vst [vmem:[%s442 + $0x8] sm:$0xff] %v1747
      %1862 = vst [vmem:[%s442 + $0x10] sm:$0xff] %v1796
      %1863 = vst [vmem:[%s442 + $0x18] sm:$0xff] %v1798
      %1864 = vst [vmem:[%s442 + $0x20] sm:$0xff] %v1749
      %1865 = vst [vmem:[%s442 + $0x28] sm:$0xff] %v1751
      %1866 = vst [vmem:[%s442 + $0x30] sm:$0xff] %v1800
      %1867 = vst [vmem:[%s442 + $0x38] sm:$0xff] %v1802
      %1868 = vst [vmem:[%s442 + $0x40] sm:$0x1] %v1755
      %1869 = vst [vmem:[%s442 + $0x48] sm:$0x1] %v1757
      %1870 = vst [vmem:[%s442 + $0x50] sm:$0x1] %v1806
      %1871 = vst [vmem:[%s442 + $0x58] sm:$0x1] %v1808
      %1872 = vst [vmem:[%s447] sm:$0xff] %v1824
      %1873 = vst [vmem:[%s447 + $0x8] sm:$0xff] %v1825
      %1874 = vst [vmem:[%s447 + $0x10] sm:$0xff] %v1826
      %1875 = vst [vmem:[%s447 + $0x18] sm:$0xff] %v1827
      %1876 = vst [vmem:[%s447 + $0x20] sm:$0xff] %v1828
      %1877 = vst [vmem:[%s447 + $0x28] sm:$0xff] %v1829
      %1878 = vst [vmem:[%s447 + $0x30] sm:$0xff] %v1830
      %1879 = vst [vmem:[%s447 + $0x38] sm:$0xff] %v1831
      %1880 = vst [vmem:[%s447 + $0x40] sm:$0x1] %v1832
      %1881 = vst [vmem:[%s447 + $0x48] sm:$0x1] %v1833
      %1882 = vst [vmem:[%s447 + $0x50] sm:$0x1] %v1834
      %1883 = vst [vmem:[%s447 + $0x58] sm:$0x1] %v1835
      %1884 = vst [vmem:[%s452] sm:$0xff] %v764
      %1885 = vst [vmem:[%s452 + $0x8] sm:$0xff] %v765
      %1886 = vst [vmem:[%s452 + $0x20] sm:$0xff] %v766
      %1887 = vst [vmem:[%s452 + $0x28] sm:$0xff] %v767
      %1888 = vst [vmem:[%s452 + $0x40] sm:$0x1] %v768
      %1889 = vst [vmem:[%s452 + $0x48] sm:$0x1] %v769
      %1890 = vst [vmem:[%s452 + $0x10] sm:$0xff] %v776
      %1891 = vst [vmem:[%s452 + $0x18] sm:$0xff] %v777
      %1892 = vst [vmem:[%s452 + $0x30] sm:$0xff] %v778
      %1893 = vst [vmem:[%s452 + $0x38] sm:$0xff] %v779
      %1894 = vst [vmem:[%s452 + $0x50] sm:$0x1] %v780
      %1895 = vst [vmem:[%s452 + $0x58] sm:$0x1] %v781
      %v1896 = vsub.f32 %v1824, %v764
      %v1897 = vsub.f32 %v1825, %v765
      %v1898 = vsub.f32 %v1828, %v766
      %v1899 = vsub.f32 %v1829, %v767
      %v1900 = vsub.f32 %v1832, %v768
      %v1901 = vsub.f32 %v1833, %v769
      %v1902 = vmul.f32 %v1896, %v1896
      %v1903 = vmul.f32 %v1897, %v1897
      %v1904 = vmul.f32 %v1898, %v1898
      %v1905 = vmul.f32 %v1899, %v1899
      %v1906 = vmul.f32 %v1900, %v1900
      %v1907 = vmul.f32 %v1901, %v1901
      %v1908 = vsub.f32 %v1826, %v776
      %v1909 = vsub.f32 %v1827, %v777
      %v1910 = vsub.f32 %v1830, %v778
      %v1911 = vsub.f32 %v1831, %v779
      %v1912 = vsub.f32 %v1834, %v780
      %v1913 = vsub.f32 %v1835, %v781
      %v1914 = vmul.f32 %v1908, %v1908
      %v1915 = vmul.f32 %v1909, %v1909
      %v1916 = vmul.f32 %v1910, %v1910
      %v1917 = vmul.f32 %v1911, %v1911
      %v1918 = vmul.f32 %v1912, %v1912
      %v1919 = vmul.f32 %v1913, %v1913
      %v1920 = vadd.f32 %v1902, %v1914
      %v1921 = vadd.f32 %v1903, %v1915
      %v1922 = vadd.f32 %v1904, %v1916
      %v1923 = vadd.f32 %v1905, %v1917
      %v1924 = vadd.f32 %v1906, %v1918
      %v1925 = vadd.f32 %v1907, %v1919
      %v1926 = vmul.f32 %v662, %v1920
      %v1927 = vmul.f32 %v663, %v1921
      %v1928 = vmul.f32 %v664, %v1922
      %v1929 = vmul.f32 %v665, %v1923
      %v1930 = vmul.f32 %v666, %v1924
      %v1931 = vmul.f32 %v667, %v1925
      %v1932 = vadd.f32 %v1926, %v1927
      %1933 = vadd.xlane.f32.xlu0 %v1932
      %v1934 = vpop.xlane.xlu0 %1933
      %v1935 = vadd.f32 %v1928, %v1929
      %1936 = vadd.xlane.f32.xlu0 %v1935
      %v1937 = vpop.xlane.xlu0 %1936
      %vm1938 = vcmask 1040384
      %v1939 = vsel %vm1938, %v1930, 0.0
      %v1940 = vsel %vm1938, %v1931, 0.0
      %v1941 = vadd.f32 %v1939, %v1940
      %1942 = vadd.xlane.f32.xlu0 %v1941
      %v1943 = vpop.xlane.xlu0 %1942
      %v1944 = vadd.f32 %v1934, %v1937
      %v1945 = vsel %vm1938, %v1943, 0.0
      %v1946 = vadd.f32 %v1944, %v1945
      %v1947 = vrot.slane %v1946, 4
      %v1948 = vadd.f32 %v1946, %v1947
      %v1949 = vrot.slane %v1948, 2
      %v1950 = vadd.f32 %v1948, %v1949
      %v1951 = vrot.slane %v1950, 1
      %v1952 = vadd.f32 %v1950, %v1951
      %vm1953 = vcmask 0
      %1954 = vst.msk [vmem:[%s455] sm:$0x1] %vm1953, %v1952
      %p1955 = scmp.lt.s32.totalorder %s29, 1
      %s1956 = scalar_select %p1955, %s29, 1
      %s1957 = smul.addr %s1956, 24
      %s1958 = smul.addr %s1957, 8
      %s1959 = scalar_lea.vmem %s7, %s1958
      %p1960 = scmp.lt.s32.totalorder %s29, 1
      %s1961 = scalar_select %p1960, %s29, 1
      %s1962 = smul.addr %s1961, 12
      %s1963 = smul.addr %s1962, 8
      %s1964 = scalar_lea.vmem %s8, %s1963
      %p1965 = scmp.lt.s32.totalorder %s29, 1
      %s1966 = scalar_select %p1965, %s29, 1
      %s1967 = smul.addr %s1966, 12
      %s1968 = smul.addr %s1967, 8
      %s1969 = scalar_lea.vmem %s9, %s1968
      %p1970 = scmp.lt.s32.totalorder %s29, 1
      %s1971 = scalar_select %p1970, %s29, 1
      %s1972 = smul.addr %s1971, 12
      %s1973 = smul.addr %s1972, 8
      %s1974 = scalar_lea.vmem %s10, %s1973
      %p1975 = scmp.lt.s32.totalorder %s29, 1
      %s1976 = scalar_select %p1975, %s29, 1
      %s1977 = scalar_lea.vmem %s11, %s1976
      // Predicated region
      $region45: #{separator_forward.3} parent=43 // pred_check
        %p1978 = pneg %p190
      $region46: #{separator_forward.3} parent=43 // pred_check_branch
        %1980 = sbr.rel (%p1978) target = $region48
      $region47: #{separator_forward.3} parent=43 // pred_region
        _
      $region48: #{separator_forward.3} parent=43 // pred_fallthru
        _
      // Predicated region
      $region49: #{separator_forward.3} parent=43 // pred_check
        %p1981 = pneg %p216
      $region50: #{separator_forward.3} parent=43 // pred_check_branch
        %1983 = sbr.rel (%p1981) target = $region52
      $region51: #{separator_forward.3} parent=43 // pred_region
        _
      $region52: #{separator_forward.3} parent=43 // pred_fallthru
        _
      // Predicated region
      $region53: #{separator_forward.3} parent=43 // pred_check
        %p1984 = pneg %p242
      $region54: #{separator_forward.3} parent=43 // pred_check_branch
        %1986 = sbr.rel (%p1984) target = $region56
      $region55: #{separator_forward.3} parent=43 // pred_region
        _
      $region56: #{separator_forward.3} parent=43 // pred_fallthru
        _
      // Predicated region
      $region57: #{separator_forward.3} parent=43 // pred_check
        %p1987 = pneg %p268
      $region58: #{separator_forward.3} parent=43 // pred_check_branch
        %1989 = sbr.rel (%p1987) target = $region60
      $region59: #{separator_forward.3} parent=43 // pred_region
        _
      $region60: #{separator_forward.3} parent=43 // pred_fallthru
        _
      // Predicated region
      $region61: #{separator_forward.3} parent=43 // pred_check
        %p1990 = pneg %p294
      $region62: #{separator_forward.3} parent=43 // pred_check_branch
        %1992 = sbr.rel (%p1990) target = $region64
      $region63: #{separator_forward.3} parent=43 // pred_region
        _
      $region64: #{separator_forward.3} parent=43 // pred_fallthru
        _
    $region44: #{separator_forward.3} parent=5 // pred_fallthru
      _
    %p1993 = scmp.le.s32.totalorder 2, %s24
    // Predicated region
    $region65: #{separator_forward.3} parent=5 // pred_check
      %p1994 = pneg %p1993
    $region66: #{separator_forward.3} parent=5 // pred_check_branch
      %1996 = sbr.rel (%p1994) target = $region68
    $region67: #{separator_forward.3} parent=5 // pred_region
      %s1997 = ssub.s32 %s24, 2
      // Predicated region
      $region69: #{separator_forward.3} parent=67 // pred_check
        %p1998 = pneg %p196
      $region70: #{separator_forward.3} parent=67 // pred_check_branch
        %2000 = sbr.rel (%p1998) target = $region72
      $region71: #{separator_forward.3} parent=67 // pred_region
        %p2001 = scmp.lt.s32.totalorder %s30, 1
        %s2002 = scalar_select %p2001, %s30, 1
        %s2003 = smul.addr %s2002, 24
        %s2004 = smul.addr %s2003, 8
        %s2005 = scalar_lea.vmem %s7, %s2004
      $region72: #{separator_forward.3} parent=67 // pred_fallthru
        _
      // Predicated region
      $region73: #{separator_forward.3} parent=67 // pred_check
        %p2006 = pneg %p222
      $region74: #{separator_forward.3} parent=67 // pred_check_branch
        %2008 = sbr.rel (%p2006) target = $region76
      $region75: #{separator_forward.3} parent=67 // pred_region
        %p2009 = scmp.lt.s32.totalorder %s30, 1
        %s2010 = scalar_select %p2009, %s30, 1
        %s2011 = smul.addr %s2010, 12
        %s2012 = smul.addr %s2011, 8
        %s2013 = scalar_lea.vmem %s8, %s2012
      $region76: #{separator_forward.3} parent=67 // pred_fallthru
        _
      // Predicated region
      $region77: #{separator_forward.3} parent=67 // pred_check
        %p2014 = pneg %p248
      $region78: #{separator_forward.3} parent=67 // pred_check_branch
        %2016 = sbr.rel (%p2014) target = $region80
      $region79: #{separator_forward.3} parent=67 // pred_region
        %p2017 = scmp.lt.s32.totalorder %s30, 1
        %s2018 = scalar_select %p2017, %s30, 1
        %s2019 = smul.addr %s2018, 12
        %s2020 = smul.addr %s2019, 8
        %s2021 = scalar_lea.vmem %s9, %s2020
      $region80: #{separator_forward.3} parent=67 // pred_fallthru
        _
      // Predicated region
      $region81: #{separator_forward.3} parent=67 // pred_check
        %p2022 = pneg %p274
      $region82: #{separator_forward.3} parent=67 // pred_check_branch
        %2024 = sbr.rel (%p2022) target = $region84
      $region83: #{separator_forward.3} parent=67 // pred_region
        %p2025 = scmp.lt.s32.totalorder %s30, 1
        %s2026 = scalar_select %p2025, %s30, 1
        %s2027 = smul.addr %s2026, 12
        %s2028 = smul.addr %s2027, 8
        %s2029 = scalar_lea.vmem %s10, %s2028
      $region84: #{separator_forward.3} parent=67 // pred_fallthru
        _
      // Predicated region
      $region85: #{separator_forward.3} parent=67 // pred_check
        %p2030 = pneg %p300
      $region86: #{separator_forward.3} parent=67 // pred_check_branch
        %2032 = sbr.rel (%p2030) target = $region88
      $region87: #{separator_forward.3} parent=67 // pred_region
        %p2033 = scmp.lt.s32.totalorder %s30, 1
        %s2034 = scalar_select %p2033, %s30, 1
        %s2035 = scalar_lea.vmem %s11, %s2034
      $region88: #{separator_forward.3} parent=67 // pred_fallthru
        _
    $region68: #{separator_forward.3} parent=5 // pred_fallthru
      _
  $region6: #{separator_forward.3} parent=0 // loop_footer
    %s28 = sadd.s32 1, %s24
  $region7: #{separator_forward.3} parent=0 // loop_footer_branch
    %23 = sbr.rel target = $region3
  $region8: #{separator_forward.3} parent=0 // loop_exit
    _

// kernel: separator_forward.2
$region0: #{separator_forward.2}
  #allocation0 [shape = 'u32[]', space=smem, size = 0x4, offset = 0x4, fixed_abs, tag = 'smem constant byte address 0x4 - core index']
  #allocation1 [shape = 'u32[144,128]{1,0:T(1,128)}', space=vmem, size = 0x12000, scoped, tag = 'internal scratch']
  %s0 = inlined_call_operand.vmem [shape: bf16[2,17,1024], index: 0, kind: input, shape index: {}]
  %s1 = inlined_call_operand.vmem [shape: bf16[1024,1024], index: 1, kind: input, shape index: {}]
  %s2 = inlined_call_operand.vmem [shape: bf16[1024,1024], index: 2, kind: input, shape index: {}]
  %s3 = inlined_call_operand.vmem [shape: f32[2,17,1024], index: 3, kind: output, shape index: {}]
  %s4 = sld [smem:[#allocation0]]
  $region45: #{separator_forward.2} parent=0
    _
  %s6 = ssub.s32 1, %s4
  %s7 = scalar_select 0, %s6, %s4
  loop: start=0, step=1, limit=4
  $region2: #{separator_forward.2} parent=0 // loop_pre_header
    _
  $region3: #{separator_forward.2} parent=0 // loop_header
    %s9 = sphi 0, %s13
    %p10 = scmp.ge.s32.totalorder %s9, 4
    %s16 = sphi 0, %s28
    %s17 = sphi 0, %s24
    %s18 = sphi 0, %s16
    %s19 = sphi 0, %s17
    %s20 = sphi 0, %s18
    %s21 = sphi 0, %s19
    %s33 = sphi 0, %s35
    %s36 = sphi 0, %s33
    %s37 = sphi 0, %s36
    %s53 = sphi 0, %s37
    %s57 = sphi 0, %s57
    %s59 = sphi 0, %s57
    %s60 = sphi 0, %s59
    %s74 = sphi 0, %s60
    %s78 = sphi 0, %s78
    %s80 = sphi 0, %s78
    %s81 = sphi 0, %s80
    %s95 = sphi 0, %s81
    %s103 = sphi 0, %s105
    %s106 = sphi 0, %s103
    %s107 = sphi 0, %s106
    %s123 = sphi 0, %s107
  $region4: #{separator_forward.2} parent=0 // loop_header_branch
    %12 = sbr.rel (%p10) target = $region8
  $region5: #{separator_forward.2} parent=0 // loop_body
    %s14 = ssub.s32 %s9, 1
    %s15 = ssub.s32 %s9, 2
    %s22 = sadd.s32 1, %s17
    %p23 = scmp.ge.s32.totalorder %s22, 1
    %s24 = scalar_select %p23, 0, %s22
    %s25 = sadd.s32 1, %s16
    %s26 = scalar_select %p23, %s25, %s16
    %p27 = scmp.ge.s32.totalorder %s26, 2
    %s28 = scalar_select %p27, 0, %s26
    %s29 = ssub.s32 %s16, %s28
    %s30 = ssub.s32 %s17, %s24
    %s31 = sor.u32 %s29, %s30
    %p32 = scmp.eq.s32.totalorder %s31, 0
    %s34 = sadd.s32 %s33, 1
    %s35 = scalar_select %p32, %s33, %s34
    %p38 = pneg %p32
    %p39 = scmp.eq.s32.totalorder %s9, 1
    %p40 = por %p38, %p39
    %p41 = scmp.ne.s32.totalorder %s33, %s36
    %p42 = scmp.eq.s32.totalorder %s9, 0
    %p43 = por %p41, %p42
    %p44 = scmp.ne.s32.totalorder %s33, %s36
    %p45 = scmp.eq.s32.totalorder %s14, 1
    %p46 = por %p44, %p45
    %p47 = scmp.ne.s32.totalorder %s36, %s37
    %p48 = scmp.eq.s32.totalorder %s14, 0
    %p49 = por %p47, %p48
    %p50 = scmp.ne.s32.totalorder %s36, %s37
    %p51 = scmp.eq.s32.totalorder %s15, 1
    %p52 = por %p50, %p51
    %p54 = scmp.ne.s32.totalorder %s37, %s53
    %p55 = scmp.eq.s32.totalorder %s15, 0
    %p56 = por %p54, %p55
    %s58 = sadd.s32 %s57, 1
    %p61 = scmp.eq.s32.totalorder %s9, 1
    %p62 = scmp.ne.s32.totalorder %s57, %s59
    %p63 = scmp.eq.s32.totalorder %s9, 0
    %p64 = por %p62, %p63
    %p65 = scmp.ne.s32.totalorder %s57, %s59
    %p66 = scmp.eq.s32.totalorder %s14, 1
    %p67 = por %p65, %p66
    %p68 = scmp.ne.s32.totalorder %s59, %s60
    %p69 = scmp.eq.s32.totalorder %s14, 0
    %p70 = por %p68, %p69
    %p71 = scmp.ne.s32.totalorder %s59, %s60
    %p72 = scmp.eq.s32.totalorder %s15, 1
    %p73 = por %p71, %p72
    %p75 = scmp.ne.s32.totalorder %s60, %s74
    %p76 = scmp.eq.s32.totalorder %s15, 0
    %p77 = por %p75, %p76
    %s79 = sadd.s32 %s78, 1
    %p82 = scmp.eq.s32.totalorder %s9, 1
    %p83 = scmp.ne.s32.totalorder %s78, %s80
    %p84 = scmp.eq.s32.totalorder %s9, 0
    %p85 = por %p83, %p84
    %p86 = scmp.ne.s32.totalorder %s78, %s80
    %p87 = scmp.eq.s32.totalorder %s14, 1
    %p88 = por %p86, %p87
    %p89 = scmp.ne.s32.totalorder %s80, %s81
    %p90 = scmp.eq.s32.totalorder %s14, 0
    %p91 = por %p89, %p90
    %p92 = scmp.ne.s32.totalorder %s80, %s81
    %p93 = scmp.eq.s32.totalorder %s15, 1
    %p94 = por %p92, %p93
    %p96 = scmp.ne.s32.totalorder %s81, %s95
    %p97 = scmp.eq.s32.totalorder %s15, 0
    %p98 = por %p96, %p97
    %s99 = ssub.s32 %s16, %s28
    %s100 = ssub.s32 %s17, %s24
    %s101 = sor.u32 %s99, %s100
    %p102 = scmp.eq.s32.totalorder %s101, 0
    %s104 = sadd.s32 %s103, 1
    %s105 = scalar_select %p102, %s103, %s104
    %p108 = pneg %p102
    %p109 = scmp.eq.s32.totalorder %s9, 1
    %p110 = por %p108, %p109
    %p111 = scmp.ne.s32.totalorder %s103, %s106
    %p112 = scmp.eq.s32.totalorder %s9, 0
    %p113 = por %p111, %p112
    %p114 = scmp.ne.s32.totalorder %s103, %s106
    %p115 = scmp.eq.s32.totalorder %s14, 1
    %p116 = por %p114, %p115
    %p117 = scmp.ne.s32.totalorder %s106, %s107
    %p118 = scmp.eq.s32.totalorder %s14, 0
    %p119 = por %p117, %p118
    %p120 = scmp.ne.s32.totalorder %s106, %s107
    %p121 = scmp.eq.s32.totalorder %s15, 1
    %p122 = por %p120, %p121
    %p124 = scmp.ne.s32.totalorder %s107, %s123
    %p125 = scmp.eq.s32.totalorder %s15, 0
    %p126 = por %p124, %p125
    %p127 = scmp.le.s32.totalorder 1, %s9
    %p128 = scmp.lt.s32.totalorder %s9, 3
    %p129 = pnand %p127, %p128
    %p130 = pneg %p129
    // Predicated region
    $region9: #{separator_forward.2} parent=5 // pred_check
      _
    $region10: #{separator_forward.2} parent=5 // pred_check_branch
      %132 = sbr.rel (%p129) target = $region12
    $region11: #{separator_forward.2} parent=5 // pred_region
      %s133 = ssub.s32 %s9, 1
      // Predicated region
      $region13: #{separator_forward.2} parent=11 // pred_check
        %p134 = pneg %p70
      $region14: #{separator_forward.2} parent=11 // pred_check_branch
        %136 = sbr.rel (%p134) target = $region16
      $region15: #{separator_forward.2} parent=11 // pred_region
        _
      $region16: #{separator_forward.2} parent=11 // pred_fallthru
        _
      // Predicated region
      $region17: #{separator_forward.2} parent=11 // pred_check
        %p137 = pneg %p91
      $region18: #{separator_forward.2} parent=11 // pred_check_branch
        %139 = sbr.rel (%p137) target = $region20
      $region19: #{separator_forward.2} parent=11 // pred_region
        _
      $region20: #{separator_forward.2} parent=11 // pred_fallthru
        _
    $region12: #{separator_forward.2} parent=5 // pred_fallthru
      _
    %p140 = scmp.lt.s32.totalorder %s9, 2
    // Predicated region
    $region21: #{separator_forward.2} parent=5 // pred_check
      %p141 = pneg %p140
    $region22: #{separator_forward.2} parent=5 // pred_check_branch
      %143 = sbr.rel (%p141) target = $region24
    $region23: #{separator_forward.2} parent=5 // pred_region
      // Predicated region
      $region25: #{separator_forward.2} parent=23 // pred_check
        %p144 = pneg %p43
      $region26: #{separator_forward.2} parent=23 // pred_check_branch
        %146 = sbr.rel (%p144) target = $region28
      $region27: #{separator_forward.2} parent=23 // pred_region
        %s147 = smul.u32 3, %s17
        %p148 = scmp.lt.s32.totalorder %s16, 1
        %s149 = scalar_select %p148, %s16, 1
        %p150 = scmp.lt.s32.totalorder %s147, 2
        %s151 = scalar_select %p150, %s147, 2
        %s152 = smul.addr %s151, 8
        %s153 = smul.addr %s149, 24
        %s154 = sadd.s32 %s152, %s153
        %s155 = smul.addr %s154, 4
        %s156 = scalar_lea.vmem %s0, %s155
        %s157 = smul.u32 3, %s17
      $region28: #{separator_forward.2} parent=23 // pred_fallthru
        _
    $region24: #{separator_forward.2} parent=5 // pred_fallthru
      _
    %p158 = scmp.le.s32.totalorder 1, %s9
    %p159 = scmp.lt.s32.totalorder %s9, 3
    %p160 = pnand %p158, %p159
    %p161 = pneg %p160
    // Predicated region
    $region29: #{separator_forward.2} parent=5 // pred_check
      _
    $region30: #{separator_forward.2} parent=5 // pred_check_branch
      %163 = sbr.rel (%p160) target = $region32
    $region31: #{separator_forward.2} parent=5 // pred_region
      %s164 = ssub.s32 %s9, 1
      %s165 = smul.u32 3, %s19
      %p166 = scmp.lt.s32.totalorder %s18, 1
      %s167 = scalar_select %p166, %s18, 1
      %p168 = scmp.lt.s32.totalorder %s165, 2
      %s169 = scalar_select %p168, %s165, 2
      %s170 = smul.addr %s169, 8
      %s171 = smul.addr %s167, 24
      %s172 = sadd.s32 %s170, %s171
      %s173 = smul.addr %s172, 4
      %s174 = scalar_lea.vmem %s0, %s173
      %p175 = pneg %p49
      %p176 = pneg %p46
      %p177 = pneg %p70
      %p178 = pneg %p67
      %p179 = pneg %p91
      %p180 = pneg %p88
      %p181 = pneg %p119
      %p182 = pneg %p116
      %s183 = smul.u32 3, %s19
      %p184 = scmp.lt.s32.totalorder %s18, 1
      %s185 = scalar_select %p184, %s18, 1
      %p186 = scmp.lt.s32.totalorder %s183, 2
      %s187 = scalar_select %p186, %s183, 2
      %s188 = smul.addr %s187, 8
      %s189 = smul.addr %s185, 24
      %s190 = sadd.s32 %s188, %s189
      %s191 = smul.addr %s190, 8
      %s192 = scalar_lea.vmem %s3, %s191
      %s193 = smul.u32 3, %s19
      %p194 = scmp.lt.s32.totalorder %s18, 1
      %s195 = scalar_select %p194, %s18, 1
      %p196 = scmp.lt.s32.totalorder %s193, 2
      %s197 = scalar_select %p196, %s193, 2
      %s198 = smul.addr %s197, 8
      %s199 = smul.addr %s195, 24
      %s200 = sadd.s32 %s198, %s199
      %s201 = smul.addr %s200, 4
      %s202 = scalar_lea.vmem %s0, %s201
      %s203 = smul.u32 3, %s19
      %s204 = smul.u32 3, %s19
      %p205 = scmp.lt.s32.totalorder %s18, 1
      %s206 = scalar_select %p205, %s18, 1
      %p207 = scmp.lt.s32.totalorder %s204, 2
      %s208 = scalar_select %p207, %s204, 2
      %s209 = smul.addr %s208, 8
      %s210 = smul.addr %s206, 24
      %s211 = sadd.s32 %s209, %s210
      %s212 = smul.addr %s211, 8
      %s213 = scalar_lea.vmem %s3, %s212
      %s214 = smul.u32 3, %s19
      %v215 = vld [vmem:[%s202] sm:$0xff]
      %v216 = vld [vmem:[%s202 + $0x8] sm:$0xff]
      %v217 = vld [vmem:[%s202 + $0x10] sm:$0xff]
      %v218 = vld [vmem:[%s202 + $0x18] sm:$0xff]
      %v219 = vld [vmem:[%s202 + $0x20] sm:$0xff]
      %v220 = vld [vmem:[%s202 + $0x28] sm:$0xff]
      %v221 = vld [vmem:[%s202 + $0x30] sm:$0xff]
      %v222 = vld [vmem:[%s202 + $0x38] sm:$0xff]
      %v223 = vld [vmem:[%s202 + $0x40] sm:$0x11]
      %v224 = vld [vmem:[%s202 + $0x48] sm:$0x11]
      %v225 = vld [vmem:[%s202 + $0x50] sm:$0x11]
      %v226 = vld [vmem:[%s202 + $0x58] sm:$0x11]
      %v227 = vld [vmem:[%s1] sm:$0xff]
      %v228 = vld [vmem:[%s1 + $0x8] sm:$0xff]
      %v229 = vld [vmem:[%s1 + $0x10] sm:$0xff]
      %v230 = vld [vmem:[%s1 + $0x18] sm:$0xff]
      %v231 = vld [vmem:[%s1 + $0x20] sm:$0xff]
      %v232 = vld [vmem:[%s1 + $0x28] sm:$0xff]
      %v233 = vld [vmem:[%s1 + $0x30] sm:$0xff]
      %v234 = vld [vmem:[%s1 + $0x38] sm:$0xff]
      %v235 = vld [vmem:[%s1 + $0x40] sm:$0xff]
      %v236 = vld [vmem:[%s1 + $0x48] sm:$0xff]
      %v237 = vld [vmem:[%s1 + $0x50] sm:$0xff]
      %v238 = vld [vmem:[%s1 + $0x58] sm:$0xff]
      %v239 = vld [vmem:[%s1 + $0x60] sm:$0xff]
      %v240 = vld [vmem:[%s1 + $0x68] sm:$0xff]
      %v241 = vld [vmem:[%s1 + $0x70] sm:$0xff]
      %v242 = vld [vmem:[%s1 + $0x78] sm:$0xff]
      %v243 = vld [vmem:[%s1 + $0x80] sm:$0xff]
      %v244 = vld [vmem:[%s1 + $0x88] sm:$0xff]
      %v245 = vld [vmem:[%s1 + $0x90] sm:$0xff]
      %v246 = vld [vmem:[%s1 + $0x98] sm:$0xff]
      %v247 = vld [vmem:[%s1 + $0xa0] sm:$0xff]
      %v248 = vld [vmem:[%s1 + $0xa8] sm:$0xff]
      %v249 = vld [vmem:[%s1 + $0xb0] sm:$0xff]
      %v250 = vld [vmem:[%s1 + $0xb8] sm:$0xff]
      %v251 = vld [vmem:[%s1 + $0xc0] sm:$0xff]
      %v252 = vld [vmem:[%s1 + $0xc8] sm:$0xff]
      %v253 = vld [vmem:[%s1 + $0xd0] sm:$0xff]
      %v254 = vld [vmem:[%s1 + $0xd8] sm:$0xff]
      %v255 = vld [vmem:[%s1 + $0xe0] sm:$0xff]
      %v256 = vld [vmem:[%s1 + $0xe8] sm:$0xff]
      %v257 = vld [vmem:[%s1 + $0xf0] sm:$0xff]
      %v258 = vld [vmem:[%s1 + $0xf8] sm:$0xff]
      %v259 = vld [vmem:[%s1 + $0x100] sm:$0xff]
      %v260 = vld [vmem:[%s1 + $0x108] sm:$0xff]
      %v261 = vld [vmem:[%s1 + $0x110] sm:$0xff]
      %v262 = vld [vmem:[%s1 + $0x118] sm:$0xff]
      %v263 = vld [vmem:[%s1 + $0x120] sm:$0xff]
      %v264 = vld [vmem:[%s1 + $0x128] sm:$0xff]
      %v265 = vld [vmem:[%s1 + $0x130] sm:$0xff]
      %v266 = vld [vmem:[%s1 + $0x138] sm:$0xff]
      %v267 = vld [vmem:[%s1 + $0x140] sm:$0xff]
      %v268 = vld [vmem:[%s1 + $0x148] sm:$0xff]
      %v269 = vld [vmem:[%s1 + $0x150] sm:$0xff]
      %v270 = vld [vmem:[%s1 + $0x158] sm:$0xff]
      %v271 = vld [vmem:[%s1 + $0x160] sm:$0xff]
      %v272 = vld [vmem:[%s1 + $0x168] sm:$0xff]
      %v273 = vld [vmem:[%s1 + $0x170] sm:$0xff]
      %v274 = vld [vmem:[%s1 + $0x178] sm:$0xff]
      %v275 = vld [vmem:[%s1 + $0x180] sm:$0xff]
      %v276 = vld [vmem:[%s1 + $0x188] sm:$0xff]
      %v277 = vld [vmem:[%s1 + $0x190] sm:$0xff]
      %v278 = vld [vmem:[%s1 + $0x198] sm:$0xff]
      %v279 = vld [vmem:[%s1 + $0x1a0] sm:$0xff]
      %v280 = vld [vmem:[%s1 + $0x1a8] sm:$0xff]
      %v281 = vld [vmem:[%s1 + $0x1b0] sm:$0xff]
      %v282 = vld [vmem:[%s1 + $0x1b8] sm:$0xff]
      %v283 = vld [vmem:[%s1 + $0x1c0] sm:$0xff]
      %v284 = vld [vmem:[%s1 + $0x1c8] sm:$0xff]
      %v285 = vld [vmem:[%s1 + $0x1d0] sm:$0xff]
      %v286 = vld [vmem:[%s1 + $0x1d8] sm:$0xff]
      %v287 = vld [vmem:[%s1 + $0x1e0] sm:$0xff]
      %v288 = vld [vmem:[%s1 + $0x1e8] sm:$0xff]
      %v289 = vld [vmem:[%s1 + $0x1f0] sm:$0xff]
      %v290 = vld [vmem:[%s1 + $0x1f8] sm:$0xff]
      %v291 = vld [vmem:[%s1 + $0x200] sm:$0xff]
      %v292 = vld [vmem:[%s1 + $0x208] sm:$0xff]
      %v293 = vld [vmem:[%s1 + $0x210] sm:$0xff]
      %v294 = vld [vmem:[%s1 + $0x218] sm:$0xff]
      %v295 = vld [vmem:[%s1 + $0x220] sm:$0xff]
      %v296 = vld [vmem:[%s1 + $0x228] sm:$0xff]
      %v297 = vld [vmem:[%s1 + $0x230] sm:$0xff]
      %v298 = vld [vmem:[%s1 + $0x238] sm:$0xff]
      %v299 = vld [vmem:[%s1 + $0x240] sm:$0xff]
      %v300 = vld [vmem:[%s1 + $0x248] sm:$0xff]
      %v301 = vld [vmem:[%s1 + $0x250] sm:$0xff]
      %v302 = vld [vmem:[%s1 + $0x258] sm:$0xff]
      %v303 = vld [vmem:[%s1 + $0x260] sm:$0xff]
      %v304 = vld [vmem:[%s1 + $0x268] sm:$0xff]
      %v305 = vld [vmem:[%s1 + $0x270] sm:$0xff]
      %v306 = vld [vmem:[%s1 + $0x278] sm:$0xff]
      %v307 = vld [vmem:[%s1 + $0x280] sm:$0xff]
      %v308 = vld [vmem:[%s1 + $0x288] sm:$0xff]
      %v309 = vld [vmem:[%s1 + $0x290] sm:$0xff]
      %v310 = vld [vmem:[%s1 + $0x298] sm:$0xff]
      %v311 = vld [vmem:[%s1 + $0x2a0] sm:$0xff]
      %v312 = vld [vmem:[%s1 + $0x2a8] sm:$0xff]
      %v313 = vld [vmem:[%s1 + $0x2b0] sm:$0xff]
      %v314 = vld [vmem:[%s1 + $0x2b8] sm:$0xff]
      %v315 = vld [vmem:[%s1 + $0x2c0] sm:$0xff]
      %v316 = vld [vmem:[%s1 + $0x2c8] sm:$0xff]
      %v317 = vld [vmem:[%s1 + $0x2d0] sm:$0xff]
      %v318 = vld [vmem:[%s1 + $0x2d8] sm:$0xff]
      %v319 = vld [vmem:[%s1 + $0x2e0] sm:$0xff]
      %v320 = vld [vmem:[%s1 + $0x2e8] sm:$0xff]
      %v321 = vld [vmem:[%s1 + $0x2f0] sm:$0xff]
      %v322 = vld [vmem:[%s1 + $0x2f8] sm:$0xff]
      %v323 = vld [vmem:[%s1 + $0x300] sm:$0xff]
      %v324 = vld [vmem:[%s1 + $0x308] sm:$0xff]
      %v325 = vld [vmem:[%s1 + $0x310] sm:$0xff]
      %v326 = vld [vmem:[%s1 + $0x318] sm:$0xff]
      %v327 = vld [vmem:[%s1 + $0x320] sm:$0xff]
      %v328 = vld [vmem:[%s1 + $0x328] sm:$0xff]
      %v329 = vld [vmem:[%s1 + $0x330] sm:$0xff]
      %v330 = vld [vmem:[%s1 + $0x338] sm:$0xff]
      %v331 = vld [vmem:[%s1 + $0x340] sm:$0xff]
      %v332 = vld [vmem:[%s1 + $0x348] sm:$0xff]
      %v333 = vld [vmem:[%s1 + $0x350] sm:$0xff]
      %v334 = vld [vmem:[%s1 + $0x358] sm:$0xff]
      %v335 = vld [vmem:[%s1 + $0x360] sm:$0xff]
      %v336 = vld [vmem:[%s1 + $0x368] sm:$0xff]
      %v337 = vld [vmem:[%s1 + $0x370] sm:$0xff]
      %v338 = vld [vmem:[%s1 + $0x378] sm:$0xff]
      %v339 = vld [vmem:[%s1 + $0x380] sm:$0xff]
      %v340 = vld [vmem:[%s1 + $0x388] sm:$0xff]
      %v341 = vld [vmem:[%s1 + $0x390] sm:$0xff]
      %v342 = vld [vmem:[%s1 + $0x398] sm:$0xff]
      %v343 = vld [vmem:[%s1 + $0x3a0] sm:$0xff]
      %v344 = vld [vmem:[%s1 + $0x3a8] sm:$0xff]
      %v345 = vld [vmem:[%s1 + $0x3b0] sm:$0xff]
      %v346 = vld [vmem:[%s1 + $0x3b8] sm:$0xff]
      %v347 = vld [vmem:[%s1 + $0x3c0] sm:$0xff]
      %v348 = vld [vmem:[%s1 + $0x3c8] sm:$0xff]
      %v349 = vld [vmem:[%s1 + $0x3d0] sm:$0xff]
      %v350 = vld [vmem:[%s1 + $0x3d8] sm:$0xff]
      %v351 = vld [vmem:[%s1 + $0x3e0] sm:$0xff]
      %v352 = vld [vmem:[%s1 + $0x3e8] sm:$0xff]
      %v353 = vld [vmem:[%s1 + $0x3f0] sm:$0xff]
      %v354 = vld [vmem:[%s1 + $0x3f8] sm:$0xff]
      %v355 = vld [vmem:[%s1 + $0x400] sm:$0xff]
      %v356 = vld [vmem:[%s1 + $0x408] sm:$0xff]
      %v357 = vld [vmem:[%s1 + $0x410] sm:$0xff]
      %v358 = vld [vmem:[%s1 + $0x418] sm:$0xff]
      %v359 = vld [vmem:[%s1 + $0x420] sm:$0xff]
      %v360 = vld [vmem:[%s1 + $0x428] sm:$0xff]
      %v361 = vld [vmem:[%s1 + $0x430] sm:$0xff]
      %v362 = vld [vmem:[%s1 + $0x438] sm:$0xff]
      %v363 = vld [vmem:[%s1 + $0x440] sm:$0xff]
      %v364 = vld [vmem:[%s1 + $0x448] sm:$0xff]
      %v365 = vld [vmem:[%s1 + $0x450] sm:$0xff]
      %v366 = vld [vmem:[%s1 + $0x458] sm:$0xff]
      %v367 = vld [vmem:[%s1 + $0x460] sm:$0xff]
      %v368 = vld [vmem:[%s1 + $0x468] sm:$0xff]
      %v369 = vld [vmem:[%s1 + $0x470] sm:$0xff]
      %v370 = vld [vmem:[%s1 + $0x478] sm:$0xff]
      %v371 = vld [vmem:[%s1 + $0x480] sm:$0xff]
      %v372 = vld [vmem:[%s1 + $0x488] sm:$0xff]
      %v373 = vld [vmem:[%s1 + $0x490] sm:$0xff]
      %v374 = vld [vmem:[%s1 + $0x498] sm:$0xff]
      %v375 = vld [vmem:[%s1 + $0x4a0] sm:$0xff]
      %v376 = vld [vmem:[%s1 + $0x4a8] sm:$0xff]
      %v377 = vld [vmem:[%s1 + $0x4b0] sm:$0xff]
      %v378 = vld [vmem:[%s1 + $0x4b8] sm:$0xff]
      %v379 = vld [vmem:[%s1 + $0x4c0] sm:$0xff]
      %v380 = vld [vmem:[%s1 + $0x4c8] sm:$0xff]
      %v381 = vld [vmem:[%s1 + $0x4d0] sm:$0xff]
      %v382 = vld [vmem:[%s1 + $0x4d8] sm:$0xff]
      %v383 = vld [vmem:[%s1 + $0x4e0] sm:$0xff]
      %v384 = vld [vmem:[%s1 + $0x4e8] sm:$0xff]
      %v385 = vld [vmem:[%s1 + $0x4f0] sm:$0xff]
      %v386 = vld [vmem:[%s1 + $0x4f8] sm:$0xff]
      %v387 = vld [vmem:[%s1 + $0x500] sm:$0xff]
      %v388 = vld [vmem:[%s1 + $0x508] sm:$0xff]
      %v389 = vld [vmem:[%s1 + $0x510] sm:$0xff]
      %v390 = vld [vmem:[%s1 + $0x518] sm:$0xff]
      %v391 = vld [vmem:[%s1 + $0x520] sm:$0xff]
      %v392 = vld [vmem:[%s1 + $0x528] sm:$0xff]
      %v393 = vld [vmem:[%s1 + $0x530] sm:$0xff]
      %v394 = vld [vmem:[%s1 + $0x538] sm:$0xff]
      %v395 = vld [vmem:[%s1 + $0x540] sm:$0xff]
      %v396 = vld [vmem:[%s1 + $0x548] sm:$0xff]
      %v397 = vld [vmem:[%s1 + $0x550] sm:$0xff]
      %v398 = vld [vmem:[%s1 + $0x558] sm:$0xff]
      %v399 = vld [vmem:[%s1 + $0x560] sm:$0xff]
      %v400 = vld [vmem:[%s1 + $0x568] sm:$0xff]
      %v401 = vld [vmem:[%s1 + $0x570] sm:$0xff]
      %v402 = vld [vmem:[%s1 + $0x578] sm:$0xff]
      %v403 = vld [vmem:[%s1 + $0x580] sm:$0xff]
      %v404 = vld [vmem:[%s1 + $0x588] sm:$0xff]
      %v405 = vld [vmem:[%s1 + $0x590] sm:$0xff]
      %v406 = vld [vmem:[%s1 + $0x598] sm:$0xff]
      %v407 = vld [vmem:[%s1 + $0x5a0] sm:$0xff]
      %v408 = vld [vmem:[%s1 + $0x5a8] sm:$0xff]
      %v409 = vld [vmem:[%s1 + $0x5b0] sm:$0xff]
      %v410 = vld [vmem:[%s1 + $0x5b8] sm:$0xff]
      %v411 = vld [vmem:[%s1 + $0x5c0] sm:$0xff]
      %v412 = vld [vmem:[%s1 + $0x5c8] sm:$0xff]
      %v413 = vld [vmem:[%s1 + $0x5d0] sm:$0xff]
      %v414 = vld [vmem:[%s1 + $0x5d8] sm:$0xff]
      %v415 = vld [vmem:[%s1 + $0x5e0] sm:$0xff]
      %v416 = vld [vmem:[%s1 + $0x5e8] sm:$0xff]
      %v417 = vld [vmem:[%s1 + $0x5f0] sm:$0xff]
      %v418 = vld [vmem:[%s1 + $0x5f8] sm:$0xff]
      %v419 = vld [vmem:[%s1 + $0x600] sm:$0xff]
      %v420 = vld [vmem:[%s1 + $0x608] sm:$0xff]
      %v421 = vld [vmem:[%s1 + $0x610] sm:$0xff]
      %v422 = vld [vmem:[%s1 + $0x618] sm:$0xff]
      %v423 = vld [vmem:[%s1 + $0x620] sm:$0xff]
      %v424 = vld [vmem:[%s1 + $0x628] sm:$0xff]
      %v425 = vld [vmem:[%s1 + $0x630] sm:$0xff]
      %v426 = vld [vmem:[%s1 + $0x638] sm:$0xff]
      %v427 = vld [vmem:[%s1 + $0x640] sm:$0xff]
      %v428 = vld [vmem:[%s1 + $0x648] sm:$0xff]
      %v429 = vld [vmem:[%s1 + $0x650] sm:$0xff]
      %v430 = vld [vmem:[%s1 + $0x658] sm:$0xff]
      %v431 = vld [vmem:[%s1 + $0x660] sm:$0xff]
      %v432 = vld [vmem:[%s1 + $0x668] sm:$0xff]
      %v433 = vld [vmem:[%s1 + $0x670] sm:$0xff]
      %v434 = vld [vmem:[%s1 + $0x678] sm:$0xff]
      %v435 = vld [vmem:[%s1 + $0x680] sm:$0xff]
      %v436 = vld [vmem:[%s1 + $0x688] sm:$0xff]
      %v437 = vld [vmem:[%s1 + $0x690] sm:$0xff]
      %v438 = vld [vmem:[%s1 + $0x698] sm:$0xff]
      %v439 = vld [vmem:[%s1 + $0x6a0] sm:$0xff]
      %v440 = vld [vmem:[%s1 + $0x6a8] sm:$0xff]
      %v441 = vld [vmem:[%s1 + $0x6b0] sm:$0xff]
      %v442 = vld [vmem:[%s1 + $0x6b8] sm:$0xff]
      %v443 = vld [vmem:[%s1 + $0x6c0] sm:$0xff]
      %v444 = vld [vmem:[%s1 + $0x6c8] sm:$0xff]
      %v445 = vld [vmem:[%s1 + $0x6d0] sm:$0xff]
      %v446 = vld [vmem:[%s1 + $0x6d8] sm:$0xff]
      %v447 = vld [vmem:[%s1 + $0x6e0] sm:$0xff]
      %v448 = vld [vmem:[%s1 + $0x6e8] sm:$0xff]
      %v449 = vld [vmem:[%s1 + $0x6f0] sm:$0xff]
      %v450 = vld [vmem:[%s1 + $0x6f8] sm:$0xff]
      %v451 = vld [vmem:[%s1 + $0x700] sm:$0xff]
      %v452 = vld [vmem:[%s1 + $0x708] sm:$0xff]
      %v453 = vld [vmem:[%s1 + $0x710] sm:$0xff]
      %v454 = vld [vmem:[%s1 + $0x718] sm:$0xff]
      %v455 = vld [vmem:[%s1 + $0x720] sm:$0xff]
      %v456 = vld [vmem:[%s1 + $0x728] sm:$0xff]
      %v457 = vld [vmem:[%s1 + $0x730] sm:$0xff]
      %v458 = vld [vmem:[%s1 + $0x738] sm:$0xff]
      %v459 = vld [vmem:[%s1 + $0x740] sm:$0xff]
      %v460 = vld [vmem:[%s1 + $0x748] sm:$0xff]
      %v461 = vld [vmem:[%s1 + $0x750] sm:$0xff]
      %v462 = vld [vmem:[%s1 + $0x758] sm:$0xff]
      %v463 = vld [vmem:[%s1 + $0x760] sm:$0xff]
      %v464 = vld [vmem:[%s1 + $0x768] sm:$0xff]
      %v465 = vld [vmem:[%s1 + $0x770] sm:$0xff]
      %v466 = vld [vmem:[%s1 + $0x778] sm:$0xff]
      %v467 = vld [vmem:[%s1 + $0x780] sm:$0xff]
      %v468 = vld [vmem:[%s1 + $0x788] sm:$0xff]
      %v469 = vld [vmem:[%s1 + $0x790] sm:$0xff]
      %v470 = vld [vmem:[%s1 + $0x798] sm:$0xff]
      %v471 = vld [vmem:[%s1 + $0x7a0] sm:$0xff]
      %v472 = vld [vmem:[%s1 + $0x7a8] sm:$0xff]
      %v473 = vld [vmem:[%s1 + $0x7b0] sm:$0xff]
      %v474 = vld [vmem:[%s1 + $0x7b8] sm:$0xff]
      %v475 = vld [vmem:[%s1 + $0x7c0] sm:$0xff]
      %v476 = vld [vmem:[%s1 + $0x7c8] sm:$0xff]
      %v477 = vld [vmem:[%s1 + $0x7d0] sm:$0xff]
      %v478 = vld [vmem:[%s1 + $0x7d8] sm:$0xff]
      %v479 = vld [vmem:[%s1 + $0x7e0] sm:$0xff]
      %v480 = vld [vmem:[%s1 + $0x7e8] sm:$0xff]
      %v481 = vld [vmem:[%s1 + $0x7f0] sm:$0xff]
      %v482 = vld [vmem:[%s1 + $0x7f8] sm:$0xff]
      %v483 = vld [vmem:[%s1 + $0x800] sm:$0xff]
      %v484 = vld [vmem:[%s1 + $0x808] sm:$0xff]
      %v485 = vld [vmem:[%s1 + $0x810] sm:$0xff]
      %v486 = vld [vmem:[%s1 + $0x818] sm:$0xff]
      %v487 = vld [vmem:[%s1 + $0x820] sm:$0xff]
      %v488 = vld [vmem:[%s1 + $0x828] sm:$0xff]
      %v489 = vld [vmem:[%s1 + $0x830] sm:$0xff]
      %v490 = vld [vmem:[%s1 + $0x838] sm:$0xff]
      %v491 = vld [vmem:[%s1 + $0x840] sm:$0xff]
      %v492 = vld [vmem:[%s1 + $0x848] sm:$0xff]
      %v493 = vld [vmem:[%s1 + $0x850] sm:$0xff]
      %v494 = vld [vmem:[%s1 + $0x858] sm:$0xff]
      %v495 = vld [vmem:[%s1 + $0x860] sm:$0xff]
      %v496 = vld [vmem:[%s1 + $0x868] sm:$0xff]
      %v497 = vld [vmem:[%s1 + $0x870] sm:$0xff]
      %v498 = vld [vmem:[%s1 + $0x878] sm:$0xff]
      %v499 = vld [vmem:[%s1 + $0x880] sm:$0xff]
      %v500 = vld [vmem:[%s1 + $0x888] sm:$0xff]
      %v501 = vld [vmem:[%s1 + $0x890] sm:$0xff]
      %v502 = vld [vmem:[%s1 + $0x898] sm:$0xff]
      %v503 = vld [vmem:[%s1 + $0x8a0] sm:$0xff]
      %v504 = vld [vmem:[%s1 + $0x8a8] sm:$0xff]
      %v505 = vld [vmem:[%s1 + $0x8b0] sm:$0xff]
      %v506 = vld [vmem:[%s1 + $0x8b8] sm:$0xff]
      %v507 = vld [vmem:[%s1 + $0x8c0] sm:$0xff]
      %v508 = vld [vmem:[%s1 + $0x8c8] sm:$0xff]
      %v509 = vld [vmem:[%s1 + $0x8d0] sm:$0xff]
      %v510 = vld [vmem:[%s1 + $0x8d8] sm:$0xff]
      %v511 = vld [vmem:[%s1 + $0x8e0] sm:$0xff]
      %v512 = vld [vmem:[%s1 + $0x8e8] sm:$0xff]
      %v513 = vld [vmem:[%s1 + $0x8f0] sm:$0xff]
      %v514 = vld [vmem:[%s1 + $0x8f8] sm:$0xff]
      %v515 = vld [vmem:[%s1 + $0x900] sm:$0xff]
      %v516 = vld [vmem:[%s1 + $0x908] sm:$0xff]
      %v517 = vld [vmem:[%s1 + $0x910] sm:$0xff]
      %v518 = vld [vmem:[%s1 + $0x918] sm:$0xff]
      %v519 = vld [vmem:[%s1 + $0x920] sm:$0xff]
      %v520 = vld [vmem:[%s1 + $0x928] sm:$0xff]
      %v521 = vld [vmem:[%s1 + $0x930] sm:$0xff]
      %v522 = vld [vmem:[%s1 + $0x938] sm:$0xff]
      %v523 = vld [vmem:[%s1 + $0x940] sm:$0xff]
      %v524 = vld [vmem:[%s1 + $0x948] sm:$0xff]
      %v525 = vld [vmem:[%s1 + $0x950] sm:$0xff]
      %v526 = vld [vmem:[%s1 + $0x958] sm:$0xff]
      %v527 = vld [vmem:[%s1 + $0x960] sm:$0xff]
      %v528 = vld [vmem:[%s1 + $0x968] sm:$0xff]
      %v529 = vld [vmem:[%s1 + $0x970] sm:$0xff]
      %v530 = vld [vmem:[%s1 + $0x978] sm:$0xff]
      %v531 = vld [vmem:[%s1 + $0x980] sm:$0xff]
      %v532 = vld [vmem:[%s1 + $0x988] sm:$0xff]
      %v533 = vld [vmem:[%s1 + $0x990] sm:$0xff]
      %v534 = vld [vmem:[%s1 + $0x998] sm:$0xff]
      %v535 = vld [vmem:[%s1 + $0x9a0] sm:$0xff]
      %v536 = vld [vmem:[%s1 + $0x9a8] sm:$0xff]
      %v537 = vld [vmem:[%s1 + $0x9b0] sm:$0xff]
      %v538 = vld [vmem:[%s1 + $0x9b8] sm:$0xff]
      %v539 = vld [vmem:[%s1 + $0x9c0] sm:$0xff]
      %v540 = vld [vmem:[%s1 + $0x9c8] sm:$0xff]
      %v541 = vld [vmem:[%s1 + $0x9d0] sm:$0xff]
      %v542 = vld [vmem:[%s1 + $0x9d8] sm:$0xff]
      %v543 = vld [vmem:[%s1 + $0x9e0] sm:$0xff]
      %v544 = vld [vmem:[%s1 + $0x9e8] sm:$0xff]
      %v545 = vld [vmem:[%s1 + $0x9f0] sm:$0xff]
      %v546 = vld [vmem:[%s1 + $0x9f8] sm:$0xff]
      %v547 = vld [vmem:[%s1 + $0xa00] sm:$0xff]
      %v548 = vld [vmem:[%s1 + $0xa08] sm:$0xff]
      %v549 = vld [vmem:[%s1 + $0xa10] sm:$0xff]
      %v550 = vld [vmem:[%s1 + $0xa18] sm:$0xff]
      %v551 = vld [vmem:[%s1 + $0xa20] sm:$0xff]
      %v552 = vld [vmem:[%s1 + $0xa28] sm:$0xff]
      %v553 = vld [vmem:[%s1 + $0xa30] sm:$0xff]
      %v554 = vld [vmem:[%s1 + $0xa38] sm:$0xff]
      %v555 = vld [vmem:[%s1 + $0xa40] sm:$0xff]
      %v556 = vld [vmem:[%s1 + $0xa48] sm:$0xff]
      %v557 = vld [vmem:[%s1 + $0xa50] sm:$0xff]
      %v558 = vld [vmem:[%s1 + $0xa58] sm:$0xff]
      %v559 = vld [vmem:[%s1 + $0xa60] sm:$0xff]
      %v560 = vld [vmem:[%s1 + $0xa68] sm:$0xff]
      %v561 = vld [vmem:[%s1 + $0xa70] sm:$0xff]
      %v562 = vld [vmem:[%s1 + $0xa78] sm:$0xff]
      %v563 = vld [vmem:[%s1 + $0xa80] sm:$0xff]
      %v564 = vld [vmem:[%s1 + $0xa88] sm:$0xff]
      %v565 = vld [vmem:[%s1 + $0xa90] sm:$0xff]
      %v566 = vld [vmem:[%s1 + $0xa98] sm:$0xff]
      %v567 = vld [vmem:[%s1 + $0xaa0] sm:$0xff]
      %v568 = vld [vmem:[%s1 + $0xaa8] sm:$0xff]
      %v569 = vld [vmem:[%s1 + $0xab0] sm:$0xff]
      %v570 = vld [vmem:[%s1 + $0xab8] sm:$0xff]
      %v571 = vld [vmem:[%s1 + $0xac0] sm:$0xff]
      %v572 = vld [vmem:[%s1 + $0xac8] sm:$0xff]
      %v573 = vld [vmem:[%s1 + $0xad0] sm:$0xff]
      %v574 = vld [vmem:[%s1 + $0xad8] sm:$0xff]
      %v575 = vld [vmem:[%s1 + $0xae0] sm:$0xff]
      %v576 = vld [vmem:[%s1 + $0xae8] sm:$0xff]
      %v577 = vld [vmem:[%s1 + $0xaf0] sm:$0xff]
      %v578 = vld [vmem:[%s1 + $0xaf8] sm:$0xff]
      %v579 = vld [vmem:[%s1 + $0xb00] sm:$0xff]
      %v580 = vld [vmem:[%s1 + $0xb08] sm:$0xff]
      %v581 = vld [vmem:[%s1 + $0xb10] sm:$0xff]
      %v582 = vld [vmem:[%s1 + $0xb18] sm:$0xff]
      %v583 = vld [vmem:[%s1 + $0xb20] sm:$0xff]
      %v584 = vld [vmem:[%s1 + $0xb28] sm:$0xff]
      %v585 = vld [vmem:[%s1 + $0xb30] sm:$0xff]
      %v586 = vld [vmem:[%s1 + $0xb38] sm:$0xff]
      %v587 = vld [vmem:[%s1 + $0xb40] sm:$0xff]
      %v588 = vld [vmem:[%s1 + $0xb48] sm:$0xff]
      %v589 = vld [vmem:[%s1 + $0xb50] sm:$0xff]
      %v590 = vld [vmem:[%s1 + $0xb58] sm:$0xff]
      %v591 = vld [vmem:[%s1 + $0xb60] sm:$0xff]
      %v592 = vld [vmem:[%s1 + $0xb68] sm:$0xff]
      %v593 = vld [vmem:[%s1 + $0xb70] sm:$0xff]
      %v594 = vld [vmem:[%s1 + $0xb78] sm:$0xff]
      %v595 = vld [vmem:[%s1 + $0xb80] sm:$0xff]
      %v596 = vld [vmem:[%s1 + $0xb88] sm:$0xff]
      %v597 = vld [vmem:[%s1 + $0xb90] sm:$0xff]
      %v598 = vld [vmem:[%s1 + $0xb98] sm:$0xff]
      %v599 = vld [vmem:[%s1 + $0xba0] sm:$0xff]
      %v600 = vld [vmem:[%s1 + $0xba8] sm:$0xff]
      %v601 = vld [vmem:[%s1 + $0xbb0] sm:$0xff]
      %v602 = vld [vmem:[%s1 + $0xbb8] sm:$0xff]
      %v603 = vld [vmem:[%s1 + $0xbc0] sm:$0xff]
      %v604 = vld [vmem:[%s1 + $0xbc8] sm:$0xff]
      %v605 = vld [vmem:[%s1 + $0xbd0] sm:$0xff]
      %v606 = vld [vmem:[%s1 + $0xbd8] sm:$0xff]
      %v607 = vld [vmem:[%s1 + $0xbe0] sm:$0xff]
      %v608 = vld [vmem:[%s1 + $0xbe8] sm:$0xff]
      %v609 = vld [vmem:[%s1 + $0xbf0] sm:$0xff]
      %v610 = vld [vmem:[%s1 + $0xbf8] sm:$0xff]
      %v611 = vld [vmem:[%s1 + $0xc00] sm:$0xff]
      %v612 = vld [vmem:[%s1 + $0xc08] sm:$0xff]
      %v613 = vld [vmem:[%s1 + $0xc10] sm:$0xff]
      %v614 = vld [vmem:[%s1 + $0xc18] sm:$0xff]
      %v615 = vld [vmem:[%s1 + $0xc20] sm:$0xff]
      %v616 = vld [vmem:[%s1 + $0xc28] sm:$0xff]
      %v617 = vld [vmem:[%s1 + $0xc30] sm:$0xff]
      %v618 = vld [vmem:[%s1 + $0xc38] sm:$0xff]
      %v619 = vld [vmem:[%s1 + $0xc40] sm:$0xff]
      %v620 = vld [vmem:[%s1 + $0xc48] sm:$0xff]
      %v621 = vld [vmem:[%s1 + $0xc50] sm:$0xff]
      %v622 = vld [vmem:[%s1 + $0xc58] sm:$0xff]
      %v623 = vld [vmem:[%s1 + $0xc60] sm:$0xff]
      %v624 = vld [vmem:[%s1 + $0xc68] sm:$0xff]
      %v625 = vld [vmem:[%s1 + $0xc70] sm:$0xff]
      %v626 = vld [vmem:[%s1 + $0xc78] sm:$0xff]
      %v627 = vld [vmem:[%s1 + $0xc80] sm:$0xff]
      %v628 = vld [vmem:[%s1 + $0xc88] sm:$0xff]
      %v629 = vld [vmem:[%s1 + $0xc90] sm:$0xff]
      %v630 = vld [vmem:[%s1 + $0xc98] sm:$0xff]
      %v631 = vld [vmem:[%s1 + $0xca0] sm:$0xff]
      %v632 = vld [vmem:[%s1 + $0xca8] sm:$0xff]
      %v633 = vld [vmem:[%s1 + $0xcb0] sm:$0xff]
      %v634 = vld [vmem:[%s1 + $0xcb8] sm:$0xff]
      %v635 = vld [vmem:[%s1 + $0xcc0] sm:$0xff]
      %v636 = vld [vmem:[%s1 + $0xcc8] sm:$0xff]
      %v637 = vld [vmem:[%s1 + $0xcd0] sm:$0xff]
      %v638 = vld [vmem:[%s1 + $0xcd8] sm:$0xff]
      %v639 = vld [vmem:[%s1 + $0xce0] sm:$0xff]
      %v640 = vld [vmem:[%s1 + $0xce8] sm:$0xff]
      %v641 = vld [vmem:[%s1 + $0xcf0] sm:$0xff]
      %v642 = vld [vmem:[%s1 + $0xcf8] sm:$0xff]
      %v643 = vld [vmem:[%s1 + $0xd00] sm:$0xff]
      %v644 = vld [vmem:[%s1 + $0xd08] sm:$0xff]
      %v645 = vld [vmem:[%s1 + $0xd10] sm:$0xff]
      %v646 = vld [vmem:[%s1 + $0xd18] sm:$0xff]
      %v647 = vld [vmem:[%s1 + $0xd20] sm:$0xff]
      %v648 = vld [vmem:[%s1 + $0xd28] sm:$0xff]
      %v649 = vld [vmem:[%s1 + $0xd30] sm:$0xff]
      %v650 = vld [vmem:[%s1 + $0xd38] sm:$0xff]
      %v651 = vld [vmem:[%s1 + $0xd40] sm:$0xff]
      %v652 = vld [vmem:[%s1 + $0xd48] sm:$0xff]
      %v653 = vld [vmem:[%s1 + $0xd50] sm:$0xff]
      %v654 = vld [vmem:[%s1 + $0xd58] sm:$0xff]
      %v655 = vld [vmem:[%s1 + $0xd60] sm:$0xff]
      %v656 = vld [vmem:[%s1 + $0xd68] sm:$0xff]
      %v657 = vld [vmem:[%s1 + $0xd70] sm:$0xff]
      %v658 = vld [vmem:[%s1 + $0xd78] sm:$0xff]
      %v659 = vld [vmem:[%s1 + $0xd80] sm:$0xff]
      %v660 = vld [vmem:[%s1 + $0xd88] sm:$0xff]
      %v661 = vld [vmem:[%s1 + $0xd90] sm:$0xff]
      %v662 = vld [vmem:[%s1 + $0xd98] sm:$0xff]
      %v663 = vld [vmem:[%s1 + $0xda0] sm:$0xff]
      %v664 = vld [vmem:[%s1 + $0xda8] sm:$0xff]
      %v665 = vld [vmem:[%s1 + $0xdb0] sm:$0xff]
      %v666 = vld [vmem:[%s1 + $0xdb8] sm:$0xff]
      %v667 = vld [vmem:[%s1 + $0xdc0] sm:$0xff]
      %v668 = vld [vmem:[%s1 + $0xdc8] sm:$0xff]
      %v669 = vld [vmem:[%s1 + $0xdd0] sm:$0xff]
      %v670 = vld [vmem:[%s1 + $0xdd8] sm:$0xff]
      %v671 = vld [vmem:[%s1 + $0xde0] sm:$0xff]
      %v672 = vld [vmem:[%s1 + $0xde8] sm:$0xff]
      %v673 = vld [vmem:[%s1 + $0xdf0] sm:$0xff]
      %v674 = vld [vmem:[%s1 + $0xdf8] sm:$0xff]
      %v675 = vld [vmem:[%s1 + $0xe00] sm:$0xff]
      %v676 = vld [vmem:[%s1 + $0xe08] sm:$0xff]
      %v677 = vld [vmem:[%s1 + $0xe10] sm:$0xff]
      %v678 = vld [vmem:[%s1 + $0xe18] sm:$0xff]
      %v679 = vld [vmem:[%s1 + $0xe20] sm:$0xff]
      %v680 = vld [vmem:[%s1 + $0xe28] sm:$0xff]
      %v681 = vld [vmem:[%s1 + $0xe30] sm:$0xff]
      %v682 = vld [vmem:[%s1 + $0xe38] sm:$0xff]
      %v683 = vld [vmem:[%s1 + $0xe40] sm:$0xff]
      %v684 = vld [vmem:[%s1 + $0xe48] sm:$0xff]
      %v685 = vld [vmem:[%s1 + $0xe50] sm:$0xff]
      %v686 = vld [vmem:[%s1 + $0xe58] sm:$0xff]
      %v687 = vld [vmem:[%s1 + $0xe60] sm:$0xff]
      %v688 = vld [vmem:[%s1 + $0xe68] sm:$0xff]
      %v689 = vld [vmem:[%s1 + $0xe70] sm:$0xff]
      %v690 = vld [vmem:[%s1 + $0xe78] sm:$0xff]
      %v691 = vld [vmem:[%s1 + $0xe80] sm:$0xff]
      %v692 = vld [vmem:[%s1 + $0xe88] sm:$0xff]
      %v693 = vld [vmem:[%s1 + $0xe90] sm:$0xff]
      %v694 = vld [vmem:[%s1 + $0xe98] sm:$0xff]
      %v695 = vld [vmem:[%s1 + $0xea0] sm:$0xff]
      %v696 = vld [vmem:[%s1 + $0xea8] sm:$0xff]
      %v697 = vld [vmem:[%s1 + $0xeb0] sm:$0xff]
      %v698 = vld [vmem:[%s1 + $0xeb8] sm:$0xff]
      %v699 = vld [vmem:[%s1 + $0xec0] sm:$0xff]
      %v700 = vld [vmem:[%s1 + $0xec8] sm:$0xff]
      %v701 = vld [vmem:[%s1 + $0xed0] sm:$0xff]
      %v702 = vld [vmem:[%s1 + $0xed8] sm:$0xff]
      %v703 = vld [vmem:[%s1 + $0xee0] sm:$0xff]
      %v704 = vld [vmem:[%s1 + $0xee8] sm:$0xff]
      %v705 = vld [vmem:[%s1 + $0xef0] sm:$0xff]
      %v706 = vld [vmem:[%s1 + $0xef8] sm:$0xff]
      %v707 = vld [vmem:[%s1 + $0xf00] sm:$0xff]
      %v708 = vld [vmem:[%s1 + $0xf08] sm:$0xff]
      %v709 = vld [vmem:[%s1 + $0xf10] sm:$0xff]
      %v710 = vld [vmem:[%s1 + $0xf18] sm:$0xff]
      %v711 = vld [vmem:[%s1 + $0xf20] sm:$0xff]
      %v712 = vld [vmem:[%s1 + $0xf28] sm:$0xff]
      %v713 = vld [vmem:[%s1 + $0xf30] sm:$0xff]
      %v714 = vld [vmem:[%s1 + $0xf38] sm:$0xff]
      %v715 = vld [vmem:[%s1 + $0xf40] sm:$0xff]
      %v716 = vld [vmem:[%s1 + $0xf48] sm:$0xff]
      %v717 = vld [vmem:[%s1 + $0xf50] sm:$0xff]
      %v718 = vld [vmem:[%s1 + $0xf58] sm:$0xff]
      %v719 = vld [vmem:[%s1 + $0xf60] sm:$0xff]
      %v720 = vld [vmem:[%s1 + $0xf68] sm:$0xff]
      %v721 = vld [vmem:[%s1 + $0xf70] sm:$0xff]
      %v722 = vld [vmem:[%s1 + $0xf78] sm:$0xff]
      %v723 = vld [vmem:[%s1 + $0xf80] sm:$0xff]
      %v724 = vld [vmem:[%s1 + $0xf88] sm:$0xff]
      %v725 = vld [vmem:[%s1 + $0xf90] sm:$0xff]
      %v726 = vld [vmem:[%s1 + $0xf98] sm:$0xff]
      %v727 = vld [vmem:[%s1 + $0xfa0] sm:$0xff]
      %v728 = vld [vmem:[%s1 + $0xfa8] sm:$0xff]
      %v729 = vld [vmem:[%s1 + $0xfb0] sm:$0xff]
      %v730 = vld [vmem:[%s1 + $0xfb8] sm:$0xff]
      %v731 = vld [vmem:[%s1 + $0xfc0] sm:$0xff]
      %v732 = vld [vmem:[%s1 + $0xfc8] sm:$0xff]
      %v733 = vld [vmem:[%s1 + $0xfd0] sm:$0xff]
      %v734 = vld [vmem:[%s1 + $0xfd8] sm:$0xff]
      %v735 = vld [vmem:[%s1 + $0xfe0] sm:$0xff]
      %v736 = vld [vmem:[%s1 + $0xfe8] sm:$0xff]
      %v737 = vld [vmem:[%s1 + $0xff0] sm:$0xff]
      %v738 = vld [vmem:[%s1 + $0xff8] sm:$0xff]
      %v739 = vld [vmem:[%s2] sm:$0xff]
      %v740 = vld [vmem:[%s2 + $0x8] sm:$0xff]
      %v741 = vld [vmem:[%s2 + $0x10] sm:$0xff]
      %v742 = vld [vmem:[%s2 + $0x18] sm:$0xff]
      %v743 = vld [vmem:[%s2 + $0x20] sm:$0xff]
      %v744 = vld [vmem:[%s2 + $0x28] sm:$0xff]
      %v745 = vld [vmem:[%s2 + $0x30] sm:$0xff]
      %v746 = vld [vmem:[%s2 + $0x38] sm:$0xff]
      %v747 = vld [vmem:[%s2 + $0x40] sm:$0xff]
      %v748 = vld [vmem:[%s2 + $0x48] sm:$0xff]
      %v749 = vld [vmem:[%s2 + $0x50] sm:$0xff]
      %v750 = vld [vmem:[%s2 + $0x58] sm:$0xff]
      %v751 = vld [vmem:[%s2 + $0x60] sm:$0xff]
      %v752 = vld [vmem:[%s2 + $0x68] sm:$0xff]
      %v753 = vld [vmem:[%s2 + $0x70] sm:$0xff]
      %v754 = vld [vmem:[%s2 + $0x78] sm:$0xff]
      %v755 = vld [vmem:[%s2 + $0x80] sm:$0xff]
      %v756 = vld [vmem:[%s2 + $0x88] sm:$0xff]
      %v757 = vld [vmem:[%s2 + $0x90] sm:$0xff]
      %v758 = vld [vmem:[%s2 + $0x98] sm:$0xff]
      %v759 = vld [vmem:[%s2 + $0xa0] sm:$0xff]
      %v760 = vld [vmem:[%s2 + $0xa8] sm:$0xff]
      %v761 = vld [vmem:[%s2 + $0xb0] sm:$0xff]
      %v762 = vld [vmem:[%s2 + $0xb8] sm:$0xff]
      %v763 = vld [vmem:[%s2 + $0xc0] sm:$0xff]
      %v764 = vld [vmem:[%s2 + $0xc8] sm:$0xff]
      %v765 = vld [vmem:[%s2 + $0xd0] sm:$0xff]
      %v766 = vld [vmem:[%s2 + $0xd8] sm:$0xff]
      %v767 = vld [vmem:[%s2 + $0xe0] sm:$0xff]
      %v768 = vld [vmem:[%s2 + $0xe8] sm:$0xff]
      %v769 = vld [vmem:[%s2 + $0xf0] sm:$0xff]
      %v770 = vld [vmem:[%s2 + $0xf8] sm:$0xff]
      %v771 = vld [vmem:[%s2 + $0x100] sm:$0xff]
      %v772 = vld [vmem:[%s2 + $0x108] sm:$0xff]
      %v773 = vld [vmem:[%s2 + $0x110] sm:$0xff]
      %v774 = vld [vmem:[%s2 + $0x118] sm:$0xff]
      %v775 = vld [vmem:[%s2 + $0x120] sm:$0xff]
      %v776 = vld [vmem:[%s2 + $0x128] sm:$0xff]
      %v777 = vld [vmem:[%s2 + $0x130] sm:$0xff]
      %v778 = vld [vmem:[%s2 + $0x138] sm:$0xff]
      %v779 = vld [vmem:[%s2 + $0x140] sm:$0xff]
      %v780 = vld [vmem:[%s2 + $0x148] sm:$0xff]
      %v781 = vld [vmem:[%s2 + $0x150] sm:$0xff]
      %v782 = vld [vmem:[%s2 + $0x158] sm:$0xff]
      %v783 = vld [vmem:[%s2 + $0x160] sm:$0xff]
      %v784 = vld [vmem:[%s2 + $0x168] sm:$0xff]
      %v785 = vld [vmem:[%s2 + $0x170] sm:$0xff]
      %v786 = vld [vmem:[%s2 + $0x178] sm:$0xff]
      %v787 = vld [vmem:[%s2 + $0x180] sm:$0xff]
      %v788 = vld [vmem:[%s2 + $0x188] sm:$0xff]
      %v789 = vld [vmem:[%s2 + $0x190] sm:$0xff]
      %v790 = vld [vmem:[%s2 + $0x198] sm:$0xff]
      %v791 = vld [vmem:[%s2 + $0x1a0] sm:$0xff]
      %v792 = vld [vmem:[%s2 + $0x1a8] sm:$0xff]
      %v793 = vld [vmem:[%s2 + $0x1b0] sm:$0xff]
      %v794 = vld [vmem:[%s2 + $0x1b8] sm:$0xff]
      %v795 = vld [vmem:[%s2 + $0x1c0] sm:$0xff]
      %v796 = vld [vmem:[%s2 + $0x1c8] sm:$0xff]
      %v797 = vld [vmem:[%s2 + $0x1d0] sm:$0xff]
      %v798 = vld [vmem:[%s2 + $0x1d8] sm:$0xff]
      %v799 = vld [vmem:[%s2 + $0x1e0] sm:$0xff]
      %v800 = vld [vmem:[%s2 + $0x1e8] sm:$0xff]
      %v801 = vld [vmem:[%s2 + $0x1f0] sm:$0xff]
      %v802 = vld [vmem:[%s2 + $0x1f8] sm:$0xff]
      %v803 = vld [vmem:[%s2 + $0x200] sm:$0xff]
      %v804 = vld [vmem:[%s2 + $0x208] sm:$0xff]
      %v805 = vld [vmem:[%s2 + $0x210] sm:$0xff]
      %v806 = vld [vmem:[%s2 + $0x218] sm:$0xff]
      %v807 = vld [vmem:[%s2 + $0x220] sm:$0xff]
      %v808 = vld [vmem:[%s2 + $0x228] sm:$0xff]
      %v809 = vld [vmem:[%s2 + $0x230] sm:$0xff]
      %v810 = vld [vmem:[%s2 + $0x238] sm:$0xff]
      %v811 = vld [vmem:[%s2 + $0x240] sm:$0xff]
      %v812 = vld [vmem:[%s2 + $0x248] sm:$0xff]
      %v813 = vld [vmem:[%s2 + $0x250] sm:$0xff]
      %v814 = vld [vmem:[%s2 + $0x258] sm:$0xff]
      %v815 = vld [vmem:[%s2 + $0x260] sm:$0xff]
      %v816 = vld [vmem:[%s2 + $0x268] sm:$0xff]
      %v817 = vld [vmem:[%s2 + $0x270] sm:$0xff]
      %v818 = vld [vmem:[%s2 + $0x278] sm:$0xff]
      %v819 = vld [vmem:[%s2 + $0x280] sm:$0xff]
      %v820 = vld [vmem:[%s2 + $0x288] sm:$0xff]
      %v821 = vld [vmem:[%s2 + $0x290] sm:$0xff]
      %v822 = vld [vmem:[%s2 + $0x298] sm:$0xff]
      %v823 = vld [vmem:[%s2 + $0x2a0] sm:$0xff]
      %v824 = vld [vmem:[%s2 + $0x2a8] sm:$0xff]
      %v825 = vld [vmem:[%s2 + $0x2b0] sm:$0xff]
      %v826 = vld [vmem:[%s2 + $0x2b8] sm:$0xff]
      %v827 = vld [vmem:[%s2 + $0x2c0] sm:$0xff]
      %v828 = vld [vmem:[%s2 + $0x2c8] sm:$0xff]
      %v829 = vld [vmem:[%s2 + $0x2d0] sm:$0xff]
      %v830 = vld [vmem:[%s2 + $0x2d8] sm:$0xff]
      %v831 = vld [vmem:[%s2 + $0x2e0] sm:$0xff]
      %v832 = vld [vmem:[%s2 + $0x2e8] sm:$0xff]
      %v833 = vld [vmem:[%s2 + $0x2f0] sm:$0xff]
      %v834 = vld [vmem:[%s2 + $0x2f8] sm:$0xff]
      %v835 = vld [vmem:[%s2 + $0x300] sm:$0xff]
      %v836 = vld [vmem:[%s2 + $0x308] sm:$0xff]
      %v837 = vld [vmem:[%s2 + $0x310] sm:$0xff]
      %v838 = vld [vmem:[%s2 + $0x318] sm:$0xff]
      %v839 = vld [vmem:[%s2 + $0x320] sm:$0xff]
      %v840 = vld [vmem:[%s2 + $0x328] sm:$0xff]
      %v841 = vld [vmem:[%s2 + $0x330] sm:$0xff]
      %v842 = vld [vmem:[%s2 + $0x338] sm:$0xff]
      %v843 = vld [vmem:[%s2 + $0x340] sm:$0xff]
      %v844 = vld [vmem:[%s2 + $0x348] sm:$0xff]
      %v845 = vld [vmem:[%s2 + $0x350] sm:$0xff]
      %v846 = vld [vmem:[%s2 + $0x358] sm:$0xff]
      %v847 = vld [vmem:[%s2 + $0x360] sm:$0xff]
      %v848 = vld [vmem:[%s2 + $0x368] sm:$0xff]
      %v849 = vld [vmem:[%s2 + $0x370] sm:$0xff]
      %v850 = vld [vmem:[%s2 + $0x378] sm:$0xff]
      %v851 = vld [vmem:[%s2 + $0x380] sm:$0xff]
      %v852 = vld [vmem:[%s2 + $0x388] sm:$0xff]
      %v853 = vld [vmem:[%s2 + $0x390] sm:$0xff]
      %v854 = vld [vmem:[%s2 + $0x398] sm:$0xff]
      %v855 = vld [vmem:[%s2 + $0x3a0] sm:$0xff]
      %v856 = vld [vmem:[%s2 + $0x3a8] sm:$0xff]
      %v857 = vld [vmem:[%s2 + $0x3b0] sm:$0xff]
      %v858 = vld [vmem:[%s2 + $0x3b8] sm:$0xff]
      %v859 = vld [vmem:[%s2 + $0x3c0] sm:$0xff]
      %v860 = vld [vmem:[%s2 + $0x3c8] sm:$0xff]
      %v861 = vld [vmem:[%s2 + $0x3d0] sm:$0xff]
      %v862 = vld [vmem:[%s2 + $0x3d8] sm:$0xff]
      %v863 = vld [vmem:[%s2 + $0x3e0] sm:$0xff]
      %v864 = vld [vmem:[%s2 + $0x3e8] sm:$0xff]
      %v865 = vld [vmem:[%s2 + $0x3f0] sm:$0xff]
      %v866 = vld [vmem:[%s2 + $0x3f8] sm:$0xff]
      %v867 = vld [vmem:[%s2 + $0x400] sm:$0xff]
      %v868 = vld [vmem:[%s2 + $0x408] sm:$0xff]
      %v869 = vld [vmem:[%s2 + $0x410] sm:$0xff]
      %v870 = vld [vmem:[%s2 + $0x418] sm:$0xff]
      %v871 = vld [vmem:[%s2 + $0x420] sm:$0xff]
      %v872 = vld [vmem:[%s2 + $0x428] sm:$0xff]
      %v873 = vld [vmem:[%s2 + $0x430] sm:$0xff]
      %v874 = vld [vmem:[%s2 + $0x438] sm:$0xff]
      %v875 = vld [vmem:[%s2 + $0x440] sm:$0xff]
      %v876 = vld [vmem:[%s2 + $0x448] sm:$0xff]
      %v877 = vld [vmem:[%s2 + $0x450] sm:$0xff]
      %v878 = vld [vmem:[%s2 + $0x458] sm:$0xff]
      %v879 = vld [vmem:[%s2 + $0x460] sm:$0xff]
      %v880 = vld [vmem:[%s2 + $0x468] sm:$0xff]
      %v881 = vld [vmem:[%s2 + $0x470] sm:$0xff]
      %v882 = vld [vmem:[%s2 + $0x478] sm:$0xff]
      %v883 = vld [vmem:[%s2 + $0x480] sm:$0xff]
      %v884 = vld [vmem:[%s2 + $0x488] sm:$0xff]
      %v885 = vld [vmem:[%s2 + $0x490] sm:$0xff]
      %v886 = vld [vmem:[%s2 + $0x498] sm:$0xff]
      %v887 = vld [vmem:[%s2 + $0x4a0] sm:$0xff]
      %v888 = vld [vmem:[%s2 + $0x4a8] sm:$0xff]
      %v889 = vld [vmem:[%s2 + $0x4b0] sm:$0xff]
      %v890 = vld [vmem:[%s2 + $0x4b8] sm:$0xff]
      %v891 = vld [vmem:[%s2 + $0x4c0] sm:$0xff]
      %v892 = vld [vmem:[%s2 + $0x4c8] sm:$0xff]
      %v893 = vld [vmem:[%s2 + $0x4d0] sm:$0xff]
      %v894 = vld [vmem:[%s2 + $0x4d8] sm:$0xff]
      %v895 = vld [vmem:[%s2 + $0x4e0] sm:$0xff]
      %v896 = vld [vmem:[%s2 + $0x4e8] sm:$0xff]
      %v897 = vld [vmem:[%s2 + $0x4f0] sm:$0xff]
      %v898 = vld [vmem:[%s2 + $0x4f8] sm:$0xff]
      %v899 = vld [vmem:[%s2 + $0x500] sm:$0xff]
      %v900 = vld [vmem:[%s2 + $0x508] sm:$0xff]
      %v901 = vld [vmem:[%s2 + $0x510] sm:$0xff]
      %v902 = vld [vmem:[%s2 + $0x518] sm:$0xff]
      %v903 = vld [vmem:[%s2 + $0x520] sm:$0xff]
      %v904 = vld [vmem:[%s2 + $0x528] sm:$0xff]
      %v905 = vld [vmem:[%s2 + $0x530] sm:$0xff]
      %v906 = vld [vmem:[%s2 + $0x538] sm:$0xff]
      %v907 = vld [vmem:[%s2 + $0x540] sm:$0xff]
      %v908 = vld [vmem:[%s2 + $0x548] sm:$0xff]
      %v909 = vld [vmem:[%s2 + $0x550] sm:$0xff]
      %v910 = vld [vmem:[%s2 + $0x558] sm:$0xff]
      %v911 = vld [vmem:[%s2 + $0x560] sm:$0xff]
      %v912 = vld [vmem:[%s2 + $0x568] sm:$0xff]
      %v913 = vld [vmem:[%s2 + $0x570] sm:$0xff]
      %v914 = vld [vmem:[%s2 + $0x578] sm:$0xff]
      %v915 = vld [vmem:[%s2 + $0x580] sm:$0xff]
      %v916 = vld [vmem:[%s2 + $0x588] sm:$0xff]
      %v917 = vld [vmem:[%s2 + $0x590] sm:$0xff]
      %v918 = vld [vmem:[%s2 + $0x598] sm:$0xff]
      %v919 = vld [vmem:[%s2 + $0x5a0] sm:$0xff]
      %v920 = vld [vmem:[%s2 + $0x5a8] sm:$0xff]
      %v921 = vld [vmem:[%s2 + $0x5b0] sm:$0xff]
      %v922 = vld [vmem:[%s2 + $0x5b8] sm:$0xff]
      %v923 = vld [vmem:[%s2 + $0x5c0] sm:$0xff]
      %v924 = vld [vmem:[%s2 + $0x5c8] sm:$0xff]
      %v925 = vld [vmem:[%s2 + $0x5d0] sm:$0xff]
      %v926 = vld [vmem:[%s2 + $0x5d8] sm:$0xff]
      %v927 = vld [vmem:[%s2 + $0x5e0] sm:$0xff]
      %v928 = vld [vmem:[%s2 + $0x5e8] sm:$0xff]
      %v929 = vld [vmem:[%s2 + $0x5f0] sm:$0xff]
      %v930 = vld [vmem:[%s2 + $0x5f8] sm:$0xff]
      %v931 = vld [vmem:[%s2 + $0x600] sm:$0xff]
      %v932 = vld [vmem:[%s2 + $0x608] sm:$0xff]
      %v933 = vld [vmem:[%s2 + $0x610] sm:$0xff]
      %v934 = vld [vmem:[%s2 + $0x618] sm:$0xff]
      %v935 = vld [vmem:[%s2 + $0x620] sm:$0xff]
      %v936 = vld [vmem:[%s2 + $0x628] sm:$0xff]
      %v937 = vld [vmem:[%s2 + $0x630] sm:$0xff]
      %v938 = vld [vmem:[%s2 + $0x638] sm:$0xff]
      %v939 = vld [vmem:[%s2 + $0x640] sm:$0xff]
      %v940 = vld [vmem:[%s2 + $0x648] sm:$0xff]
      %v941 = vld [vmem:[%s2 + $0x650] sm:$0xff]
      %v942 = vld [vmem:[%s2 + $0x658] sm:$0xff]
      %v943 = vld [vmem:[%s2 + $0x660] sm:$0xff]
      %v944 = vld [vmem:[%s2 + $0x668] sm:$0xff]
      %v945 = vld [vmem:[%s2 + $0x670] sm:$0xff]
      %v946 = vld [vmem:[%s2 + $0x678] sm:$0xff]
      %v947 = vld [vmem:[%s2 + $0x680] sm:$0xff]
      %v948 = vld [vmem:[%s2 + $0x688] sm:$0xff]
      %v949 = vld [vmem:[%s2 + $0x690] sm:$0xff]
      %v950 = vld [vmem:[%s2 + $0x698] sm:$0xff]
      %v951 = vld [vmem:[%s2 + $0x6a0] sm:$0xff]
      %v952 = vld [vmem:[%s2 + $0x6a8] sm:$0xff]
      %v953 = vld [vmem:[%s2 + $0x6b0] sm:$0xff]
      %v954 = vld [vmem:[%s2 + $0x6b8] sm:$0xff]
      %v955 = vld [vmem:[%s2 + $0x6c0] sm:$0xff]
      %v956 = vld [vmem:[%s2 + $0x6c8] sm:$0xff]
      %v957 = vld [vmem:[%s2 + $0x6d0] sm:$0xff]
      %v958 = vld [vmem:[%s2 + $0x6d8] sm:$0xff]
      %v959 = vld [vmem:[%s2 + $0x6e0] sm:$0xff]
      %v960 = vld [vmem:[%s2 + $0x6e8] sm:$0xff]
      %v961 = vld [vmem:[%s2 + $0x6f0] sm:$0xff]
      %v962 = vld [vmem:[%s2 + $0x6f8] sm:$0xff]
      %v963 = vld [vmem:[%s2 + $0x700] sm:$0xff]
      %v964 = vld [vmem:[%s2 + $0x708] sm:$0xff]
      %v965 = vld [vmem:[%s2 + $0x710] sm:$0xff]
      %v966 = vld [vmem:[%s2 + $0x718] sm:$0xff]
      %v967 = vld [vmem:[%s2 + $0x720] sm:$0xff]
      %v968 = vld [vmem:[%s2 + $0x728] sm:$0xff]
      %v969 = vld [vmem:[%s2 + $0x730] sm:$0xff]
      %v970 = vld [vmem:[%s2 + $0x738] sm:$0xff]
      %v971 = vld [vmem:[%s2 + $0x740] sm:$0xff]
      %v972 = vld [vmem:[%s2 + $0x748] sm:$0xff]
      %v973 = vld [vmem:[%s2 + $0x750] sm:$0xff]
      %v974 = vld [vmem:[%s2 + $0x758] sm:$0xff]
      %v975 = vld [vmem:[%s2 + $0x760] sm:$0xff]
      %v976 = vld [vmem:[%s2 + $0x768] sm:$0xff]
      %v977 = vld [vmem:[%s2 + $0x770] sm:$0xff]
      %v978 = vld [vmem:[%s2 + $0x778] sm:$0xff]
      %v979 = vld [vmem:[%s2 + $0x780] sm:$0xff]
      %v980 = vld [vmem:[%s2 + $0x788] sm:$0xff]
      %v981 = vld [vmem:[%s2 + $0x790] sm:$0xff]
      %v982 = vld [vmem:[%s2 + $0x798] sm:$0xff]
      %v983 = vld [vmem:[%s2 + $0x7a0] sm:$0xff]
      %v984 = vld [vmem:[%s2 + $0x7a8] sm:$0xff]
      %v985 = vld [vmem:[%s2 + $0x7b0] sm:$0xff]
      %v986 = vld [vmem:[%s2 + $0x7b8] sm:$0xff]
      %v987 = vld [vmem:[%s2 + $0x7c0] sm:$0xff]
      %v988 = vld [vmem:[%s2 + $0x7c8] sm:$0xff]
      %v989 = vld [vmem:[%s2 + $0x7d0] sm:$0xff]
      %v990 = vld [vmem:[%s2 + $0x7d8] sm:$0xff]
      %v991 = vld [vmem:[%s2 + $0x7e0] sm:$0xff]
      %v992 = vld [vmem:[%s2 + $0x7e8] sm:$0xff]
      %v993 = vld [vmem:[%s2 + $0x7f0] sm:$0xff]
      %v994 = vld [vmem:[%s2 + $0x7f8] sm:$0xff]
      %v995 = vld [vmem:[%s2 + $0x800] sm:$0xff]
      %v996 = vld [vmem:[%s2 + $0x808] sm:$0xff]
      %v997 = vld [vmem:[%s2 + $0x810] sm:$0xff]
      %v998 = vld [vmem:[%s2 + $0x818] sm:$0xff]
      %v999 = vld [vmem:[%s2 + $0x820] sm:$0xff]
      %v1000 = vld [vmem:[%s2 + $0x828] sm:$0xff]
      %v1001 = vld [vmem:[%s2 + $0x830] sm:$0xff]
      %v1002 = vld [vmem:[%s2 + $0x838] sm:$0xff]
      %v1003 = vld [vmem:[%s2 + $0x840] sm:$0xff]
      %v1004 = vld [vmem:[%s2 + $0x848] sm:$0xff]
      %v1005 = vld [vmem:[%s2 + $0x850] sm:$0xff]
      %v1006 = vld [vmem:[%s2 + $0x858] sm:$0xff]
      %v1007 = vld [vmem:[%s2 + $0x860] sm:$0xff]
      %v1008 = vld [vmem:[%s2 + $0x868] sm:$0xff]
      %v1009 = vld [vmem:[%s2 + $0x870] sm:$0xff]
      %v1010 = vld [vmem:[%s2 + $0x878] sm:$0xff]
      %v1011 = vld [vmem:[%s2 + $0x880] sm:$0xff]
      %v1012 = vld [vmem:[%s2 + $0x888] sm:$0xff]
      %v1013 = vld [vmem:[%s2 + $0x890] sm:$0xff]
      %v1014 = vld [vmem:[%s2 + $0x898] sm:$0xff]
      %v1015 = vld [vmem:[%s2 + $0x8a0] sm:$0xff]
      %v1016 = vld [vmem:[%s2 + $0x8a8] sm:$0xff]
      %v1017 = vld [vmem:[%s2 + $0x8b0] sm:$0xff]
      %v1018 = vld [vmem:[%s2 + $0x8b8] sm:$0xff]
      %v1019 = vld [vmem:[%s2 + $0x8c0] sm:$0xff]
      %v1020 = vld [vmem:[%s2 + $0x8c8] sm:$0xff]
      %v1021 = vld [vmem:[%s2 + $0x8d0] sm:$0xff]
      %v1022 = vld [vmem:[%s2 + $0x8d8] sm:$0xff]
      %v1023 = vld [vmem:[%s2 + $0x8e0] sm:$0xff]
      %v1024 = vld [vmem:[%s2 + $0x8e8] sm:$0xff]
      %v1025 = vld [vmem:[%s2 + $0x8f0] sm:$0xff]
      %v1026 = vld [vmem:[%s2 + $0x8f8] sm:$0xff]
      %v1027 = vld [vmem:[%s2 + $0x900] sm:$0xff]
      %v1028 = vld [vmem:[%s2 + $0x908] sm:$0xff]
      %v1029 = vld [vmem:[%s2 + $0x910] sm:$0xff]
      %v1030 = vld [vmem:[%s2 + $0x918] sm:$0xff]
      %v1031 = vld [vmem:[%s2 + $0x920] sm:$0xff]
      %v1032 = vld [vmem:[%s2 + $0x928] sm:$0xff]
      %v1033 = vld [vmem:[%s2 + $0x930] sm:$0xff]
      %v1034 = vld [vmem:[%s2 + $0x938] sm:$0xff]
      %v1035 = vld [vmem:[%s2 + $0x940] sm:$0xff]
      %v1036 = vld [vmem:[%s2 + $0x948] sm:$0xff]
      %v1037 = vld [vmem:[%s2 + $0x950] sm:$0xff]
      %v1038 = vld [vmem:[%s2 + $0x958] sm:$0xff]
      %v1039 = vld [vmem:[%s2 + $0x960] sm:$0xff]
      %v1040 = vld [vmem:[%s2 + $0x968] sm:$0xff]
      %v1041 = vld [vmem:[%s2 + $0x970] sm:$0xff]
      %v1042 = vld [vmem:[%s2 + $0x978] sm:$0xff]
      %v1043 = vld [vmem:[%s2 + $0x980] sm:$0xff]
      %v1044 = vld [vmem:[%s2 + $0x988] sm:$0xff]
      %v1045 = vld [vmem:[%s2 + $0x990] sm:$0xff]
      %v1046 = vld [vmem:[%s2 + $0x998] sm:$0xff]
      %v1047 = vld [vmem:[%s2 + $0x9a0] sm:$0xff]
      %v1048 = vld [vmem:[%s2 + $0x9a8] sm:$0xff]
      %v1049 = vld [vmem:[%s2 + $0x9b0] sm:$0xff]
      %v1050 = vld [vmem:[%s2 + $0x9b8] sm:$0xff]
      %v1051 = vld [vmem:[%s2 + $0x9c0] sm:$0xff]
      %v1052 = vld [vmem:[%s2 + $0x9c8] sm:$0xff]
      %v1053 = vld [vmem:[%s2 + $0x9d0] sm:$0xff]
      %v1054 = vld [vmem:[%s2 + $0x9d8] sm:$0xff]
      %v1055 = vld [vmem:[%s2 + $0x9e0] sm:$0xff]
      %v1056 = vld [vmem:[%s2 + $0x9e8] sm:$0xff]
      %v1057 = vld [vmem:[%s2 + $0x9f0] sm:$0xff]
      %v1058 = vld [vmem:[%s2 + $0x9f8] sm:$0xff]
      %v1059 = vld [vmem:[%s2 + $0xa00] sm:$0xff]
      %v1060 = vld [vmem:[%s2 + $0xa08] sm:$0xff]
      %v1061 = vld [vmem:[%s2 + $0xa10] sm:$0xff]
      %v1062 = vld [vmem:[%s2 + $0xa18] sm:$0xff]
      %v1063 = vld [vmem:[%s2 + $0xa20] sm:$0xff]
      %v1064 = vld [vmem:[%s2 + $0xa28] sm:$0xff]
      %v1065 = vld [vmem:[%s2 + $0xa30] sm:$0xff]
      %v1066 = vld [vmem:[%s2 + $0xa38] sm:$0xff]
      %v1067 = vld [vmem:[%s2 + $0xa40] sm:$0xff]
      %v1068 = vld [vmem:[%s2 + $0xa48] sm:$0xff]
      %v1069 = vld [vmem:[%s2 + $0xa50] sm:$0xff]
      %v1070 = vld [vmem:[%s2 + $0xa58] sm:$0xff]
      %v1071 = vld [vmem:[%s2 + $0xa60] sm:$0xff]
      %v1072 = vld [vmem:[%s2 + $0xa68] sm:$0xff]
      %v1073 = vld [vmem:[%s2 + $0xa70] sm:$0xff]
      %v1074 = vld [vmem:[%s2 + $0xa78] sm:$0xff]
      %v1075 = vld [vmem:[%s2 + $0xa80] sm:$0xff]
      %v1076 = vld [vmem:[%s2 + $0xa88] sm:$0xff]
      %v1077 = vld [vmem:[%s2 + $0xa90] sm:$0xff]
      %v1078 = vld [vmem:[%s2 + $0xa98] sm:$0xff]
      %v1079 = vld [vmem:[%s2 + $0xaa0] sm:$0xff]
      %v1080 = vld [vmem:[%s2 + $0xaa8] sm:$0xff]
      %v1081 = vld [vmem:[%s2 + $0xab0] sm:$0xff]
      %v1082 = vld [vmem:[%s2 + $0xab8] sm:$0xff]
      %v1083 = vld [vmem:[%s2 + $0xac0] sm:$0xff]
      %v1084 = vld [vmem:[%s2 + $0xac8] sm:$0xff]
      %v1085 = vld [vmem:[%s2 + $0xad0] sm:$0xff]
      %v1086 = vld [vmem:[%s2 + $0xad8] sm:$0xff]
      %v1087 = vld [vmem:[%s2 + $0xae0] sm:$0xff]
      %v1088 = vld [vmem:[%s2 + $0xae8] sm:$0xff]
      %v1089 = vld [vmem:[%s2 + $0xaf0] sm:$0xff]
      %v1090 = vld [vmem:[%s2 + $0xaf8] sm:$0xff]
      %v1091 = vld [vmem:[%s2 + $0xb00] sm:$0xff]
      %v1092 = vld [vmem:[%s2 + $0xb08] sm:$0xff]
      %v1093 = vld [vmem:[%s2 + $0xb10] sm:$0xff]
      %v1094 = vld [vmem:[%s2 + $0xb18] sm:$0xff]
      %v1095 = vld [vmem:[%s2 + $0xb20] sm:$0xff]
      %v1096 = vld [vmem:[%s2 + $0xb28] sm:$0xff]
      %v1097 = vld [vmem:[%s2 + $0xb30] sm:$0xff]
      %v1098 = vld [vmem:[%s2 + $0xb38] sm:$0xff]
      %v1099 = vld [vmem:[%s2 + $0xb40] sm:$0xff]
      %v1100 = vld [vmem:[%s2 + $0xb48] sm:$0xff]
      %v1101 = vld [vmem:[%s2 + $0xb50] sm:$0xff]
      %v1102 = vld [vmem:[%s2 + $0xb58] sm:$0xff]
      %v1103 = vld [vmem:[%s2 + $0xb60] sm:$0xff]
      %v1104 = vld [vmem:[%s2 + $0xb68] sm:$0xff]
      %v1105 = vld [vmem:[%s2 + $0xb70] sm:$0xff]
      %v1106 = vld [vmem:[%s2 + $0xb78] sm:$0xff]
      %v1107 = vld [vmem:[%s2 + $0xb80] sm:$0xff]
      %v1108 = vld [vmem:[%s2 + $0xb88] sm:$0xff]
      %v1109 = vld [vmem:[%s2 + $0xb90] sm:$0xff]
      %v1110 = vld [vmem:[%s2 + $0xb98] sm:$0xff]
      %v1111 = vld [vmem:[%s2 + $0xba0] sm:$0xff]
      %v1112 = vld [vmem:[%s2 + $0xba8] sm:$0xff]
      %v1113 = vld [vmem:[%s2 + $0xbb0] sm:$0xff]
      %v1114 = vld [vmem:[%s2 + $0xbb8] sm:$0xff]
      %v1115 = vld [vmem:[%s2 + $0xbc0] sm:$0xff]
      %v1116 = vld [vmem:[%s2 + $0xbc8] sm:$0xff]
      %v1117 = vld [vmem:[%s2 + $0xbd0] sm:$0xff]
      %v1118 = vld [vmem:[%s2 + $0xbd8] sm:$0xff]
      %v1119 = vld [vmem:[%s2 + $0xbe0] sm:$0xff]
      %v1120 = vld [vmem:[%s2 + $0xbe8] sm:$0xff]
      %v1121 = vld [vmem:[%s2 + $0xbf0] sm:$0xff]
      %v1122 = vld [vmem:[%s2 + $0xbf8] sm:$0xff]
      %v1123 = vld [vmem:[%s2 + $0xc00] sm:$0xff]
      %v1124 = vld [vmem:[%s2 + $0xc08] sm:$0xff]
      %v1125 = vld [vmem:[%s2 + $0xc10] sm:$0xff]
      %v1126 = vld [vmem:[%s2 + $0xc18] sm:$0xff]
      %v1127 = vld [vmem:[%s2 + $0xc20] sm:$0xff]
      %v1128 = vld [vmem:[%s2 + $0xc28] sm:$0xff]
      %v1129 = vld [vmem:[%s2 + $0xc30] sm:$0xff]
      %v1130 = vld [vmem:[%s2 + $0xc38] sm:$0xff]
      %v1131 = vld [vmem:[%s2 + $0xc40] sm:$0xff]
      %v1132 = vld [vmem:[%s2 + $0xc48] sm:$0xff]
      %v1133 = vld [vmem:[%s2 + $0xc50] sm:$0xff]
      %v1134 = vld [vmem:[%s2 + $0xc58] sm:$0xff]
      %v1135 = vld [vmem:[%s2 + $0xc60] sm:$0xff]
      %v1136 = vld [vmem:[%s2 + $0xc68] sm:$0xff]
      %v1137 = vld [vmem:[%s2 + $0xc70] sm:$0xff]
      %v1138 = vld [vmem:[%s2 + $0xc78] sm:$0xff]
      %v1139 = vld [vmem:[%s2 + $0xc80] sm:$0xff]
      %v1140 = vld [vmem:[%s2 + $0xc88] sm:$0xff]
      %v1141 = vld [vmem:[%s2 + $0xc90] sm:$0xff]
      %v1142 = vld [vmem:[%s2 + $0xc98] sm:$0xff]
      %v1143 = vld [vmem:[%s2 + $0xca0] sm:$0xff]
      %v1144 = vld [vmem:[%s2 + $0xca8] sm:$0xff]
      %v1145 = vld [vmem:[%s2 + $0xcb0] sm:$0xff]
      %v1146 = vld [vmem:[%s2 + $0xcb8] sm:$0xff]
      %v1147 = vld [vmem:[%s2 + $0xcc0] sm:$0xff]
      %v1148 = vld [vmem:[%s2 + $0xcc8] sm:$0xff]
      %v1149 = vld [vmem:[%s2 + $0xcd0] sm:$0xff]
      %v1150 = vld [vmem:[%s2 + $0xcd8] sm:$0xff]
      %v1151 = vld [vmem:[%s2 + $0xce0] sm:$0xff]
      %v1152 = vld [vmem:[%s2 + $0xce8] sm:$0xff]
      %v1153 = vld [vmem:[%s2 + $0xcf0] sm:$0xff]
      %v1154 = vld [vmem:[%s2 + $0xcf8] sm:$0xff]
      %v1155 = vld [vmem:[%s2 + $0xd00] sm:$0xff]
      %v1156 = vld [vmem:[%s2 + $0xd08] sm:$0xff]
      %v1157 = vld [vmem:[%s2 + $0xd10] sm:$0xff]
      %v1158 = vld [vmem:[%s2 + $0xd18] sm:$0xff]
      %v1159 = vld [vmem:[%s2 + $0xd20] sm:$0xff]
      %v1160 = vld [vmem:[%s2 + $0xd28] sm:$0xff]
      %v1161 = vld [vmem:[%s2 + $0xd30] sm:$0xff]
      %v1162 = vld [vmem:[%s2 + $0xd38] sm:$0xff]
      %v1163 = vld [vmem:[%s2 + $0xd40] sm:$0xff]
      %v1164 = vld [vmem:[%s2 + $0xd48] sm:$0xff]
      %v1165 = vld [vmem:[%s2 + $0xd50] sm:$0xff]
      %v1166 = vld [vmem:[%s2 + $0xd58] sm:$0xff]
      %v1167 = vld [vmem:[%s2 + $0xd60] sm:$0xff]
      %v1168 = vld [vmem:[%s2 + $0xd68] sm:$0xff]
      %v1169 = vld [vmem:[%s2 + $0xd70] sm:$0xff]
      %v1170 = vld [vmem:[%s2 + $0xd78] sm:$0xff]
      %v1171 = vld [vmem:[%s2 + $0xd80] sm:$0xff]
      %v1172 = vld [vmem:[%s2 + $0xd88] sm:$0xff]
      %v1173 = vld [vmem:[%s2 + $0xd90] sm:$0xff]
      %v1174 = vld [vmem:[%s2 + $0xd98] sm:$0xff]
      %v1175 = vld [vmem:[%s2 + $0xda0] sm:$0xff]
      %v1176 = vld [vmem:[%s2 + $0xda8] sm:$0xff]
      %v1177 = vld [vmem:[%s2 + $0xdb0] sm:$0xff]
      %v1178 = vld [vmem:[%s2 + $0xdb8] sm:$0xff]
      %v1179 = vld [vmem:[%s2 + $0xdc0] sm:$0xff]
      %v1180 = vld [vmem:[%s2 + $0xdc8] sm:$0xff]
      %v1181 = vld [vmem:[%s2 + $0xdd0] sm:$0xff]
      %v1182 = vld [vmem:[%s2 + $0xdd8] sm:$0xff]
      %v1183 = vld [vmem:[%s2 + $0xde0] sm:$0xff]
      %v1184 = vld [vmem:[%s2 + $0xde8] sm:$0xff]
      %v1185 = vld [vmem:[%s2 + $0xdf0] sm:$0xff]
      %v1186 = vld [vmem:[%s2 + $0xdf8] sm:$0xff]
      %v1187 = vld [vmem:[%s2 + $0xe00] sm:$0xff]
      %v1188 = vld [vmem:[%s2 + $0xe08] sm:$0xff]
      %v1189 = vld [vmem:[%s2 + $0xe10] sm:$0xff]
      %v1190 = vld [vmem:[%s2 + $0xe18] sm:$0xff]
      %v1191 = vld [vmem:[%s2 + $0xe20] sm:$0xff]
      %v1192 = vld [vmem:[%s2 + $0xe28] sm:$0xff]
      %v1193 = vld [vmem:[%s2 + $0xe30] sm:$0xff]
      %v1194 = vld [vmem:[%s2 + $0xe38] sm:$0xff]
      %v1195 = vld [vmem:[%s2 + $0xe40] sm:$0xff]
      %v1196 = vld [vmem:[%s2 + $0xe48] sm:$0xff]
      %v1197 = vld [vmem:[%s2 + $0xe50] sm:$0xff]
      %v1198 = vld [vmem:[%s2 + $0xe58] sm:$0xff]
      %v1199 = vld [vmem:[%s2 + $0xe60] sm:$0xff]
      %v1200 = vld [vmem:[%s2 + $0xe68] sm:$0xff]
      %v1201 = vld [vmem:[%s2 + $0xe70] sm:$0xff]
      %v1202 = vld [vmem:[%s2 + $0xe78] sm:$0xff]
      %v1203 = vld [vmem:[%s2 + $0xe80] sm:$0xff]
      %v1204 = vld [vmem:[%s2 + $0xe88] sm:$0xff]
      %v1205 = vld [vmem:[%s2 + $0xe90] sm:$0xff]
      %v1206 = vld [vmem:[%s2 + $0xe98] sm:$0xff]
      %v1207 = vld [vmem:[%s2 + $0xea0] sm:$0xff]
      %v1208 = vld [vmem:[%s2 + $0xea8] sm:$0xff]
      %v1209 = vld [vmem:[%s2 + $0xeb0] sm:$0xff]
      %v1210 = vld [vmem:[%s2 + $0xeb8] sm:$0xff]
      %v1211 = vld [vmem:[%s2 + $0xec0] sm:$0xff]
      %v1212 = vld [vmem:[%s2 + $0xec8] sm:$0xff]
      %v1213 = vld [vmem:[%s2 + $0xed0] sm:$0xff]
      %v1214 = vld [vmem:[%s2 + $0xed8] sm:$0xff]
      %v1215 = vld [vmem:[%s2 + $0xee0] sm:$0xff]
      %v1216 = vld [vmem:[%s2 + $0xee8] sm:$0xff]
      %v1217 = vld [vmem:[%s2 + $0xef0] sm:$0xff]
      %v1218 = vld [vmem:[%s2 + $0xef8] sm:$0xff]
      %v1219 = vld [vmem:[%s2 + $0xf00] sm:$0xff]
      %v1220 = vld [vmem:[%s2 + $0xf08] sm:$0xff]
      %v1221 = vld [vmem:[%s2 + $0xf10] sm:$0xff]
      %v1222 = vld [vmem:[%s2 + $0xf18] sm:$0xff]
      %v1223 = vld [vmem:[%s2 + $0xf20] sm:$0xff]
      %v1224 = vld [vmem:[%s2 + $0xf28] sm:$0xff]
      %v1225 = vld [vmem:[%s2 + $0xf30] sm:$0xff]
      %v1226 = vld [vmem:[%s2 + $0xf38] sm:$0xff]
      %v1227 = vld [vmem:[%s2 + $0xf40] sm:$0xff]
      %v1228 = vld [vmem:[%s2 + $0xf48] sm:$0xff]
      %v1229 = vld [vmem:[%s2 + $0xf50] sm:$0xff]
      %v1230 = vld [vmem:[%s2 + $0xf58] sm:$0xff]
      %v1231 = vld [vmem:[%s2 + $0xf60] sm:$0xff]
      %v1232 = vld [vmem:[%s2 + $0xf68] sm:$0xff]
      %v1233 = vld [vmem:[%s2 + $0xf70] sm:$0xff]
      %v1234 = vld [vmem:[%s2 + $0xf78] sm:$0xff]
      %v1235 = vld [vmem:[%s2 + $0xf80] sm:$0xff]
      %v1236 = vld [vmem:[%s2 + $0xf88] sm:$0xff]
      %v1237 = vld [vmem:[%s2 + $0xf90] sm:$0xff]
      %v1238 = vld [vmem:[%s2 + $0xf98] sm:$0xff]
      %v1239 = vld [vmem:[%s2 + $0xfa0] sm:$0xff]
      %v1240 = vld [vmem:[%s2 + $0xfa8] sm:$0xff]
      %v1241 = vld [vmem:[%s2 + $0xfb0] sm:$0xff]
      %v1242 = vld [vmem:[%s2 + $0xfb8] sm:$0xff]
      %v1243 = vld [vmem:[%s2 + $0xfc0] sm:$0xff]
      %v1244 = vld [vmem:[%s2 + $0xfc8] sm:$0xff]
      %v1245 = vld [vmem:[%s2 + $0xfd0] sm:$0xff]
      %v1246 = vld [vmem:[%s2 + $0xfd8] sm:$0xff]
      %v1247 = vld [vmem:[%s2 + $0xfe0] sm:$0xff]
      %v1248 = vld [vmem:[%s2 + $0xfe8] sm:$0xff]
      %v1249 = vld [vmem:[%s2 + $0xff0] sm:$0xff]
      %v1250 = vld [vmem:[%s2 + $0xff8] sm:$0xff]
      %v1263 = vunpack.c.l.b16 %v215
      %v1264 = vunpack.c.h.b16 %v215
      %v1265 = vunpack.c.l.b16 %v216
      %v1266 = vunpack.c.h.b16 %v216
      %v1267 = vunpack.c.l.b16 %v217
      %v1268 = vunpack.c.h.b16 %v217
      %v1269 = vunpack.c.l.b16 %v218
      %v1270 = vunpack.c.h.b16 %v218
      %v1271 = vunpack.c.l.b16 %v219
      %v1272 = vunpack.c.h.b16 %v219
      %v1273 = vunpack.c.l.b16 %v220
      %v1274 = vunpack.c.h.b16 %v220
      %v1275 = vunpack.c.l.b16 %v221
      %v1276 = vunpack.c.h.b16 %v221
      %v1277 = vunpack.c.l.b16 %v222
      %v1278 = vunpack.c.h.b16 %v222
      %v1279 = vunpack.c.l.b16 %v223
      %v1280 = vunpack.c.h.b16 %v223
      %v1281 = vunpack.c.l.b16 %v224
      %v1282 = vunpack.c.h.b16 %v224
      %v1283 = vunpack.c.l.b16 %v225
      %v1284 = vunpack.c.h.b16 %v225
      %v1285 = vunpack.c.l.b16 %v226
      %v1286 = vunpack.c.h.b16 %v226
      %v1287 = vpack.c.b16 %v1271, %v1263
      %v1288 = vpack.c.b16 %v1272, %v1264
      %v1289 = vpack.c.b16 %v1273, %v1265
      %v1290 = vpack.c.b16 %v1274, %v1266
      %v1291 = vpack.c.b16 %v1275, %v1267
      %v1292 = vpack.c.b16 %v1276, %v1268
      %v1293 = vpack.c.b16 %v1277, %v1269
      %v1294 = vpack.c.b16 %v1278, %v1270
      %v1295 = vpack.c.b16 %v1279, %v1279
      %v1296 = vpack.c.b16 %v1280, %v1280
      %v1297 = vpack.c.b16 %v1281, %v1281
      %v1298 = vpack.c.b16 %v1282, %v1282
      %v1299 = vpack.c.b16 %v1283, %v1283
      %v1300 = vpack.c.b16 %v1284, %v1284
      %v1301 = vpack.c.b16 %v1285, %v1285
      %v1302 = vpack.c.b16 %v1286, %v1286
      %v1831 = vunpack.c.l.b16 %v739
      %v1832 = vunpack.c.h.b16 %v739
      %v1833 = vunpack.c.l.b16 %v740
      %v1834 = vunpack.c.h.b16 %v740
      %v1835 = vunpack.c.l.b16 %v741
      %v1836 = vunpack.c.h.b16 %v741
      %v1837 = vunpack.c.l.b16 %v742
      %v1838 = vunpack.c.h.b16 %v742
      %v1839 = vunpack.c.l.b16 %v743
      %v1840 = vunpack.c.h.b16 %v743
      %v1841 = vunpack.c.l.b16 %v744
      %v1842 = vunpack.c.h.b16 %v744
      %v1843 = vunpack.c.l.b16 %v745
      %v1844 = vunpack.c.h.b16 %v745
      %v1845 = vunpack.c.l.b16 %v746
      %v1846 = vunpack.c.h.b16 %v746
      %v1847 = vunpack.c.l.b16 %v747
      %v1848 = vunpack.c.h.b16 %v747
      %v1849 = vunpack.c.l.b16 %v748
      %v1850 = vunpack.c.h.b16 %v748
      %v1851 = vunpack.c.l.b16 %v749
      %v1852 = vunpack.c.h.b16 %v749
      %v1853 = vunpack.c.l.b16 %v750
      %v1854 = vunpack.c.h.b16 %v750
      %v1855 = vunpack.c.l.b16 %v751
      %v1856 = vunpack.c.h.b16 %v751
      %v1857 = vunpack.c.l.b16 %v752
      %v1858 = vunpack.c.h.b16 %v752
      %v1859 = vunpack.c.l.b16 %v753
      %v1860 = vunpack.c.h.b16 %v753
      %v1861 = vunpack.c.l.b16 %v754
      %v1862 = vunpack.c.h.b16 %v754
      %v1863 = vunpack.c.l.b16 %v755
      %v1864 = vunpack.c.h.b16 %v755
      %v1865 = vunpack.c.l.b16 %v756
      %v1866 = vunpack.c.h.b16 %v756
      %v1867 = vunpack.c.l.b16 %v757
      %v1868 = vunpack.c.h.b16 %v757
      %v1869 = vunpack.c.l.b16 %v758
      %v1870 = vunpack.c.h.b16 %v758
      %v1871 = vunpack.c.l.b16 %v759
      %v1872 = vunpack.c.h.b16 %v759
      %v1873 = vunpack.c.l.b16 %v760
      %v1874 = vunpack.c.h.b16 %v760
      %v1875 = vunpack.c.l.b16 %v761
      %v1876 = vunpack.c.h.b16 %v761
      %v1877 = vunpack.c.l.b16 %v762
      %v1878 = vunpack.c.h.b16 %v762
      %v1879 = vunpack.c.l.b16 %v763
      %v1880 = vunpack.c.h.b16 %v763
      %v1881 = vunpack.c.l.b16 %v764
      %v1882 = vunpack.c.h.b16 %v764
      %v1883 = vunpack.c.l.b16 %v765
      %v1884 = vunpack.c.h.b16 %v765
      %v1885 = vunpack.c.l.b16 %v766
      %v1886 = vunpack.c.h.b16 %v766
      %v1887 = vunpack.c.l.b16 %v767
      %v1888 = vunpack.c.h.b16 %v767
      %v1889 = vunpack.c.l.b16 %v768
      %v1890 = vunpack.c.h.b16 %v768
      %v1891 = vunpack.c.l.b16 %v769
      %v1892 = vunpack.c.h.b16 %v769
      %v1893 = vunpack.c.l.b16 %v770
      %v1894 = vunpack.c.h.b16 %v770
      %v1895 = vunpack.c.l.b16 %v771
      %v1896 = vunpack.c.h.b16 %v771
      %v1897 = vunpack.c.l.b16 %v772
      %v1898 = vunpack.c.h.b16 %v772
      %v1899 = vunpack.c.l.b16 %v773
      %v1900 = vunpack.c.h.b16 %v773
      %v1901 = vunpack.c.l.b16 %v774
      %v1902 = vunpack.c.h.b16 %v774
      %v1903 = vunpack.c.l.b16 %v775
      %v1904 = vunpack.c.h.b16 %v775
      %v1905 = vunpack.c.l.b16 %v776
      %v1906 = vunpack.c.h.b16 %v776
      %v1907 = vunpack.c.l.b16 %v777
      %v1908 = vunpack.c.h.b16 %v777
      %v1909 = vunpack.c.l.b16 %v778
      %v1910 = vunpack.c.h.b16 %v778
      %v1911 = vunpack.c.l.b16 %v779
      %v1912 = vunpack.c.h.b16 %v779
      %v1913 = vunpack.c.l.b16 %v780
      %v1914 = vunpack.c.h.b16 %v780
      %v1915 = vunpack.c.l.b16 %v781
      %v1916 = vunpack.c.h.b16 %v781
      %v1917 = vunpack.c.l.b16 %v782
      %v1918 = vunpack.c.h.b16 %v782
      %v1919 = vunpack.c.l.b16 %v783
      %v1920 = vunpack.c.h.b16 %v783
      %v1921 = vunpack.c.l.b16 %v784
      %v1922 = vunpack.c.h.b16 %v784
      %v1923 = vunpack.c.l.b16 %v785
      %v1924 = vunpack.c.h.b16 %v785
      %v1925 = vunpack.c.l.b16 %v786
      %v1926 = vunpack.c.h.b16 %v786
      %v1927 = vunpack.c.l.b16 %v787
      %v1928 = vunpack.c.h.b16 %v787
      %v1929 = vunpack.c.l.b16 %v788
      %v1930 = vunpack.c.h.b16 %v788
      %v1931 = vunpack.c.l.b16 %v789
      %v1932 = vunpack.c.h.b16 %v789
      %v1933 = vunpack.c.l.b16 %v790
      %v1934 = vunpack.c.h.b16 %v790
      %v1935 = vunpack.c.l.b16 %v791
      %v1936 = vunpack.c.h.b16 %v791
      %v1937 = vunpack.c.l.b16 %v792
      %v1938 = vunpack.c.h.b16 %v792
      %v1939 = vunpack.c.l.b16 %v793
      %v1940 = vunpack.c.h.b16 %v793
      %v1941 = vunpack.c.l.b16 %v794
      %v1942 = vunpack.c.h.b16 %v794
      %v1943 = vunpack.c.l.b16 %v795
      %v1944 = vunpack.c.h.b16 %v795
      %v1945 = vunpack.c.l.b16 %v796
      %v1946 = vunpack.c.h.b16 %v796
      %v1947 = vunpack.c.l.b16 %v797
      %v1948 = vunpack.c.h.b16 %v797
      %v1949 = vunpack.c.l.b16 %v798
      %v1950 = vunpack.c.h.b16 %v798
      %v1951 = vunpack.c.l.b16 %v799
      %v1952 = vunpack.c.h.b16 %v799
      %v1953 = vunpack.c.l.b16 %v800
      %v1954 = vunpack.c.h.b16 %v800
      %v1955 = vunpack.c.l.b16 %v801
      %v1956 = vunpack.c.h.b16 %v801
      %v1957 = vunpack.c.l.b16 %v802
      %v1958 = vunpack.c.h.b16 %v802
      %v1959 = vunpack.c.l.b16 %v803
      %v1960 = vunpack.c.h.b16 %v803
      %v1961 = vunpack.c.l.b16 %v804
      %v1962 = vunpack.c.h.b16 %v804
      %v1963 = vunpack.c.l.b16 %v805
      %v1964 = vunpack.c.h.b16 %v805
      %v1965 = vunpack.c.l.b16 %v806
      %v1966 = vunpack.c.h.b16 %v806
      %v1967 = vunpack.c.l.b16 %v807
      %v1968 = vunpack.c.h.b16 %v807
      %v1969 = vunpack.c.l.b16 %v808
      %v1970 = vunpack.c.h.b16 %v808
      %v1971 = vunpack.c.l.b16 %v809
      %v1972 = vunpack.c.h.b16 %v809
      %v1973 = vunpack.c.l.b16 %v810
      %v1974 = vunpack.c.h.b16 %v810
      %v1975 = vunpack.c.l.b16 %v811
      %v1976 = vunpack.c.h.b16 %v811
      %v1977 = vunpack.c.l.b16 %v812
      %v1978 = vunpack.c.h.b16 %v812
      %v1979 = vunpack.c.l.b16 %v813
      %v1980 = vunpack.c.h.b16 %v813
      %v1981 = vunpack.c.l.b16 %v814
      %v1982 = vunpack.c.h.b16 %v814
      %v1983 = vunpack.c.l.b16 %v815
      %v1984 = vunpack.c.h.b16 %v815
      %v1985 = vunpack.c.l.b16 %v816
      %v1986 = vunpack.c.h.b16 %v816
      %v1987 = vunpack.c.l.b16 %v817
      %v1988 = vunpack.c.h.b16 %v817
      %v1989 = vunpack.c.l.b16 %v818
      %v1990 = vunpack.c.h.b16 %v818
      %v1991 = vunpack.c.l.b16 %v819
      %v1992 = vunpack.c.h.b16 %v819
      %v1993 = vunpack.c.l.b16 %v820
      %v1994 = vunpack.c.h.b16 %v820
      %v1995 = vunpack.c.l.b16 %v821
      %v1996 = vunpack.c.h.b16 %v821
      %v1997 = vunpack.c.l.b16 %v822
      %v1998 = vunpack.c.h.b16 %v822
      %v1999 = vunpack.c.l.b16 %v823
      %v2000 = vunpack.c.h.b16 %v823
      %v2001 = vunpack.c.l.b16 %v824
      %v2002 = vunpack.c.h.b16 %v824
      %v2003 = vunpack.c.l.b16 %v825
      %v2004 = vunpack.c.h.b16 %v825
      %v2005 = vunpack.c.l.b16 %v826
      %v2006 = vunpack.c.h.b16 %v826
      %v2007 = vunpack.c.l.b16 %v827
      %v2008 = vunpack.c.h.b16 %v827
      %v2009 = vunpack.c.l.b16 %v828
      %v2010 = vunpack.c.h.b16 %v828
      %v2011 = vunpack.c.l.b16 %v829
      %v2012 = vunpack.c.h.b16 %v829
      %v2013 = vunpack.c.l.b16 %v830
      %v2014 = vunpack.c.h.b16 %v830
      %v2015 = vunpack.c.l.b16 %v831
      %v2016 = vunpack.c.h.b16 %v831
      %v2017 = vunpack.c.l.b16 %v832
      %v2018 = vunpack.c.h.b16 %v832
      %v2019 = vunpack.c.l.b16 %v833
      %v2020 = vunpack.c.h.b16 %v833
      %v2021 = vunpack.c.l.b16 %v834
      %v2022 = vunpack.c.h.b16 %v834
      %v2023 = vunpack.c.l.b16 %v835
      %v2024 = vunpack.c.h.b16 %v835
      %v2025 = vunpack.c.l.b16 %v836
      %v2026 = vunpack.c.h.b16 %v836
      %v2027 = vunpack.c.l.b16 %v837
      %v2028 = vunpack.c.h.b16 %v837
      %v2029 = vunpack.c.l.b16 %v838
      %v2030 = vunpack.c.h.b16 %v838
      %v2031 = vunpack.c.l.b16 %v839
      %v2032 = vunpack.c.h.b16 %v839
      %v2033 = vunpack.c.l.b16 %v840
      %v2034 = vunpack.c.h.b16 %v840
      %v2035 = vunpack.c.l.b16 %v841
      %v2036 = vunpack.c.h.b16 %v841
      %v2037 = vunpack.c.l.b16 %v842
      %v2038 = vunpack.c.h.b16 %v842
      %v2039 = vunpack.c.l.b16 %v843
      %v2040 = vunpack.c.h.b16 %v843
      %v2041 = vunpack.c.l.b16 %v844
      %v2042 = vunpack.c.h.b16 %v844
      %v2043 = vunpack.c.l.b16 %v845
      %v2044 = vunpack.c.h.b16 %v845
      %v2045 = vunpack.c.l.b16 %v846
      %v2046 = vunpack.c.h.b16 %v846
      %v2047 = vunpack.c.l.b16 %v847
      %v2048 = vunpack.c.h.b16 %v847
      %v2049 = vunpack.c.l.b16 %v848
      %v2050 = vunpack.c.h.b16 %v848
      %v2051 = vunpack.c.l.b16 %v849
      %v2052 = vunpack.c.h.b16 %v849
      %v2053 = vunpack.c.l.b16 %v850
      %v2054 = vunpack.c.h.b16 %v850
      %v2055 = vunpack.c.l.b16 %v851
      %v2056 = vunpack.c.h.b16 %v851
      %v2057 = vunpack.c.l.b16 %v852
      %v2058 = vunpack.c.h.b16 %v852
      %v2059 = vunpack.c.l.b16 %v853
      %v2060 = vunpack.c.h.b16 %v853
      %v2061 = vunpack.c.l.b16 %v854
      %v2062 = vunpack.c.h.b16 %v854
      %v2063 = vunpack.c.l.b16 %v855
      %v2064 = vunpack.c.h.b16 %v855
      %v2065 = vunpack.c.l.b16 %v856
      %v2066 = vunpack.c.h.b16 %v856
      %v2067 = vunpack.c.l.b16 %v857
      %v2068 = vunpack.c.h.b16 %v857
      %v2069 = vunpack.c.l.b16 %v858
      %v2070 = vunpack.c.h.b16 %v858
      %v2071 = vunpack.c.l.b16 %v859
      %v2072 = vunpack.c.h.b16 %v859
      %v2073 = vunpack.c.l.b16 %v860
      %v2074 = vunpack.c.h.b16 %v860
      %v2075 = vunpack.c.l.b16 %v861
      %v2076 = vunpack.c.h.b16 %v861
      %v2077 = vunpack.c.l.b16 %v862
      %v2078 = vunpack.c.h.b16 %v862
      %v2079 = vunpack.c.l.b16 %v863
      %v2080 = vunpack.c.h.b16 %v863
      %v2081 = vunpack.c.l.b16 %v864
      %v2082 = vunpack.c.h.b16 %v864
      %v2083 = vunpack.c.l.b16 %v865
      %v2084 = vunpack.c.h.b16 %v865
      %v2085 = vunpack.c.l.b16 %v866
      %v2086 = vunpack.c.h.b16 %v866
      %v2087 = vunpack.c.l.b16 %v867
      %v2088 = vunpack.c.h.b16 %v867
      %v2089 = vunpack.c.l.b16 %v868
      %v2090 = vunpack.c.h.b16 %v868
      %v2091 = vunpack.c.l.b16 %v869
      %v2092 = vunpack.c.h.b16 %v869
      %v2093 = vunpack.c.l.b16 %v870
      %v2094 = vunpack.c.h.b16 %v870
      %v2095 = vunpack.c.l.b16 %v871
      %v2096 = vunpack.c.h.b16 %v871
      %v2097 = vunpack.c.l.b16 %v872
      %v2098 = vunpack.c.h.b16 %v872
      %v2099 = vunpack.c.l.b16 %v873
      %v2100 = vunpack.c.h.b16 %v873
      %v2101 = vunpack.c.l.b16 %v874
      %v2102 = vunpack.c.h.b16 %v874
      %v2103 = vunpack.c.l.b16 %v875
      %v2104 = vunpack.c.h.b16 %v875
      %v2105 = vunpack.c.l.b16 %v876
      %v2106 = vunpack.c.h.b16 %v876
      %v2107 = vunpack.c.l.b16 %v877
      %v2108 = vunpack.c.h.b16 %v877
      %v2109 = vunpack.c.l.b16 %v878
      %v2110 = vunpack.c.h.b16 %v878
      %v2111 = vunpack.c.l.b16 %v879
      %v2112 = vunpack.c.h.b16 %v879
      %v2113 = vunpack.c.l.b16 %v880
      %v2114 = vunpack.c.h.b16 %v880
      %v2115 = vunpack.c.l.b16 %v881
      %v2116 = vunpack.c.h.b16 %v881
      %v2117 = vunpack.c.l.b16 %v882
      %v2118 = vunpack.c.h.b16 %v882
      %v2119 = vunpack.c.l.b16 %v883
      %v2120 = vunpack.c.h.b16 %v883
      %v2121 = vunpack.c.l.b16 %v884
      %v2122 = vunpack.c.h.b16 %v884
      %v2123 = vunpack.c.l.b16 %v885
      %v2124 = vunpack.c.h.b16 %v885
      %v2125 = vunpack.c.l.b16 %v886
      %v2126 = vunpack.c.h.b16 %v886
      %v2127 = vunpack.c.l.b16 %v887
      %v2128 = vunpack.c.h.b16 %v887
      %v2129 = vunpack.c.l.b16 %v888
      %v2130 = vunpack.c.h.b16 %v888
      %v2131 = vunpack.c.l.b16 %v889
      %v2132 = vunpack.c.h.b16 %v889
      %v2133 = vunpack.c.l.b16 %v890
      %v2134 = vunpack.c.h.b16 %v890
      %v2135 = vunpack.c.l.b16 %v891
      %v2136 = vunpack.c.h.b16 %v891
      %v2137 = vunpack.c.l.b16 %v892
      %v2138 = vunpack.c.h.b16 %v892
      %v2139 = vunpack.c.l.b16 %v893
      %v2140 = vunpack.c.h.b16 %v893
      %v2141 = vunpack.c.l.b16 %v894
      %v2142 = vunpack.c.h.b16 %v894
      %v2143 = vunpack.c.l.b16 %v895
      %v2144 = vunpack.c.h.b16 %v895
      %v2145 = vunpack.c.l.b16 %v896
      %v2146 = vunpack.c.h.b16 %v896
      %v2147 = vunpack.c.l.b16 %v897
      %v2148 = vunpack.c.h.b16 %v897
      %v2149 = vunpack.c.l.b16 %v898
      %v2150 = vunpack.c.h.b16 %v898
      %v2151 = vunpack.c.l.b16 %v899
      %v2152 = vunpack.c.h.b16 %v899
      %v2153 = vunpack.c.l.b16 %v900
      %v2154 = vunpack.c.h.b16 %v900
      %v2155 = vunpack.c.l.b16 %v901
      %v2156 = vunpack.c.h.b16 %v901
      %v2157 = vunpack.c.l.b16 %v902
      %v2158 = vunpack.c.h.b16 %v902
      %v2159 = vunpack.c.l.b16 %v903
      %v2160 = vunpack.c.h.b16 %v903
      %v2161 = vunpack.c.l.b16 %v904
      %v2162 = vunpack.c.h.b16 %v904
      %v2163 = vunpack.c.l.b16 %v905
      %v2164 = vunpack.c.h.b16 %v905
      %v2165 = vunpack.c.l.b16 %v906
      %v2166 = vunpack.c.h.b16 %v906
      %v2167 = vunpack.c.l.b16 %v907
      %v2168 = vunpack.c.h.b16 %v907
      %v2169 = vunpack.c.l.b16 %v908
      %v2170 = vunpack.c.h.b16 %v908
      %v2171 = vunpack.c.l.b16 %v909
      %v2172 = vunpack.c.h.b16 %v909
      %v2173 = vunpack.c.l.b16 %v910
      %v2174 = vunpack.c.h.b16 %v910
      %v2175 = vunpack.c.l.b16 %v911
      %v2176 = vunpack.c.h.b16 %v911
      %v2177 = vunpack.c.l.b16 %v912
      %v2178 = vunpack.c.h.b16 %v912
      %v2179 = vunpack.c.l.b16 %v913
      %v2180 = vunpack.c.h.b16 %v913
      %v2181 = vunpack.c.l.b16 %v914
      %v2182 = vunpack.c.h.b16 %v914
      %v2183 = vunpack.c.l.b16 %v915
      %v2184 = vunpack.c.h.b16 %v915
      %v2185 = vunpack.c.l.b16 %v916
      %v2186 = vunpack.c.h.b16 %v916
      %v2187 = vunpack.c.l.b16 %v917
      %v2188 = vunpack.c.h.b16 %v917
      %v2189 = vunpack.c.l.b16 %v918
      %v2190 = vunpack.c.h.b16 %v918
      %v2191 = vunpack.c.l.b16 %v919
      %v2192 = vunpack.c.h.b16 %v919
      %v2193 = vunpack.c.l.b16 %v920
      %v2194 = vunpack.c.h.b16 %v920
      %v2195 = vunpack.c.l.b16 %v921
      %v2196 = vunpack.c.h.b16 %v921
      %v2197 = vunpack.c.l.b16 %v922
      %v2198 = vunpack.c.h.b16 %v922
      %v2199 = vunpack.c.l.b16 %v923
      %v2200 = vunpack.c.h.b16 %v923
      %v2201 = vunpack.c.l.b16 %v924
      %v2202 = vunpack.c.h.b16 %v924
      %v2203 = vunpack.c.l.b16 %v925
      %v2204 = vunpack.c.h.b16 %v925
      %v2205 = vunpack.c.l.b16 %v926
      %v2206 = vunpack.c.h.b16 %v926
      %v2207 = vunpack.c.l.b16 %v927
      %v2208 = vunpack.c.h.b16 %v927
      %v2209 = vunpack.c.l.b16 %v928
      %v2210 = vunpack.c.h.b16 %v928
      %v2211 = vunpack.c.l.b16 %v929
      %v2212 = vunpack.c.h.b16 %v929
      %v2213 = vunpack.c.l.b16 %v930
      %v2214 = vunpack.c.h.b16 %v930
      %v2215 = vunpack.c.l.b16 %v931
      %v2216 = vunpack.c.h.b16 %v931
      %v2217 = vunpack.c.l.b16 %v932
      %v2218 = vunpack.c.h.b16 %v932
      %v2219 = vunpack.c.l.b16 %v933
      %v2220 = vunpack.c.h.b16 %v933
      %v2221 = vunpack.c.l.b16 %v934
      %v2222 = vunpack.c.h.b16 %v934
      %v2223 = vunpack.c.l.b16 %v935
      %v2224 = vunpack.c.h.b16 %v935
      %v2225 = vunpack.c.l.b16 %v936
      %v2226 = vunpack.c.h.b16 %v936
      %v2227 = vunpack.c.l.b16 %v937
      %v2228 = vunpack.c.h.b16 %v937
      %v2229 = vunpack.c.l.b16 %v938
      %v2230 = vunpack.c.h.b16 %v938
      %v2231 = vunpack.c.l.b16 %v939
      %v2232 = vunpack.c.h.b16 %v939
      %v2233 = vunpack.c.l.b16 %v940
      %v2234 = vunpack.c.h.b16 %v940
      %v2235 = vunpack.c.l.b16 %v941
      %v2236 = vunpack.c.h.b16 %v941
      %v2237 = vunpack.c.l.b16 %v942
      %v2238 = vunpack.c.h.b16 %v942
      %v2239 = vunpack.c.l.b16 %v943
      %v2240 = vunpack.c.h.b16 %v943
      %v2241 = vunpack.c.l.b16 %v944
      %v2242 = vunpack.c.h.b16 %v944
      %v2243 = vunpack.c.l.b16 %v945
      %v2244 = vunpack.c.h.b16 %v945
      %v2245 = vunpack.c.l.b16 %v946
      %v2246 = vunpack.c.h.b16 %v946
      %v2247 = vunpack.c.l.b16 %v947
      %v2248 = vunpack.c.h.b16 %v947
      %v2249 = vunpack.c.l.b16 %v948
      %v2250 = vunpack.c.h.b16 %v948
      %v2251 = vunpack.c.l.b16 %v949
      %v2252 = vunpack.c.h.b16 %v949
      %v2253 = vunpack.c.l.b16 %v950
      %v2254 = vunpack.c.h.b16 %v950
      %v2255 = vunpack.c.l.b16 %v951
      %v2256 = vunpack.c.h.b16 %v951
      %v2257 = vunpack.c.l.b16 %v952
      %v2258 = vunpack.c.h.b16 %v952
      %v2259 = vunpack.c.l.b16 %v953
      %v2260 = vunpack.c.h.b16 %v953
      %v2261 = vunpack.c.l.b16 %v954
      %v2262 = vunpack.c.h.b16 %v954
      %v2263 = vunpack.c.l.b16 %v955
      %v2264 = vunpack.c.h.b16 %v955
      %v2265 = vunpack.c.l.b16 %v956
      %v2266 = vunpack.c.h.b16 %v956
      %v2267 = vunpack.c.l.b16 %v957
      %v2268 = vunpack.c.h.b16 %v957
      %v2269 = vunpack.c.l.b16 %v958
      %v2270 = vunpack.c.h.b16 %v958
      %v2271 = vunpack.c.l.b16 %v959
      %v2272 = vunpack.c.h.b16 %v959
      %v2273 = vunpack.c.l.b16 %v960
      %v2274 = vunpack.c.h.b16 %v960
      %v2275 = vunpack.c.l.b16 %v961
      %v2276 = vunpack.c.h.b16 %v961
      %v2277 = vunpack.c.l.b16 %v962
      %v2278 = vunpack.c.h.b16 %v962
      %v2279 = vunpack.c.l.b16 %v963
      %v2280 = vunpack.c.h.b16 %v963
      %v2281 = vunpack.c.l.b16 %v964
      %v2282 = vunpack.c.h.b16 %v964
      %v2283 = vunpack.c.l.b16 %v965
      %v2284 = vunpack.c.h.b16 %v965
      %v2285 = vunpack.c.l.b16 %v966
      %v2286 = vunpack.c.h.b16 %v966
      %v2287 = vunpack.c.l.b16 %v967
      %v2288 = vunpack.c.h.b16 %v967
      %v2289 = vunpack.c.l.b16 %v968
      %v2290 = vunpack.c.h.b16 %v968
      %v2291 = vunpack.c.l.b16 %v969
      %v2292 = vunpack.c.h.b16 %v969
      %v2293 = vunpack.c.l.b16 %v970
      %v2294 = vunpack.c.h.b16 %v970
      %v2295 = vunpack.c.l.b16 %v971
      %v2296 = vunpack.c.h.b16 %v971
      %v2297 = vunpack.c.l.b16 %v972
      %v2298 = vunpack.c.h.b16 %v972
      %v2299 = vunpack.c.l.b16 %v973
      %v2300 = vunpack.c.h.b16 %v973
      %v2301 = vunpack.c.l.b16 %v974
      %v2302 = vunpack.c.h.b16 %v974
      %v2303 = vunpack.c.l.b16 %v975
      %v2304 = vunpack.c.h.b16 %v975
      %v2305 = vunpack.c.l.b16 %v976
      %v2306 = vunpack.c.h.b16 %v976
      %v2307 = vunpack.c.l.b16 %v977
      %v2308 = vunpack.c.h.b16 %v977
      %v2309 = vunpack.c.l.b16 %v978
      %v2310 = vunpack.c.h.b16 %v978
      %v2311 = vunpack.c.l.b16 %v979
      %v2312 = vunpack.c.h.b16 %v979
      %v2313 = vunpack.c.l.b16 %v980
      %v2314 = vunpack.c.h.b16 %v980
      %v2315 = vunpack.c.l.b16 %v981
      %v2316 = vunpack.c.h.b16 %v981
      %v2317 = vunpack.c.l.b16 %v982
      %v2318 = vunpack.c.h.b16 %v982
      %v2319 = vunpack.c.l.b16 %v983
      %v2320 = vunpack.c.h.b16 %v983
      %v2321 = vunpack.c.l.b16 %v984
      %v2322 = vunpack.c.h.b16 %v984
      %v2323 = vunpack.c.l.b16 %v985
      %v2324 = vunpack.c.h.b16 %v985
      %v2325 = vunpack.c.l.b16 %v986
      %v2326 = vunpack.c.h.b16 %v986
      %v2327 = vunpack.c.l.b16 %v987
      %v2328 = vunpack.c.h.b16 %v987
      %v2329 = vunpack.c.l.b16 %v988
      %v2330 = vunpack.c.h.b16 %v988
      %v2331 = vunpack.c.l.b16 %v989
      %v2332 = vunpack.c.h.b16 %v989
      %v2333 = vunpack.c.l.b16 %v990
      %v2334 = vunpack.c.h.b16 %v990
      %v2335 = vunpack.c.l.b16 %v991
      %v2336 = vunpack.c.h.b16 %v991
      %v2337 = vunpack.c.l.b16 %v992
      %v2338 = vunpack.c.h.b16 %v992
      %v2339 = vunpack.c.l.b16 %v993
      %v2340 = vunpack.c.h.b16 %v993
      %v2341 = vunpack.c.l.b16 %v994
      %v2342 = vunpack.c.h.b16 %v994
      %v2343 = vunpack.c.l.b16 %v995
      %v2344 = vunpack.c.h.b16 %v995
      %v2345 = vunpack.c.l.b16 %v996
      %v2346 = vunpack.c.h.b16 %v996
      %v2347 = vunpack.c.l.b16 %v997
      %v2348 = vunpack.c.h.b16 %v997
      %v2349 = vunpack.c.l.b16 %v998
      %v2350 = vunpack.c.h.b16 %v998
      %v2351 = vunpack.c.l.b16 %v999
      %v2352 = vunpack.c.h.b16 %v999
      %v2353 = vunpack.c.l.b16 %v1000
      %v2354 = vunpack.c.h.b16 %v1000
      %v2355 = vunpack.c.l.b16 %v1001
      %v2356 = vunpack.c.h.b16 %v1001
      %v2357 = vunpack.c.l.b16 %v1002
      %v2358 = vunpack.c.h.b16 %v1002
      %v2359 = vunpack.c.l.b16 %v1003
      %v2360 = vunpack.c.h.b16 %v1003
      %v2361 = vunpack.c.l.b16 %v1004
      %v2362 = vunpack.c.h.b16 %v1004
      %v2363 = vunpack.c.l.b16 %v1005
      %v2364 = vunpack.c.h.b16 %v1005
      %v2365 = vunpack.c.l.b16 %v1006
      %v2366 = vunpack.c.h.b16 %v1006
      %v2367 = vunpack.c.l.b16 %v1007
      %v2368 = vunpack.c.h.b16 %v1007
      %v2369 = vunpack.c.l.b16 %v1008
      %v2370 = vunpack.c.h.b16 %v1008
      %v2371 = vunpack.c.l.b16 %v1009
      %v2372 = vunpack.c.h.b16 %v1009
      %v2373 = vunpack.c.l.b16 %v1010
      %v2374 = vunpack.c.h.b16 %v1010
      %v2375 = vunpack.c.l.b16 %v1011
      %v2376 = vunpack.c.h.b16 %v1011
      %v2377 = vunpack.c.l.b16 %v1012
      %v2378 = vunpack.c.h.b16 %v1012
      %v2379 = vunpack.c.l.b16 %v1013
      %v2380 = vunpack.c.h.b16 %v1013
      %v2381 = vunpack.c.l.b16 %v1014
      %v2382 = vunpack.c.h.b16 %v1014
      %v2383 = vunpack.c.l.b16 %v1015
      %v2384 = vunpack.c.h.b16 %v1015
      %v2385 = vunpack.c.l.b16 %v1016
      %v2386 = vunpack.c.h.b16 %v1016
      %v2387 = vunpack.c.l.b16 %v1017
      %v2388 = vunpack.c.h.b16 %v1017
      %v2389 = vunpack.c.l.b16 %v1018
      %v2390 = vunpack.c.h.b16 %v1018
      %v2391 = vunpack.c.l.b16 %v1019
      %v2392 = vunpack.c.h.b16 %v1019
      %v2393 = vunpack.c.l.b16 %v1020
      %v2394 = vunpack.c.h.b16 %v1020
      %v2395 = vunpack.c.l.b16 %v1021
      %v2396 = vunpack.c.h.b16 %v1021
      %v2397 = vunpack.c.l.b16 %v1022
      %v2398 = vunpack.c.h.b16 %v1022
      %v2399 = vunpack.c.l.b16 %v1023
      %v2400 = vunpack.c.h.b16 %v1023
      %v2401 = vunpack.c.l.b16 %v1024
      %v2402 = vunpack.c.h.b16 %v1024
      %v2403 = vunpack.c.l.b16 %v1025
      %v2404 = vunpack.c.h.b16 %v1025
      %v2405 = vunpack.c.l.b16 %v1026
      %v2406 = vunpack.c.h.b16 %v1026
      %v2407 = vunpack.c.l.b16 %v1027
      %v2408 = vunpack.c.h.b16 %v1027
      %v2409 = vunpack.c.l.b16 %v1028
      %v2410 = vunpack.c.h.b16 %v1028
      %v2411 = vunpack.c.l.b16 %v1029
      %v2412 = vunpack.c.h.b16 %v1029
      %v2413 = vunpack.c.l.b16 %v1030
      %v2414 = vunpack.c.h.b16 %v1030
      %v2415 = vunpack.c.l.b16 %v1031
      %v2416 = vunpack.c.h.b16 %v1031
      %v2417 = vunpack.c.l.b16 %v1032
      %v2418 = vunpack.c.h.b16 %v1032
      %v2419 = vunpack.c.l.b16 %v1033
      %v2420 = vunpack.c.h.b16 %v1033
      %v2421 = vunpack.c.l.b16 %v1034
      %v2422 = vunpack.c.h.b16 %v1034
      %v2423 = vunpack.c.l.b16 %v1035
      %v2424 = vunpack.c.h.b16 %v1035
      %v2425 = vunpack.c.l.b16 %v1036
      %v2426 = vunpack.c.h.b16 %v1036
      %v2427 = vunpack.c.l.b16 %v1037
      %v2428 = vunpack.c.h.b16 %v1037
      %v2429 = vunpack.c.l.b16 %v1038
      %v2430 = vunpack.c.h.b16 %v1038
      %v2431 = vunpack.c.l.b16 %v1039
      %v2432 = vunpack.c.h.b16 %v1039
      %v2433 = vunpack.c.l.b16 %v1040
      %v2434 = vunpack.c.h.b16 %v1040
      %v2435 = vunpack.c.l.b16 %v1041
      %v2436 = vunpack.c.h.b16 %v1041
      %v2437 = vunpack.c.l.b16 %v1042
      %v2438 = vunpack.c.h.b16 %v1042
      %v2439 = vunpack.c.l.b16 %v1043
      %v2440 = vunpack.c.h.b16 %v1043
      %v2441 = vunpack.c.l.b16 %v1044
      %v2442 = vunpack.c.h.b16 %v1044
      %v2443 = vunpack.c.l.b16 %v1045
      %v2444 = vunpack.c.h.b16 %v1045
      %v2445 = vunpack.c.l.b16 %v1046
      %v2446 = vunpack.c.h.b16 %v1046
      %v2447 = vunpack.c.l.b16 %v1047
      %v2448 = vunpack.c.h.b16 %v1047
      %v2449 = vunpack.c.l.b16 %v1048
      %v2450 = vunpack.c.h.b16 %v1048
      %v2451 = vunpack.c.l.b16 %v1049
      %v2452 = vunpack.c.h.b16 %v1049
      %v2453 = vunpack.c.l.b16 %v1050
      %v2454 = vunpack.c.h.b16 %v1050
      %v2455 = vunpack.c.l.b16 %v1051
      %v2456 = vunpack.c.h.b16 %v1051
      %v2457 = vunpack.c.l.b16 %v1052
      %v2458 = vunpack.c.h.b16 %v1052
      %v2459 = vunpack.c.l.b16 %v1053
      %v2460 = vunpack.c.h.b16 %v1053
      %v2461 = vunpack.c.l.b16 %v1054
      %v2462 = vunpack.c.h.b16 %v1054
      %v2463 = vunpack.c.l.b16 %v1055
      %v2464 = vunpack.c.h.b16 %v1055
      %v2465 = vunpack.c.l.b16 %v1056
      %v2466 = vunpack.c.h.b16 %v1056
      %v2467 = vunpack.c.l.b16 %v1057
      %v2468 = vunpack.c.h.b16 %v1057
      %v2469 = vunpack.c.l.b16 %v1058
      %v2470 = vunpack.c.h.b16 %v1058
      %v2471 = vunpack.c.l.b16 %v1059
      %v2472 = vunpack.c.h.b16 %v1059
      %v2473 = vunpack.c.l.b16 %v1060
      %v2474 = vunpack.c.h.b16 %v1060
      %v2475 = vunpack.c.l.b16 %v1061
      %v2476 = vunpack.c.h.b16 %v1061
      %v2477 = vunpack.c.l.b16 %v1062
      %v2478 = vunpack.c.h.b16 %v1062
      %v2479 = vunpack.c.l.b16 %v1063
      %v2480 = vunpack.c.h.b16 %v1063
      %v2481 = vunpack.c.l.b16 %v1064
      %v2482 = vunpack.c.h.b16 %v1064
      %v2483 = vunpack.c.l.b16 %v1065
      %v2484 = vunpack.c.h.b16 %v1065
      %v2485 = vunpack.c.l.b16 %v1066
      %v2486 = vunpack.c.h.b16 %v1066
      %v2487 = vunpack.c.l.b16 %v1067
      %v2488 = vunpack.c.h.b16 %v1067
      %v2489 = vunpack.c.l.b16 %v1068
      %v2490 = vunpack.c.h.b16 %v1068
      %v2491 = vunpack.c.l.b16 %v1069
      %v2492 = vunpack.c.h.b16 %v1069
      %v2493 = vunpack.c.l.b16 %v1070
      %v2494 = vunpack.c.h.b16 %v1070
      %v2495 = vunpack.c.l.b16 %v1071
      %v2496 = vunpack.c.h.b16 %v1071
      %v2497 = vunpack.c.l.b16 %v1072
      %v2498 = vunpack.c.h.b16 %v1072
      %v2499 = vunpack.c.l.b16 %v1073
      %v2500 = vunpack.c.h.b16 %v1073
      %v2501 = vunpack.c.l.b16 %v1074
      %v2502 = vunpack.c.h.b16 %v1074
      %v2503 = vunpack.c.l.b16 %v1075
      %v2504 = vunpack.c.h.b16 %v1075
      %v2505 = vunpack.c.l.b16 %v1076
      %v2506 = vunpack.c.h.b16 %v1076
      %v2507 = vunpack.c.l.b16 %v1077
      %v2508 = vunpack.c.h.b16 %v1077
      %v2509 = vunpack.c.l.b16 %v1078
      %v2510 = vunpack.c.h.b16 %v1078
      %v2511 = vunpack.c.l.b16 %v1079
      %v2512 = vunpack.c.h.b16 %v1079
      %v2513 = vunpack.c.l.b16 %v1080
      %v2514 = vunpack.c.h.b16 %v1080
      %v2515 = vunpack.c.l.b16 %v1081
      %v2516 = vunpack.c.h.b16 %v1081
      %v2517 = vunpack.c.l.b16 %v1082
      %v2518 = vunpack.c.h.b16 %v1082
      %v2519 = vunpack.c.l.b16 %v1083
      %v2520 = vunpack.c.h.b16 %v1083
      %v2521 = vunpack.c.l.b16 %v1084
      %v2522 = vunpack.c.h.b16 %v1084
      %v2523 = vunpack.c.l.b16 %v1085
      %v2524 = vunpack.c.h.b16 %v1085
      %v2525 = vunpack.c.l.b16 %v1086
      %v2526 = vunpack.c.h.b16 %v1086
      %v2527 = vunpack.c.l.b16 %v1087
      %v2528 = vunpack.c.h.b16 %v1087
      %v2529 = vunpack.c.l.b16 %v1088
      %v2530 = vunpack.c.h.b16 %v1088
      %v2531 = vunpack.c.l.b16 %v1089
      %v2532 = vunpack.c.h.b16 %v1089
      %v2533 = vunpack.c.l.b16 %v1090
      %v2534 = vunpack.c.h.b16 %v1090
      %v2535 = vunpack.c.l.b16 %v1091
      %v2536 = vunpack.c.h.b16 %v1091
      %v2537 = vunpack.c.l.b16 %v1092
      %v2538 = vunpack.c.h.b16 %v1092
      %v2539 = vunpack.c.l.b16 %v1093
      %v2540 = vunpack.c.h.b16 %v1093
      %v2541 = vunpack.c.l.b16 %v1094
      %v2542 = vunpack.c.h.b16 %v1094
      %v2543 = vunpack.c.l.b16 %v1095
      %v2544 = vunpack.c.h.b16 %v1095
      %v2545 = vunpack.c.l.b16 %v1096
      %v2546 = vunpack.c.h.b16 %v1096
      %v2547 = vunpack.c.l.b16 %v1097
      %v2548 = vunpack.c.h.b16 %v1097
      %v2549 = vunpack.c.l.b16 %v1098
      %v2550 = vunpack.c.h.b16 %v1098
      %v2551 = vunpack.c.l.b16 %v1099
      %v2552 = vunpack.c.h.b16 %v1099
      %v2553 = vunpack.c.l.b16 %v1100
      %v2554 = vunpack.c.h.b16 %v1100
      %v2555 = vunpack.c.l.b16 %v1101
      %v2556 = vunpack.c.h.b16 %v1101
      %v2557 = vunpack.c.l.b16 %v1102
      %v2558 = vunpack.c.h.b16 %v1102
      %v2559 = vunpack.c.l.b16 %v1103
      %v2560 = vunpack.c.h.b16 %v1103
      %v2561 = vunpack.c.l.b16 %v1104
      %v2562 = vunpack.c.h.b16 %v1104
      %v2563 = vunpack.c.l.b16 %v1105
      %v2564 = vunpack.c.h.b16 %v1105
      %v2565 = vunpack.c.l.b16 %v1106
      %v2566 = vunpack.c.h.b16 %v1106
      %v2567 = vunpack.c.l.b16 %v1107
      %v2568 = vunpack.c.h.b16 %v1107
      %v2569 = vunpack.c.l.b16 %v1108
      %v2570 = vunpack.c.h.b16 %v1108
      %v2571 = vunpack.c.l.b16 %v1109
      %v2572 = vunpack.c.h.b16 %v1109
      %v2573 = vunpack.c.l.b16 %v1110
      %v2574 = vunpack.c.h.b16 %v1110
      %v2575 = vunpack.c.l.b16 %v1111
      %v2576 = vunpack.c.h.b16 %v1111
      %v2577 = vunpack.c.l.b16 %v1112
      %v2578 = vunpack.c.h.b16 %v1112
      %v2579 = vunpack.c.l.b16 %v1113
      %v2580 = vunpack.c.h.b16 %v1113
      %v2581 = vunpack.c.l.b16 %v1114
      %v2582 = vunpack.c.h.b16 %v1114
      %v2583 = vunpack.c.l.b16 %v1115
      %v2584 = vunpack.c.h.b16 %v1115
      %v2585 = vunpack.c.l.b16 %v1116
      %v2586 = vunpack.c.h.b16 %v1116
      %v2587 = vunpack.c.l.b16 %v1117
      %v2588 = vunpack.c.h.b16 %v1117
      %v2589 = vunpack.c.l.b16 %v1118
      %v2590 = vunpack.c.h.b16 %v1118
      %v2591 = vunpack.c.l.b16 %v1119
      %v2592 = vunpack.c.h.b16 %v1119
      %v2593 = vunpack.c.l.b16 %v1120
      %v2594 = vunpack.c.h.b16 %v1120
      %v2595 = vunpack.c.l.b16 %v1121
      %v2596 = vunpack.c.h.b16 %v1121
      %v2597 = vunpack.c.l.b16 %v1122
      %v2598 = vunpack.c.h.b16 %v1122
      %v2599 = vunpack.c.l.b16 %v1123
      %v2600 = vunpack.c.h.b16 %v1123
      %v2601 = vunpack.c.l.b16 %v1124
      %v2602 = vunpack.c.h.b16 %v1124
      %v2603 = vunpack.c.l.b16 %v1125
      %v2604 = vunpack.c.h.b16 %v1125
      %v2605 = vunpack.c.l.b16 %v1126
      %v2606 = vunpack.c.h.b16 %v1126
      %v2607 = vunpack.c.l.b16 %v1127
      %v2608 = vunpack.c.h.b16 %v1127
      %v2609 = vunpack.c.l.b16 %v1128
      %v2610 = vunpack.c.h.b16 %v1128
      %v2611 = vunpack.c.l.b16 %v1129
      %v2612 = vunpack.c.h.b16 %v1129
      %v2613 = vunpack.c.l.b16 %v1130
      %v2614 = vunpack.c.h.b16 %v1130
      %v2615 = vunpack.c.l.b16 %v1131
      %v2616 = vunpack.c.h.b16 %v1131
      %v2617 = vunpack.c.l.b16 %v1132
      %v2618 = vunpack.c.h.b16 %v1132
      %v2619 = vunpack.c.l.b16 %v1133
      %v2620 = vunpack.c.h.b16 %v1133
      %v2621 = vunpack.c.l.b16 %v1134
      %v2622 = vunpack.c.h.b16 %v1134
      %v2623 = vunpack.c.l.b16 %v1135
      %v2624 = vunpack.c.h.b16 %v1135
      %v2625 = vunpack.c.l.b16 %v1136
      %v2626 = vunpack.c.h.b16 %v1136
      %v2627 = vunpack.c.l.b16 %v1137
      %v2628 = vunpack.c.h.b16 %v1137
      %v2629 = vunpack.c.l.b16 %v1138
      %v2630 = vunpack.c.h.b16 %v1138
      %v2631 = vunpack.c.l.b16 %v1139
      %v2632 = vunpack.c.h.b16 %v1139
      %v2633 = vunpack.c.l.b16 %v1140
      %v2634 = vunpack.c.h.b16 %v1140
      %v2635 = vunpack.c.l.b16 %v1141
      %v2636 = vunpack.c.h.b16 %v1141
      %v2637 = vunpack.c.l.b16 %v1142
      %v2638 = vunpack.c.h.b16 %v1142
      %v2639 = vunpack.c.l.b16 %v1143
      %v2640 = vunpack.c.h.b16 %v1143
      %v2641 = vunpack.c.l.b16 %v1144
      %v2642 = vunpack.c.h.b16 %v1144
      %v2643 = vunpack.c.l.b16 %v1145
      %v2644 = vunpack.c.h.b16 %v1145
      %v2645 = vunpack.c.l.b16 %v1146
      %v2646 = vunpack.c.h.b16 %v1146
      %v2647 = vunpack.c.l.b16 %v1147
      %v2648 = vunpack.c.h.b16 %v1147
      %v2649 = vunpack.c.l.b16 %v1148
      %v2650 = vunpack.c.h.b16 %v1148
      %v2651 = vunpack.c.l.b16 %v1149
      %v2652 = vunpack.c.h.b16 %v1149
      %v2653 = vunpack.c.l.b16 %v1150
      %v2654 = vunpack.c.h.b16 %v1150
      %v2655 = vunpack.c.l.b16 %v1151
      %v2656 = vunpack.c.h.b16 %v1151
      %v2657 = vunpack.c.l.b16 %v1152
      %v2658 = vunpack.c.h.b16 %v1152
      %v2659 = vunpack.c.l.b16 %v1153
      %v2660 = vunpack.c.h.b16 %v1153
      %v2661 = vunpack.c.l.b16 %v1154
      %v2662 = vunpack.c.h.b16 %v1154
      %v2663 = vunpack.c.l.b16 %v1155
      %v2664 = vunpack.c.h.b16 %v1155
      %v2665 = vunpack.c.l.b16 %v1156
      %v2666 = vunpack.c.h.b16 %v1156
      %v2667 = vunpack.c.l.b16 %v1157
      %v2668 = vunpack.c.h.b16 %v1157
      %v2669 = vunpack.c.l.b16 %v1158
      %v2670 = vunpack.c.h.b16 %v1158
      %v2671 = vunpack.c.l.b16 %v1159
      %v2672 = vunpack.c.h.b16 %v1159
      %v2673 = vunpack.c.l.b16 %v1160
      %v2674 = vunpack.c.h.b16 %v1160
      %v2675 = vunpack.c.l.b16 %v1161
      %v2676 = vunpack.c.h.b16 %v1161
      %v2677 = vunpack.c.l.b16 %v1162
      %v2678 = vunpack.c.h.b16 %v1162
      %v2679 = vunpack.c.l.b16 %v1163
      %v2680 = vunpack.c.h.b16 %v1163
      %v2681 = vunpack.c.l.b16 %v1164
      %v2682 = vunpack.c.h.b16 %v1164
      %v2683 = vunpack.c.l.b16 %v1165
      %v2684 = vunpack.c.h.b16 %v1165
      %v2685 = vunpack.c.l.b16 %v1166
      %v2686 = vunpack.c.h.b16 %v1166
      %v2687 = vunpack.c.l.b16 %v1167
      %v2688 = vunpack.c.h.b16 %v1167
      %v2689 = vunpack.c.l.b16 %v1168
      %v2690 = vunpack.c.h.b16 %v1168
      %v2691 = vunpack.c.l.b16 %v1169
      %v2692 = vunpack.c.h.b16 %v1169
      %v2693 = vunpack.c.l.b16 %v1170
      %v2694 = vunpack.c.h.b16 %v1170
      %v2695 = vunpack.c.l.b16 %v1171
      %v2696 = vunpack.c.h.b16 %v1171
      %v2697 = vunpack.c.l.b16 %v1172
      %v2698 = vunpack.c.h.b16 %v1172
      %v2699 = vunpack.c.l.b16 %v1173
      %v2700 = vunpack.c.h.b16 %v1173
      %v2701 = vunpack.c.l.b16 %v1174
      %v2702 = vunpack.c.h.b16 %v1174
      %v2703 = vunpack.c.l.b16 %v1175
      %v2704 = vunpack.c.h.b16 %v1175
      %v2705 = vunpack.c.l.b16 %v1176
      %v2706 = vunpack.c.h.b16 %v1176
      %v2707 = vunpack.c.l.b16 %v1177
      %v2708 = vunpack.c.h.b16 %v1177
      %v2709 = vunpack.c.l.b16 %v1178
      %v2710 = vunpack.c.h.b16 %v1178
      %v2711 = vunpack.c.l.b16 %v1179
      %v2712 = vunpack.c.h.b16 %v1179
      %v2713 = vunpack.c.l.b16 %v1180
      %v2714 = vunpack.c.h.b16 %v1180
      %v2715 = vunpack.c.l.b16 %v1181
      %v2716 = vunpack.c.h.b16 %v1181
      %v2717 = vunpack.c.l.b16 %v1182
      %v2718 = vunpack.c.h.b16 %v1182
      %v2719 = vunpack.c.l.b16 %v1183
      %v2720 = vunpack.c.h.b16 %v1183
      %v2721 = vunpack.c.l.b16 %v1184
      %v2722 = vunpack.c.h.b16 %v1184
      %v2723 = vunpack.c.l.b16 %v1185
      %v2724 = vunpack.c.h.b16 %v1185
      %v2725 = vunpack.c.l.b16 %v1186
      %v2726 = vunpack.c.h.b16 %v1186
      %v2727 = vunpack.c.l.b16 %v1187
      %v2728 = vunpack.c.h.b16 %v1187
      %v2729 = vunpack.c.l.b16 %v1188
      %v2730 = vunpack.c.h.b16 %v1188
      %v2731 = vunpack.c.l.b16 %v1189
      %v2732 = vunpack.c.h.b16 %v1189
      %v2733 = vunpack.c.l.b16 %v1190
      %v2734 = vunpack.c.h.b16 %v1190
      %v2735 = vunpack.c.l.b16 %v1191
      %v2736 = vunpack.c.h.b16 %v1191
      %v2737 = vunpack.c.l.b16 %v1192
      %v2738 = vunpack.c.h.b16 %v1192
      %v2739 = vunpack.c.l.b16 %v1193
      %v2740 = vunpack.c.h.b16 %v1193
      %v2741 = vunpack.c.l.b16 %v1194
      %v2742 = vunpack.c.h.b16 %v1194
      %v2743 = vunpack.c.l.b16 %v1195
      %v2744 = vunpack.c.h.b16 %v1195
      %v2745 = vunpack.c.l.b16 %v1196
      %v2746 = vunpack.c.h.b16 %v1196
      %v2747 = vunpack.c.l.b16 %v1197
      %v2748 = vunpack.c.h.b16 %v1197
      %v2749 = vunpack.c.l.b16 %v1198
      %v2750 = vunpack.c.h.b16 %v1198
      %v2751 = vunpack.c.l.b16 %v1199
      %v2752 = vunpack.c.h.b16 %v1199
      %v2753 = vunpack.c.l.b16 %v1200
      %v2754 = vunpack.c.h.b16 %v1200
      %v2755 = vunpack.c.l.b16 %v1201
      %v2756 = vunpack.c.h.b16 %v1201
      %v2757 = vunpack.c.l.b16 %v1202
      %v2758 = vunpack.c.h.b16 %v1202
      %v2759 = vunpack.c.l.b16 %v1203
      %v2760 = vunpack.c.h.b16 %v1203
      %v2761 = vunpack.c.l.b16 %v1204
      %v2762 = vunpack.c.h.b16 %v1204
      %v2763 = vunpack.c.l.b16 %v1205
      %v2764 = vunpack.c.h.b16 %v1205
      %v2765 = vunpack.c.l.b16 %v1206
      %v2766 = vunpack.c.h.b16 %v1206
      %v2767 = vunpack.c.l.b16 %v1207
      %v2768 = vunpack.c.h.b16 %v1207
      %v2769 = vunpack.c.l.b16 %v1208
      %v2770 = vunpack.c.h.b16 %v1208
      %v2771 = vunpack.c.l.b16 %v1209
      %v2772 = vunpack.c.h.b16 %v1209
      %v2773 = vunpack.c.l.b16 %v1210
      %v2774 = vunpack.c.h.b16 %v1210
      %v2775 = vunpack.c.l.b16 %v1211
      %v2776 = vunpack.c.h.b16 %v1211
      %v2777 = vunpack.c.l.b16 %v1212
      %v2778 = vunpack.c.h.b16 %v1212
      %v2779 = vunpack.c.l.b16 %v1213
      %v2780 = vunpack.c.h.b16 %v1213
      %v2781 = vunpack.c.l.b16 %v1214
      %v2782 = vunpack.c.h.b16 %v1214
      %v2783 = vunpack.c.l.b16 %v1215
      %v2784 = vunpack.c.h.b16 %v1215
      %v2785 = vunpack.c.l.b16 %v1216
      %v2786 = vunpack.c.h.b16 %v1216
      %v2787 = vunpack.c.l.b16 %v1217
      %v2788 = vunpack.c.h.b16 %v1217
      %v2789 = vunpack.c.l.b16 %v1218
      %v2790 = vunpack.c.h.b16 %v1218
      %v2791 = vunpack.c.l.b16 %v1219
      %v2792 = vunpack.c.h.b16 %v1219
      %v2793 = vunpack.c.l.b16 %v1220
      %v2794 = vunpack.c.h.b16 %v1220
      %v2795 = vunpack.c.l.b16 %v1221
      %v2796 = vunpack.c.h.b16 %v1221
      %v2797 = vunpack.c.l.b16 %v1222
      %v2798 = vunpack.c.h.b16 %v1222
      %v2799 = vunpack.c.l.b16 %v1223
      %v2800 = vunpack.c.h.b16 %v1223
      %v2801 = vunpack.c.l.b16 %v1224
      %v2802 = vunpack.c.h.b16 %v1224
      %v2803 = vunpack.c.l.b16 %v1225
      %v2804 = vunpack.c.h.b16 %v1225
      %v2805 = vunpack.c.l.b16 %v1226
      %v2806 = vunpack.c.h.b16 %v1226
      %v2807 = vunpack.c.l.b16 %v1227
      %v2808 = vunpack.c.h.b16 %v1227
      %v2809 = vunpack.c.l.b16 %v1228
      %v2810 = vunpack.c.h.b16 %v1228
      %v2811 = vunpack.c.l.b16 %v1229
      %v2812 = vunpack.c.h.b16 %v1229
      %v2813 = vunpack.c.l.b16 %v1230
      %v2814 = vunpack.c.h.b16 %v1230
      %v2815 = vunpack.c.l.b16 %v1231
      %v2816 = vunpack.c.h.b16 %v1231
      %v2817 = vunpack.c.l.b16 %v1232
      %v2818 = vunpack.c.h.b16 %v1232
      %v2819 = vunpack.c.l.b16 %v1233
      %v2820 = vunpack.c.h.b16 %v1233
      %v2821 = vunpack.c.l.b16 %v1234
      %v2822 = vunpack.c.h.b16 %v1234
      %v2823 = vunpack.c.l.b16 %v1235
      %v2824 = vunpack.c.h.b16 %v1235
      %v2825 = vunpack.c.l.b16 %v1236
      %v2826 = vunpack.c.h.b16 %v1236
      %v2827 = vunpack.c.l.b16 %v1237
      %v2828 = vunpack.c.h.b16 %v1237
      %v2829 = vunpack.c.l.b16 %v1238
      %v2830 = vunpack.c.h.b16 %v1238
      %v2831 = vunpack.c.l.b16 %v1239
      %v2832 = vunpack.c.h.b16 %v1239
      %v2833 = vunpack.c.l.b16 %v1240
      %v2834 = vunpack.c.h.b16 %v1240
      %v2835 = vunpack.c.l.b16 %v1241
      %v2836 = vunpack.c.h.b16 %v1241
      %v2837 = vunpack.c.l.b16 %v1242
      %v2838 = vunpack.c.h.b16 %v1242
      %v2839 = vunpack.c.l.b16 %v1243
      %v2840 = vunpack.c.h.b16 %v1243
      %v2841 = vunpack.c.l.b16 %v1244
      %v2842 = vunpack.c.h.b16 %v1244
      %v2843 = vunpack.c.l.b16 %v1245
      %v2844 = vunpack.c.h.b16 %v1245
      %v2845 = vunpack.c.l.b16 %v1246
      %v2846 = vunpack.c.h.b16 %v1246
      %v2847 = vunpack.c.l.b16 %v1247
      %v2848 = vunpack.c.h.b16 %v1247
      %v2849 = vunpack.c.l.b16 %v1248
      %v2850 = vunpack.c.h.b16 %v1248
      %v2851 = vunpack.c.l.b16 %v1249
      %v2852 = vunpack.c.h.b16 %v1249
      %v2853 = vunpack.c.l.b16 %v1250
      %v2854 = vunpack.c.h.b16 %v1250
      %v2855 = vpack.c.b16 %v1839, %v1831
      %v2856 = vpack.c.b16 %v1840, %v1832
      %v2857 = vpack.c.b16 %v1841, %v1833
      %v2858 = vpack.c.b16 %v1842, %v1834
      %v2859 = vpack.c.b16 %v1843, %v1835
      %v2860 = vpack.c.b16 %v1844, %v1836
      %v2861 = vpack.c.b16 %v1845, %v1837
      %v2862 = vpack.c.b16 %v1846, %v1838
      %v2863 = vpack.c.b16 %v1855, %v1847
      %v2864 = vpack.c.b16 %v1856, %v1848
      %v2865 = vpack.c.b16 %v1857, %v1849
      %v2866 = vpack.c.b16 %v1858, %v1850
      %v2867 = vpack.c.b16 %v1859, %v1851
      %v2868 = vpack.c.b16 %v1860, %v1852
      %v2869 = vpack.c.b16 %v1861, %v1853
      %v2870 = vpack.c.b16 %v1862, %v1854
      %v2871 = vpack.c.b16 %v1871, %v1863
      %v2872 = vpack.c.b16 %v1872, %v1864
      %v2873 = vpack.c.b16 %v1873, %v1865
      %v2874 = vpack.c.b16 %v1874, %v1866
      %v2875 = vpack.c.b16 %v1875, %v1867
      %v2876 = vpack.c.b16 %v1876, %v1868
      %v2877 = vpack.c.b16 %v1877, %v1869
      %v2878 = vpack.c.b16 %v1878, %v1870
      %v2879 = vpack.c.b16 %v1887, %v1879
      %v2880 = vpack.c.b16 %v1888, %v1880
      %v2881 = vpack.c.b16 %v1889, %v1881
      %v2882 = vpack.c.b16 %v1890, %v1882
      %v2883 = vpack.c.b16 %v1891, %v1883
      %v2884 = vpack.c.b16 %v1892, %v1884
      %v2885 = vpack.c.b16 %v1893, %v1885
      %v2886 = vpack.c.b16 %v1894, %v1886
      %v2887 = vpack.c.b16 %v1903, %v1895
      %v2888 = vpack.c.b16 %v1904, %v1896
      %v2889 = vpack.c.b16 %v1905, %v1897
      %v2890 = vpack.c.b16 %v1906, %v1898
      %v2891 = vpack.c.b16 %v1907, %v1899
      %v2892 = vpack.c.b16 %v1908, %v1900
      %v2893 = vpack.c.b16 %v1909, %v1901
      %v2894 = vpack.c.b16 %v1910, %v1902
      %v2895 = vpack.c.b16 %v1919, %v1911
      %v2896 = vpack.c.b16 %v1920, %v1912
      %v2897 = vpack.c.b16 %v1921, %v1913
      %v2898 = vpack.c.b16 %v1922, %v1914
      %v2899 = vpack.c.b16 %v1923, %v1915
      %v2900 = vpack.c.b16 %v1924, %v1916
      %v2901 = vpack.c.b16 %v1925, %v1917
      %v2902 = vpack.c.b16 %v1926, %v1918
      %v2903 = vpack.c.b16 %v1935, %v1927
      %v2904 = vpack.c.b16 %v1936, %v1928
      %v2905 = vpack.c.b16 %v1937, %v1929
      %v2906 = vpack.c.b16 %v1938, %v1930
      %v2907 = vpack.c.b16 %v1939, %v1931
      %v2908 = vpack.c.b16 %v1940, %v1932
      %v2909 = vpack.c.b16 %v1941, %v1933
      %v2910 = vpack.c.b16 %v1942, %v1934
      %v2911 = vpack.c.b16 %v1951, %v1943
      %v2912 = vpack.c.b16 %v1952, %v1944
      %v2913 = vpack.c.b16 %v1953, %v1945
      %v2914 = vpack.c.b16 %v1954, %v1946
      %v2915 = vpack.c.b16 %v1955, %v1947
      %v2916 = vpack.c.b16 %v1956, %v1948
      %v2917 = vpack.c.b16 %v1957, %v1949
      %v2918 = vpack.c.b16 %v1958, %v1950
      %v2919 = vpack.c.b16 %v1967, %v1959
      %v2920 = vpack.c.b16 %v1968, %v1960
      %v2921 = vpack.c.b16 %v1969, %v1961
      %v2922 = vpack.c.b16 %v1970, %v1962
      %v2923 = vpack.c.b16 %v1971, %v1963
      %v2924 = vpack.c.b16 %v1972, %v1964
      %v2925 = vpack.c.b16 %v1973, %v1965
      %v2926 = vpack.c.b16 %v1974, %v1966
      %v2927 = vpack.c.b16 %v1983, %v1975
      %v2928 = vpack.c.b16 %v1984, %v1976
      %v2929 = vpack.c.b16 %v1985, %v1977
      %v2930 = vpack.c.b16 %v1986, %v1978
      %v2931 = vpack.c.b16 %v1987, %v1979
      %v2932 = vpack.c.b16 %v1988, %v1980
      %v2933 = vpack.c.b16 %v1989, %v1981
      %v2934 = vpack.c.b16 %v1990, %v1982
      %v2935 = vpack.c.b16 %v1999, %v1991
      %v2936 = vpack.c.b16 %v2000, %v1992
      %v2937 = vpack.c.b16 %v2001, %v1993
      %v2938 = vpack.c.b16 %v2002, %v1994
      %v2939 = vpack.c.b16 %v2003, %v1995
      %v2940 = vpack.c.b16 %v2004, %v1996
      %v2941 = vpack.c.b16 %v2005, %v1997
      %v2942 = vpack.c.b16 %v2006, %v1998
      %v2943 = vpack.c.b16 %v2015, %v2007
      %v2944 = vpack.c.b16 %v2016, %v2008
      %v2945 = vpack.c.b16 %v2017, %v2009
      %v2946 = vpack.c.b16 %v2018, %v2010
      %v2947 = vpack.c.b16 %v2019, %v2011
      %v2948 = vpack.c.b16 %v2020, %v2012
      %v2949 = vpack.c.b16 %v2021, %v2013
      %v2950 = vpack.c.b16 %v2022, %v2014
      %v2951 = vpack.c.b16 %v2031, %v2023
      %v2952 = vpack.c.b16 %v2032, %v2024
      %v2953 = vpack.c.b16 %v2033, %v2025
      %v2954 = vpack.c.b16 %v2034, %v2026
      %v2955 = vpack.c.b16 %v2035, %v2027
      %v2956 = vpack.c.b16 %v2036, %v2028
      %v2957 = vpack.c.b16 %v2037, %v2029
      %v2958 = vpack.c.b16 %v2038, %v2030
      %v2959 = vpack.c.b16 %v2047, %v2039
      %v2960 = vpack.c.b16 %v2048, %v2040
      %v2961 = vpack.c.b16 %v2049, %v2041
      %v2962 = vpack.c.b16 %v2050, %v2042
      %v2963 = vpack.c.b16 %v2051, %v2043
      %v2964 = vpack.c.b16 %v2052, %v2044
      %v2965 = vpack.c.b16 %v2053, %v2045
      %v2966 = vpack.c.b16 %v2054, %v2046
      %v2967 = vpack.c.b16 %v2063, %v2055
      %v2968 = vpack.c.b16 %v2064, %v2056
      %v2969 = vpack.c.b16 %v2065, %v2057
      %v2970 = vpack.c.b16 %v2066, %v2058
      %v2971 = vpack.c.b16 %v2067, %v2059
      %v2972 = vpack.c.b16 %v2068, %v2060
      %v2973 = vpack.c.b16 %v2069, %v2061
      %v2974 = vpack.c.b16 %v2070, %v2062
      %v2975 = vpack.c.b16 %v2079, %v2071
      %v2976 = vpack.c.b16 %v2080, %v2072
      %v2977 = vpack.c.b16 %v2081, %v2073
      %v2978 = vpack.c.b16 %v2082, %v2074
      %v2979 = vpack.c.b16 %v2083, %v2075
      %v2980 = vpack.c.b16 %v2084, %v2076
      %v2981 = vpack.c.b16 %v2085, %v2077
      %v2982 = vpack.c.b16 %v2086, %v2078
      %v2983 = vpack.c.b16 %v2095, %v2087
      %v2984 = vpack.c.b16 %v2096, %v2088
      %v2985 = vpack.c.b16 %v2097, %v2089
      %v2986 = vpack.c.b16 %v2098, %v2090
      %v2987 = vpack.c.b16 %v2099, %v2091
      %v2988 = vpack.c.b16 %v2100, %v2092
      %v2989 = vpack.c.b16 %v2101, %v2093
      %v2990 = vpack.c.b16 %v2102, %v2094
      %v2991 = vpack.c.b16 %v2111, %v2103
      %v2992 = vpack.c.b16 %v2112, %v2104
      %v2993 = vpack.c.b16 %v2113, %v2105
      %v2994 = vpack.c.b16 %v2114, %v2106
      %v2995 = vpack.c.b16 %v2115, %v2107
      %v2996 = vpack.c.b16 %v2116, %v2108
      %v2997 = vpack.c.b16 %v2117, %v2109
      %v2998 = vpack.c.b16 %v2118, %v2110
      %v2999 = vpack.c.b16 %v2127, %v2119
      %v3000 = vpack.c.b16 %v2128, %v2120
      %v3001 = vpack.c.b16 %v2129, %v2121
      %v3002 = vpack.c.b16 %v2130, %v2122
      %v3003 = vpack.c.b16 %v2131, %v2123
      %v3004 = vpack.c.b16 %v2132, %v2124
      %v3005 = vpack.c.b16 %v2133, %v2125
      %v3006 = vpack.c.b16 %v2134, %v2126
      %v3007 = vpack.c.b16 %v2143, %v2135
      %v3008 = vpack.c.b16 %v2144, %v2136
      %v3009 = vpack.c.b16 %v2145, %v2137
      %v3010 = vpack.c.b16 %v2146, %v2138
      %v3011 = vpack.c.b16 %v2147, %v2139
      %v3012 = vpack.c.b16 %v2148, %v2140
      %v3013 = vpack.c.b16 %v2149, %v2141
      %v3014 = vpack.c.b16 %v2150, %v2142
      %v3015 = vpack.c.b16 %v2159, %v2151
      %v3016 = vpack.c.b16 %v2160, %v2152
      %v3017 = vpack.c.b16 %v2161, %v2153
      %v3018 = vpack.c.b16 %v2162, %v2154
      %v3019 = vpack.c.b16 %v2163, %v2155
      %v3020 = vpack.c.b16 %v2164, %v2156
      %v3021 = vpack.c.b16 %v2165, %v2157
      %v3022 = vpack.c.b16 %v2166, %v2158
      %v3023 = vpack.c.b16 %v2175, %v2167
      %v3024 = vpack.c.b16 %v2176, %v2168
      %v3025 = vpack.c.b16 %v2177, %v2169
      %v3026 = vpack.c.b16 %v2178, %v2170
      %v3027 = vpack.c.b16 %v2179, %v2171
      %v3028 = vpack.c.b16 %v2180, %v2172
      %v3029 = vpack.c.b16 %v2181, %v2173
      %v3030 = vpack.c.b16 %v2182, %v2174
      %v3031 = vpack.c.b16 %v2191, %v2183
      %v3032 = vpack.c.b16 %v2192, %v2184
      %v3033 = vpack.c.b16 %v2193, %v2185
      %v3034 = vpack.c.b16 %v2194, %v2186
      %v3035 = vpack.c.b16 %v2195, %v2187
      %v3036 = vpack.c.b16 %v2196, %v2188
      %v3037 = vpack.c.b16 %v2197, %v2189
      %v3038 = vpack.c.b16 %v2198, %v2190
      %v3039 = vpack.c.b16 %v2207, %v2199
      %v3040 = vpack.c.b16 %v2208, %v2200
      %v3041 = vpack.c.b16 %v2209, %v2201
      %v3042 = vpack.c.b16 %v2210, %v2202
      %v3043 = vpack.c.b16 %v2211, %v2203
      %v3044 = vpack.c.b16 %v2212, %v2204
      %v3045 = vpack.c.b16 %v2213, %v2205
      %v3046 = vpack.c.b16 %v2214, %v2206
      %v3047 = vpack.c.b16 %v2223, %v2215
      %v3048 = vpack.c.b16 %v2224, %v2216
      %v3049 = vpack.c.b16 %v2225, %v2217
      %v3050 = vpack.c.b16 %v2226, %v2218
      %v3051 = vpack.c.b16 %v2227, %v2219
      %v3052 = vpack.c.b16 %v2228, %v2220
      %v3053 = vpack.c.b16 %v2229, %v2221
      %v3054 = vpack.c.b16 %v2230, %v2222
      %v3055 = vpack.c.b16 %v2239, %v2231
      %v3056 = vpack.c.b16 %v2240, %v2232
      %v3057 = vpack.c.b16 %v2241, %v2233
      %v3058 = vpack.c.b16 %v2242, %v2234
      %v3059 = vpack.c.b16 %v2243, %v2235
      %v3060 = vpack.c.b16 %v2244, %v2236
      %v3061 = vpack.c.b16 %v2245, %v2237
      %v3062 = vpack.c.b16 %v2246, %v2238
      %v3063 = vpack.c.b16 %v2255, %v2247
      %v3064 = vpack.c.b16 %v2256, %v2248
      %v3065 = vpack.c.b16 %v2257, %v2249
      %v3066 = vpack.c.b16 %v2258, %v2250
      %v3067 = vpack.c.b16 %v2259, %v2251
      %v3068 = vpack.c.b16 %v2260, %v2252
      %v3069 = vpack.c.b16 %v2261, %v2253
      %v3070 = vpack.c.b16 %v2262, %v2254
      %v3071 = vpack.c.b16 %v2271, %v2263
      %v3072 = vpack.c.b16 %v2272, %v2264
      %v3073 = vpack.c.b16 %v2273, %v2265
      %v3074 = vpack.c.b16 %v2274, %v2266
      %v3075 = vpack.c.b16 %v2275, %v2267
      %v3076 = vpack.c.b16 %v2276, %v2268
      %v3077 = vpack.c.b16 %v2277, %v2269
      %v3078 = vpack.c.b16 %v2278, %v2270
      %v3079 = vpack.c.b16 %v2287, %v2279
      %v3080 = vpack.c.b16 %v2288, %v2280
      %v3081 = vpack.c.b16 %v2289, %v2281
      %v3082 = vpack.c.b16 %v2290, %v2282
      %v3083 = vpack.c.b16 %v2291, %v2283
      %v3084 = vpack.c.b16 %v2292, %v2284
      %v3085 = vpack.c.b16 %v2293, %v2285
      %v3086 = vpack.c.b16 %v2294, %v2286
      %v3087 = vpack.c.b16 %v2303, %v2295
      %v3088 = vpack.c.b16 %v2304, %v2296
      %v3089 = vpack.c.b16 %v2305, %v2297
      %v3090 = vpack.c.b16 %v2306, %v2298
      %v3091 = vpack.c.b16 %v2307, %v2299
      %v3092 = vpack.c.b16 %v2308, %v2300
      %v3093 = vpack.c.b16 %v2309, %v2301
      %v3094 = vpack.c.b16 %v2310, %v2302
      %v3095 = vpack.c.b16 %v2319, %v2311
      %v3096 = vpack.c.b16 %v2320, %v2312
      %v3097 = vpack.c.b16 %v2321, %v2313
      %v3098 = vpack.c.b16 %v2322, %v2314
      %v3099 = vpack.c.b16 %v2323, %v2315
      %v3100 = vpack.c.b16 %v2324, %v2316
      %v3101 = vpack.c.b16 %v2325, %v2317
      %v3102 = vpack.c.b16 %v2326, %v2318
      %v3103 = vpack.c.b16 %v2335, %v2327
      %v3104 = vpack.c.b16 %v2336, %v2328
      %v3105 = vpack.c.b16 %v2337, %v2329
      %v3106 = vpack.c.b16 %v2338, %v2330
      %v3107 = vpack.c.b16 %v2339, %v2331
      %v3108 = vpack.c.b16 %v2340, %v2332
      %v3109 = vpack.c.b16 %v2341, %v2333
      %v3110 = vpack.c.b16 %v2342, %v2334
      %v3111 = vpack.c.b16 %v2351, %v2343
      %v3112 = vpack.c.b16 %v2352, %v2344
      %v3113 = vpack.c.b16 %v2353, %v2345
      %v3114 = vpack.c.b16 %v2354, %v2346
      %v3115 = vpack.c.b16 %v2355, %v2347
      %v3116 = vpack.c.b16 %v2356, %v2348
      %v3117 = vpack.c.b16 %v2357, %v2349
      %v3118 = vpack.c.b16 %v2358, %v2350
      %v3119 = vpack.c.b16 %v2367, %v2359
      %v3120 = vpack.c.b16 %v2368, %v2360
      %v3121 = vpack.c.b16 %v2369, %v2361
      %v3122 = vpack.c.b16 %v2370, %v2362
      %v3123 = vpack.c.b16 %v2371, %v2363
      %v3124 = vpack.c.b16 %v2372, %v2364
      %v3125 = vpack.c.b16 %v2373, %v2365
      %v3126 = vpack.c.b16 %v2374, %v2366
      %v3127 = vpack.c.b16 %v2383, %v2375
      %v3128 = vpack.c.b16 %v2384, %v2376
      %v3129 = vpack.c.b16 %v2385, %v2377
      %v3130 = vpack.c.b16 %v2386, %v2378
      %v3131 = vpack.c.b16 %v2387, %v2379
      %v3132 = vpack.c.b16 %v2388, %v2380
      %v3133 = vpack.c.b16 %v2389, %v2381
      %v3134 = vpack.c.b16 %v2390, %v2382
      %v3135 = vpack.c.b16 %v2399, %v2391
      %v3136 = vpack.c.b16 %v2400, %v2392
      %v3137 = vpack.c.b16 %v2401, %v2393
      %v3138 = vpack.c.b16 %v2402, %v2394
      %v3139 = vpack.c.b16 %v2403, %v2395
      %v3140 = vpack.c.b16 %v2404, %v2396
      %v3141 = vpack.c.b16 %v2405, %v2397
      %v3142 = vpack.c.b16 %v2406, %v2398
      %v3143 = vpack.c.b16 %v2415, %v2407
      %v3144 = vpack.c.b16 %v2416, %v2408
      %v3145 = vpack.c.b16 %v2417, %v2409
      %v3146 = vpack.c.b16 %v2418, %v2410
      %v3147 = vpack.c.b16 %v2419, %v2411
      %v3148 = vpack.c.b16 %v2420, %v2412
      %v3149 = vpack.c.b16 %v2421, %v2413
      %v3150 = vpack.c.b16 %v2422, %v2414
      %v3151 = vpack.c.b16 %v2431, %v2423
      %v3152 = vpack.c.b16 %v2432, %v2424
      %v3153 = vpack.c.b16 %v2433, %v2425
      %v3154 = vpack.c.b16 %v2434, %v2426
      %v3155 = vpack.c.b16 %v2435, %v2427
      %v3156 = vpack.c.b16 %v2436, %v2428
      %v3157 = vpack.c.b16 %v2437, %v2429
      %v3158 = vpack.c.b16 %v2438, %v2430
      %v3159 = vpack.c.b16 %v2447, %v2439
      %v3160 = vpack.c.b16 %v2448, %v2440
      %v3161 = vpack.c.b16 %v2449, %v2441
      %v3162 = vpack.c.b16 %v2450, %v2442
      %v3163 = vpack.c.b16 %v2451, %v2443
      %v3164 = vpack.c.b16 %v2452, %v2444
      %v3165 = vpack.c.b16 %v2453, %v2445
      %v3166 = vpack.c.b16 %v2454, %v2446
      %v3167 = vpack.c.b16 %v2463, %v2455
      %v3168 = vpack.c.b16 %v2464, %v2456
      %v3169 = vpack.c.b16 %v2465, %v2457
      %v3170 = vpack.c.b16 %v2466, %v2458
      %v3171 = vpack.c.b16 %v2467, %v2459
      %v3172 = vpack.c.b16 %v2468, %v2460
      %v3173 = vpack.c.b16 %v2469, %v2461
      %v3174 = vpack.c.b16 %v2470, %v2462
      %v3175 = vpack.c.b16 %v2479, %v2471
      %v3176 = vpack.c.b16 %v2480, %v2472
      %v3177 = vpack.c.b16 %v2481, %v2473
      %v3178 = vpack.c.b16 %v2482, %v2474
      %v3179 = vpack.c.b16 %v2483, %v2475
      %v3180 = vpack.c.b16 %v2484, %v2476
      %v3181 = vpack.c.b16 %v2485, %v2477
      %v3182 = vpack.c.b16 %v2486, %v2478
      %v3183 = vpack.c.b16 %v2495, %v2487
      %v3184 = vpack.c.b16 %v2496, %v2488
      %v3185 = vpack.c.b16 %v2497, %v2489
      %v3186 = vpack.c.b16 %v2498, %v2490
      %v3187 = vpack.c.b16 %v2499, %v2491
      %v3188 = vpack.c.b16 %v2500, %v2492
      %v3189 = vpack.c.b16 %v2501, %v2493
      %v3190 = vpack.c.b16 %v2502, %v2494
      %v3191 = vpack.c.b16 %v2511, %v2503
      %v3192 = vpack.c.b16 %v2512, %v2504
      %v3193 = vpack.c.b16 %v2513, %v2505
      %v3194 = vpack.c.b16 %v2514, %v2506
      %v3195 = vpack.c.b16 %v2515, %v2507
      %v3196 = vpack.c.b16 %v2516, %v2508
      %v3197 = vpack.c.b16 %v2517, %v2509
      %v3198 = vpack.c.b16 %v2518, %v2510
      %v3199 = vpack.c.b16 %v2527, %v2519
      %v3200 = vpack.c.b16 %v2528, %v2520
      %v3201 = vpack.c.b16 %v2529, %v2521
      %v3202 = vpack.c.b16 %v2530, %v2522
      %v3203 = vpack.c.b16 %v2531, %v2523
      %v3204 = vpack.c.b16 %v2532, %v2524
      %v3205 = vpack.c.b16 %v2533, %v2525
      %v3206 = vpack.c.b16 %v2534, %v2526
      %v3207 = vpack.c.b16 %v2543, %v2535
      %v3208 = vpack.c.b16 %v2544, %v2536
      %v3209 = vpack.c.b16 %v2545, %v2537
      %v3210 = vpack.c.b16 %v2546, %v2538
      %v3211 = vpack.c.b16 %v2547, %v2539
      %v3212 = vpack.c.b16 %v2548, %v2540
      %v3213 = vpack.c.b16 %v2549, %v2541
      %v3214 = vpack.c.b16 %v2550, %v2542
      %v3215 = vpack.c.b16 %v2559, %v2551
      %v3216 = vpack.c.b16 %v2560, %v2552
      %v3217 = vpack.c.b16 %v2561, %v2553
      %v3218 = vpack.c.b16 %v2562, %v2554
      %v3219 = vpack.c.b16 %v2563, %v2555
      %v3220 = vpack.c.b16 %v2564, %v2556
      %v3221 = vpack.c.b16 %v2565, %v2557
      %v3222 = vpack.c.b16 %v2566, %v2558
      %v3223 = vpack.c.b16 %v2575, %v2567
      %v3224 = vpack.c.b16 %v2576, %v2568
      %v3225 = vpack.c.b16 %v2577, %v2569
      %v3226 = vpack.c.b16 %v2578, %v2570
      %v3227 = vpack.c.b16 %v2579, %v2571
      %v3228 = vpack.c.b16 %v2580, %v2572
      %v3229 = vpack.c.b16 %v2581, %v2573
      %v3230 = vpack.c.b16 %v2582, %v2574
      %v3231 = vpack.c.b16 %v2591, %v2583
      %v3232 = vpack.c.b16 %v2592, %v2584
      %v3233 = vpack.c.b16 %v2593, %v2585
      %v3234 = vpack.c.b16 %v2594, %v2586
      %v3235 = vpack.c.b16 %v2595, %v2587
      %v3236 = vpack.c.b16 %v2596, %v2588
      %v3237 = vpack.c.b16 %v2597, %v2589
      %v3238 = vpack.c.b16 %v2598, %v2590
      %v3239 = vpack.c.b16 %v2607, %v2599
      %v3240 = vpack.c.b16 %v2608, %v2600
      %v3241 = vpack.c.b16 %v2609, %v2601
      %v3242 = vpack.c.b16 %v2610, %v2602
      %v3243 = vpack.c.b16 %v2611, %v2603
      %v3244 = vpack.c.b16 %v2612, %v2604
      %v3245 = vpack.c.b16 %v2613, %v2605
      %v3246 = vpack.c.b16 %v2614, %v2606
      %v3247 = vpack.c.b16 %v2623, %v2615
      %v3248 = vpack.c.b16 %v2624, %v2616
      %v3249 = vpack.c.b16 %v2625, %v2617
      %v3250 = vpack.c.b16 %v2626, %v2618
      %v3251 = vpack.c.b16 %v2627, %v2619
      %v3252 = vpack.c.b16 %v2628, %v2620
      %v3253 = vpack.c.b16 %v2629, %v2621
      %v3254 = vpack.c.b16 %v2630, %v2622
      %v3255 = vpack.c.b16 %v2639, %v2631
      %v3256 = vpack.c.b16 %v2640, %v2632
      %v3257 = vpack.c.b16 %v2641, %v2633
      %v3258 = vpack.c.b16 %v2642, %v2634
      %v3259 = vpack.c.b16 %v2643, %v2635
      %v3260 = vpack.c.b16 %v2644, %v2636
      %v3261 = vpack.c.b16 %v2645, %v2637
      %v3262 = vpack.c.b16 %v2646, %v2638
      %v3263 = vpack.c.b16 %v2655, %v2647
      %v3264 = vpack.c.b16 %v2656, %v2648
      %v3265 = vpack.c.b16 %v2657, %v2649
      %v3266 = vpack.c.b16 %v2658, %v2650
      %v3267 = vpack.c.b16 %v2659, %v2651
      %v3268 = vpack.c.b16 %v2660, %v2652
      %v3269 = vpack.c.b16 %v2661, %v2653
      %v3270 = vpack.c.b16 %v2662, %v2654
      %v3271 = vpack.c.b16 %v2671, %v2663
      %v3272 = vpack.c.b16 %v2672, %v2664
      %v3273 = vpack.c.b16 %v2673, %v2665
      %v3274 = vpack.c.b16 %v2674, %v2666
      %v3275 = vpack.c.b16 %v2675, %v2667
      %v3276 = vpack.c.b16 %v2676, %v2668
      %v3277 = vpack.c.b16 %v2677, %v2669
      %v3278 = vpack.c.b16 %v2678, %v2670
      %v3279 = vpack.c.b16 %v2687, %v2679
      %v3280 = vpack.c.b16 %v2688, %v2680
      %v3281 = vpack.c.b16 %v2689, %v2681
      %v3282 = vpack.c.b16 %v2690, %v2682
      %v3283 = vpack.c.b16 %v2691, %v2683
      %v3284 = vpack.c.b16 %v2692, %v2684
      %v3285 = vpack.c.b16 %v2693, %v2685
      %v3286 = vpack.c.b16 %v2694, %v2686
      %v3287 = vpack.c.b16 %v2703, %v2695
      %v3288 = vpack.c.b16 %v2704, %v2696
      %v3289 = vpack.c.b16 %v2705, %v2697
      %v3290 = vpack.c.b16 %v2706, %v2698
      %v3291 = vpack.c.b16 %v2707, %v2699
      %v3292 = vpack.c.b16 %v2708, %v2700
      %v3293 = vpack.c.b16 %v2709, %v2701
      %v3294 = vpack.c.b16 %v2710, %v2702
      %v3295 = vpack.c.b16 %v2719, %v2711
      %v3296 = vpack.c.b16 %v2720, %v2712
      %v3297 = vpack.c.b16 %v2721, %v2713
      %v3298 = vpack.c.b16 %v2722, %v2714
      %v3299 = vpack.c.b16 %v2723, %v2715
      %v3300 = vpack.c.b16 %v2724, %v2716
      %v3301 = vpack.c.b16 %v2725, %v2717
      %v3302 = vpack.c.b16 %v2726, %v2718
      %v3303 = vpack.c.b16 %v2735, %v2727
      %v3304 = vpack.c.b16 %v2736, %v2728
      %v3305 = vpack.c.b16 %v2737, %v2729
      %v3306 = vpack.c.b16 %v2738, %v2730
      %v3307 = vpack.c.b16 %v2739, %v2731
      %v3308 = vpack.c.b16 %v2740, %v2732
      %v3309 = vpack.c.b16 %v2741, %v2733
      %v3310 = vpack.c.b16 %v2742, %v2734
      %v3311 = vpack.c.b16 %v2751, %v2743
      %v3312 = vpack.c.b16 %v2752, %v2744
      %v3313 = vpack.c.b16 %v2753, %v2745
      %v3314 = vpack.c.b16 %v2754, %v2746
      %v3315 = vpack.c.b16 %v2755, %v2747
      %v3316 = vpack.c.b16 %v2756, %v2748
      %v3317 = vpack.c.b16 %v2757, %v2749
      %v3318 = vpack.c.b16 %v2758, %v2750
      %v3319 = vpack.c.b16 %v2767, %v2759
      %v3320 = vpack.c.b16 %v2768, %v2760
      %v3321 = vpack.c.b16 %v2769, %v2761
      %v3322 = vpack.c.b16 %v2770, %v2762
      %v3323 = vpack.c.b16 %v2771, %v2763
      %v3324 = vpack.c.b16 %v2772, %v2764
      %v3325 = vpack.c.b16 %v2773, %v2765
      %v3326 = vpack.c.b16 %v2774, %v2766
      %v3327 = vpack.c.b16 %v2783, %v2775
      %v3328 = vpack.c.b16 %v2784, %v2776
      %v3329 = vpack.c.b16 %v2785, %v2777
      %v3330 = vpack.c.b16 %v2786, %v2778
      %v3331 = vpack.c.b16 %v2787, %v2779
      %v3332 = vpack.c.b16 %v2788, %v2780
      %v3333 = vpack.c.b16 %v2789, %v2781
      %v3334 = vpack.c.b16 %v2790, %v2782
      %v3335 = vpack.c.b16 %v2799, %v2791
      %v3336 = vpack.c.b16 %v2800, %v2792
      %v3337 = vpack.c.b16 %v2801, %v2793
      %v3338 = vpack.c.b16 %v2802, %v2794
      %v3339 = vpack.c.b16 %v2803, %v2795
      %v3340 = vpack.c.b16 %v2804, %v2796
      %v3341 = vpack.c.b16 %v2805, %v2797
      %v3342 = vpack.c.b16 %v2806, %v2798
      %v3343 = vpack.c.b16 %v2815, %v2807
      %v3344 = vpack.c.b16 %v2816, %v2808
      %v3345 = vpack.c.b16 %v2817, %v2809
      %v3346 = vpack.c.b16 %v2818, %v2810
      %v3347 = vpack.c.b16 %v2819, %v2811
      %v3348 = vpack.c.b16 %v2820, %v2812
      %v3349 = vpack.c.b16 %v2821, %v2813
      %v3350 = vpack.c.b16 %v2822, %v2814
      %v3351 = vpack.c.b16 %v2831, %v2823
      %v3352 = vpack.c.b16 %v2832, %v2824
      %v3353 = vpack.c.b16 %v2833, %v2825
      %v3354 = vpack.c.b16 %v2834, %v2826
      %v3355 = vpack.c.b16 %v2835, %v2827
      %v3356 = vpack.c.b16 %v2836, %v2828
      %v3357 = vpack.c.b16 %v2837, %v2829
      %v3358 = vpack.c.b16 %v2838, %v2830
      %v3359 = vpack.c.b16 %v2847, %v2839
      %v3360 = vpack.c.b16 %v2848, %v2840
      %v3361 = vpack.c.b16 %v2849, %v2841
      %v3362 = vpack.c.b16 %v2850, %v2842
      %v3363 = vpack.c.b16 %v2851, %v2843
      %v3364 = vpack.c.b16 %v2852, %v2844
      %v3365 = vpack.c.b16 %v2853, %v2845
      %v3366 = vpack.c.b16 %v2854, %v2846
      %3879 = vmatprep.subr.bf16.mxu0 %v2912
      %3880 = vmatpush1.bf16.msra.mxu0 %v2911
      %3881 = vmatprep.subr.bf16.mxu0 %v2904
      %3882 = vmatpush1.bf16.msra.mxu0 %v2903
      %3883 = vmatprep.subr.bf16.mxu0 %v2896
      %3884 = vmatpush1.bf16.msra.mxu0 %v2895
      %3885 = vmatprep.subr.bf16.mxu0 %v2888
      %3886 = vmatpush1.bf16.msra.mxu0 %v2887
      %3887 = vmatprep.subr.bf16.mxu0 %v2880
      %3888 = vmatpush1.bf16.msra.mxu0 %v2879
      %3889 = vmatprep.subr.bf16.mxu0 %v2872
      %3890 = vmatpush1.bf16.msra.mxu0 %v2871
      %3891 = vmatprep.subr.bf16.mxu0 %v2864
      %3892 = vmatpush1.bf16.msra.mxu0 %v2863
      %3893 = vmatprep.subr.bf16.mxu0 %v2856
      %3894 = vmatpush1.bf16.msra.mxu0 %v2855
      %3895 = vmatprep.subr.bf16.mxu0 %v2976
      %3896 = vmatpush2.bf16.msra.mxu0 %v2975
      %3897 = vmatprep.subr.bf16.mxu0 %v2968
      %3898 = vmatpush2.bf16.msra.mxu0 %v2967
      %3899 = vmatprep.subr.bf16.mxu0 %v2960
      %3900 = vmatpush2.bf16.msra.mxu0 %v2959
      %3901 = vmatprep.subr.bf16.mxu0 %v2952
      %3902 = vmatpush2.bf16.msra.mxu0 %v2951
      %3903 = vmatprep.subr.bf16.mxu0 %v2944
      %3904 = vmatpush2.bf16.msra.mxu0 %v2943
      %3905 = vmatprep.subr.bf16.mxu0 %v2936
      %3906 = vmatpush2.bf16.msra.mxu0 %v2935
      %3907 = vmatprep.subr.bf16.mxu0 %v2928
      %3908 = vmatpush2.bf16.msra.mxu0 %v2927
      %3909 = vmatprep.subr.bf16.mxu0 %v2920
      %3910 = vmatpush2.bf16.msra.mxu0 %v2919
      %3911 = vmatprep.mubr.bf16.mxu0 %v1288
      %3912 = vmatmul.mubr.bf16.gmra.mxu0 %v1287
      %v3913 = vpop.f32.mrf.mxu0
      %v3914 = vadd.f32 0.0, %v3913
      %v3915 = vpop.f32.mrf.mxu0
      %v3916 = vadd.f32 0.0, %v3915
      %v3917 = vpop.f32.mrf.mxu0
      %v3918 = vadd.f32 0.0, %v3917
      %v3919 = vpop.f32.mrf.mxu0
      %v3920 = vadd.f32 0.0, %v3919
      %3921 = vmatprep.mubr.bf16.mxu0 %v1296
      %3922 = vmatmul.mubr.bf16.gmra.mxu0 %v1295
      %v3923 = vpop.f32.mrf.mxu0
      %v3924 = vadd.f32 0.0, %v3923
      %v3925 = vpop.f32.mrf.mxu0
      %v3926 = vadd.f32 0.0, %v3925
      %v3927 = vpop.f32.mrf.mxu0
      %v3928 = vpop.f32.mrf.mxu0
      %3929 = vdwg.mxu0
      %3930 = vmatprep.subr.bf16.mxu0 %v3040
      %3931 = vmatpush1.bf16.msra.mxu0 %v3039
      %3932 = vmatprep.subr.bf16.mxu0 %v3032
      %3933 = vmatpush1.bf16.msra.mxu0 %v3031
      %3934 = vmatprep.subr.bf16.mxu0 %v3024
      %3935 = vmatpush1.bf16.msra.mxu0 %v3023
      %3936 = vmatprep.subr.bf16.mxu0 %v3016
      %3937 = vmatpush1.bf16.msra.mxu0 %v3015
      %3938 = vmatprep.subr.bf16.mxu0 %v3008
      %3939 = vmatpush1.bf16.msra.mxu0 %v3007
      %3940 = vmatprep.subr.bf16.mxu0 %v3000
      %3941 = vmatpush1.bf16.msra.mxu0 %v2999
      %3942 = vmatprep.subr.bf16.mxu0 %v2992
      %3943 = vmatpush1.bf16.msra.mxu0 %v2991
      %3944 = vmatprep.subr.bf16.mxu0 %v2984
      %3945 = vmatpush1.bf16.msra.mxu0 %v2983
      %3946 = vmatprep.subr.bf16.mxu0 %v3104
      %3947 = vmatpush2.bf16.msra.mxu0 %v3103
      %3948 = vmatprep.subr.bf16.mxu0 %v3096
      %3949 = vmatpush2.bf16.msra.mxu0 %v3095
      %3950 = vmatprep.subr.bf16.mxu0 %v3088
      %3951 = vmatpush2.bf16.msra.mxu0 %v3087
      %3952 = vmatprep.subr.bf16.mxu0 %v3080
      %3953 = vmatpush2.bf16.msra.mxu0 %v3079
      %3954 = vmatprep.subr.bf16.mxu0 %v3072
      %3955 = vmatpush2.bf16.msra.mxu0 %v3071
      %3956 = vmatprep.subr.bf16.mxu0 %v3064
      %3957 = vmatpush2.bf16.msra.mxu0 %v3063
      %3958 = vmatprep.subr.bf16.mxu0 %v3056
      %3959 = vmatpush2.bf16.msra.mxu0 %v3055
      %3960 = vmatprep.subr.bf16.mxu0 %v3048
      %3961 = vmatpush2.bf16.msra.mxu0 %v3047
      %3962 = vmatprep.mubr.bf16.mxu0 %v1290
      %3963 = vmatmul.mubr.bf16.gmra.mxu0 %v1289
      %v3964 = vpop.f32.mrf.mxu0
      %v3965 = vadd.f32 %v3914, %v3964
      %v3966 = vpop.f32.mrf.mxu0
      %v3967 = vadd.f32 %v3916, %v3966
      %v3968 = vpop.f32.mrf.mxu0
      %v3969 = vadd.f32 %v3918, %v3968
      %v3970 = vpop.f32.mrf.mxu0
      %v3971 = vadd.f32 %v3920, %v3970
      %3972 = vmatprep.mubr.bf16.mxu0 %v1298
      %3973 = vmatmul.mubr.bf16.gmra.mxu0 %v1297
      %v3974 = vpop.f32.mrf.mxu0
      %v3975 = vadd.f32 %v3924, %v3974
      %v3976 = vpop.f32.mrf.mxu0
      %v3977 = vadd.f32 %v3926, %v3976
      %v3978 = vpop.f32.mrf.mxu0
      %v3979 = vpop.f32.mrf.mxu0
      %3980 = vdwg.mxu0
      %3981 = vmatprep.subr.bf16.mxu0 %v3168
      %3982 = vmatpush1.bf16.msra.mxu0 %v3167
      %3983 = vmatprep.subr.bf16.mxu0 %v3160
      %3984 = vmatpush1.bf16.msra.mxu0 %v3159
      %3985 = vmatprep.subr.bf16.mxu0 %v3152
      %3986 = vmatpush1.bf16.msra.mxu0 %v3151
      %3987 = vmatprep.subr.bf16.mxu0 %v3144
      %3988 = vmatpush1.bf16.msra.mxu0 %v3143
      %3989 = vmatprep.subr.bf16.mxu0 %v3136
      %3990 = vmatpush1.bf16.msra.mxu0 %v3135
      %3991 = vmatprep.subr.bf16.mxu0 %v3128
      %3992 = vmatpush1.bf16.msra.mxu0 %v3127
      %3993 = vmatprep.subr.bf16.mxu0 %v3120
      %3994 = vmatpush1.bf16.msra.mxu0 %v3119
      %3995 = vmatprep.subr.bf16.mxu0 %v3112
      %3996 = vmatpush1.bf16.msra.mxu0 %v3111
      %3997 = vmatprep.subr.bf16.mxu0 %v3232
      %3998 = vmatpush2.bf16.msra.mxu0 %v3231
      %3999 = vmatprep.subr.bf16.mxu0 %v3224
      %4000 = vmatpush2.bf16.msra.mxu0 %v3223
      %4001 = vmatprep.subr.bf16.mxu0 %v3216
      %4002 = vmatpush2.bf16.msra.mxu0 %v3215
      %4003 = vmatprep.subr.bf16.mxu0 %v3208
      %4004 = vmatpush2.bf16.msra.mxu0 %v3207
      %4005 = vmatprep.subr.bf16.mxu0 %v3200
      %4006 = vmatpush2.bf16.msra.mxu0 %v3199
      %4007 = vmatprep.subr.bf16.mxu0 %v3192
      %4008 = vmatpush2.bf16.msra.mxu0 %v3191
      %4009 = vmatprep.subr.bf16.mxu0 %v3184
      %4010 = vmatpush2.bf16.msra.mxu0 %v3183
      %4011 = vmatprep.subr.bf16.mxu0 %v3176
      %4012 = vmatpush2.bf16.msra.mxu0 %v3175
      %4013 = vmatprep.mubr.bf16.mxu0 %v1292
      %4014 = vmatmul.mubr.bf16.gmra.mxu0 %v1291
      %v4015 = vpop.f32.mrf.mxu0
      %v4016 = vadd.f32 %v3965, %v4015
      %v4017 = vpop.f32.mrf.mxu0
      %v4018 = vadd.f32 %v3967, %v4017
      %v4019 = vpop.f32.mrf.mxu0
      %v4020 = vadd.f32 %v3969, %v4019
      %v4021 = vpop.f32.mrf.mxu0
      %v4022 = vadd.f32 %v3971, %v4021
      %4023 = vmatprep.mubr.bf16.mxu0 %v1300
      %4024 = vmatmul.mubr.bf16.gmra.mxu0 %v1299
      %v4025 = vpop.f32.mrf.mxu0
      %v4026 = vadd.f32 %v3975, %v4025
      %v4027 = vpop.f32.mrf.mxu0
      %v4028 = vadd.f32 %v3977, %v4027
      %v4029 = vpop.f32.mrf.mxu0
      %v4030 = vpop.f32.mrf.mxu0
      %4031 = vdwg.mxu0
      %4032 = vmatprep.subr.bf16.mxu0 %v3296
      %4033 = vmatpush1.bf16.msra.mxu0 %v3295
      %4034 = vmatprep.subr.bf16.mxu0 %v3288
      %4035 = vmatpush1.bf16.msra.mxu0 %v3287
      %4036 = vmatprep.subr.bf16.mxu0 %v3280
      %4037 = vmatpush1.bf16.msra.mxu0 %v3279
      %4038 = vmatprep.subr.bf16.mxu0 %v3272
      %4039 = vmatpush1.bf16.msra.mxu0 %v3271
      %4040 = vmatprep.subr.bf16.mxu0 %v3264
      %4041 = vmatpush1.bf16.msra.mxu0 %v3263
      %4042 = vmatprep.subr.bf16.mxu0 %v3256
      %4043 = vmatpush1.bf16.msra.mxu0 %v3255
      %4044 = vmatprep.subr.bf16.mxu0 %v3248
      %4045 = vmatpush1.bf16.msra.mxu0 %v3247
      %4046 = vmatprep.subr.bf16.mxu0 %v3240
      %4047 = vmatpush1.bf16.msra.mxu0 %v3239
      %4048 = vmatprep.subr.bf16.mxu0 %v3360
      %4049 = vmatpush2.bf16.msra.mxu0 %v3359
      %4050 = vmatprep.subr.bf16.mxu0 %v3352
      %4051 = vmatpush2.bf16.msra.mxu0 %v3351
      %4052 = vmatprep.subr.bf16.mxu0 %v3344
      %4053 = vmatpush2.bf16.msra.mxu0 %v3343
      %4054 = vmatprep.subr.bf16.mxu0 %v3336
      %4055 = vmatpush2.bf16.msra.mxu0 %v3335
      %4056 = vmatprep.subr.bf16.mxu0 %v3328
      %4057 = vmatpush2.bf16.msra.mxu0 %v3327
      %4058 = vmatprep.subr.bf16.mxu0 %v3320
      %4059 = vmatpush2.bf16.msra.mxu0 %v3319
      %4060 = vmatprep.subr.bf16.mxu0 %v3312
      %4061 = vmatpush2.bf16.msra.mxu0 %v3311
      %4062 = vmatprep.subr.bf16.mxu0 %v3304
      %4063 = vmatpush2.bf16.msra.mxu0 %v3303
      %4064 = vmatprep.mubr.bf16.mxu0 %v1294
      %4065 = vmatmul.mubr.bf16.gmra.mxu0 %v1293
      %v4066 = vpop.f32.mrf.mxu0
      %v4067 = vadd.f32 %v4016, %v4066
      %v4068 = vpop.f32.mrf.mxu0
      %v4069 = vadd.f32 %v4018, %v4068
      %v4070 = vpop.f32.mrf.mxu0
      %v4071 = vadd.f32 %v4020, %v4070
      %v4072 = vpop.f32.mrf.mxu0
      %v4073 = vadd.f32 %v4022, %v4072
      %4074 = vmatprep.mubr.bf16.mxu0 %v1302
      %4075 = vmatmul.mubr.bf16.gmra.mxu0 %v1301
      %v4076 = vpop.f32.mrf.mxu0
      %v4077 = vadd.f32 %v4026, %v4076
      %v4078 = vpop.f32.mrf.mxu0
      %v4079 = vadd.f32 %v4028, %v4078
      %v4080 = vpop.f32.mrf.mxu0
      %v4081 = vpop.f32.mrf.mxu0
      %4082 = vdwg.mxu0
      %4083 = vmatprep.subr.bf16.mxu0 %v2914
      %4084 = vmatpush1.bf16.msra.mxu0 %v2913
      %4085 = vmatprep.subr.bf16.mxu0 %v2906
      %4086 = vmatpush1.bf16.msra.mxu0 %v2905
      %4087 = vmatprep.subr.bf16.mxu0 %v2898
      %4088 = vmatpush1.bf16.msra.mxu0 %v2897
      %4089 = vmatprep.subr.bf16.mxu0 %v2890
      %4090 = vmatpush1.bf16.msra.mxu0 %v2889
      %4091 = vmatprep.subr.bf16.mxu0 %v2882
      %4092 = vmatpush1.bf16.msra.mxu0 %v2881
      %4093 = vmatprep.subr.bf16.mxu0 %v2874
      %4094 = vmatpush1.bf16.msra.mxu0 %v2873
      %4095 = vmatprep.subr.bf16.mxu0 %v2866
      %4096 = vmatpush1.bf16.msra.mxu0 %v2865
      %4097 = vmatprep.subr.bf16.mxu0 %v2858
      %4098 = vmatpush1.bf16.msra.mxu0 %v2857
      %4099 = vmatprep.subr.bf16.mxu0 %v2978
      %4100 = vmatpush2.bf16.msra.mxu0 %v2977
      %4101 = vmatprep.subr.bf16.mxu0 %v2970
      %4102 = vmatpush2.bf16.msra.mxu0 %v2969
      %4103 = vmatprep.subr.bf16.mxu0 %v2962
      %4104 = vmatpush2.bf16.msra.mxu0 %v2961
      %4105 = vmatprep.subr.bf16.mxu0 %v2954
      %4106 = vmatpush2.bf16.msra.mxu0 %v2953
      %4107 = vmatprep.subr.bf16.mxu0 %v2946
      %4108 = vmatpush2.bf16.msra.mxu0 %v2945
      %4109 = vmatprep.subr.bf16.mxu0 %v2938
      %4110 = vmatpush2.bf16.msra.mxu0 %v2937
      %4111 = vmatprep.subr.bf16.mxu0 %v2930
      %4112 = vmatpush2.bf16.msra.mxu0 %v2929
      %4113 = vmatprep.subr.bf16.mxu0 %v2922
      %4114 = vmatpush2.bf16.msra.mxu0 %v2921
      %4115 = vmatprep.mubr.bf16.mxu0 %v1288
      %4116 = vmatmul.mubr.bf16.gmra.mxu0 %v1287
      %v4117 = vpop.f32.mrf.mxu0
      %v4118 = vadd.f32 0.0, %v4117
      %v4119 = vpop.f32.mrf.mxu0
      %v4120 = vadd.f32 0.0, %v4119
      %v4121 = vpop.f32.mrf.mxu0
      %v4122 = vadd.f32 0.0, %v4121
      %v4123 = vpop.f32.mrf.mxu0
      %v4124 = vadd.f32 0.0, %v4123
      %4125 = vmatprep.mubr.bf16.mxu0 %v1296
      %4126 = vmatmul.mubr.bf16.gmra.mxu0 %v1295
      %v4127 = vpop.f32.mrf.mxu0
      %v4128 = vadd.f32 0.0, %v4127
      %v4129 = vpop.f32.mrf.mxu0
      %v4130 = vadd.f32 0.0, %v4129
      %v4131 = vpop.f32.mrf.mxu0
      %v4132 = vpop.f32.mrf.mxu0
      %4133 = vdwg.mxu0
      %4134 = vmatprep.subr.bf16.mxu0 %v3042
      %4135 = vmatpush1.bf16.msra.mxu0 %v3041
      %4136 = vmatprep.subr.bf16.mxu0 %v3034
      %4137 = vmatpush1.bf16.msra.mxu0 %v3033
      %4138 = vmatprep.subr.bf16.mxu0 %v3026
      %4139 = vmatpush1.bf16.msra.mxu0 %v3025
      %4140 = vmatprep.subr.bf16.mxu0 %v3018
      %4141 = vmatpush1.bf16.msra.mxu0 %v3017
      %4142 = vmatprep.subr.bf16.mxu0 %v3010
      %4143 = vmatpush1.bf16.msra.mxu0 %v3009
      %4144 = vmatprep.subr.bf16.mxu0 %v3002
      %4145 = vmatpush1.bf16.msra.mxu0 %v3001
      %4146 = vmatprep.subr.bf16.mxu0 %v2994
      %4147 = vmatpush1.bf16.msra.mxu0 %v2993
      %4148 = vmatprep.subr.bf16.mxu0 %v2986
      %4149 = vmatpush1.bf16.msra.mxu0 %v2985
      %4150 = vmatprep.subr.bf16.mxu0 %v3106
      %4151 = vmatpush2.bf16.msra.mxu0 %v3105
      %4152 = vmatprep.subr.bf16.mxu0 %v3098
      %4153 = vmatpush2.bf16.msra.mxu0 %v3097
      %4154 = vmatprep.subr.bf16.mxu0 %v3090
      %4155 = vmatpush2.bf16.msra.mxu0 %v3089
      %4156 = vmatprep.subr.bf16.mxu0 %v3082
      %4157 = vmatpush2.bf16.msra.mxu0 %v3081
      %4158 = vmatprep.subr.bf16.mxu0 %v3074
      %4159 = vmatpush2.bf16.msra.mxu0 %v3073
      %4160 = vmatprep.subr.bf16.mxu0 %v3066
      %4161 = vmatpush2.bf16.msra.mxu0 %v3065
      %4162 = vmatprep.subr.bf16.mxu0 %v3058
      %4163 = vmatpush2.bf16.msra.mxu0 %v3057
      %4164 = vmatprep.subr.bf16.mxu0 %v3050
      %4165 = vmatpush2.bf16.msra.mxu0 %v3049
      %4166 = vmatprep.mubr.bf16.mxu0 %v1290
      %4167 = vmatmul.mubr.bf16.gmra.mxu0 %v1289
      %v4168 = vpop.f32.mrf.mxu0
      %v4169 = vadd.f32 %v4118, %v4168
      %v4170 = vpop.f32.mrf.mxu0
      %v4171 = vadd.f32 %v4120, %v4170
      %v4172 = vpop.f32.mrf.mxu0
      %v4173 = vadd.f32 %v4122, %v4172
      %v4174 = vpop.f32.mrf.mxu0
      %v4175 = vadd.f32 %v4124, %v4174
      %4176 = vmatprep.mubr.bf16.mxu0 %v1298
      %4177 = vmatmul.mubr.bf16.gmra.mxu0 %v1297
      %v4178 = vpop.f32.mrf.mxu0
      %v4179 = vadd.f32 %v4128, %v4178
      %v4180 = vpop.f32.mrf.mxu0
      %v4181 = vadd.f32 %v4130, %v4180
      %v4182 = vpop.f32.mrf.mxu0
      %v4183 = vpop.f32.mrf.mxu0
      %4184 = vdwg.mxu0
      %4185 = vmatprep.subr.bf16.mxu0 %v3170
      %4186 = vmatpush1.bf16.msra.mxu0 %v3169
      %4187 = vmatprep.subr.bf16.mxu0 %v3162
      %4188 = vmatpush1.bf16.msra.mxu0 %v3161
      %4189 = vmatprep.subr.bf16.mxu0 %v3154
      %4190 = vmatpush1.bf16.msra.mxu0 %v3153
      %4191 = vmatprep.subr.bf16.mxu0 %v3146
      %4192 = vmatpush1.bf16.msra.mxu0 %v3145
      %4193 = vmatprep.subr.bf16.mxu0 %v3138
      %4194 = vmatpush1.bf16.msra.mxu0 %v3137
      %4195 = vmatprep.subr.bf16.mxu0 %v3130
      %4196 = vmatpush1.bf16.msra.mxu0 %v3129
      %4197 = vmatprep.subr.bf16.mxu0 %v3122
      %4198 = vmatpush1.bf16.msra.mxu0 %v3121
      %4199 = vmatprep.subr.bf16.mxu0 %v3114
      %4200 = vmatpush1.bf16.msra.mxu0 %v3113
      %4201 = vmatprep.subr.bf16.mxu0 %v3234
      %4202 = vmatpush2.bf16.msra.mxu0 %v3233
      %4203 = vmatprep.subr.bf16.mxu0 %v3226
      %4204 = vmatpush2.bf16.msra.mxu0 %v3225
      %4205 = vmatprep.subr.bf16.mxu0 %v3218
      %4206 = vmatpush2.bf16.msra.mxu0 %v3217
      %4207 = vmatprep.subr.bf16.mxu0 %v3210
      %4208 = vmatpush2.bf16.msra.mxu0 %v3209
      %4209 = vmatprep.subr.bf16.mxu0 %v3202
      %4210 = vmatpush2.bf16.msra.mxu0 %v3201
      %4211 = vmatprep.subr.bf16.mxu0 %v3194
      %4212 = vmatpush2.bf16.msra.mxu0 %v3193
      %4213 = vmatprep.subr.bf16.mxu0 %v3186
      %4214 = vmatpush2.bf16.msra.mxu0 %v3185
      %4215 = vmatprep.subr.bf16.mxu0 %v3178
      %4216 = vmatpush2.bf16.msra.mxu0 %v3177
      %4217 = vmatprep.mubr.bf16.mxu0 %v1292
      %4218 = vmatmul.mubr.bf16.gmra.mxu0 %v1291
      %v4219 = vpop.f32.mrf.mxu0
      %v4220 = vadd.f32 %v4169, %v4219
      %v4221 = vpop.f32.mrf.mxu0
      %v4222 = vadd.f32 %v4171, %v4221
      %v4223 = vpop.f32.mrf.mxu0
      %v4224 = vadd.f32 %v4173, %v4223
      %v4225 = vpop.f32.mrf.mxu0
      %v4226 = vadd.f32 %v4175, %v4225
      %4227 = vmatprep.mubr.bf16.mxu0 %v1300
      %4228 = vmatmul.mubr.bf16.gmra.mxu0 %v1299
      %v4229 = vpop.f32.mrf.mxu0
      %v4230 = vadd.f32 %v4179, %v4229
      %v4231 = vpop.f32.mrf.mxu0
      %v4232 = vadd.f32 %v4181, %v4231
      %v4233 = vpop.f32.mrf.mxu0
      %v4234 = vpop.f32.mrf.mxu0
      %4235 = vdwg.mxu0
      %4236 = vmatprep.subr.bf16.mxu0 %v3298
      %4237 = vmatpush1.bf16.msra.mxu0 %v3297
      %4238 = vmatprep.subr.bf16.mxu0 %v3290
      %4239 = vmatpush1.bf16.msra.mxu0 %v3289
      %4240 = vmatprep.subr.bf16.mxu0 %v3282
      %4241 = vmatpush1.bf16.msra.mxu0 %v3281
      %4242 = vmatprep.subr.bf16.mxu0 %v3274
      %4243 = vmatpush1.bf16.msra.mxu0 %v3273
      %4244 = vmatprep.subr.bf16.mxu0 %v3266
      %4245 = vmatpush1.bf16.msra.mxu0 %v3265
      %4246 = vmatprep.subr.bf16.mxu0 %v3258
      %4247 = vmatpush1.bf16.msra.mxu0 %v3257
      %4248 = vmatprep.subr.bf16.mxu0 %v3250
      %4249 = vmatpush1.bf16.msra.mxu0 %v3249
      %4250 = vmatprep.subr.bf16.mxu0 %v3242
      %4251 = vmatpush1.bf16.msra.mxu0 %v3241
      %4252 = vmatprep.subr.bf16.mxu0 %v3362
      %4253 = vmatpush2.bf16.msra.mxu0 %v3361
      %4254 = vmatprep.subr.bf16.mxu0 %v3354
      %4255 = vmatpush2.bf16.msra.mxu0 %v3353
      %4256 = vmatprep.subr.bf16.mxu0 %v3346
      %4257 = vmatpush2.bf16.msra.mxu0 %v3345
      %4258 = vmatprep.subr.bf16.mxu0 %v3338
      %4259 = vmatpush2.bf16.msra.mxu0 %v3337
      %4260 = vmatprep.subr.bf16.mxu0 %v3330
      %4261 = vmatpush2.bf16.msra.mxu0 %v3329
      %4262 = vmatprep.subr.bf16.mxu0 %v3322
      %4263 = vmatpush2.bf16.msra.mxu0 %v3321
      %4264 = vmatprep.subr.bf16.mxu0 %v3314
      %4265 = vmatpush2.bf16.msra.mxu0 %v3313
      %4266 = vmatprep.subr.bf16.mxu0 %v3306
      %4267 = vmatpush2.bf16.msra.mxu0 %v3305
      %4268 = vmatprep.mubr.bf16.mxu0 %v1294
      %4269 = vmatmul.mubr.bf16.gmra.mxu0 %v1293
      %v4270 = vpop.f32.mrf.mxu0
      %v4271 = vadd.f32 %v4220, %v4270
      %v4272 = vpop.f32.mrf.mxu0
      %v4273 = vadd.f32 %v4222, %v4272
      %v4274 = vpop.f32.mrf.mxu0
      %v4275 = vadd.f32 %v4224, %v4274
      %v4276 = vpop.f32.mrf.mxu0
      %v4277 = vadd.f32 %v4226, %v4276
      %4278 = vmatprep.mubr.bf16.mxu0 %v1302
      %4279 = vmatmul.mubr.bf16.gmra.mxu0 %v1301
      %v4280 = vpop.f32.mrf.mxu0
      %v4281 = vadd.f32 %v4230, %v4280
      %v4282 = vpop.f32.mrf.mxu0
      %v4283 = vadd.f32 %v4232, %v4282
      %v4284 = vpop.f32.mrf.mxu0
      %v4285 = vpop.f32.mrf.mxu0
      %4286 = vdwg.mxu0
      %4287 = vmatprep.subr.bf16.mxu0 %v2916
      %4288 = vmatpush1.bf16.msra.mxu0 %v2915
      %4289 = vmatprep.subr.bf16.mxu0 %v2908
      %4290 = vmatpush1.bf16.msra.mxu0 %v2907
      %4291 = vmatprep.subr.bf16.mxu0 %v2900
      %4292 = vmatpush1.bf16.msra.mxu0 %v2899
      %4293 = vmatprep.subr.bf16.mxu0 %v2892
      %4294 = vmatpush1.bf16.msra.mxu0 %v2891
      %4295 = vmatprep.subr.bf16.mxu0 %v2884
      %4296 = vmatpush1.bf16.msra.mxu0 %v2883
      %4297 = vmatprep.subr.bf16.mxu0 %v2876
      %4298 = vmatpush1.bf16.msra.mxu0 %v2875
      %4299 = vmatprep.subr.bf16.mxu0 %v2868
      %4300 = vmatpush1.bf16.msra.mxu0 %v2867
      %4301 = vmatprep.subr.bf16.mxu0 %v2860
      %4302 = vmatpush1.bf16.msra.mxu0 %v2859
      %4303 = vmatprep.subr.bf16.mxu0 %v2980
      %4304 = vmatpush2.bf16.msra.mxu0 %v2979
      %4305 = vmatprep.subr.bf16.mxu0 %v2972
      %4306 = vmatpush2.bf16.msra.mxu0 %v2971
      %4307 = vmatprep.subr.bf16.mxu0 %v2964
      %4308 = vmatpush2.bf16.msra.mxu0 %v2963
      %4309 = vmatprep.subr.bf16.mxu0 %v2956
      %4310 = vmatpush2.bf16.msra.mxu0 %v2955
      %4311 = vmatprep.subr.bf16.mxu0 %v2948
      %4312 = vmatpush2.bf16.msra.mxu0 %v2947
      %4313 = vmatprep.subr.bf16.mxu0 %v2940
      %4314 = vmatpush2.bf16.msra.mxu0 %v2939
      %4315 = vmatprep.subr.bf16.mxu0 %v2932
      %4316 = vmatpush2.bf16.msra.mxu0 %v2931
      %4317 = vmatprep.subr.bf16.mxu0 %v2924
      %4318 = vmatpush2.bf16.msra.mxu0 %v2923
      %4319 = vmatprep.mubr.bf16.mxu0 %v1288
      %4320 = vmatmul.mubr.bf16.gmra.mxu0 %v1287
      %v4321 = vpop.f32.mrf.mxu0
      %v4322 = vadd.f32 0.0, %v4321
      %v4323 = vpop.f32.mrf.mxu0
      %v4324 = vadd.f32 0.0, %v4323
      %v4325 = vpop.f32.mrf.mxu0
      %v4326 = vadd.f32 0.0, %v4325
      %v4327 = vpop.f32.mrf.mxu0
      %v4328 = vadd.f32 0.0, %v4327
      %4329 = vmatprep.mubr.bf16.mxu0 %v1296
      %4330 = vmatmul.mubr.bf16.gmra.mxu0 %v1295
      %v4331 = vpop.f32.mrf.mxu0
      %v4332 = vadd.f32 0.0, %v4331
      %v4333 = vpop.f32.mrf.mxu0
      %v4334 = vadd.f32 0.0, %v4333
      %v4335 = vpop.f32.mrf.mxu0
      %v4336 = vpop.f32.mrf.mxu0
      %4337 = vdwg.mxu0
      %4338 = vmatprep.subr.bf16.mxu0 %v3044
      %4339 = vmatpush1.bf16.msra.mxu0 %v3043
      %4340 = vmatprep.subr.bf16.mxu0 %v3036
      %4341 = vmatpush1.bf16.msra.mxu0 %v3035
      %4342 = vmatprep.subr.bf16.mxu0 %v3028
      %4343 = vmatpush1.bf16.msra.mxu0 %v3027
      %4344 = vmatprep.subr.bf16.mxu0 %v3020
      %4345 = vmatpush1.bf16.msra.mxu0 %v3019
      %4346 = vmatprep.subr.bf16.mxu0 %v3012
      %4347 = vmatpush1.bf16.msra.mxu0 %v3011
      %4348 = vmatprep.subr.bf16.mxu0 %v3004
      %4349 = vmatpush1.bf16.msra.mxu0 %v3003
      %4350 = vmatprep.subr.bf16.mxu0 %v2996
      %4351 = vmatpush1.bf16.msra.mxu0 %v2995
      %4352 = vmatprep.subr.bf16.mxu0 %v2988
      %4353 = vmatpush1.bf16.msra.mxu0 %v2987
      %4354 = vmatprep.subr.bf16.mxu0 %v3108
      %4355 = vmatpush2.bf16.msra.mxu0 %v3107
      %4356 = vmatprep.subr.bf16.mxu0 %v3100
      %4357 = vmatpush2.bf16.msra.mxu0 %v3099
      %4358 = vmatprep.subr.bf16.mxu0 %v3092
      %4359 = vmatpush2.bf16.msra.mxu0 %v3091
      %4360 = vmatprep.subr.bf16.mxu0 %v3084
      %4361 = vmatpush2.bf16.msra.mxu0 %v3083
      %4362 = vmatprep.subr.bf16.mxu0 %v3076
      %4363 = vmatpush2.bf16.msra.mxu0 %v3075
      %4364 = vmatprep.subr.bf16.mxu0 %v3068
      %4365 = vmatpush2.bf16.msra.mxu0 %v3067
      %4366 = vmatprep.subr.bf16.mxu0 %v3060
      %4367 = vmatpush2.bf16.msra.mxu0 %v3059
      %4368 = vmatprep.subr.bf16.mxu0 %v3052
      %4369 = vmatpush2.bf16.msra.mxu0 %v3051
      %4370 = vmatprep.mubr.bf16.mxu0 %v1290
      %4371 = vmatmul.mubr.bf16.gmra.mxu0 %v1289
      %v4372 = vpop.f32.mrf.mxu0
      %v4373 = vadd.f32 %v4322, %v4372
      %v4374 = vpop.f32.mrf.mxu0
      %v4375 = vadd.f32 %v4324, %v4374
      %v4376 = vpop.f32.mrf.mxu0
      %v4377 = vadd.f32 %v4326, %v4376
      %v4378 = vpop.f32.mrf.mxu0
      %v4379 = vadd.f32 %v4328, %v4378
      %4380 = vmatprep.mubr.bf16.mxu0 %v1298
      %4381 = vmatmul.mubr.bf16.gmra.mxu0 %v1297
      %v4382 = vpop.f32.mrf.mxu0
      %v4383 = vadd.f32 %v4332, %v4382
      %v4384 = vpop.f32.mrf.mxu0
      %v4385 = vadd.f32 %v4334, %v4384
      %v4386 = vpop.f32.mrf.mxu0
      %v4387 = vpop.f32.mrf.mxu0
      %4388 = vdwg.mxu0
      %4389 = vmatprep.subr.bf16.mxu0 %v3172
      %4390 = vmatpush1.bf16.msra.mxu0 %v3171
      %4391 = vmatprep.subr.bf16.mxu0 %v3164
      %4392 = vmatpush1.bf16.msra.mxu0 %v3163
      %4393 = vmatprep.subr.bf16.mxu0 %v3156
      %4394 = vmatpush1.bf16.msra.mxu0 %v3155
      %4395 = vmatprep.subr.bf16.mxu0 %v3148
      %4396 = vmatpush1.bf16.msra.mxu0 %v3147
      %4397 = vmatprep.subr.bf16.mxu0 %v3140
      %4398 = vmatpush1.bf16.msra.mxu0 %v3139
      %4399 = vmatprep.subr.bf16.mxu0 %v3132
      %4400 = vmatpush1.bf16.msra.mxu0 %v3131
      %4401 = vmatprep.subr.bf16.mxu0 %v3124
      %4402 = vmatpush1.bf16.msra.mxu0 %v3123
      %4403 = vmatprep.subr.bf16.mxu0 %v3116
      %4404 = vmatpush1.bf16.msra.mxu0 %v3115
      %4405 = vmatprep.subr.bf16.mxu0 %v3236
      %4406 = vmatpush2.bf16.msra.mxu0 %v3235
      %4407 = vmatprep.subr.bf16.mxu0 %v3228
      %4408 = vmatpush2.bf16.msra.mxu0 %v3227
      %4409 = vmatprep.subr.bf16.mxu0 %v3220
      %4410 = vmatpush2.bf16.msra.mxu0 %v3219
      %4411 = vmatprep.subr.bf16.mxu0 %v3212
      %4412 = vmatpush2.bf16.msra.mxu0 %v3211
      %4413 = vmatprep.subr.bf16.mxu0 %v3204
      %4414 = vmatpush2.bf16.msra.mxu0 %v3203
      %4415 = vmatprep.subr.bf16.mxu0 %v3196
      %4416 = vmatpush2.bf16.msra.mxu0 %v3195
      %4417 = vmatprep.subr.bf16.mxu0 %v3188
      %4418 = vmatpush2.bf16.msra.mxu0 %v3187
      %4419 = vmatprep.subr.bf16.mxu0 %v3180
      %4420 = vmatpush2.bf16.msra.mxu0 %v3179
      %4421 = vmatprep.mubr.bf16.mxu0 %v1292
      %4422 = vmatmul.mubr.bf16.gmra.mxu0 %v1291
      %v4423 = vpop.f32.mrf.mxu0
      %v4424 = vadd.f32 %v4373, %v4423
      %v4425 = vpop.f32.mrf.mxu0
      %v4426 = vadd.f32 %v4375, %v4425
      %v4427 = vpop.f32.mrf.mxu0
      %v4428 = vadd.f32 %v4377, %v4427
      %v4429 = vpop.f32.mrf.mxu0
      %v4430 = vadd.f32 %v4379, %v4429
      %4431 = vmatprep.mubr.bf16.mxu0 %v1300
      %4432 = vmatmul.mubr.bf16.gmra.mxu0 %v1299
      %v4433 = vpop.f32.mrf.mxu0
      %v4434 = vadd.f32 %v4383, %v4433
      %v4435 = vpop.f32.mrf.mxu0
      %v4436 = vadd.f32 %v4385, %v4435
      %v4437 = vpop.f32.mrf.mxu0
      %v4438 = vpop.f32.mrf.mxu0
      %4439 = vdwg.mxu0
      %4440 = vmatprep.subr.bf16.mxu0 %v3300
      %4441 = vmatpush1.bf16.msra.mxu0 %v3299
      %4442 = vmatprep.subr.bf16.mxu0 %v3292
      %4443 = vmatpush1.bf16.msra.mxu0 %v3291
      %4444 = vmatprep.subr.bf16.mxu0 %v3284
      %4445 = vmatpush1.bf16.msra.mxu0 %v3283
      %4446 = vmatprep.subr.bf16.mxu0 %v3276
      %4447 = vmatpush1.bf16.msra.mxu0 %v3275
      %4448 = vmatprep.subr.bf16.mxu0 %v3268
      %4449 = vmatpush1.bf16.msra.mxu0 %v3267
      %4450 = vmatprep.subr.bf16.mxu0 %v3260
      %4451 = vmatpush1.bf16.msra.mxu0 %v3259
      %4452 = vmatprep.subr.bf16.mxu0 %v3252
      %4453 = vmatpush1.bf16.msra.mxu0 %v3251
      %4454 = vmatprep.subr.bf16.mxu0 %v3244
      %4455 = vmatpush1.bf16.msra.mxu0 %v3243
      %4456 = vmatprep.subr.bf16.mxu0 %v3364
      %4457 = vmatpush2.bf16.msra.mxu0 %v3363
      %4458 = vmatprep.subr.bf16.mxu0 %v3356
      %4459 = vmatpush2.bf16.msra.mxu0 %v3355
      %4460 = vmatprep.subr.bf16.mxu0 %v3348
      %4461 = vmatpush2.bf16.msra.mxu0 %v3347
      %4462 = vmatprep.subr.bf16.mxu0 %v3340
      %4463 = vmatpush2.bf16.msra.mxu0 %v3339
      %4464 = vmatprep.subr.bf16.mxu0 %v3332
      %4465 = vmatpush2.bf16.msra.mxu0 %v3331
      %4466 = vmatprep.subr.bf16.mxu0 %v3324
      %4467 = vmatpush2.bf16.msra.mxu0 %v3323
      %4468 = vmatprep.subr.bf16.mxu0 %v3316
      %4469 = vmatpush2.bf16.msra.mxu0 %v3315
      %4470 = vmatprep.subr.bf16.mxu0 %v3308
      %4471 = vmatpush2.bf16.msra.mxu0 %v3307
      %4472 = vmatprep.mubr.bf16.mxu0 %v1294
      %4473 = vmatmul.mubr.bf16.gmra.mxu0 %v1293
      %v4474 = vpop.f32.mrf.mxu0
      %v4475 = vadd.f32 %v4424, %v4474
      %v4476 = vpop.f32.mrf.mxu0
      %v4477 = vadd.f32 %v4426, %v4476
      %v4478 = vpop.f32.mrf.mxu0
      %v4479 = vadd.f32 %v4428, %v4478
      %v4480 = vpop.f32.mrf.mxu0
      %v4481 = vadd.f32 %v4430, %v4480
      %4482 = vmatprep.mubr.bf16.mxu0 %v1302
      %4483 = vmatmul.mubr.bf16.gmra.mxu0 %v1301
      %v4484 = vpop.f32.mrf.mxu0
      %v4485 = vadd.f32 %v4434, %v4484
      %v4486 = vpop.f32.mrf.mxu0
      %v4487 = vadd.f32 %v4436, %v4486
      %v4488 = vpop.f32.mrf.mxu0
      %v4489 = vpop.f32.mrf.mxu0
      %4490 = vdwg.mxu0
      %4491 = vmatprep.subr.bf16.mxu0 %v2918
      %4492 = vmatpush1.bf16.msra.mxu0 %v2917
      %4493 = vmatprep.subr.bf16.mxu0 %v2910
      %4494 = vmatpush1.bf16.msra.mxu0 %v2909
      %4495 = vmatprep.subr.bf16.mxu0 %v2902
      %4496 = vmatpush1.bf16.msra.mxu0 %v2901
      %4497 = vmatprep.subr.bf16.mxu0 %v2894
      %4498 = vmatpush1.bf16.msra.mxu0 %v2893
      %4499 = vmatprep.subr.bf16.mxu0 %v2886
      %4500 = vmatpush1.bf16.msra.mxu0 %v2885
      %4501 = vmatprep.subr.bf16.mxu0 %v2878
      %4502 = vmatpush1.bf16.msra.mxu0 %v2877
      %4503 = vmatprep.subr.bf16.mxu0 %v2870
      %4504 = vmatpush1.bf16.msra.mxu0 %v2869
      %4505 = vmatprep.subr.bf16.mxu0 %v2862
      %4506 = vmatpush1.bf16.msra.mxu0 %v2861
      %4507 = vmatprep.subr.bf16.mxu0 %v2982
      %4508 = vmatpush2.bf16.msra.mxu0 %v2981
      %4509 = vmatprep.subr.bf16.mxu0 %v2974
      %4510 = vmatpush2.bf16.msra.mxu0 %v2973
      %4511 = vmatprep.subr.bf16.mxu0 %v2966
      %4512 = vmatpush2.bf16.msra.mxu0 %v2965
      %4513 = vmatprep.subr.bf16.mxu0 %v2958
      %4514 = vmatpush2.bf16.msra.mxu0 %v2957
      %4515 = vmatprep.subr.bf16.mxu0 %v2950
      %4516 = vmatpush2.bf16.msra.mxu0 %v2949
      %4517 = vmatprep.subr.bf16.mxu0 %v2942
      %4518 = vmatpush2.bf16.msra.mxu0 %v2941
      %4519 = vmatprep.subr.bf16.mxu0 %v2934
      %4520 = vmatpush2.bf16.msra.mxu0 %v2933
      %4521 = vmatprep.subr.bf16.mxu0 %v2926
      %4522 = vmatpush2.bf16.msra.mxu0 %v2925
      %4523 = vmatprep.mubr.bf16.mxu0 %v1288
      %4524 = vmatmul.mubr.bf16.gmra.mxu0 %v1287
      %v4525 = vpop.f32.mrf.mxu0
      %v4526 = vadd.f32 0.0, %v4525
      %v4527 = vpop.f32.mrf.mxu0
      %v4528 = vadd.f32 0.0, %v4527
      %v4529 = vpop.f32.mrf.mxu0
      %v4530 = vadd.f32 0.0, %v4529
      %v4531 = vpop.f32.mrf.mxu0
      %v4532 = vadd.f32 0.0, %v4531
      %4533 = vmatprep.mubr.bf16.mxu0 %v1296
      %4534 = vmatmul.mubr.bf16.gmra.mxu0 %v1295
      %v4535 = vpop.f32.mrf.mxu0
      %v4536 = vadd.f32 0.0, %v4535
      %v4537 = vpop.f32.mrf.mxu0
      %v4538 = vadd.f32 0.0, %v4537
      %v4539 = vpop.f32.mrf.mxu0
      %v4540 = vpop.f32.mrf.mxu0
      %4541 = vdwg.mxu0
      %4542 = vmatprep.subr.bf16.mxu0 %v3046
      %4543 = vmatpush1.bf16.msra.mxu0 %v3045
      %4544 = vmatprep.subr.bf16.mxu0 %v3038
      %4545 = vmatpush1.bf16.msra.mxu0 %v3037
      %4546 = vmatprep.subr.bf16.mxu0 %v3030
      %4547 = vmatpush1.bf16.msra.mxu0 %v3029
      %4548 = vmatprep.subr.bf16.mxu0 %v3022
      %4549 = vmatpush1.bf16.msra.mxu0 %v3021
      %4550 = vmatprep.subr.bf16.mxu0 %v3014
      %4551 = vmatpush1.bf16.msra.mxu0 %v3013
      %4552 = vmatprep.subr.bf16.mxu0 %v3006
      %4553 = vmatpush1.bf16.msra.mxu0 %v3005
      %4554 = vmatprep.subr.bf16.mxu0 %v2998
      %4555 = vmatpush1.bf16.msra.mxu0 %v2997
      %4556 = vmatprep.subr.bf16.mxu0 %v2990
      %4557 = vmatpush1.bf16.msra.mxu0 %v2989
      %4558 = vmatprep.subr.bf16.mxu0 %v3110
      %4559 = vmatpush2.bf16.msra.mxu0 %v3109
      %4560 = vmatprep.subr.bf16.mxu0 %v3102
      %4561 = vmatpush2.bf16.msra.mxu0 %v3101
      %4562 = vmatprep.subr.bf16.mxu0 %v3094
      %4563 = vmatpush2.bf16.msra.mxu0 %v3093
      %4564 = vmatprep.subr.bf16.mxu0 %v3086
      %4565 = vmatpush2.bf16.msra.mxu0 %v3085
      %4566 = vmatprep.subr.bf16.mxu0 %v3078
      %4567 = vmatpush2.bf16.msra.mxu0 %v3077
      %4568 = vmatprep.subr.bf16.mxu0 %v3070
      %4569 = vmatpush2.bf16.msra.mxu0 %v3069
      %4570 = vmatprep.subr.bf16.mxu0 %v3062
      %4571 = vmatpush2.bf16.msra.mxu0 %v3061
      %4572 = vmatprep.subr.bf16.mxu0 %v3054
      %4573 = vmatpush2.bf16.msra.mxu0 %v3053
      %4574 = vmatprep.mubr.bf16.mxu0 %v1290
      %4575 = vmatmul.mubr.bf16.gmra.mxu0 %v1289
      %v4576 = vpop.f32.mrf.mxu0
      %v4577 = vadd.f32 %v4526, %v4576
      %v4578 = vpop.f32.mrf.mxu0
      %v4579 = vadd.f32 %v4528, %v4578
      %v4580 = vpop.f32.mrf.mxu0
      %v4581 = vadd.f32 %v4530, %v4580
      %v4582 = vpop.f32.mrf.mxu0
      %v4583 = vadd.f32 %v4532, %v4582
      %4584 = vmatprep.mubr.bf16.mxu0 %v1298
      %4585 = vmatmul.mubr.bf16.gmra.mxu0 %v1297
      %v4586 = vpop.f32.mrf.mxu0
      %v4587 = vadd.f32 %v4536, %v4586
      %v4588 = vpop.f32.mrf.mxu0
      %v4589 = vadd.f32 %v4538, %v4588
      %v4590 = vpop.f32.mrf.mxu0
      %v4591 = vpop.f32.mrf.mxu0
      %4592 = vdwg.mxu0
      %4593 = vmatprep.subr.bf16.mxu0 %v3174
      %4594 = vmatpush1.bf16.msra.mxu0 %v3173
      %4595 = vmatprep.subr.bf16.mxu0 %v3166
      %4596 = vmatpush1.bf16.msra.mxu0 %v3165
      %4597 = vmatprep.subr.bf16.mxu0 %v3158
      %4598 = vmatpush1.bf16.msra.mxu0 %v3157
      %4599 = vmatprep.subr.bf16.mxu0 %v3150
      %4600 = vmatpush1.bf16.msra.mxu0 %v3149
      %4601 = vmatprep.subr.bf16.mxu0 %v3142
      %4602 = vmatpush1.bf16.msra.mxu0 %v3141
      %4603 = vmatprep.subr.bf16.mxu0 %v3134
      %4604 = vmatpush1.bf16.msra.mxu0 %v3133
      %4605 = vmatprep.subr.bf16.mxu0 %v3126
      %4606 = vmatpush1.bf16.msra.mxu0 %v3125
      %4607 = vmatprep.subr.bf16.mxu0 %v3118
      %4608 = vmatpush1.bf16.msra.mxu0 %v3117
      %4609 = vmatprep.subr.bf16.mxu0 %v3238
      %4610 = vmatpush2.bf16.msra.mxu0 %v3237
      %4611 = vmatprep.subr.bf16.mxu0 %v3230
      %4612 = vmatpush2.bf16.msra.mxu0 %v3229
      %4613 = vmatprep.subr.bf16.mxu0 %v3222
      %4614 = vmatpush2.bf16.msra.mxu0 %v3221
      %4615 = vmatprep.subr.bf16.mxu0 %v3214
      %4616 = vmatpush2.bf16.msra.mxu0 %v3213
      %4617 = vmatprep.subr.bf16.mxu0 %v3206
      %4618 = vmatpush2.bf16.msra.mxu0 %v3205
      %4619 = vmatprep.subr.bf16.mxu0 %v3198
      %4620 = vmatpush2.bf16.msra.mxu0 %v3197
      %4621 = vmatprep.subr.bf16.mxu0 %v3190
      %4622 = vmatpush2.bf16.msra.mxu0 %v3189
      %4623 = vmatprep.subr.bf16.mxu0 %v3182
      %4624 = vmatpush2.bf16.msra.mxu0 %v3181
      %4625 = vmatprep.mubr.bf16.mxu0 %v1292
      %4626 = vmatmul.mubr.bf16.gmra.mxu0 %v1291
      %v4627 = vpop.f32.mrf.mxu0
      %v4628 = vadd.f32 %v4577, %v4627
      %v4629 = vpop.f32.mrf.mxu0
      %v4630 = vadd.f32 %v4579, %v4629
      %v4631 = vpop.f32.mrf.mxu0
      %v4632 = vadd.f32 %v4581, %v4631
      %v4633 = vpop.f32.mrf.mxu0
      %v4634 = vadd.f32 %v4583, %v4633
      %4635 = vmatprep.mubr.bf16.mxu0 %v1300
      %4636 = vmatmul.mubr.bf16.gmra.mxu0 %v1299
      %v4637 = vpop.f32.mrf.mxu0
      %v4638 = vadd.f32 %v4587, %v4637
      %v4639 = vpop.f32.mrf.mxu0
      %v4640 = vadd.f32 %v4589, %v4639
      %v4641 = vpop.f32.mrf.mxu0
      %v4642 = vpop.f32.mrf.mxu0
      %4643 = vdwg.mxu0
      %4644 = vmatprep.subr.bf16.mxu0 %v3302
      %4645 = vmatpush1.bf16.msra.mxu0 %v3301
      %4646 = vmatprep.subr.bf16.mxu0 %v3294
      %4647 = vmatpush1.bf16.msra.mxu0 %v3293
      %4648 = vmatprep.subr.bf16.mxu0 %v3286
      %4649 = vmatpush1.bf16.msra.mxu0 %v3285
      %4650 = vmatprep.subr.bf16.mxu0 %v3278
      %4651 = vmatpush1.bf16.msra.mxu0 %v3277
      %4652 = vmatprep.subr.bf16.mxu0 %v3270
      %4653 = vmatpush1.bf16.msra.mxu0 %v3269
      %4654 = vmatprep.subr.bf16.mxu0 %v3262
      %4655 = vmatpush1.bf16.msra.mxu0 %v3261
      %4656 = vmatprep.subr.bf16.mxu0 %v3254
      %4657 = vmatpush1.bf16.msra.mxu0 %v3253
      %4658 = vmatprep.subr.bf16.mxu0 %v3246
      %4659 = vmatpush1.bf16.msra.mxu0 %v3245
      %4660 = vmatprep.subr.bf16.mxu0 %v3366
      %4661 = vmatpush2.bf16.msra.mxu0 %v3365
      %4662 = vmatprep.subr.bf16.mxu0 %v3358
      %4663 = vmatpush2.bf16.msra.mxu0 %v3357
      %4664 = vmatprep.subr.bf16.mxu0 %v3350
      %4665 = vmatpush2.bf16.msra.mxu0 %v3349
      %4666 = vmatprep.subr.bf16.mxu0 %v3342
      %4667 = vmatpush2.bf16.msra.mxu0 %v3341
      %4668 = vmatprep.subr.bf16.mxu0 %v3334
      %4669 = vmatpush2.bf16.msra.mxu0 %v3333
      %4670 = vmatprep.subr.bf16.mxu0 %v3326
      %4671 = vmatpush2.bf16.msra.mxu0 %v3325
      %4672 = vmatprep.subr.bf16.mxu0 %v3318
      %4673 = vmatpush2.bf16.msra.mxu0 %v3317
      %4674 = vmatprep.subr.bf16.mxu0 %v3310
      %4675 = vmatpush2.bf16.msra.mxu0 %v3309
      %4676 = vmatprep.mubr.bf16.mxu0 %v1294
      %4677 = vmatmul.mubr.bf16.gmra.mxu0 %v1293
      %v4678 = vpop.f32.mrf.mxu0
      %v4679 = vadd.f32 %v4628, %v4678
      %v4680 = vpop.f32.mrf.mxu0
      %v4681 = vadd.f32 %v4630, %v4680
      %v4682 = vpop.f32.mrf.mxu0
      %v4683 = vadd.f32 %v4632, %v4682
      %v4684 = vpop.f32.mrf.mxu0
      %v4685 = vadd.f32 %v4634, %v4684
      %4686 = vmatprep.mubr.bf16.mxu0 %v1302
      %4687 = vmatmul.mubr.bf16.gmra.mxu0 %v1301
      %v4688 = vpop.f32.mrf.mxu0
      %v4689 = vadd.f32 %v4638, %v4688
      %v4690 = vpop.f32.mrf.mxu0
      %v4691 = vadd.f32 %v4640, %v4690
      %v4692 = vpop.f32.mrf.mxu0
      %v4693 = vpop.f32.mrf.mxu0
      %4694 = vdwg.mxu0
      %v5207 = vunpack.c.l.b16 %v227
      %v5208 = vunpack.c.h.b16 %v227
      %v5209 = vunpack.c.l.b16 %v228
      %v5210 = vunpack.c.h.b16 %v228
      %v5211 = vunpack.c.l.b16 %v229
      %v5212 = vunpack.c.h.b16 %v229
      %v5213 = vunpack.c.l.b16 %v230
      %v5214 = vunpack.c.h.b16 %v230
      %v5215 = vunpack.c.l.b16 %v231
      %v5216 = vunpack.c.h.b16 %v231
      %v5217 = vunpack.c.l.b16 %v232
      %v5218 = vunpack.c.h.b16 %v232
      %v5219 = vunpack.c.l.b16 %v233
      %v5220 = vunpack.c.h.b16 %v233
      %v5221 = vunpack.c.l.b16 %v234
      %v5222 = vunpack.c.h.b16 %v234
      %v5223 = vunpack.c.l.b16 %v235
      %v5224 = vunpack.c.h.b16 %v235
      %v5225 = vunpack.c.l.b16 %v236
      %v5226 = vunpack.c.h.b16 %v236
      %v5227 = vunpack.c.l.b16 %v237
      %v5228 = vunpack.c.h.b16 %v237
      %v5229 = vunpack.c.l.b16 %v238
      %v5230 = vunpack.c.h.b16 %v238
      %v5231 = vunpack.c.l.b16 %v239
      %v5232 = vunpack.c.h.b16 %v239
      %v5233 = vunpack.c.l.b16 %v240
      %v5234 = vunpack.c.h.b16 %v240
      %v5235 = vunpack.c.l.b16 %v241
      %v5236 = vunpack.c.h.b16 %v241
      %v5237 = vunpack.c.l.b16 %v242
      %v5238 = vunpack.c.h.b16 %v242
      %v5239 = vunpack.c.l.b16 %v243
      %v5240 = vunpack.c.h.b16 %v243
      %v5241 = vunpack.c.l.b16 %v244
      %v5242 = vunpack.c.h.b16 %v244
      %v5243 = vunpack.c.l.b16 %v245
      %v5244 = vunpack.c.h.b16 %v245
      %v5245 = vunpack.c.l.b16 %v246
      %v5246 = vunpack.c.h.b16 %v246
      %v5247 = vunpack.c.l.b16 %v247
      %v5248 = vunpack.c.h.b16 %v247
      %v5249 = vunpack.c.l.b16 %v248
      %v5250 = vunpack.c.h.b16 %v248
      %v5251 = vunpack.c.l.b16 %v249
      %v5252 = vunpack.c.h.b16 %v249
      %v5253 = vunpack.c.l.b16 %v250
      %v5254 = vunpack.c.h.b16 %v250
      %v5255 = vunpack.c.l.b16 %v251
      %v5256 = vunpack.c.h.b16 %v251
      %v5257 = vunpack.c.l.b16 %v252
      %v5258 = vunpack.c.h.b16 %v252
      %v5259 = vunpack.c.l.b16 %v253
      %v5260 = vunpack.c.h.b16 %v253
      %v5261 = vunpack.c.l.b16 %v254
      %v5262 = vunpack.c.h.b16 %v254
      %v5263 = vunpack.c.l.b16 %v255
      %v5264 = vunpack.c.h.b16 %v255
      %v5265 = vunpack.c.l.b16 %v256
      %v5266 = vunpack.c.h.b16 %v256
      %v5267 = vunpack.c.l.b16 %v257
      %v5268 = vunpack.c.h.b16 %v257
      %v5269 = vunpack.c.l.b16 %v258
      %v5270 = vunpack.c.h.b16 %v258
      %v5271 = vunpack.c.l.b16 %v259
      %v5272 = vunpack.c.h.b16 %v259
      %v5273 = vunpack.c.l.b16 %v260
      %v5274 = vunpack.c.h.b16 %v260
      %v5275 = vunpack.c.l.b16 %v261
      %v5276 = vunpack.c.h.b16 %v261
      %v5277 = vunpack.c.l.b16 %v262
      %v5278 = vunpack.c.h.b16 %v262
      %v5279 = vunpack.c.l.b16 %v263
      %v5280 = vunpack.c.h.b16 %v263
      %v5281 = vunpack.c.l.b16 %v264
      %v5282 = vunpack.c.h.b16 %v264
      %v5283 = vunpack.c.l.b16 %v265
      %v5284 = vunpack.c.h.b16 %v265
      %v5285 = vunpack.c.l.b16 %v266
      %v5286 = vunpack.c.h.b16 %v266
      %v5287 = vunpack.c.l.b16 %v267
      %v5288 = vunpack.c.h.b16 %v267
      %v5289 = vunpack.c.l.b16 %v268
      %v5290 = vunpack.c.h.b16 %v268
      %v5291 = vunpack.c.l.b16 %v269
      %v5292 = vunpack.c.h.b16 %v269
      %v5293 = vunpack.c.l.b16 %v270
      %v5294 = vunpack.c.h.b16 %v270
      %v5295 = vunpack.c.l.b16 %v271
      %v5296 = vunpack.c.h.b16 %v271
      %v5297 = vunpack.c.l.b16 %v272
      %v5298 = vunpack.c.h.b16 %v272
      %v5299 = vunpack.c.l.b16 %v273
      %v5300 = vunpack.c.h.b16 %v273
      %v5301 = vunpack.c.l.b16 %v274
      %v5302 = vunpack.c.h.b16 %v274
      %v5303 = vunpack.c.l.b16 %v275
      %v5304 = vunpack.c.h.b16 %v275
      %v5305 = vunpack.c.l.b16 %v276
      %v5306 = vunpack.c.h.b16 %v276
      %v5307 = vunpack.c.l.b16 %v277
      %v5308 = vunpack.c.h.b16 %v277
      %v5309 = vunpack.c.l.b16 %v278
      %v5310 = vunpack.c.h.b16 %v278
      %v5311 = vunpack.c.l.b16 %v279
      %v5312 = vunpack.c.h.b16 %v279
      %v5313 = vunpack.c.l.b16 %v280
      %v5314 = vunpack.c.h.b16 %v280
      %v5315 = vunpack.c.l.b16 %v281
      %v5316 = vunpack.c.h.b16 %v281
      %v5317 = vunpack.c.l.b16 %v282
      %v5318 = vunpack.c.h.b16 %v282
      %v5319 = vunpack.c.l.b16 %v283
      %v5320 = vunpack.c.h.b16 %v283
      %v5321 = vunpack.c.l.b16 %v284
      %v5322 = vunpack.c.h.b16 %v284
      %v5323 = vunpack.c.l.b16 %v285
      %v5324 = vunpack.c.h.b16 %v285
      %v5325 = vunpack.c.l.b16 %v286
      %v5326 = vunpack.c.h.b16 %v286
      %v5327 = vunpack.c.l.b16 %v287
      %v5328 = vunpack.c.h.b16 %v287
      %v5329 = vunpack.c.l.b16 %v288
      %v5330 = vunpack.c.h.b16 %v288
      %v5331 = vunpack.c.l.b16 %v289
      %v5332 = vunpack.c.h.b16 %v289
      %v5333 = vunpack.c.l.b16 %v290
      %v5334 = vunpack.c.h.b16 %v290
      %v5335 = vunpack.c.l.b16 %v291
      %v5336 = vunpack.c.h.b16 %v291
      %v5337 = vunpack.c.l.b16 %v292
      %v5338 = vunpack.c.h.b16 %v292
      %v5339 = vunpack.c.l.b16 %v293
      %v5340 = vunpack.c.h.b16 %v293
      %v5341 = vunpack.c.l.b16 %v294
      %v5342 = vunpack.c.h.b16 %v294
      %v5343 = vunpack.c.l.b16 %v295
      %v5344 = vunpack.c.h.b16 %v295
      %v5345 = vunpack.c.l.b16 %v296
      %v5346 = vunpack.c.h.b16 %v296
      %v5347 = vunpack.c.l.b16 %v297
      %v5348 = vunpack.c.h.b16 %v297
      %v5349 = vunpack.c.l.b16 %v298
      %v5350 = vunpack.c.h.b16 %v298
      %v5351 = vunpack.c.l.b16 %v299
      %v5352 = vunpack.c.h.b16 %v299
      %v5353 = vunpack.c.l.b16 %v300
      %v5354 = vunpack.c.h.b16 %v300
      %v5355 = vunpack.c.l.b16 %v301
      %v5356 = vunpack.c.h.b16 %v301
      %v5357 = vunpack.c.l.b16 %v302
      %v5358 = vunpack.c.h.b16 %v302
      %v5359 = vunpack.c.l.b16 %v303
      %v5360 = vunpack.c.h.b16 %v303
      %v5361 = vunpack.c.l.b16 %v304
      %v5362 = vunpack.c.h.b16 %v304
      %v5363 = vunpack.c.l.b16 %v305
      %v5364 = vunpack.c.h.b16 %v305
      %v5365 = vunpack.c.l.b16 %v306
      %v5366 = vunpack.c.h.b16 %v306
      %v5367 = vunpack.c.l.b16 %v307
      %v5368 = vunpack.c.h.b16 %v307
      %v5369 = vunpack.c.l.b16 %v308
      %v5370 = vunpack.c.h.b16 %v308
      %v5371 = vunpack.c.l.b16 %v309
      %v5372 = vunpack.c.h.b16 %v309
      %v5373 = vunpack.c.l.b16 %v310
      %v5374 = vunpack.c.h.b16 %v310
      %v5375 = vunpack.c.l.b16 %v311
      %v5376 = vunpack.c.h.b16 %v311
      %v5377 = vunpack.c.l.b16 %v312
      %v5378 = vunpack.c.h.b16 %v312
      %v5379 = vunpack.c.l.b16 %v313
      %v5380 = vunpack.c.h.b16 %v313
      %v5381 = vunpack.c.l.b16 %v314
      %v5382 = vunpack.c.h.b16 %v314
      %v5383 = vunpack.c.l.b16 %v315
      %v5384 = vunpack.c.h.b16 %v315
      %v5385 = vunpack.c.l.b16 %v316
      %v5386 = vunpack.c.h.b16 %v316
      %v5387 = vunpack.c.l.b16 %v317
      %v5388 = vunpack.c.h.b16 %v317
      %v5389 = vunpack.c.l.b16 %v318
      %v5390 = vunpack.c.h.b16 %v318
      %v5391 = vunpack.c.l.b16 %v319
      %v5392 = vunpack.c.h.b16 %v319
      %v5393 = vunpack.c.l.b16 %v320
      %v5394 = vunpack.c.h.b16 %v320
      %v5395 = vunpack.c.l.b16 %v321
      %v5396 = vunpack.c.h.b16 %v321
      %v5397 = vunpack.c.l.b16 %v322
      %v5398 = vunpack.c.h.b16 %v322
      %v5399 = vunpack.c.l.b16 %v323
      %v5400 = vunpack.c.h.b16 %v323
      %v5401 = vunpack.c.l.b16 %v324
      %v5402 = vunpack.c.h.b16 %v324
      %v5403 = vunpack.c.l.b16 %v325
      %v5404 = vunpack.c.h.b16 %v325
      %v5405 = vunpack.c.l.b16 %v326
      %v5406 = vunpack.c.h.b16 %v326
      %v5407 = vunpack.c.l.b16 %v327
      %v5408 = vunpack.c.h.b16 %v327
      %v5409 = vunpack.c.l.b16 %v328
      %v5410 = vunpack.c.h.b16 %v328
      %v5411 = vunpack.c.l.b16 %v329
      %v5412 = vunpack.c.h.b16 %v329
      %v5413 = vunpack.c.l.b16 %v330
      %v5414 = vunpack.c.h.b16 %v330
      %v5415 = vunpack.c.l.b16 %v331
      %v5416 = vunpack.c.h.b16 %v331
      %v5417 = vunpack.c.l.b16 %v332
      %v5418 = vunpack.c.h.b16 %v332
      %v5419 = vunpack.c.l.b16 %v333
      %v5420 = vunpack.c.h.b16 %v333
      %v5421 = vunpack.c.l.b16 %v334
      %v5422 = vunpack.c.h.b16 %v334
      %v5423 = vunpack.c.l.b16 %v335
      %v5424 = vunpack.c.h.b16 %v335
      %v5425 = vunpack.c.l.b16 %v336
      %v5426 = vunpack.c.h.b16 %v336
      %v5427 = vunpack.c.l.b16 %v337
      %v5428 = vunpack.c.h.b16 %v337
      %v5429 = vunpack.c.l.b16 %v338
      %v5430 = vunpack.c.h.b16 %v338
      %v5431 = vunpack.c.l.b16 %v339
      %v5432 = vunpack.c.h.b16 %v339
      %v5433 = vunpack.c.l.b16 %v340
      %v5434 = vunpack.c.h.b16 %v340
      %v5435 = vunpack.c.l.b16 %v341
      %v5436 = vunpack.c.h.b16 %v341
      %v5437 = vunpack.c.l.b16 %v342
      %v5438 = vunpack.c.h.b16 %v342
      %v5439 = vunpack.c.l.b16 %v343
      %v5440 = vunpack.c.h.b16 %v343
      %v5441 = vunpack.c.l.b16 %v344
      %v5442 = vunpack.c.h.b16 %v344
      %v5443 = vunpack.c.l.b16 %v345
      %v5444 = vunpack.c.h.b16 %v345
      %v5445 = vunpack.c.l.b16 %v346
      %v5446 = vunpack.c.h.b16 %v346
      %v5447 = vunpack.c.l.b16 %v347
      %v5448 = vunpack.c.h.b16 %v347
      %v5449 = vunpack.c.l.b16 %v348
      %v5450 = vunpack.c.h.b16 %v348
      %v5451 = vunpack.c.l.b16 %v349
      %v5452 = vunpack.c.h.b16 %v349
      %v5453 = vunpack.c.l.b16 %v350
      %v5454 = vunpack.c.h.b16 %v350
      %v5455 = vunpack.c.l.b16 %v351
      %v5456 = vunpack.c.h.b16 %v351
      %v5457 = vunpack.c.l.b16 %v352
      %v5458 = vunpack.c.h.b16 %v352
      %v5459 = vunpack.c.l.b16 %v353
      %v5460 = vunpack.c.h.b16 %v353
      %v5461 = vunpack.c.l.b16 %v354
      %v5462 = vunpack.c.h.b16 %v354
      %v5463 = vunpack.c.l.b16 %v355
      %v5464 = vunpack.c.h.b16 %v355
      %v5465 = vunpack.c.l.b16 %v356
      %v5466 = vunpack.c.h.b16 %v356
      %v5467 = vunpack.c.l.b16 %v357
      %v5468 = vunpack.c.h.b16 %v357
      %v5469 = vunpack.c.l.b16 %v358
      %v5470 = vunpack.c.h.b16 %v358
      %v5471 = vunpack.c.l.b16 %v359
      %v5472 = vunpack.c.h.b16 %v359
      %v5473 = vunpack.c.l.b16 %v360
      %v5474 = vunpack.c.h.b16 %v360
      %v5475 = vunpack.c.l.b16 %v361
      %v5476 = vunpack.c.h.b16 %v361
      %v5477 = vunpack.c.l.b16 %v362
      %v5478 = vunpack.c.h.b16 %v362
      %v5479 = vunpack.c.l.b16 %v363
      %v5480 = vunpack.c.h.b16 %v363
      %v5481 = vunpack.c.l.b16 %v364
      %v5482 = vunpack.c.h.b16 %v364
      %v5483 = vunpack.c.l.b16 %v365
      %v5484 = vunpack.c.h.b16 %v365
      %v5485 = vunpack.c.l.b16 %v366
      %v5486 = vunpack.c.h.b16 %v366
      %v5487 = vunpack.c.l.b16 %v367
      %v5488 = vunpack.c.h.b16 %v367
      %v5489 = vunpack.c.l.b16 %v368
      %v5490 = vunpack.c.h.b16 %v368
      %v5491 = vunpack.c.l.b16 %v369
      %v5492 = vunpack.c.h.b16 %v369
      %v5493 = vunpack.c.l.b16 %v370
      %v5494 = vunpack.c.h.b16 %v370
      %v5495 = vunpack.c.l.b16 %v371
      %v5496 = vunpack.c.h.b16 %v371
      %v5497 = vunpack.c.l.b16 %v372
      %v5498 = vunpack.c.h.b16 %v372
      %v5499 = vunpack.c.l.b16 %v373
      %v5500 = vunpack.c.h.b16 %v373
      %v5501 = vunpack.c.l.b16 %v374
      %v5502 = vunpack.c.h.b16 %v374
      %v5503 = vunpack.c.l.b16 %v375
      %v5504 = vunpack.c.h.b16 %v375
      %v5505 = vunpack.c.l.b16 %v376
      %v5506 = vunpack.c.h.b16 %v376
      %v5507 = vunpack.c.l.b16 %v377
      %v5508 = vunpack.c.h.b16 %v377
      %v5509 = vunpack.c.l.b16 %v378
      %v5510 = vunpack.c.h.b16 %v378
      %v5511 = vunpack.c.l.b16 %v379
      %v5512 = vunpack.c.h.b16 %v379
      %v5513 = vunpack.c.l.b16 %v380
      %v5514 = vunpack.c.h.b16 %v380
      %v5515 = vunpack.c.l.b16 %v381
      %v5516 = vunpack.c.h.b16 %v381
      %v5517 = vunpack.c.l.b16 %v382
      %v5518 = vunpack.c.h.b16 %v382
      %v5519 = vunpack.c.l.b16 %v383
      %v5520 = vunpack.c.h.b16 %v383
      %v5521 = vunpack.c.l.b16 %v384
      %v5522 = vunpack.c.h.b16 %v384
      %v5523 = vunpack.c.l.b16 %v385
      %v5524 = vunpack.c.h.b16 %v385
      %v5525 = vunpack.c.l.b16 %v386
      %v5526 = vunpack.c.h.b16 %v386
      %v5527 = vunpack.c.l.b16 %v387
      %v5528 = vunpack.c.h.b16 %v387
      %v5529 = vunpack.c.l.b16 %v388
      %v5530 = vunpack.c.h.b16 %v388
      %v5531 = vunpack.c.l.b16 %v389
      %v5532 = vunpack.c.h.b16 %v389
      %v5533 = vunpack.c.l.b16 %v390
      %v5534 = vunpack.c.h.b16 %v390
      %v5535 = vunpack.c.l.b16 %v391
      %v5536 = vunpack.c.h.b16 %v391
      %v5537 = vunpack.c.l.b16 %v392
      %v5538 = vunpack.c.h.b16 %v392
      %v5539 = vunpack.c.l.b16 %v393
      %v5540 = vunpack.c.h.b16 %v393
      %v5541 = vunpack.c.l.b16 %v394
      %v5542 = vunpack.c.h.b16 %v394
      %v5543 = vunpack.c.l.b16 %v395
      %v5544 = vunpack.c.h.b16 %v395
      %v5545 = vunpack.c.l.b16 %v396
      %v5546 = vunpack.c.h.b16 %v396
      %v5547 = vunpack.c.l.b16 %v397
      %v5548 = vunpack.c.h.b16 %v397
      %v5549 = vunpack.c.l.b16 %v398
      %v5550 = vunpack.c.h.b16 %v398
      %v5551 = vunpack.c.l.b16 %v399
      %v5552 = vunpack.c.h.b16 %v399
      %v5553 = vunpack.c.l.b16 %v400
      %v5554 = vunpack.c.h.b16 %v400
      %v5555 = vunpack.c.l.b16 %v401
      %v5556 = vunpack.c.h.b16 %v401
      %v5557 = vunpack.c.l.b16 %v402
      %v5558 = vunpack.c.h.b16 %v402
      %v5559 = vunpack.c.l.b16 %v403
      %v5560 = vunpack.c.h.b16 %v403
      %v5561 = vunpack.c.l.b16 %v404
      %v5562 = vunpack.c.h.b16 %v404
      %v5563 = vunpack.c.l.b16 %v405
      %v5564 = vunpack.c.h.b16 %v405
      %v5565 = vunpack.c.l.b16 %v406
      %v5566 = vunpack.c.h.b16 %v406
      %v5567 = vunpack.c.l.b16 %v407
      %v5568 = vunpack.c.h.b16 %v407
      %v5569 = vunpack.c.l.b16 %v408
      %v5570 = vunpack.c.h.b16 %v408
      %v5571 = vunpack.c.l.b16 %v409
      %v5572 = vunpack.c.h.b16 %v409
      %v5573 = vunpack.c.l.b16 %v410
      %v5574 = vunpack.c.h.b16 %v410
      %v5575 = vunpack.c.l.b16 %v411
      %v5576 = vunpack.c.h.b16 %v411
      %v5577 = vunpack.c.l.b16 %v412
      %v5578 = vunpack.c.h.b16 %v412
      %v5579 = vunpack.c.l.b16 %v413
      %v5580 = vunpack.c.h.b16 %v413
      %v5581 = vunpack.c.l.b16 %v414
      %v5582 = vunpack.c.h.b16 %v414
      %v5583 = vunpack.c.l.b16 %v415
      %v5584 = vunpack.c.h.b16 %v415
      %v5585 = vunpack.c.l.b16 %v416
      %v5586 = vunpack.c.h.b16 %v416
      %v5587 = vunpack.c.l.b16 %v417
      %v5588 = vunpack.c.h.b16 %v417
      %v5589 = vunpack.c.l.b16 %v418
      %v5590 = vunpack.c.h.b16 %v418
      %v5591 = vunpack.c.l.b16 %v419
      %v5592 = vunpack.c.h.b16 %v419
      %v5593 = vunpack.c.l.b16 %v420
      %v5594 = vunpack.c.h.b16 %v420
      %v5595 = vunpack.c.l.b16 %v421
      %v5596 = vunpack.c.h.b16 %v421
      %v5597 = vunpack.c.l.b16 %v422
      %v5598 = vunpack.c.h.b16 %v422
      %v5599 = vunpack.c.l.b16 %v423
      %v5600 = vunpack.c.h.b16 %v423
      %v5601 = vunpack.c.l.b16 %v424
      %v5602 = vunpack.c.h.b16 %v424
      %v5603 = vunpack.c.l.b16 %v425
      %v5604 = vunpack.c.h.b16 %v425
      %v5605 = vunpack.c.l.b16 %v426
      %v5606 = vunpack.c.h.b16 %v426
      %v5607 = vunpack.c.l.b16 %v427
      %v5608 = vunpack.c.h.b16 %v427
      %v5609 = vunpack.c.l.b16 %v428
      %v5610 = vunpack.c.h.b16 %v428
      %v5611 = vunpack.c.l.b16 %v429
      %v5612 = vunpack.c.h.b16 %v429
      %v5613 = vunpack.c.l.b16 %v430
      %v5614 = vunpack.c.h.b16 %v430
      %v5615 = vunpack.c.l.b16 %v431
      %v5616 = vunpack.c.h.b16 %v431
      %v5617 = vunpack.c.l.b16 %v432
      %v5618 = vunpack.c.h.b16 %v432
      %v5619 = vunpack.c.l.b16 %v433
      %v5620 = vunpack.c.h.b16 %v433
      %v5621 = vunpack.c.l.b16 %v434
      %v5622 = vunpack.c.h.b16 %v434
      %v5623 = vunpack.c.l.b16 %v435
      %v5624 = vunpack.c.h.b16 %v435
      %v5625 = vunpack.c.l.b16 %v436
      %v5626 = vunpack.c.h.b16 %v436
      %v5627 = vunpack.c.l.b16 %v437
      %v5628 = vunpack.c.h.b16 %v437
      %v5629 = vunpack.c.l.b16 %v438
      %v5630 = vunpack.c.h.b16 %v438
      %v5631 = vunpack.c.l.b16 %v439
      %v5632 = vunpack.c.h.b16 %v439
      %v5633 = vunpack.c.l.b16 %v440
      %v5634 = vunpack.c.h.b16 %v440
      %v5635 = vunpack.c.l.b16 %v441
      %v5636 = vunpack.c.h.b16 %v441
      %v5637 = vunpack.c.l.b16 %v442
      %v5638 = vunpack.c.h.b16 %v442
      %v5639 = vunpack.c.l.b16 %v443
      %v5640 = vunpack.c.h.b16 %v443
      %v5641 = vunpack.c.l.b16 %v444
      %v5642 = vunpack.c.h.b16 %v444
      %v5643 = vunpack.c.l.b16 %v445
      %v5644 = vunpack.c.h.b16 %v445
      %v5645 = vunpack.c.l.b16 %v446
      %v5646 = vunpack.c.h.b16 %v446
      %v5647 = vunpack.c.l.b16 %v447
      %v5648 = vunpack.c.h.b16 %v447
      %v5649 = vunpack.c.l.b16 %v448
      %v5650 = vunpack.c.h.b16 %v448
      %v5651 = vunpack.c.l.b16 %v449
      %v5652 = vunpack.c.h.b16 %v449
      %v5653 = vunpack.c.l.b16 %v450
      %v5654 = vunpack.c.h.b16 %v450
      %v5655 = vunpack.c.l.b16 %v451
      %v5656 = vunpack.c.h.b16 %v451
      %v5657 = vunpack.c.l.b16 %v452
      %v5658 = vunpack.c.h.b16 %v452
      %v5659 = vunpack.c.l.b16 %v453
      %v5660 = vunpack.c.h.b16 %v453
      %v5661 = vunpack.c.l.b16 %v454
      %v5662 = vunpack.c.h.b16 %v454
      %v5663 = vunpack.c.l.b16 %v455
      %v5664 = vunpack.c.h.b16 %v455
      %v5665 = vunpack.c.l.b16 %v456
      %v5666 = vunpack.c.h.b16 %v456
      %v5667 = vunpack.c.l.b16 %v457
      %v5668 = vunpack.c.h.b16 %v457
      %v5669 = vunpack.c.l.b16 %v458
      %v5670 = vunpack.c.h.b16 %v458
      %v5671 = vunpack.c.l.b16 %v459
      %v5672 = vunpack.c.h.b16 %v459
      %v5673 = vunpack.c.l.b16 %v460
      %v5674 = vunpack.c.h.b16 %v460
      %v5675 = vunpack.c.l.b16 %v461
      %v5676 = vunpack.c.h.b16 %v461
      %v5677 = vunpack.c.l.b16 %v462
      %v5678 = vunpack.c.h.b16 %v462
      %v5679 = vunpack.c.l.b16 %v463
      %v5680 = vunpack.c.h.b16 %v463
      %v5681 = vunpack.c.l.b16 %v464
      %v5682 = vunpack.c.h.b16 %v464
      %v5683 = vunpack.c.l.b16 %v465
      %v5684 = vunpack.c.h.b16 %v465
      %v5685 = vunpack.c.l.b16 %v466
      %v5686 = vunpack.c.h.b16 %v466
      %v5687 = vunpack.c.l.b16 %v467
      %v5688 = vunpack.c.h.b16 %v467
      %v5689 = vunpack.c.l.b16 %v468
      %v5690 = vunpack.c.h.b16 %v468
      %v5691 = vunpack.c.l.b16 %v469
      %v5692 = vunpack.c.h.b16 %v469
      %v5693 = vunpack.c.l.b16 %v470
      %v5694 = vunpack.c.h.b16 %v470
      %v5695 = vunpack.c.l.b16 %v471
      %v5696 = vunpack.c.h.b16 %v471
      %v5697 = vunpack.c.l.b16 %v472
      %v5698 = vunpack.c.h.b16 %v472
      %v5699 = vunpack.c.l.b16 %v473
      %v5700 = vunpack.c.h.b16 %v473
      %v5701 = vunpack.c.l.b16 %v474
      %v5702 = vunpack.c.h.b16 %v474
      %v5703 = vunpack.c.l.b16 %v475
      %v5704 = vunpack.c.h.b16 %v475
      %v5705 = vunpack.c.l.b16 %v476
      %v5706 = vunpack.c.h.b16 %v476
      %v5707 = vunpack.c.l.b16 %v477
      %v5708 = vunpack.c.h.b16 %v477
      %v5709 = vunpack.c.l.b16 %v478
      %v5710 = vunpack.c.h.b16 %v478
      %v5711 = vunpack.c.l.b16 %v479
      %v5712 = vunpack.c.h.b16 %v479
      %v5713 = vunpack.c.l.b16 %v480
      %v5714 = vunpack.c.h.b16 %v480
      %v5715 = vunpack.c.l.b16 %v481
      %v5716 = vunpack.c.h.b16 %v481
      %v5717 = vunpack.c.l.b16 %v482
      %v5718 = vunpack.c.h.b16 %v482
      %v5719 = vunpack.c.l.b16 %v483
      %v5720 = vunpack.c.h.b16 %v483
      %v5721 = vunpack.c.l.b16 %v484
      %v5722 = vunpack.c.h.b16 %v484
      %v5723 = vunpack.c.l.b16 %v485
      %v5724 = vunpack.c.h.b16 %v485
      %v5725 = vunpack.c.l.b16 %v486
      %v5726 = vunpack.c.h.b16 %v486
      %v5727 = vunpack.c.l.b16 %v487
      %v5728 = vunpack.c.h.b16 %v487
      %v5729 = vunpack.c.l.b16 %v488
      %v5730 = vunpack.c.h.b16 %v488
      %v5731 = vunpack.c.l.b16 %v489
      %v5732 = vunpack.c.h.b16 %v489
      %v5733 = vunpack.c.l.b16 %v490
      %v5734 = vunpack.c.h.b16 %v490
      %v5735 = vunpack.c.l.b16 %v491
      %v5736 = vunpack.c.h.b16 %v491
      %v5737 = vunpack.c.l.b16 %v492
      %v5738 = vunpack.c.h.b16 %v492
      %v5739 = vunpack.c.l.b16 %v493
      %v5740 = vunpack.c.h.b16 %v493
      %v5741 = vunpack.c.l.b16 %v494
      %v5742 = vunpack.c.h.b16 %v494
      %v5743 = vunpack.c.l.b16 %v495
      %v5744 = vunpack.c.h.b16 %v495
      %v5745 = vunpack.c.l.b16 %v496
      %v5746 = vunpack.c.h.b16 %v496
      %v5747 = vunpack.c.l.b16 %v497
      %v5748 = vunpack.c.h.b16 %v497
      %v5749 = vunpack.c.l.b16 %v498
      %v5750 = vunpack.c.h.b16 %v498
      %v5751 = vunpack.c.l.b16 %v499
      %v5752 = vunpack.c.h.b16 %v499
      %v5753 = vunpack.c.l.b16 %v500
      %v5754 = vunpack.c.h.b16 %v500
      %v5755 = vunpack.c.l.b16 %v501
      %v5756 = vunpack.c.h.b16 %v501
      %v5757 = vunpack.c.l.b16 %v502
      %v5758 = vunpack.c.h.b16 %v502
      %v5759 = vunpack.c.l.b16 %v503
      %v5760 = vunpack.c.h.b16 %v503
      %v5761 = vunpack.c.l.b16 %v504
      %v5762 = vunpack.c.h.b16 %v504
      %v5763 = vunpack.c.l.b16 %v505
      %v5764 = vunpack.c.h.b16 %v505
      %v5765 = vunpack.c.l.b16 %v506
      %v5766 = vunpack.c.h.b16 %v506
      %v5767 = vunpack.c.l.b16 %v507
      %v5768 = vunpack.c.h.b16 %v507
      %v5769 = vunpack.c.l.b16 %v508
      %v5770 = vunpack.c.h.b16 %v508
      %v5771 = vunpack.c.l.b16 %v509
      %v5772 = vunpack.c.h.b16 %v509
      %v5773 = vunpack.c.l.b16 %v510
      %v5774 = vunpack.c.h.b16 %v510
      %v5775 = vunpack.c.l.b16 %v511
      %v5776 = vunpack.c.h.b16 %v511
      %v5777 = vunpack.c.l.b16 %v512
      %v5778 = vunpack.c.h.b16 %v512
      %v5779 = vunpack.c.l.b16 %v513
      %v5780 = vunpack.c.h.b16 %v513
      %v5781 = vunpack.c.l.b16 %v514
      %v5782 = vunpack.c.h.b16 %v514
      %v5783 = vunpack.c.l.b16 %v515
      %v5784 = vunpack.c.h.b16 %v515
      %v5785 = vunpack.c.l.b16 %v516
      %v5786 = vunpack.c.h.b16 %v516
      %v5787 = vunpack.c.l.b16 %v517
      %v5788 = vunpack.c.h.b16 %v517
      %v5789 = vunpack.c.l.b16 %v518
      %v5790 = vunpack.c.h.b16 %v518
      %v5791 = vunpack.c.l.b16 %v519
      %v5792 = vunpack.c.h.b16 %v519
      %v5793 = vunpack.c.l.b16 %v520
      %v5794 = vunpack.c.h.b16 %v520
      %v5795 = vunpack.c.l.b16 %v521
      %v5796 = vunpack.c.h.b16 %v521
      %v5797 = vunpack.c.l.b16 %v522
      %v5798 = vunpack.c.h.b16 %v522
      %v5799 = vunpack.c.l.b16 %v523
      %v5800 = vunpack.c.h.b16 %v523
      %v5801 = vunpack.c.l.b16 %v524
      %v5802 = vunpack.c.h.b16 %v524
      %v5803 = vunpack.c.l.b16 %v525
      %v5804 = vunpack.c.h.b16 %v525
      %v5805 = vunpack.c.l.b16 %v526
      %v5806 = vunpack.c.h.b16 %v526
      %v5807 = vunpack.c.l.b16 %v527
      %v5808 = vunpack.c.h.b16 %v527
      %v5809 = vunpack.c.l.b16 %v528
      %v5810 = vunpack.c.h.b16 %v528
      %v5811 = vunpack.c.l.b16 %v529
      %v5812 = vunpack.c.h.b16 %v529
      %v5813 = vunpack.c.l.b16 %v530
      %v5814 = vunpack.c.h.b16 %v530
      %v5815 = vunpack.c.l.b16 %v531
      %v5816 = vunpack.c.h.b16 %v531
      %v5817 = vunpack.c.l.b16 %v532
      %v5818 = vunpack.c.h.b16 %v532
      %v5819 = vunpack.c.l.b16 %v533
      %v5820 = vunpack.c.h.b16 %v533
      %v5821 = vunpack.c.l.b16 %v534
      %v5822 = vunpack.c.h.b16 %v534
      %v5823 = vunpack.c.l.b16 %v535
      %v5824 = vunpack.c.h.b16 %v535
      %v5825 = vunpack.c.l.b16 %v536
      %v5826 = vunpack.c.h.b16 %v536
      %v5827 = vunpack.c.l.b16 %v537
      %v5828 = vunpack.c.h.b16 %v537
      %v5829 = vunpack.c.l.b16 %v538
      %v5830 = vunpack.c.h.b16 %v538
      %v5831 = vunpack.c.l.b16 %v539
      %v5832 = vunpack.c.h.b16 %v539
      %v5833 = vunpack.c.l.b16 %v540
      %v5834 = vunpack.c.h.b16 %v540
      %v5835 = vunpack.c.l.b16 %v541
      %v5836 = vunpack.c.h.b16 %v541
      %v5837 = vunpack.c.l.b16 %v542
      %v5838 = vunpack.c.h.b16 %v542
      %v5839 = vunpack.c.l.b16 %v543
      %v5840 = vunpack.c.h.b16 %v543
      %v5841 = vunpack.c.l.b16 %v544
      %v5842 = vunpack.c.h.b16 %v544
      %v5843 = vunpack.c.l.b16 %v545
      %v5844 = vunpack.c.h.b16 %v545
      %v5845 = vunpack.c.l.b16 %v546
      %v5846 = vunpack.c.h.b16 %v546
      %v5847 = vunpack.c.l.b16 %v547
      %v5848 = vunpack.c.h.b16 %v547
      %v5849 = vunpack.c.l.b16 %v548
      %v5850 = vunpack.c.h.b16 %v548
      %v5851 = vunpack.c.l.b16 %v549
      %v5852 = vunpack.c.h.b16 %v549
      %v5853 = vunpack.c.l.b16 %v550
      %v5854 = vunpack.c.h.b16 %v550
      %v5855 = vunpack.c.l.b16 %v551
      %v5856 = vunpack.c.h.b16 %v551
      %v5857 = vunpack.c.l.b16 %v552
      %v5858 = vunpack.c.h.b16 %v552
      %v5859 = vunpack.c.l.b16 %v553
      %v5860 = vunpack.c.h.b16 %v553
      %v5861 = vunpack.c.l.b16 %v554
      %v5862 = vunpack.c.h.b16 %v554
      %v5863 = vunpack.c.l.b16 %v555
      %v5864 = vunpack.c.h.b16 %v555
      %v5865 = vunpack.c.l.b16 %v556
      %v5866 = vunpack.c.h.b16 %v556
      %v5867 = vunpack.c.l.b16 %v557
      %v5868 = vunpack.c.h.b16 %v557
      %v5869 = vunpack.c.l.b16 %v558
      %v5870 = vunpack.c.h.b16 %v558
      %v5871 = vunpack.c.l.b16 %v559
      %v5872 = vunpack.c.h.b16 %v559
      %v5873 = vunpack.c.l.b16 %v560
      %v5874 = vunpack.c.h.b16 %v560
      %v5875 = vunpack.c.l.b16 %v561
      %v5876 = vunpack.c.h.b16 %v561
      %v5877 = vunpack.c.l.b16 %v562
      %v5878 = vunpack.c.h.b16 %v562
      %v5879 = vunpack.c.l.b16 %v563
      %v5880 = vunpack.c.h.b16 %v563
      %v5881 = vunpack.c.l.b16 %v564
      %v5882 = vunpack.c.h.b16 %v564
      %v5883 = vunpack.c.l.b16 %v565
      %v5884 = vunpack.c.h.b16 %v565
      %v5885 = vunpack.c.l.b16 %v566
      %v5886 = vunpack.c.h.b16 %v566
      %v5887 = vunpack.c.l.b16 %v567
      %v5888 = vunpack.c.h.b16 %v567
      %v5889 = vunpack.c.l.b16 %v568
      %v5890 = vunpack.c.h.b16 %v568
      %v5891 = vunpack.c.l.b16 %v569
      %v5892 = vunpack.c.h.b16 %v569
      %v5893 = vunpack.c.l.b16 %v570
      %v5894 = vunpack.c.h.b16 %v570
      %v5895 = vunpack.c.l.b16 %v571
      %v5896 = vunpack.c.h.b16 %v571
      %v5897 = vunpack.c.l.b16 %v572
      %v5898 = vunpack.c.h.b16 %v572
      %v5899 = vunpack.c.l.b16 %v573
      %v5900 = vunpack.c.h.b16 %v573
      %v5901 = vunpack.c.l.b16 %v574
      %v5902 = vunpack.c.h.b16 %v574
      %v5903 = vunpack.c.l.b16 %v575
      %v5904 = vunpack.c.h.b16 %v575
      %v5905 = vunpack.c.l.b16 %v576
      %v5906 = vunpack.c.h.b16 %v576
      %v5907 = vunpack.c.l.b16 %v577
      %v5908 = vunpack.c.h.b16 %v577
      %v5909 = vunpack.c.l.b16 %v578
      %v5910 = vunpack.c.h.b16 %v578
      %v5911 = vunpack.c.l.b16 %v579
      %v5912 = vunpack.c.h.b16 %v579
      %v5913 = vunpack.c.l.b16 %v580
      %v5914 = vunpack.c.h.b16 %v580
      %v5915 = vunpack.c.l.b16 %v581
      %v5916 = vunpack.c.h.b16 %v581
      %v5917 = vunpack.c.l.b16 %v582
      %v5918 = vunpack.c.h.b16 %v582
      %v5919 = vunpack.c.l.b16 %v583
      %v5920 = vunpack.c.h.b16 %v583
      %v5921 = vunpack.c.l.b16 %v584
      %v5922 = vunpack.c.h.b16 %v584
      %v5923 = vunpack.c.l.b16 %v585
      %v5924 = vunpack.c.h.b16 %v585
      %v5925 = vunpack.c.l.b16 %v586
      %v5926 = vunpack.c.h.b16 %v586
      %v5927 = vunpack.c.l.b16 %v587
      %v5928 = vunpack.c.h.b16 %v587
      %v5929 = vunpack.c.l.b16 %v588
      %v5930 = vunpack.c.h.b16 %v588
      %v5931 = vunpack.c.l.b16 %v589
      %v5932 = vunpack.c.h.b16 %v589
      %v5933 = vunpack.c.l.b16 %v590
      %v5934 = vunpack.c.h.b16 %v590
      %v5935 = vunpack.c.l.b16 %v591
      %v5936 = vunpack.c.h.b16 %v591
      %v5937 = vunpack.c.l.b16 %v592
      %v5938 = vunpack.c.h.b16 %v592
      %v5939 = vunpack.c.l.b16 %v593
      %v5940 = vunpack.c.h.b16 %v593
      %v5941 = vunpack.c.l.b16 %v594
      %v5942 = vunpack.c.h.b16 %v594
      %v5943 = vunpack.c.l.b16 %v595
      %v5944 = vunpack.c.h.b16 %v595
      %v5945 = vunpack.c.l.b16 %v596
      %v5946 = vunpack.c.h.b16 %v596
      %v5947 = vunpack.c.l.b16 %v597
      %v5948 = vunpack.c.h.b16 %v597
      %v5949 = vunpack.c.l.b16 %v598
      %v5950 = vunpack.c.h.b16 %v598
      %v5951 = vunpack.c.l.b16 %v599
      %v5952 = vunpack.c.h.b16 %v599
      %v5953 = vunpack.c.l.b16 %v600
      %v5954 = vunpack.c.h.b16 %v600
      %v5955 = vunpack.c.l.b16 %v601
      %v5956 = vunpack.c.h.b16 %v601
      %v5957 = vunpack.c.l.b16 %v602
      %v5958 = vunpack.c.h.b16 %v602
      %v5959 = vunpack.c.l.b16 %v603
      %v5960 = vunpack.c.h.b16 %v603
      %v5961 = vunpack.c.l.b16 %v604
      %v5962 = vunpack.c.h.b16 %v604
      %v5963 = vunpack.c.l.b16 %v605
      %v5964 = vunpack.c.h.b16 %v605
      %v5965 = vunpack.c.l.b16 %v606
      %v5966 = vunpack.c.h.b16 %v606
      %v5967 = vunpack.c.l.b16 %v607
      %v5968 = vunpack.c.h.b16 %v607
      %v5969 = vunpack.c.l.b16 %v608
      %v5970 = vunpack.c.h.b16 %v608
      %v5971 = vunpack.c.l.b16 %v609
      %v5972 = vunpack.c.h.b16 %v609
      %v5973 = vunpack.c.l.b16 %v610
      %v5974 = vunpack.c.h.b16 %v610
      %v5975 = vunpack.c.l.b16 %v611
      %v5976 = vunpack.c.h.b16 %v611
      %v5977 = vunpack.c.l.b16 %v612
      %v5978 = vunpack.c.h.b16 %v612
      %v5979 = vunpack.c.l.b16 %v613
      %v5980 = vunpack.c.h.b16 %v613
      %v5981 = vunpack.c.l.b16 %v614
      %v5982 = vunpack.c.h.b16 %v614
      %v5983 = vunpack.c.l.b16 %v615
      %v5984 = vunpack.c.h.b16 %v615
      %v5985 = vunpack.c.l.b16 %v616
      %v5986 = vunpack.c.h.b16 %v616
      %v5987 = vunpack.c.l.b16 %v617
      %v5988 = vunpack.c.h.b16 %v617
      %v5989 = vunpack.c.l.b16 %v618
      %v5990 = vunpack.c.h.b16 %v618
      %v5991 = vunpack.c.l.b16 %v619
      %v5992 = vunpack.c.h.b16 %v619
      %v5993 = vunpack.c.l.b16 %v620
      %v5994 = vunpack.c.h.b16 %v620
      %v5995 = vunpack.c.l.b16 %v621
      %v5996 = vunpack.c.h.b16 %v621
      %v5997 = vunpack.c.l.b16 %v622
      %v5998 = vunpack.c.h.b16 %v622
      %v5999 = vunpack.c.l.b16 %v623
      %v6000 = vunpack.c.h.b16 %v623
      %v6001 = vunpack.c.l.b16 %v624
      %v6002 = vunpack.c.h.b16 %v624
      %v6003 = vunpack.c.l.b16 %v625
      %v6004 = vunpack.c.h.b16 %v625
      %v6005 = vunpack.c.l.b16 %v626
      %v6006 = vunpack.c.h.b16 %v626
      %v6007 = vunpack.c.l.b16 %v627
      %v6008 = vunpack.c.h.b16 %v627
      %v6009 = vunpack.c.l.b16 %v628
      %v6010 = vunpack.c.h.b16 %v628
      %v6011 = vunpack.c.l.b16 %v629
      %v6012 = vunpack.c.h.b16 %v629
      %v6013 = vunpack.c.l.b16 %v630
      %v6014 = vunpack.c.h.b16 %v630
      %v6015 = vunpack.c.l.b16 %v631
      %v6016 = vunpack.c.h.b16 %v631
      %v6017 = vunpack.c.l.b16 %v632
      %v6018 = vunpack.c.h.b16 %v632
      %v6019 = vunpack.c.l.b16 %v633
      %v6020 = vunpack.c.h.b16 %v633
      %v6021 = vunpack.c.l.b16 %v634
      %v6022 = vunpack.c.h.b16 %v634
      %v6023 = vunpack.c.l.b16 %v635
      %v6024 = vunpack.c.h.b16 %v635
      %v6025 = vunpack.c.l.b16 %v636
      %v6026 = vunpack.c.h.b16 %v636
      %v6027 = vunpack.c.l.b16 %v637
      %v6028 = vunpack.c.h.b16 %v637
      %v6029 = vunpack.c.l.b16 %v638
      %v6030 = vunpack.c.h.b16 %v638
      %v6031 = vunpack.c.l.b16 %v639
      %v6032 = vunpack.c.h.b16 %v639
      %v6033 = vunpack.c.l.b16 %v640
      %v6034 = vunpack.c.h.b16 %v640
      %v6035 = vunpack.c.l.b16 %v641
      %v6036 = vunpack.c.h.b16 %v641
      %v6037 = vunpack.c.l.b16 %v642
      %v6038 = vunpack.c.h.b16 %v642
      %v6039 = vunpack.c.l.b16 %v643
      %v6040 = vunpack.c.h.b16 %v643
      %v6041 = vunpack.c.l.b16 %v644
      %v6042 = vunpack.c.h.b16 %v644
      %v6043 = vunpack.c.l.b16 %v645
      %v6044 = vunpack.c.h.b16 %v645
      %v6045 = vunpack.c.l.b16 %v646
      %v6046 = vunpack.c.h.b16 %v646
      %v6047 = vunpack.c.l.b16 %v647
      %v6048 = vunpack.c.h.b16 %v647
      %v6049 = vunpack.c.l.b16 %v648
      %v6050 = vunpack.c.h.b16 %v648
      %v6051 = vunpack.c.l.b16 %v649
      %v6052 = vunpack.c.h.b16 %v649
      %v6053 = vunpack.c.l.b16 %v650
      %v6054 = vunpack.c.h.b16 %v650
      %v6055 = vunpack.c.l.b16 %v651
      %v6056 = vunpack.c.h.b16 %v651
      %v6057 = vunpack.c.l.b16 %v652
      %v6058 = vunpack.c.h.b16 %v652
      %v6059 = vunpack.c.l.b16 %v653
      %v6060 = vunpack.c.h.b16 %v653
      %v6061 = vunpack.c.l.b16 %v654
      %v6062 = vunpack.c.h.b16 %v654
      %v6063 = vunpack.c.l.b16 %v655
      %v6064 = vunpack.c.h.b16 %v655
      %v6065 = vunpack.c.l.b16 %v656
      %v6066 = vunpack.c.h.b16 %v656
      %v6067 = vunpack.c.l.b16 %v657
      %v6068 = vunpack.c.h.b16 %v657
      %v6069 = vunpack.c.l.b16 %v658
      %v6070 = vunpack.c.h.b16 %v658
      %v6071 = vunpack.c.l.b16 %v659
      %v6072 = vunpack.c.h.b16 %v659
      %v6073 = vunpack.c.l.b16 %v660
      %v6074 = vunpack.c.h.b16 %v660
      %v6075 = vunpack.c.l.b16 %v661
      %v6076 = vunpack.c.h.b16 %v661
      %v6077 = vunpack.c.l.b16 %v662
      %v6078 = vunpack.c.h.b16 %v662
      %v6079 = vunpack.c.l.b16 %v663
      %v6080 = vunpack.c.h.b16 %v663
      %v6081 = vunpack.c.l.b16 %v664
      %v6082 = vunpack.c.h.b16 %v664
      %v6083 = vunpack.c.l.b16 %v665
      %v6084 = vunpack.c.h.b16 %v665
      %v6085 = vunpack.c.l.b16 %v666
      %v6086 = vunpack.c.h.b16 %v666
      %v6087 = vunpack.c.l.b16 %v667
      %v6088 = vunpack.c.h.b16 %v667
      %v6089 = vunpack.c.l.b16 %v668
      %v6090 = vunpack.c.h.b16 %v668
      %v6091 = vunpack.c.l.b16 %v669
      %v6092 = vunpack.c.h.b16 %v669
      %v6093 = vunpack.c.l.b16 %v670
      %v6094 = vunpack.c.h.b16 %v670
      %v6095 = vunpack.c.l.b16 %v671
      %v6096 = vunpack.c.h.b16 %v671
      %v6097 = vunpack.c.l.b16 %v672
      %v6098 = vunpack.c.h.b16 %v672
      %v6099 = vunpack.c.l.b16 %v673
      %v6100 = vunpack.c.h.b16 %v673
      %v6101 = vunpack.c.l.b16 %v674
      %v6102 = vunpack.c.h.b16 %v674
      %v6103 = vunpack.c.l.b16 %v675
      %v6104 = vunpack.c.h.b16 %v675
      %v6105 = vunpack.c.l.b16 %v676
      %v6106 = vunpack.c.h.b16 %v676
      %v6107 = vunpack.c.l.b16 %v677
      %v6108 = vunpack.c.h.b16 %v677
      %v6109 = vunpack.c.l.b16 %v678
      %v6110 = vunpack.c.h.b16 %v678
      %v6111 = vunpack.c.l.b16 %v679
      %v6112 = vunpack.c.h.b16 %v679
      %v6113 = vunpack.c.l.b16 %v680
      %v6114 = vunpack.c.h.b16 %v680
      %v6115 = vunpack.c.l.b16 %v681
      %v6116 = vunpack.c.h.b16 %v681
      %v6117 = vunpack.c.l.b16 %v682
      %v6118 = vunpack.c.h.b16 %v682
      %v6119 = vunpack.c.l.b16 %v683
      %v6120 = vunpack.c.h.b16 %v683
      %v6121 = vunpack.c.l.b16 %v684
      %v6122 = vunpack.c.h.b16 %v684
      %v6123 = vunpack.c.l.b16 %v685
      %v6124 = vunpack.c.h.b16 %v685
      %v6125 = vunpack.c.l.b16 %v686
      %v6126 = vunpack.c.h.b16 %v686
      %v6127 = vunpack.c.l.b16 %v687
      %v6128 = vunpack.c.h.b16 %v687
      %v6129 = vunpack.c.l.b16 %v688
      %v6130 = vunpack.c.h.b16 %v688
      %v6131 = vunpack.c.l.b16 %v689
      %v6132 = vunpack.c.h.b16 %v689
      %v6133 = vunpack.c.l.b16 %v690
      %v6134 = vunpack.c.h.b16 %v690
      %v6135 = vunpack.c.l.b16 %v691
      %v6136 = vunpack.c.h.b16 %v691
      %v6137 = vunpack.c.l.b16 %v692
      %v6138 = vunpack.c.h.b16 %v692
      %v6139 = vunpack.c.l.b16 %v693
      %v6140 = vunpack.c.h.b16 %v693
      %v6141 = vunpack.c.l.b16 %v694
      %v6142 = vunpack.c.h.b16 %v694
      %v6143 = vunpack.c.l.b16 %v695
      %v6144 = vunpack.c.h.b16 %v695
      %v6145 = vunpack.c.l.b16 %v696
      %v6146 = vunpack.c.h.b16 %v696
      %v6147 = vunpack.c.l.b16 %v697
      %v6148 = vunpack.c.h.b16 %v697
      %v6149 = vunpack.c.l.b16 %v698
      %v6150 = vunpack.c.h.b16 %v698
      %v6151 = vunpack.c.l.b16 %v699
      %v6152 = vunpack.c.h.b16 %v699
      %v6153 = vunpack.c.l.b16 %v700
      %v6154 = vunpack.c.h.b16 %v700
      %v6155 = vunpack.c.l.b16 %v701
      %v6156 = vunpack.c.h.b16 %v701
      %v6157 = vunpack.c.l.b16 %v702
      %v6158 = vunpack.c.h.b16 %v702
      %v6159 = vunpack.c.l.b16 %v703
      %v6160 = vunpack.c.h.b16 %v703
      %v6161 = vunpack.c.l.b16 %v704
      %v6162 = vunpack.c.h.b16 %v704
      %v6163 = vunpack.c.l.b16 %v705
      %v6164 = vunpack.c.h.b16 %v705
      %v6165 = vunpack.c.l.b16 %v706
      %v6166 = vunpack.c.h.b16 %v706
      %v6167 = vunpack.c.l.b16 %v707
      %v6168 = vunpack.c.h.b16 %v707
      %v6169 = vunpack.c.l.b16 %v708
      %v6170 = vunpack.c.h.b16 %v708
      %v6171 = vunpack.c.l.b16 %v709
      %v6172 = vunpack.c.h.b16 %v709
      %v6173 = vunpack.c.l.b16 %v710
      %v6174 = vunpack.c.h.b16 %v710
      %v6175 = vunpack.c.l.b16 %v711
      %v6176 = vunpack.c.h.b16 %v711
      %v6177 = vunpack.c.l.b16 %v712
      %v6178 = vunpack.c.h.b16 %v712
      %v6179 = vunpack.c.l.b16 %v713
      %v6180 = vunpack.c.h.b16 %v713
      %v6181 = vunpack.c.l.b16 %v714
      %v6182 = vunpack.c.h.b16 %v714
      %v6183 = vunpack.c.l.b16 %v715
      %v6184 = vunpack.c.h.b16 %v715
      %v6185 = vunpack.c.l.b16 %v716
      %v6186 = vunpack.c.h.b16 %v716
      %v6187 = vunpack.c.l.b16 %v717
      %v6188 = vunpack.c.h.b16 %v717
      %v6189 = vunpack.c.l.b16 %v718
      %v6190 = vunpack.c.h.b16 %v718
      %v6191 = vunpack.c.l.b16 %v719
      %v6192 = vunpack.c.h.b16 %v719
      %v6193 = vunpack.c.l.b16 %v720
      %v6194 = vunpack.c.h.b16 %v720
      %v6195 = vunpack.c.l.b16 %v721
      %v6196 = vunpack.c.h.b16 %v721
      %v6197 = vunpack.c.l.b16 %v722
      %v6198 = vunpack.c.h.b16 %v722
      %v6199 = vunpack.c.l.b16 %v723
      %v6200 = vunpack.c.h.b16 %v723
      %v6201 = vunpack.c.l.b16 %v724
      %v6202 = vunpack.c.h.b16 %v724
      %v6203 = vunpack.c.l.b16 %v725
      %v6204 = vunpack.c.h.b16 %v725
      %v6205 = vunpack.c.l.b16 %v726
      %v6206 = vunpack.c.h.b16 %v726
      %v6207 = vunpack.c.l.b16 %v727
      %v6208 = vunpack.c.h.b16 %v727
      %v6209 = vunpack.c.l.b16 %v728
      %v6210 = vunpack.c.h.b16 %v728
      %v6211 = vunpack.c.l.b16 %v729
      %v6212 = vunpack.c.h.b16 %v729
      %v6213 = vunpack.c.l.b16 %v730
      %v6214 = vunpack.c.h.b16 %v730
      %v6215 = vunpack.c.l.b16 %v731
      %v6216 = vunpack.c.h.b16 %v731
      %v6217 = vunpack.c.l.b16 %v732
      %v6218 = vunpack.c.h.b16 %v732
      %v6219 = vunpack.c.l.b16 %v733
      %v6220 = vunpack.c.h.b16 %v733
      %v6221 = vunpack.c.l.b16 %v734
      %v6222 = vunpack.c.h.b16 %v734
      %v6223 = vunpack.c.l.b16 %v735
      %v6224 = vunpack.c.h.b16 %v735
      %v6225 = vunpack.c.l.b16 %v736
      %v6226 = vunpack.c.h.b16 %v736
      %v6227 = vunpack.c.l.b16 %v737
      %v6228 = vunpack.c.h.b16 %v737
      %v6229 = vunpack.c.l.b16 %v738
      %v6230 = vunpack.c.h.b16 %v738
      %v6231 = vpack.c.b16 %v5215, %v5207
      %v6232 = vpack.c.b16 %v5216, %v5208
      %v6233 = vpack.c.b16 %v5217, %v5209
      %v6234 = vpack.c.b16 %v5218, %v5210
      %v6235 = vpack.c.b16 %v5219, %v5211
      %v6236 = vpack.c.b16 %v5220, %v5212
      %v6237 = vpack.c.b16 %v5221, %v5213
      %v6238 = vpack.c.b16 %v5222, %v5214
      %v6239 = vpack.c.b16 %v5231, %v5223
      %v6240 = vpack.c.b16 %v5232, %v5224
      %v6241 = vpack.c.b16 %v5233, %v5225
      %v6242 = vpack.c.b16 %v5234, %v5226
      %v6243 = vpack.c.b16 %v5235, %v5227
      %v6244 = vpack.c.b16 %v5236, %v5228
      %v6245 = vpack.c.b16 %v5237, %v5229
      %v6246 = vpack.c.b16 %v5238, %v5230
      %v6247 = vpack.c.b16 %v5247, %v5239
      %v6248 = vpack.c.b16 %v5248, %v5240
      %v6249 = vpack.c.b16 %v5249, %v5241
      %v6250 = vpack.c.b16 %v5250, %v5242
      %v6251 = vpack.c.b16 %v5251, %v5243
      %v6252 = vpack.c.b16 %v5252, %v5244
      %v6253 = vpack.c.b16 %v5253, %v5245
      %v6254 = vpack.c.b16 %v5254, %v5246
      %v6255 = vpack.c.b16 %v5263, %v5255
      %v6256 = vpack.c.b16 %v5264, %v5256
      %v6257 = vpack.c.b16 %v5265, %v5257
      %v6258 = vpack.c.b16 %v5266, %v5258
      %v6259 = vpack.c.b16 %v5267, %v5259
      %v6260 = vpack.c.b16 %v5268, %v5260
      %v6261 = vpack.c.b16 %v5269, %v5261
      %v6262 = vpack.c.b16 %v5270, %v5262
      %v6263 = vpack.c.b16 %v5279, %v5271
      %v6264 = vpack.c.b16 %v5280, %v5272
      %v6265 = vpack.c.b16 %v5281, %v5273
      %v6266 = vpack.c.b16 %v5282, %v5274
      %v6267 = vpack.c.b16 %v5283, %v5275
      %v6268 = vpack.c.b16 %v5284, %v5276
      %v6269 = vpack.c.b16 %v5285, %v5277
      %v6270 = vpack.c.b16 %v5286, %v5278
      %v6271 = vpack.c.b16 %v5295, %v5287
      %v6272 = vpack.c.b16 %v5296, %v5288
      %v6273 = vpack.c.b16 %v5297, %v5289
      %v6274 = vpack.c.b16 %v5298, %v5290
      %v6275 = vpack.c.b16 %v5299, %v5291
      %v6276 = vpack.c.b16 %v5300, %v5292
      %v6277 = vpack.c.b16 %v5301, %v5293
      %v6278 = vpack.c.b16 %v5302, %v5294
      %v6279 = vpack.c.b16 %v5311, %v5303
      %v6280 = vpack.c.b16 %v5312, %v5304
      %v6281 = vpack.c.b16 %v5313, %v5305
      %v6282 = vpack.c.b16 %v5314, %v5306
      %v6283 = vpack.c.b16 %v5315, %v5307
      %v6284 = vpack.c.b16 %v5316, %v5308
      %v6285 = vpack.c.b16 %v5317, %v5309
      %v6286 = vpack.c.b16 %v5318, %v5310
      %v6287 = vpack.c.b16 %v5327, %v5319
      %v6288 = vpack.c.b16 %v5328, %v5320
      %v6289 = vpack.c.b16 %v5329, %v5321
      %v6290 = vpack.c.b16 %v5330, %v5322
      %v6291 = vpack.c.b16 %v5331, %v5323
      %v6292 = vpack.c.b16 %v5332, %v5324
      %v6293 = vpack.c.b16 %v5333, %v5325
      %v6294 = vpack.c.b16 %v5334, %v5326
      %v6295 = vpack.c.b16 %v5343, %v5335
      %v6296 = vpack.c.b16 %v5344, %v5336
      %v6297 = vpack.c.b16 %v5345, %v5337
      %v6298 = vpack.c.b16 %v5346, %v5338
      %v6299 = vpack.c.b16 %v5347, %v5339
      %v6300 = vpack.c.b16 %v5348, %v5340
      %v6301 = vpack.c.b16 %v5349, %v5341
      %v6302 = vpack.c.b16 %v5350, %v5342
      %v6303 = vpack.c.b16 %v5359, %v5351
      %v6304 = vpack.c.b16 %v5360, %v5352
      %v6305 = vpack.c.b16 %v5361, %v5353
      %v6306 = vpack.c.b16 %v5362, %v5354
      %v6307 = vpack.c.b16 %v5363, %v5355
      %v6308 = vpack.c.b16 %v5364, %v5356
      %v6309 = vpack.c.b16 %v5365, %v5357
      %v6310 = vpack.c.b16 %v5366, %v5358
      %v6311 = vpack.c.b16 %v5375, %v5367
      %v6312 = vpack.c.b16 %v5376, %v5368
      %v6313 = vpack.c.b16 %v5377, %v5369
      %v6314 = vpack.c.b16 %v5378, %v5370
      %v6315 = vpack.c.b16 %v5379, %v5371
      %v6316 = vpack.c.b16 %v5380, %v5372
      %v6317 = vpack.c.b16 %v5381, %v5373
      %v6318 = vpack.c.b16 %v5382, %v5374
      %v6319 = vpack.c.b16 %v5391, %v5383
      %v6320 = vpack.c.b16 %v5392, %v5384
      %v6321 = vpack.c.b16 %v5393, %v5385
      %v6322 = vpack.c.b16 %v5394, %v5386
      %v6323 = vpack.c.b16 %v5395, %v5387
      %v6324 = vpack.c.b16 %v5396, %v5388
      %v6325 = vpack.c.b16 %v5397, %v5389
      %v6326 = vpack.c.b16 %v5398, %v5390
      %v6327 = vpack.c.b16 %v5407, %v5399
      %v6328 = vpack.c.b16 %v5408, %v5400
      %v6329 = vpack.c.b16 %v5409, %v5401
      %v6330 = vpack.c.b16 %v5410, %v5402
      %v6331 = vpack.c.b16 %v5411, %v5403
      %v6332 = vpack.c.b16 %v5412, %v5404
      %v6333 = vpack.c.b16 %v5413, %v5405
      %v6334 = vpack.c.b16 %v5414, %v5406
      %v6335 = vpack.c.b16 %v5423, %v5415
      %v6336 = vpack.c.b16 %v5424, %v5416
      %v6337 = vpack.c.b16 %v5425, %v5417
      %v6338 = vpack.c.b16 %v5426, %v5418
      %v6339 = vpack.c.b16 %v5427, %v5419
      %v6340 = vpack.c.b16 %v5428, %v5420
      %v6341 = vpack.c.b16 %v5429, %v5421
      %v6342 = vpack.c.b16 %v5430, %v5422
      %v6343 = vpack.c.b16 %v5439, %v5431
      %v6344 = vpack.c.b16 %v5440, %v5432
      %v6345 = vpack.c.b16 %v5441, %v5433
      %v6346 = vpack.c.b16 %v5442, %v5434
      %v6347 = vpack.c.b16 %v5443, %v5435
      %v6348 = vpack.c.b16 %v5444, %v5436
      %v6349 = vpack.c.b16 %v5445, %v5437
      %v6350 = vpack.c.b16 %v5446, %v5438
      %v6351 = vpack.c.b16 %v5455, %v5447
      %v6352 = vpack.c.b16 %v5456, %v5448
      %v6353 = vpack.c.b16 %v5457, %v5449
      %v6354 = vpack.c.b16 %v5458, %v5450
      %v6355 = vpack.c.b16 %v5459, %v5451
      %v6356 = vpack.c.b16 %v5460, %v5452
      %v6357 = vpack.c.b16 %v5461, %v5453
      %v6358 = vpack.c.b16 %v5462, %v5454
      %v6359 = vpack.c.b16 %v5471, %v5463
      %v6360 = vpack.c.b16 %v5472, %v5464
      %v6361 = vpack.c.b16 %v5473, %v5465
      %v6362 = vpack.c.b16 %v5474, %v5466
      %v6363 = vpack.c.b16 %v5475, %v5467
      %v6364 = vpack.c.b16 %v5476, %v5468
      %v6365 = vpack.c.b16 %v5477, %v5469
      %v6366 = vpack.c.b16 %v5478, %v5470
      %v6367 = vpack.c.b16 %v5487, %v5479
      %v6368 = vpack.c.b16 %v5488, %v5480
      %v6369 = vpack.c.b16 %v5489, %v5481
      %v6370 = vpack.c.b16 %v5490, %v5482
      %v6371 = vpack.c.b16 %v5491, %v5483
      %v6372 = vpack.c.b16 %v5492, %v5484
      %v6373 = vpack.c.b16 %v5493, %v5485
      %v6374 = vpack.c.b16 %v5494, %v5486
      %v6375 = vpack.c.b16 %v5503, %v5495
      %v6376 = vpack.c.b16 %v5504, %v5496
      %v6377 = vpack.c.b16 %v5505, %v5497
      %v6378 = vpack.c.b16 %v5506, %v5498
      %v6379 = vpack.c.b16 %v5507, %v5499
      %v6380 = vpack.c.b16 %v5508, %v5500
      %v6381 = vpack.c.b16 %v5509, %v5501
      %v6382 = vpack.c.b16 %v5510, %v5502
      %v6383 = vpack.c.b16 %v5519, %v5511
      %v6384 = vpack.c.b16 %v5520, %v5512
      %v6385 = vpack.c.b16 %v5521, %v5513
      %v6386 = vpack.c.b16 %v5522, %v5514
      %v6387 = vpack.c.b16 %v5523, %v5515
      %v6388 = vpack.c.b16 %v5524, %v5516
      %v6389 = vpack.c.b16 %v5525, %v5517
      %v6390 = vpack.c.b16 %v5526, %v5518
      %v6391 = vpack.c.b16 %v5535, %v5527
      %v6392 = vpack.c.b16 %v5536, %v5528
      %v6393 = vpack.c.b16 %v5537, %v5529
      %v6394 = vpack.c.b16 %v5538, %v5530
      %v6395 = vpack.c.b16 %v5539, %v5531
      %v6396 = vpack.c.b16 %v5540, %v5532
      %v6397 = vpack.c.b16 %v5541, %v5533
      %v6398 = vpack.c.b16 %v5542, %v5534
      %v6399 = vpack.c.b16 %v5551, %v5543
      %v6400 = vpack.c.b16 %v5552, %v5544
      %v6401 = vpack.c.b16 %v5553, %v5545
      %v6402 = vpack.c.b16 %v5554, %v5546
      %v6403 = vpack.c.b16 %v5555, %v5547
      %v6404 = vpack.c.b16 %v5556, %v5548
      %v6405 = vpack.c.b16 %v5557, %v5549
      %v6406 = vpack.c.b16 %v5558, %v5550
      %v6407 = vpack.c.b16 %v5567, %v5559
      %v6408 = vpack.c.b16 %v5568, %v5560
      %v6409 = vpack.c.b16 %v5569, %v5561
      %v6410 = vpack.c.b16 %v5570, %v5562
      %v6411 = vpack.c.b16 %v5571, %v5563
      %v6412 = vpack.c.b16 %v5572, %v5564
      %v6413 = vpack.c.b16 %v5573, %v5565
      %v6414 = vpack.c.b16 %v5574, %v5566
      %v6415 = vpack.c.b16 %v5583, %v5575
      %v6416 = vpack.c.b16 %v5584, %v5576
      %v6417 = vpack.c.b16 %v5585, %v5577
      %v6418 = vpack.c.b16 %v5586, %v5578
      %v6419 = vpack.c.b16 %v5587, %v5579
      %v6420 = vpack.c.b16 %v5588, %v5580
      %v6421 = vpack.c.b16 %v5589, %v5581
      %v6422 = vpack.c.b16 %v5590, %v5582
      %v6423 = vpack.c.b16 %v5599, %v5591
      %v6424 = vpack.c.b16 %v5600, %v5592
      %v6425 = vpack.c.b16 %v5601, %v5593
      %v6426 = vpack.c.b16 %v5602, %v5594
      %v6427 = vpack.c.b16 %v5603, %v5595
      %v6428 = vpack.c.b16 %v5604, %v5596
      %v6429 = vpack.c.b16 %v5605, %v5597
      %v6430 = vpack.c.b16 %v5606, %v5598
      %v6431 = vpack.c.b16 %v5615, %v5607
      %v6432 = vpack.c.b16 %v5616, %v5608
      %v6433 = vpack.c.b16 %v5617, %v5609
      %v6434 = vpack.c.b16 %v5618, %v5610
      %v6435 = vpack.c.b16 %v5619, %v5611
      %v6436 = vpack.c.b16 %v5620, %v5612
      %v6437 = vpack.c.b16 %v5621, %v5613
      %v6438 = vpack.c.b16 %v5622, %v5614
      %v6439 = vpack.c.b16 %v5631, %v5623
      %v6440 = vpack.c.b16 %v5632, %v5624
      %v6441 = vpack.c.b16 %v5633, %v5625
      %v6442 = vpack.c.b16 %v5634, %v5626
      %v6443 = vpack.c.b16 %v5635, %v5627
      %v6444 = vpack.c.b16 %v5636, %v5628
      %v6445 = vpack.c.b16 %v5637, %v5629
      %v6446 = vpack.c.b16 %v5638, %v5630
      %v6447 = vpack.c.b16 %v5647, %v5639
      %v6448 = vpack.c.b16 %v5648, %v5640
      %v6449 = vpack.c.b16 %v5649, %v5641
      %v6450 = vpack.c.b16 %v5650, %v5642
      %v6451 = vpack.c.b16 %v5651, %v5643
      %v6452 = vpack.c.b16 %v5652, %v5644
      %v6453 = vpack.c.b16 %v5653, %v5645
      %v6454 = vpack.c.b16 %v5654, %v5646
      %v6455 = vpack.c.b16 %v5663, %v5655
      %v6456 = vpack.c.b16 %v5664, %v5656
      %v6457 = vpack.c.b16 %v5665, %v5657
      %v6458 = vpack.c.b16 %v5666, %v5658
      %v6459 = vpack.c.b16 %v5667, %v5659
      %v6460 = vpack.c.b16 %v5668, %v5660
      %v6461 = vpack.c.b16 %v5669, %v5661
      %v6462 = vpack.c.b16 %v5670, %v5662
      %v6463 = vpack.c.b16 %v5679, %v5671
      %v6464 = vpack.c.b16 %v5680, %v5672
      %v6465 = vpack.c.b16 %v5681, %v5673
      %v6466 = vpack.c.b16 %v5682, %v5674
      %v6467 = vpack.c.b16 %v5683, %v5675
      %v6468 = vpack.c.b16 %v5684, %v5676
      %v6469 = vpack.c.b16 %v5685, %v5677
      %v6470 = vpack.c.b16 %v5686, %v5678
      %v6471 = vpack.c.b16 %v5695, %v5687
      %v6472 = vpack.c.b16 %v5696, %v5688
      %v6473 = vpack.c.b16 %v5697, %v5689
      %v6474 = vpack.c.b16 %v5698, %v5690
      %v6475 = vpack.c.b16 %v5699, %v5691
      %v6476 = vpack.c.b16 %v5700, %v5692
      %v6477 = vpack.c.b16 %v5701, %v5693
      %v6478 = vpack.c.b16 %v5702, %v5694
      %v6479 = vpack.c.b16 %v5711, %v5703
      %v6480 = vpack.c.b16 %v5712, %v5704
      %v6481 = vpack.c.b16 %v5713, %v5705
      %v6482 = vpack.c.b16 %v5714, %v5706
      %v6483 = vpack.c.b16 %v5715, %v5707
      %v6484 = vpack.c.b16 %v5716, %v5708
      %v6485 = vpack.c.b16 %v5717, %v5709
      %v6486 = vpack.c.b16 %v5718, %v5710
      %v6487 = vpack.c.b16 %v5727, %v5719
      %v6488 = vpack.c.b16 %v5728, %v5720
      %v6489 = vpack.c.b16 %v5729, %v5721
      %v6490 = vpack.c.b16 %v5730, %v5722
      %v6491 = vpack.c.b16 %v5731, %v5723
      %v6492 = vpack.c.b16 %v5732, %v5724
      %v6493 = vpack.c.b16 %v5733, %v5725
      %v6494 = vpack.c.b16 %v5734, %v5726
      %v6495 = vpack.c.b16 %v5743, %v5735
      %v6496 = vpack.c.b16 %v5744, %v5736
      %v6497 = vpack.c.b16 %v5745, %v5737
      %v6498 = vpack.c.b16 %v5746, %v5738
      %v6499 = vpack.c.b16 %v5747, %v5739
      %v6500 = vpack.c.b16 %v5748, %v5740
      %v6501 = vpack.c.b16 %v5749, %v5741
      %v6502 = vpack.c.b16 %v5750, %v5742
      %v6503 = vpack.c.b16 %v5759, %v5751
      %v6504 = vpack.c.b16 %v5760, %v5752
      %v6505 = vpack.c.b16 %v5761, %v5753
      %v6506 = vpack.c.b16 %v5762, %v5754
      %v6507 = vpack.c.b16 %v5763, %v5755
      %v6508 = vpack.c.b16 %v5764, %v5756
      %v6509 = vpack.c.b16 %v5765, %v5757
      %v6510 = vpack.c.b16 %v5766, %v5758
      %v6511 = vpack.c.b16 %v5775, %v5767
      %v6512 = vpack.c.b16 %v5776, %v5768
      %v6513 = vpack.c.b16 %v5777, %v5769
      %v6514 = vpack.c.b16 %v5778, %v5770
      %v6515 = vpack.c.b16 %v5779, %v5771
      %v6516 = vpack.c.b16 %v5780, %v5772
      %v6517 = vpack.c.b16 %v5781, %v5773
      %v6518 = vpack.c.b16 %v5782, %v5774
      %v6519 = vpack.c.b16 %v5791, %v5783
      %v6520 = vpack.c.b16 %v5792, %v5784
      %v6521 = vpack.c.b16 %v5793, %v5785
      %v6522 = vpack.c.b16 %v5794, %v5786
      %v6523 = vpack.c.b16 %v5795, %v5787
      %v6524 = vpack.c.b16 %v5796, %v5788
      %v6525 = vpack.c.b16 %v5797, %v5789
      %v6526 = vpack.c.b16 %v5798, %v5790
      %v6527 = vpack.c.b16 %v5807, %v5799
      %v6528 = vpack.c.b16 %v5808, %v5800
      %v6529 = vpack.c.b16 %v5809, %v5801
      %v6530 = vpack.c.b16 %v5810, %v5802
      %v6531 = vpack.c.b16 %v5811, %v5803
      %v6532 = vpack.c.b16 %v5812, %v5804
      %v6533 = vpack.c.b16 %v5813, %v5805
      %v6534 = vpack.c.b16 %v5814, %v5806
      %v6535 = vpack.c.b16 %v5823, %v5815
      %v6536 = vpack.c.b16 %v5824, %v5816
      %v6537 = vpack.c.b16 %v5825, %v5817
      %v6538 = vpack.c.b16 %v5826, %v5818
      %v6539 = vpack.c.b16 %v5827, %v5819
      %v6540 = vpack.c.b16 %v5828, %v5820
      %v6541 = vpack.c.b16 %v5829, %v5821
      %v6542 = vpack.c.b16 %v5830, %v5822
      %v6543 = vpack.c.b16 %v5839, %v5831
      %v6544 = vpack.c.b16 %v5840, %v5832
      %v6545 = vpack.c.b16 %v5841, %v5833
      %v6546 = vpack.c.b16 %v5842, %v5834
      %v6547 = vpack.c.b16 %v5843, %v5835
      %v6548 = vpack.c.b16 %v5844, %v5836
      %v6549 = vpack.c.b16 %v5845, %v5837
      %v6550 = vpack.c.b16 %v5846, %v5838
      %v6551 = vpack.c.b16 %v5855, %v5847
      %v6552 = vpack.c.b16 %v5856, %v5848
      %v6553 = vpack.c.b16 %v5857, %v5849
      %v6554 = vpack.c.b16 %v5858, %v5850
      %v6555 = vpack.c.b16 %v5859, %v5851
      %v6556 = vpack.c.b16 %v5860, %v5852
      %v6557 = vpack.c.b16 %v5861, %v5853
      %v6558 = vpack.c.b16 %v5862, %v5854
      %v6559 = vpack.c.b16 %v5871, %v5863
      %v6560 = vpack.c.b16 %v5872, %v5864
      %v6561 = vpack.c.b16 %v5873, %v5865
      %v6562 = vpack.c.b16 %v5874, %v5866
      %v6563 = vpack.c.b16 %v5875, %v5867
      %v6564 = vpack.c.b16 %v5876, %v5868
      %v6565 = vpack.c.b16 %v5877, %v5869
      %v6566 = vpack.c.b16 %v5878, %v5870
      %v6567 = vpack.c.b16 %v5887, %v5879
      %v6568 = vpack.c.b16 %v5888, %v5880
      %v6569 = vpack.c.b16 %v5889, %v5881
      %v6570 = vpack.c.b16 %v5890, %v5882
      %v6571 = vpack.c.b16 %v5891, %v5883
      %v6572 = vpack.c.b16 %v5892, %v5884
      %v6573 = vpack.c.b16 %v5893, %v5885
      %v6574 = vpack.c.b16 %v5894, %v5886
      %v6575 = vpack.c.b16 %v5903, %v5895
      %v6576 = vpack.c.b16 %v5904, %v5896
      %v6577 = vpack.c.b16 %v5905, %v5897
      %v6578 = vpack.c.b16 %v5906, %v5898
      %v6579 = vpack.c.b16 %v5907, %v5899
      %v6580 = vpack.c.b16 %v5908, %v5900
      %v6581 = vpack.c.b16 %v5909, %v5901
      %v6582 = vpack.c.b16 %v5910, %v5902
      %v6583 = vpack.c.b16 %v5919, %v5911
      %v6584 = vpack.c.b16 %v5920, %v5912
      %v6585 = vpack.c.b16 %v5921, %v5913
      %v6586 = vpack.c.b16 %v5922, %v5914
      %v6587 = vpack.c.b16 %v5923, %v5915
      %v6588 = vpack.c.b16 %v5924, %v5916
      %v6589 = vpack.c.b16 %v5925, %v5917
      %v6590 = vpack.c.b16 %v5926, %v5918
      %v6591 = vpack.c.b16 %v5935, %v5927
      %v6592 = vpack.c.b16 %v5936, %v5928
      %v6593 = vpack.c.b16 %v5937, %v5929
      %v6594 = vpack.c.b16 %v5938, %v5930
      %v6595 = vpack.c.b16 %v5939, %v5931
      %v6596 = vpack.c.b16 %v5940, %v5932
      %v6597 = vpack.c.b16 %v5941, %v5933
      %v6598 = vpack.c.b16 %v5942, %v5934
      %v6599 = vpack.c.b16 %v5951, %v5943
      %v6600 = vpack.c.b16 %v5952, %v5944
      %v6601 = vpack.c.b16 %v5953, %v5945
      %v6602 = vpack.c.b16 %v5954, %v5946
      %v6603 = vpack.c.b16 %v5955, %v5947
      %v6604 = vpack.c.b16 %v5956, %v5948
      %v6605 = vpack.c.b16 %v5957, %v5949
      %v6606 = vpack.c.b16 %v5958, %v5950
      %v6607 = vpack.c.b16 %v5967, %v5959
      %v6608 = vpack.c.b16 %v5968, %v5960
      %v6609 = vpack.c.b16 %v5969, %v5961
      %v6610 = vpack.c.b16 %v5970, %v5962
      %v6611 = vpack.c.b16 %v5971, %v5963
      %v6612 = vpack.c.b16 %v5972, %v5964
      %v6613 = vpack.c.b16 %v5973, %v5965
      %v6614 = vpack.c.b16 %v5974, %v5966
      %v6615 = vpack.c.b16 %v5983, %v5975
      %v6616 = vpack.c.b16 %v5984, %v5976
      %v6617 = vpack.c.b16 %v5985, %v5977
      %v6618 = vpack.c.b16 %v5986, %v5978
      %v6619 = vpack.c.b16 %v5987, %v5979
      %v6620 = vpack.c.b16 %v5988, %v5980
      %v6621 = vpack.c.b16 %v5989, %v5981
      %v6622 = vpack.c.b16 %v5990, %v5982
      %v6623 = vpack.c.b16 %v5999, %v5991
      %v6624 = vpack.c.b16 %v6000, %v5992
      %v6625 = vpack.c.b16 %v6001, %v5993
      %v6626 = vpack.c.b16 %v6002, %v5994
      %v6627 = vpack.c.b16 %v6003, %v5995
      %v6628 = vpack.c.b16 %v6004, %v5996
      %v6629 = vpack.c.b16 %v6005, %v5997
      %v6630 = vpack.c.b16 %v6006, %v5998
      %v6631 = vpack.c.b16 %v6015, %v6007
      %v6632 = vpack.c.b16 %v6016, %v6008
      %v6633 = vpack.c.b16 %v6017, %v6009
      %v6634 = vpack.c.b16 %v6018, %v6010
      %v6635 = vpack.c.b16 %v6019, %v6011
      %v6636 = vpack.c.b16 %v6020, %v6012
      %v6637 = vpack.c.b16 %v6021, %v6013
      %v6638 = vpack.c.b16 %v6022, %v6014
      %v6639 = vpack.c.b16 %v6031, %v6023
      %v6640 = vpack.c.b16 %v6032, %v6024
      %v6641 = vpack.c.b16 %v6033, %v6025
      %v6642 = vpack.c.b16 %v6034, %v6026
      %v6643 = vpack.c.b16 %v6035, %v6027
      %v6644 = vpack.c.b16 %v6036, %v6028
      %v6645 = vpack.c.b16 %v6037, %v6029
      %v6646 = vpack.c.b16 %v6038, %v6030
      %v6647 = vpack.c.b16 %v6047, %v6039
      %v6648 = vpack.c.b16 %v6048, %v6040
      %v6649 = vpack.c.b16 %v6049, %v6041
      %v6650 = vpack.c.b16 %v6050, %v6042
      %v6651 = vpack.c.b16 %v6051, %v6043
      %v6652 = vpack.c.b16 %v6052, %v6044
      %v6653 = vpack.c.b16 %v6053, %v6045
      %v6654 = vpack.c.b16 %v6054, %v6046
      %v6655 = vpack.c.b16 %v6063, %v6055
      %v6656 = vpack.c.b16 %v6064, %v6056
      %v6657 = vpack.c.b16 %v6065, %v6057
      %v6658 = vpack.c.b16 %v6066, %v6058
      %v6659 = vpack.c.b16 %v6067, %v6059
      %v6660 = vpack.c.b16 %v6068, %v6060
      %v6661 = vpack.c.b16 %v6069, %v6061
      %v6662 = vpack.c.b16 %v6070, %v6062
      %v6663 = vpack.c.b16 %v6079, %v6071
      %v6664 = vpack.c.b16 %v6080, %v6072
      %v6665 = vpack.c.b16 %v6081, %v6073
      %v6666 = vpack.c.b16 %v6082, %v6074
      %v6667 = vpack.c.b16 %v6083, %v6075
      %v6668 = vpack.c.b16 %v6084, %v6076
      %v6669 = vpack.c.b16 %v6085, %v6077
      %v6670 = vpack.c.b16 %v6086, %v6078
      %v6671 = vpack.c.b16 %v6095, %v6087
      %v6672 = vpack.c.b16 %v6096, %v6088
      %v6673 = vpack.c.b16 %v6097, %v6089
      %v6674 = vpack.c.b16 %v6098, %v6090
      %v6675 = vpack.c.b16 %v6099, %v6091
      %v6676 = vpack.c.b16 %v6100, %v6092
      %v6677 = vpack.c.b16 %v6101, %v6093
      %v6678 = vpack.c.b16 %v6102, %v6094
      %v6679 = vpack.c.b16 %v6111, %v6103
      %v6680 = vpack.c.b16 %v6112, %v6104
      %v6681 = vpack.c.b16 %v6113, %v6105
      %v6682 = vpack.c.b16 %v6114, %v6106
      %v6683 = vpack.c.b16 %v6115, %v6107
      %v6684 = vpack.c.b16 %v6116, %v6108
      %v6685 = vpack.c.b16 %v6117, %v6109
      %v6686 = vpack.c.b16 %v6118, %v6110
      %v6687 = vpack.c.b16 %v6127, %v6119
      %v6688 = vpack.c.b16 %v6128, %v6120
      %v6689 = vpack.c.b16 %v6129, %v6121
      %v6690 = vpack.c.b16 %v6130, %v6122
      %v6691 = vpack.c.b16 %v6131, %v6123
      %v6692 = vpack.c.b16 %v6132, %v6124
      %v6693 = vpack.c.b16 %v6133, %v6125
      %v6694 = vpack.c.b16 %v6134, %v6126
      %v6695 = vpack.c.b16 %v6143, %v6135
      %v6696 = vpack.c.b16 %v6144, %v6136
      %v6697 = vpack.c.b16 %v6145, %v6137
      %v6698 = vpack.c.b16 %v6146, %v6138
      %v6699 = vpack.c.b16 %v6147, %v6139
      %v6700 = vpack.c.b16 %v6148, %v6140
      %v6701 = vpack.c.b16 %v6149, %v6141
      %v6702 = vpack.c.b16 %v6150, %v6142
      %v6703 = vpack.c.b16 %v6159, %v6151
      %v6704 = vpack.c.b16 %v6160, %v6152
      %v6705 = vpack.c.b16 %v6161, %v6153
      %v6706 = vpack.c.b16 %v6162, %v6154
      %v6707 = vpack.c.b16 %v6163, %v6155
      %v6708 = vpack.c.b16 %v6164, %v6156
      %v6709 = vpack.c.b16 %v6165, %v6157
      %v6710 = vpack.c.b16 %v6166, %v6158
      %v6711 = vpack.c.b16 %v6175, %v6167
      %v6712 = vpack.c.b16 %v6176, %v6168
      %v6713 = vpack.c.b16 %v6177, %v6169
      %v6714 = vpack.c.b16 %v6178, %v6170
      %v6715 = vpack.c.b16 %v6179, %v6171
      %v6716 = vpack.c.b16 %v6180, %v6172
      %v6717 = vpack.c.b16 %v6181, %v6173
      %v6718 = vpack.c.b16 %v6182, %v6174
      %v6719 = vpack.c.b16 %v6191, %v6183
      %v6720 = vpack.c.b16 %v6192, %v6184
      %v6721 = vpack.c.b16 %v6193, %v6185
      %v6722 = vpack.c.b16 %v6194, %v6186
      %v6723 = vpack.c.b16 %v6195, %v6187
      %v6724 = vpack.c.b16 %v6196, %v6188
      %v6725 = vpack.c.b16 %v6197, %v6189
      %v6726 = vpack.c.b16 %v6198, %v6190
      %v6727 = vpack.c.b16 %v6207, %v6199
      %v6728 = vpack.c.b16 %v6208, %v6200
      %v6729 = vpack.c.b16 %v6209, %v6201
      %v6730 = vpack.c.b16 %v6210, %v6202
      %v6731 = vpack.c.b16 %v6211, %v6203
      %v6732 = vpack.c.b16 %v6212, %v6204
      %v6733 = vpack.c.b16 %v6213, %v6205
      %v6734 = vpack.c.b16 %v6214, %v6206
      %v6735 = vpack.c.b16 %v6223, %v6215
      %v6736 = vpack.c.b16 %v6224, %v6216
      %v6737 = vpack.c.b16 %v6225, %v6217
      %v6738 = vpack.c.b16 %v6226, %v6218
      %v6739 = vpack.c.b16 %v6227, %v6219
      %v6740 = vpack.c.b16 %v6228, %v6220
      %v6741 = vpack.c.b16 %v6229, %v6221
      %v6742 = vpack.c.b16 %v6230, %v6222
      %7255 = vmatprep.subr.bf16.mxu0 %v6288
      %7256 = vmatpush1.bf16.msra.mxu0 %v6287
      %7257 = vmatprep.subr.bf16.mxu0 %v6280
      %7258 = vmatpush1.bf16.msra.mxu0 %v6279
      %7259 = vmatprep.subr.bf16.mxu0 %v6272
      %7260 = vmatpush1.bf16.msra.mxu0 %v6271
      %7261 = vmatprep.subr.bf16.mxu0 %v6264
      %7262 = vmatpush1.bf16.msra.mxu0 %v6263
      %7263 = vmatprep.subr.bf16.mxu0 %v6256
      %7264 = vmatpush1.bf16.msra.mxu0 %v6255
      %7265 = vmatprep.subr.bf16.mxu0 %v6248
      %7266 = vmatpush1.bf16.msra.mxu0 %v6247
      %7267 = vmatprep.subr.bf16.mxu0 %v6240
      %7268 = vmatpush1.bf16.msra.mxu0 %v6239
      %7269 = vmatprep.subr.bf16.mxu0 %v6232
      %7270 = vmatpush1.bf16.msra.mxu0 %v6231
      %7271 = vmatprep.subr.bf16.mxu0 %v6352
      %7272 = vmatpush2.bf16.msra.mxu0 %v6351
      %7273 = vmatprep.subr.bf16.mxu0 %v6344
      %7274 = vmatpush2.bf16.msra.mxu0 %v6343
      %7275 = vmatprep.subr.bf16.mxu0 %v6336
      %7276 = vmatpush2.bf16.msra.mxu0 %v6335
      %7277 = vmatprep.subr.bf16.mxu0 %v6328
      %7278 = vmatpush2.bf16.msra.mxu0 %v6327
      %7279 = vmatprep.subr.bf16.mxu0 %v6320
      %7280 = vmatpush2.bf16.msra.mxu0 %v6319
      %7281 = vmatprep.subr.bf16.mxu0 %v6312
      %7282 = vmatpush2.bf16.msra.mxu0 %v6311
      %7283 = vmatprep.subr.bf16.mxu0 %v6304
      %7284 = vmatpush2.bf16.msra.mxu0 %v6303
      %7285 = vmatprep.subr.bf16.mxu0 %v6296
      %7286 = vmatpush2.bf16.msra.mxu0 %v6295
      %7287 = vmatprep.mubr.bf16.mxu0 %v1288
      %7288 = vmatmul.mubr.bf16.gmra.mxu0 %v1287
      %v7289 = vpop.f32.mrf.mxu0
      %v7290 = vadd.f32 %v4067, %v7289
      %v7291 = vpop.f32.mrf.mxu0
      %v7292 = vadd.f32 %v4069, %v7291
      %v7293 = vpop.f32.mrf.mxu0
      %v7294 = vadd.f32 %v4071, %v7293
      %v7295 = vpop.f32.mrf.mxu0
      %v7296 = vadd.f32 %v4073, %v7295
      %7297 = vmatprep.mubr.bf16.mxu0 %v1296
      %7298 = vmatmul.mubr.bf16.gmra.mxu0 %v1295
      %v7299 = vpop.f32.mrf.mxu0
      %v7300 = vadd.f32 %v4077, %v7299
      %v7301 = vpop.f32.mrf.mxu0
      %v7302 = vadd.f32 %v4079, %v7301
      %v7303 = vpop.f32.mrf.mxu0
      %v7304 = vpop.f32.mrf.mxu0
      %7305 = vdwg.mxu0
      %7306 = vmatprep.subr.bf16.mxu0 %v6416
      %7307 = vmatpush1.bf16.msra.mxu0 %v6415
      %7308 = vmatprep.subr.bf16.mxu0 %v6408
      %7309 = vmatpush1.bf16.msra.mxu0 %v6407
      %7310 = vmatprep.subr.bf16.mxu0 %v6400
      %7311 = vmatpush1.bf16.msra.mxu0 %v6399
      %7312 = vmatprep.subr.bf16.mxu0 %v6392
      %7313 = vmatpush1.bf16.msra.mxu0 %v6391
      %7314 = vmatprep.subr.bf16.mxu0 %v6384
      %7315 = vmatpush1.bf16.msra.mxu0 %v6383
      %7316 = vmatprep.subr.bf16.mxu0 %v6376
      %7317 = vmatpush1.bf16.msra.mxu0 %v6375
      %7318 = vmatprep.subr.bf16.mxu0 %v6368
      %7319 = vmatpush1.bf16.msra.mxu0 %v6367
      %7320 = vmatprep.subr.bf16.mxu0 %v6360
      %7321 = vmatpush1.bf16.msra.mxu0 %v6359
      %7322 = vmatprep.subr.bf16.mxu0 %v6480
      %7323 = vmatpush2.bf16.msra.mxu0 %v6479
      %7324 = vmatprep.subr.bf16.mxu0 %v6472
      %7325 = vmatpush2.bf16.msra.mxu0 %v6471
      %7326 = vmatprep.subr.bf16.mxu0 %v6464
      %7327 = vmatpush2.bf16.msra.mxu0 %v6463
      %7328 = vmatprep.subr.bf16.mxu0 %v6456
      %7329 = vmatpush2.bf16.msra.mxu0 %v6455
      %7330 = vmatprep.subr.bf16.mxu0 %v6448
      %7331 = vmatpush2.bf16.msra.mxu0 %v6447
      %7332 = vmatprep.subr.bf16.mxu0 %v6440
      %7333 = vmatpush2.bf16.msra.mxu0 %v6439
      %7334 = vmatprep.subr.bf16.mxu0 %v6432
      %7335 = vmatpush2.bf16.msra.mxu0 %v6431
      %7336 = vmatprep.subr.bf16.mxu0 %v6424
      %7337 = vmatpush2.bf16.msra.mxu0 %v6423
      %7338 = vmatprep.mubr.bf16.mxu0 %v1290
      %7339 = vmatmul.mubr.bf16.gmra.mxu0 %v1289
      %v7340 = vpop.f32.mrf.mxu0
      %v7341 = vadd.f32 %v7290, %v7340
      %v7342 = vpop.f32.mrf.mxu0
      %v7343 = vadd.f32 %v7292, %v7342
      %v7344 = vpop.f32.mrf.mxu0
      %v7345 = vadd.f32 %v7294, %v7344
      %v7346 = vpop.f32.mrf.mxu0
      %v7347 = vadd.f32 %v7296, %v7346
      %7348 = vmatprep.mubr.bf16.mxu0 %v1298
      %7349 = vmatmul.mubr.bf16.gmra.mxu0 %v1297
      %v7350 = vpop.f32.mrf.mxu0
      %v7351 = vadd.f32 %v7300, %v7350
      %v7352 = vpop.f32.mrf.mxu0
      %v7353 = vadd.f32 %v7302, %v7352
      %v7354 = vpop.f32.mrf.mxu0
      %v7355 = vpop.f32.mrf.mxu0
      %7356 = vdwg.mxu0
      %7357 = vmatprep.subr.bf16.mxu0 %v6544
      %7358 = vmatpush1.bf16.msra.mxu0 %v6543
      %7359 = vmatprep.subr.bf16.mxu0 %v6536
      %7360 = vmatpush1.bf16.msra.mxu0 %v6535
      %7361 = vmatprep.subr.bf16.mxu0 %v6528
      %7362 = vmatpush1.bf16.msra.mxu0 %v6527
      %7363 = vmatprep.subr.bf16.mxu0 %v6520
      %7364 = vmatpush1.bf16.msra.mxu0 %v6519
      %7365 = vmatprep.subr.bf16.mxu0 %v6512
      %7366 = vmatpush1.bf16.msra.mxu0 %v6511
      %7367 = vmatprep.subr.bf16.mxu0 %v6504
      %7368 = vmatpush1.bf16.msra.mxu0 %v6503
      %7369 = vmatprep.subr.bf16.mxu0 %v6496
      %7370 = vmatpush1.bf16.msra.mxu0 %v6495
      %7371 = vmatprep.subr.bf16.mxu0 %v6488
      %7372 = vmatpush1.bf16.msra.mxu0 %v6487
      %7373 = vmatprep.subr.bf16.mxu0 %v6608
      %7374 = vmatpush2.bf16.msra.mxu0 %v6607
      %7375 = vmatprep.subr.bf16.mxu0 %v6600
      %7376 = vmatpush2.bf16.msra.mxu0 %v6599
      %7377 = vmatprep.subr.bf16.mxu0 %v6592
      %7378 = vmatpush2.bf16.msra.mxu0 %v6591
      %7379 = vmatprep.subr.bf16.mxu0 %v6584
      %7380 = vmatpush2.bf16.msra.mxu0 %v6583
      %7381 = vmatprep.subr.bf16.mxu0 %v6576
      %7382 = vmatpush2.bf16.msra.mxu0 %v6575
      %7383 = vmatprep.subr.bf16.mxu0 %v6568
      %7384 = vmatpush2.bf16.msra.mxu0 %v6567
      %7385 = vmatprep.subr.bf16.mxu0 %v6560
      %7386 = vmatpush2.bf16.msra.mxu0 %v6559
      %7387 = vmatprep.subr.bf16.mxu0 %v6552
      %7388 = vmatpush2.bf16.msra.mxu0 %v6551
      %7389 = vmatprep.mubr.bf16.mxu0 %v1292
      %7390 = vmatmul.mubr.bf16.gmra.mxu0 %v1291
      %v7391 = vpop.f32.mrf.mxu0
      %v7392 = vadd.f32 %v7341, %v7391
      %v7393 = vpop.f32.mrf.mxu0
      %v7394 = vadd.f32 %v7343, %v7393
      %v7395 = vpop.f32.mrf.mxu0
      %v7396 = vadd.f32 %v7345, %v7395
      %v7397 = vpop.f32.mrf.mxu0
      %v7398 = vadd.f32 %v7347, %v7397
      %7399 = vmatprep.mubr.bf16.mxu0 %v1300
      %7400 = vmatmul.mubr.bf16.gmra.mxu0 %v1299
      %v7401 = vpop.f32.mrf.mxu0
      %v7402 = vadd.f32 %v7351, %v7401
      %v7403 = vpop.f32.mrf.mxu0
      %v7404 = vadd.f32 %v7353, %v7403
      %v7405 = vpop.f32.mrf.mxu0
      %v7406 = vpop.f32.mrf.mxu0
      %7407 = vdwg.mxu0
      %7408 = vmatprep.subr.bf16.mxu0 %v6672
      %7409 = vmatpush1.bf16.msra.mxu0 %v6671
      %7410 = vmatprep.subr.bf16.mxu0 %v6664
      %7411 = vmatpush1.bf16.msra.mxu0 %v6663
      %7412 = vmatprep.subr.bf16.mxu0 %v6656
      %7413 = vmatpush1.bf16.msra.mxu0 %v6655
      %7414 = vmatprep.subr.bf16.mxu0 %v6648
      %7415 = vmatpush1.bf16.msra.mxu0 %v6647
      %7416 = vmatprep.subr.bf16.mxu0 %v6640
      %7417 = vmatpush1.bf16.msra.mxu0 %v6639
      %7418 = vmatprep.subr.bf16.mxu0 %v6632
      %7419 = vmatpush1.bf16.msra.mxu0 %v6631
      %7420 = vmatprep.subr.bf16.mxu0 %v6624
      %7421 = vmatpush1.bf16.msra.mxu0 %v6623
      %7422 = vmatprep.subr.bf16.mxu0 %v6616
      %7423 = vmatpush1.bf16.msra.mxu0 %v6615
      %7424 = vmatprep.subr.bf16.mxu0 %v6736
      %7425 = vmatpush2.bf16.msra.mxu0 %v6735
      %7426 = vmatprep.subr.bf16.mxu0 %v6728
      %7427 = vmatpush2.bf16.msra.mxu0 %v6727
      %7428 = vmatprep.subr.bf16.mxu0 %v6720
      %7429 = vmatpush2.bf16.msra.mxu0 %v6719
      %7430 = vmatprep.subr.bf16.mxu0 %v6712
      %7431 = vmatpush2.bf16.msra.mxu0 %v6711
      %7432 = vmatprep.subr.bf16.mxu0 %v6704
      %7433 = vmatpush2.bf16.msra.mxu0 %v6703
      %7434 = vmatprep.subr.bf16.mxu0 %v6696
      %7435 = vmatpush2.bf16.msra.mxu0 %v6695
      %7436 = vmatprep.subr.bf16.mxu0 %v6688
      %7437 = vmatpush2.bf16.msra.mxu0 %v6687
      %7438 = vmatprep.subr.bf16.mxu0 %v6680
      %7439 = vmatpush2.bf16.msra.mxu0 %v6679
      %7440 = vmatprep.mubr.bf16.mxu0 %v1294
      %7441 = vmatmul.mubr.bf16.gmra.mxu0 %v1293
      %v7442 = vpop.f32.mrf.mxu0
      %v7443 = vadd.f32 %v7392, %v7442
      %v7444 = vpop.f32.mrf.mxu0
      %v7445 = vadd.f32 %v7394, %v7444
      %v7446 = vpop.f32.mrf.mxu0
      %v7447 = vadd.f32 %v7396, %v7446
      %v7448 = vpop.f32.mrf.mxu0
      %v7449 = vadd.f32 %v7398, %v7448
      %7450 = vmatprep.mubr.bf16.mxu0 %v1302
      %7451 = vmatmul.mubr.bf16.gmra.mxu0 %v1301
      %v7452 = vpop.f32.mrf.mxu0
      %v7453 = vadd.f32 %v7402, %v7452
      %v7454 = vpop.f32.mrf.mxu0
      %v7455 = vadd.f32 %v7404, %v7454
      %v7456 = vpop.f32.mrf.mxu0
      %v7457 = vpop.f32.mrf.mxu0
      %7458 = vdwg.mxu0
      %7459 = vmatprep.subr.bf16.mxu0 %v6290
      %7460 = vmatpush1.bf16.msra.mxu0 %v6289
      %7461 = vmatprep.subr.bf16.mxu0 %v6282
      %7462 = vmatpush1.bf16.msra.mxu0 %v6281
      %7463 = vmatprep.subr.bf16.mxu0 %v6274
      %7464 = vmatpush1.bf16.msra.mxu0 %v6273
      %7465 = vmatprep.subr.bf16.mxu0 %v6266
      %7466 = vmatpush1.bf16.msra.mxu0 %v6265
      %7467 = vmatprep.subr.bf16.mxu0 %v6258
      %7468 = vmatpush1.bf16.msra.mxu0 %v6257
      %7469 = vmatprep.subr.bf16.mxu0 %v6250
      %7470 = vmatpush1.bf16.msra.mxu0 %v6249
      %7471 = vmatprep.subr.bf16.mxu0 %v6242
      %7472 = vmatpush1.bf16.msra.mxu0 %v6241
      %7473 = vmatprep.subr.bf16.mxu0 %v6234
      %7474 = vmatpush1.bf16.msra.mxu0 %v6233
      %7475 = vmatprep.subr.bf16.mxu0 %v6354
      %7476 = vmatpush2.bf16.msra.mxu0 %v6353
      %7477 = vmatprep.subr.bf16.mxu0 %v6346
      %7478 = vmatpush2.bf16.msra.mxu0 %v6345
      %7479 = vmatprep.subr.bf16.mxu0 %v6338
      %7480 = vmatpush2.bf16.msra.mxu0 %v6337
      %7481 = vmatprep.subr.bf16.mxu0 %v6330
      %7482 = vmatpush2.bf16.msra.mxu0 %v6329
      %7483 = vmatprep.subr.bf16.mxu0 %v6322
      %7484 = vmatpush2.bf16.msra.mxu0 %v6321
      %7485 = vmatprep.subr.bf16.mxu0 %v6314
      %7486 = vmatpush2.bf16.msra.mxu0 %v6313
      %7487 = vmatprep.subr.bf16.mxu0 %v6306
      %7488 = vmatpush2.bf16.msra.mxu0 %v6305
      %7489 = vmatprep.subr.bf16.mxu0 %v6298
      %7490 = vmatpush2.bf16.msra.mxu0 %v6297
      %7491 = vmatprep.mubr.bf16.mxu0 %v1288
      %7492 = vmatmul.mubr.bf16.gmra.mxu0 %v1287
      %v7493 = vpop.f32.mrf.mxu0
      %v7494 = vadd.f32 %v4271, %v7493
      %v7495 = vpop.f32.mrf.mxu0
      %v7496 = vadd.f32 %v4273, %v7495
      %v7497 = vpop.f32.mrf.mxu0
      %v7498 = vadd.f32 %v4275, %v7497
      %v7499 = vpop.f32.mrf.mxu0
      %v7500 = vadd.f32 %v4277, %v7499
      %7501 = vmatprep.mubr.bf16.mxu0 %v1296
      %7502 = vmatmul.mubr.bf16.gmra.mxu0 %v1295
      %v7503 = vpop.f32.mrf.mxu0
      %v7504 = vadd.f32 %v4281, %v7503
      %v7505 = vpop.f32.mrf.mxu0
      %v7506 = vadd.f32 %v4283, %v7505
      %v7507 = vpop.f32.mrf.mxu0
      %v7508 = vpop.f32.mrf.mxu0
      %7509 = vdwg.mxu0
      %7510 = vmatprep.subr.bf16.mxu0 %v6418
      %7511 = vmatpush1.bf16.msra.mxu0 %v6417
      %7512 = vmatprep.subr.bf16.mxu0 %v6410
      %7513 = vmatpush1.bf16.msra.mxu0 %v6409
      %7514 = vmatprep.subr.bf16.mxu0 %v6402
      %7515 = vmatpush1.bf16.msra.mxu0 %v6401
      %7516 = vmatprep.subr.bf16.mxu0 %v6394
      %7517 = vmatpush1.bf16.msra.mxu0 %v6393
      %7518 = vmatprep.subr.bf16.mxu0 %v6386
      %7519 = vmatpush1.bf16.msra.mxu0 %v6385
      %7520 = vmatprep.subr.bf16.mxu0 %v6378
      %7521 = vmatpush1.bf16.msra.mxu0 %v6377
      %7522 = vmatprep.subr.bf16.mxu0 %v6370
      %7523 = vmatpush1.bf16.msra.mxu0 %v6369
      %7524 = vmatprep.subr.bf16.mxu0 %v6362
      %7525 = vmatpush1.bf16.msra.mxu0 %v6361
      %7526 = vmatprep.subr.bf16.mxu0 %v6482
      %7527 = vmatpush2.bf16.msra.mxu0 %v6481
      %7528 = vmatprep.subr.bf16.mxu0 %v6474
      %7529 = vmatpush2.bf16.msra.mxu0 %v6473
      %7530 = vmatprep.subr.bf16.mxu0 %v6466
      %7531 = vmatpush2.bf16.msra.mxu0 %v6465
      %7532 = vmatprep.subr.bf16.mxu0 %v6458
      %7533 = vmatpush2.bf16.msra.mxu0 %v6457
      %7534 = vmatprep.subr.bf16.mxu0 %v6450
      %7535 = vmatpush2.bf16.msra.mxu0 %v6449
      %7536 = vmatprep.subr.bf16.mxu0 %v6442
      %7537 = vmatpush2.bf16.msra.mxu0 %v6441
      %7538 = vmatprep.subr.bf16.mxu0 %v6434
      %7539 = vmatpush2.bf16.msra.mxu0 %v6433
      %7540 = vmatprep.subr.bf16.mxu0 %v6426
      %7541 = vmatpush2.bf16.msra.mxu0 %v6425
      %7542 = vmatprep.mubr.bf16.mxu0 %v1290
      %7543 = vmatmul.mubr.bf16.gmra.mxu0 %v1289
      %v7544 = vpop.f32.mrf.mxu0
      %v7545 = vadd.f32 %v7494, %v7544
      %v7546 = vpop.f32.mrf.mxu0
      %v7547 = vadd.f32 %v7496, %v7546
      %v7548 = vpop.f32.mrf.mxu0
      %v7549 = vadd.f32 %v7498, %v7548
      %v7550 = vpop.f32.mrf.mxu0
      %v7551 = vadd.f32 %v7500, %v7550
      %7552 = vmatprep.mubr.bf16.mxu0 %v1298
      %7553 = vmatmul.mubr.bf16.gmra.mxu0 %v1297
      %v7554 = vpop.f32.mrf.mxu0
      %v7555 = vadd.f32 %v7504, %v7554
      %v7556 = vpop.f32.mrf.mxu0
      %v7557 = vadd.f32 %v7506, %v7556
      %v7558 = vpop.f32.mrf.mxu0
      %v7559 = vpop.f32.mrf.mxu0
      %7560 = vdwg.mxu0
      %7561 = vmatprep.subr.bf16.mxu0 %v6546
      %7562 = vmatpush1.bf16.msra.mxu0 %v6545
      %7563 = vmatprep.subr.bf16.mxu0 %v6538
      %7564 = vmatpush1.bf16.msra.mxu0 %v6537
      %7565 = vmatprep.subr.bf16.mxu0 %v6530
      %7566 = vmatpush1.bf16.msra.mxu0 %v6529
      %7567 = vmatprep.subr.bf16.mxu0 %v6522
      %7568 = vmatpush1.bf16.msra.mxu0 %v6521
      %7569 = vmatprep.subr.bf16.mxu0 %v6514
      %7570 = vmatpush1.bf16.msra.mxu0 %v6513
      %7571 = vmatprep.subr.bf16.mxu0 %v6506
      %7572 = vmatpush1.bf16.msra.mxu0 %v6505
      %7573 = vmatprep.subr.bf16.mxu0 %v6498
      %7574 = vmatpush1.bf16.msra.mxu0 %v6497
      %7575 = vmatprep.subr.bf16.mxu0 %v6490
      %7576 = vmatpush1.bf16.msra.mxu0 %v6489
      %7577 = vmatprep.subr.bf16.mxu0 %v6610
      %7578 = vmatpush2.bf16.msra.mxu0 %v6609
      %7579 = vmatprep.subr.bf16.mxu0 %v6602
      %7580 = vmatpush2.bf16.msra.mxu0 %v6601
      %7581 = vmatprep.subr.bf16.mxu0 %v6594
      %7582 = vmatpush2.bf16.msra.mxu0 %v6593
      %7583 = vmatprep.subr.bf16.mxu0 %v6586
      %7584 = vmatpush2.bf16.msra.mxu0 %v6585
      %7585 = vmatprep.subr.bf16.mxu0 %v6578
      %7586 = vmatpush2.bf16.msra.mxu0 %v6577
      %7587 = vmatprep.subr.bf16.mxu0 %v6570
      %7588 = vmatpush2.bf16.msra.mxu0 %v6569
      %7589 = vmatprep.subr.bf16.mxu0 %v6562
      %7590 = vmatpush2.bf16.msra.mxu0 %v6561
      %7591 = vmatprep.subr.bf16.mxu0 %v6554
      %7592 = vmatpush2.bf16.msra.mxu0 %v6553
      %7593 = vmatprep.mubr.bf16.mxu0 %v1292
      %7594 = vmatmul.mubr.bf16.gmra.mxu0 %v1291
      %v7595 = vpop.f32.mrf.mxu0
      %v7596 = vadd.f32 %v7545, %v7595
      %v7597 = vpop.f32.mrf.mxu0
      %v7598 = vadd.f32 %v7547, %v7597
      %v7599 = vpop.f32.mrf.mxu0
      %v7600 = vadd.f32 %v7549, %v7599
      %v7601 = vpop.f32.mrf.mxu0
      %v7602 = vadd.f32 %v7551, %v7601
      %7603 = vmatprep.mubr.bf16.mxu0 %v1300
      %7604 = vmatmul.mubr.bf16.gmra.mxu0 %v1299
      %v7605 = vpop.f32.mrf.mxu0
      %v7606 = vadd.f32 %v7555, %v7605
      %v7607 = vpop.f32.mrf.mxu0
      %v7608 = vadd.f32 %v7557, %v7607
      %v7609 = vpop.f32.mrf.mxu0
      %v7610 = vpop.f32.mrf.mxu0
      %7611 = vdwg.mxu0
      %7612 = vmatprep.subr.bf16.mxu0 %v6674
      %7613 = vmatpush1.bf16.msra.mxu0 %v6673
      %7614 = vmatprep.subr.bf16.mxu0 %v6666
      %7615 = vmatpush1.bf16.msra.mxu0 %v6665
      %7616 = vmatprep.subr.bf16.mxu0 %v6658
      %7617 = vmatpush1.bf16.msra.mxu0 %v6657
      %7618 = vmatprep.subr.bf16.mxu0 %v6650
      %7619 = vmatpush1.bf16.msra.mxu0 %v6649
      %7620 = vmatprep.subr.bf16.mxu0 %v6642
      %7621 = vmatpush1.bf16.msra.mxu0 %v6641
      %7622 = vmatprep.subr.bf16.mxu0 %v6634
      %7623 = vmatpush1.bf16.msra.mxu0 %v6633
      %7624 = vmatprep.subr.bf16.mxu0 %v6626
      %7625 = vmatpush1.bf16.msra.mxu0 %v6625
      %7626 = vmatprep.subr.bf16.mxu0 %v6618
      %7627 = vmatpush1.bf16.msra.mxu0 %v6617
      %7628 = vmatprep.subr.bf16.mxu0 %v6738
      %7629 = vmatpush2.bf16.msra.mxu0 %v6737
      %7630 = vmatprep.subr.bf16.mxu0 %v6730
      %7631 = vmatpush2.bf16.msra.mxu0 %v6729
      %7632 = vmatprep.subr.bf16.mxu0 %v6722
      %7633 = vmatpush2.bf16.msra.mxu0 %v6721
      %7634 = vmatprep.subr.bf16.mxu0 %v6714
      %7635 = vmatpush2.bf16.msra.mxu0 %v6713
      %7636 = vmatprep.subr.bf16.mxu0 %v6706
      %7637 = vmatpush2.bf16.msra.mxu0 %v6705
      %7638 = vmatprep.subr.bf16.mxu0 %v6698
      %7639 = vmatpush2.bf16.msra.mxu0 %v6697
      %7640 = vmatprep.subr.bf16.mxu0 %v6690
      %7641 = vmatpush2.bf16.msra.mxu0 %v6689
      %7642 = vmatprep.subr.bf16.mxu0 %v6682
      %7643 = vmatpush2.bf16.msra.mxu0 %v6681
      %7644 = vmatprep.mubr.bf16.mxu0 %v1294
      %7645 = vmatmul.mubr.bf16.gmra.mxu0 %v1293
      %v7646 = vpop.f32.mrf.mxu0
      %v7647 = vadd.f32 %v7596, %v7646
      %v7648 = vpop.f32.mrf.mxu0
      %v7649 = vadd.f32 %v7598, %v7648
      %v7650 = vpop.f32.mrf.mxu0
      %v7651 = vadd.f32 %v7600, %v7650
      %v7652 = vpop.f32.mrf.mxu0
      %v7653 = vadd.f32 %v7602, %v7652
      %7654 = vmatprep.mubr.bf16.mxu0 %v1302
      %7655 = vmatmul.mubr.bf16.gmra.mxu0 %v1301
      %v7656 = vpop.f32.mrf.mxu0
      %v7657 = vadd.f32 %v7606, %v7656
      %v7658 = vpop.f32.mrf.mxu0
      %v7659 = vadd.f32 %v7608, %v7658
      %v7660 = vpop.f32.mrf.mxu0
      %v7661 = vpop.f32.mrf.mxu0
      %7662 = vdwg.mxu0
      %7663 = vmatprep.subr.bf16.mxu0 %v6292
      %7664 = vmatpush1.bf16.msra.mxu0 %v6291
      %7665 = vmatprep.subr.bf16.mxu0 %v6284
      %7666 = vmatpush1.bf16.msra.mxu0 %v6283
      %7667 = vmatprep.subr.bf16.mxu0 %v6276
      %7668 = vmatpush1.bf16.msra.mxu0 %v6275
      %7669 = vmatprep.subr.bf16.mxu0 %v6268
      %7670 = vmatpush1.bf16.msra.mxu0 %v6267
      %7671 = vmatprep.subr.bf16.mxu0 %v6260
      %7672 = vmatpush1.bf16.msra.mxu0 %v6259
      %7673 = vmatprep.subr.bf16.mxu0 %v6252
      %7674 = vmatpush1.bf16.msra.mxu0 %v6251
      %7675 = vmatprep.subr.bf16.mxu0 %v6244
      %7676 = vmatpush1.bf16.msra.mxu0 %v6243
      %7677 = vmatprep.subr.bf16.mxu0 %v6236
      %7678 = vmatpush1.bf16.msra.mxu0 %v6235
      %7679 = vmatprep.subr.bf16.mxu0 %v6356
      %7680 = vmatpush2.bf16.msra.mxu0 %v6355
      %7681 = vmatprep.subr.bf16.mxu0 %v6348
      %7682 = vmatpush2.bf16.msra.mxu0 %v6347
      %7683 = vmatprep.subr.bf16.mxu0 %v6340
      %7684 = vmatpush2.bf16.msra.mxu0 %v6339
      %7685 = vmatprep.subr.bf16.mxu0 %v6332
      %7686 = vmatpush2.bf16.msra.mxu0 %v6331
      %7687 = vmatprep.subr.bf16.mxu0 %v6324
      %7688 = vmatpush2.bf16.msra.mxu0 %v6323
      %7689 = vmatprep.subr.bf16.mxu0 %v6316
      %7690 = vmatpush2.bf16.msra.mxu0 %v6315
      %7691 = vmatprep.subr.bf16.mxu0 %v6308
      %7692 = vmatpush2.bf16.msra.mxu0 %v6307
      %7693 = vmatprep.subr.bf16.mxu0 %v6300
      %7694 = vmatpush2.bf16.msra.mxu0 %v6299
      %7695 = vmatprep.mubr.bf16.mxu0 %v1288
      %7696 = vmatmul.mubr.bf16.gmra.mxu0 %v1287
      %v7697 = vpop.f32.mrf.mxu0
      %v7698 = vadd.f32 %v4475, %v7697
      %v7699 = vpop.f32.mrf.mxu0
      %v7700 = vadd.f32 %v4477, %v7699
      %v7701 = vpop.f32.mrf.mxu0
      %v7702 = vadd.f32 %v4479, %v7701
      %v7703 = vpop.f32.mrf.mxu0
      %v7704 = vadd.f32 %v4481, %v7703
      %7705 = vmatprep.mubr.bf16.mxu0 %v1296
      %7706 = vmatmul.mubr.bf16.gmra.mxu0 %v1295
      %v7707 = vpop.f32.mrf.mxu0
      %v7708 = vadd.f32 %v4485, %v7707
      %v7709 = vpop.f32.mrf.mxu0
      %v7710 = vadd.f32 %v4487, %v7709
      %v7711 = vpop.f32.mrf.mxu0
      %v7712 = vpop.f32.mrf.mxu0
      %7713 = vdwg.mxu0
      %7714 = vmatprep.subr.bf16.mxu0 %v6420
      %7715 = vmatpush1.bf16.msra.mxu0 %v6419
      %7716 = vmatprep.subr.bf16.mxu0 %v6412
      %7717 = vmatpush1.bf16.msra.mxu0 %v6411
      %7718 = vmatprep.subr.bf16.mxu0 %v6404
      %7719 = vmatpush1.bf16.msra.mxu0 %v6403
      %7720 = vmatprep.subr.bf16.mxu0 %v6396
      %7721 = vmatpush1.bf16.msra.mxu0 %v6395
      %7722 = vmatprep.subr.bf16.mxu0 %v6388
      %7723 = vmatpush1.bf16.msra.mxu0 %v6387
      %7724 = vmatprep.subr.bf16.mxu0 %v6380
      %7725 = vmatpush1.bf16.msra.mxu0 %v6379
      %7726 = vmatprep.subr.bf16.mxu0 %v6372
      %7727 = vmatpush1.bf16.msra.mxu0 %v6371
      %7728 = vmatprep.subr.bf16.mxu0 %v6364
      %7729 = vmatpush1.bf16.msra.mxu0 %v6363
      %7730 = vmatprep.subr.bf16.mxu0 %v6484
      %7731 = vmatpush2.bf16.msra.mxu0 %v6483
      %7732 = vmatprep.subr.bf16.mxu0 %v6476
      %7733 = vmatpush2.bf16.msra.mxu0 %v6475
      %7734 = vmatprep.subr.bf16.mxu0 %v6468
      %7735 = vmatpush2.bf16.msra.mxu0 %v6467
      %7736 = vmatprep.subr.bf16.mxu0 %v6460
      %7737 = vmatpush2.bf16.msra.mxu0 %v6459
      %7738 = vmatprep.subr.bf16.mxu0 %v6452
      %7739 = vmatpush2.bf16.msra.mxu0 %v6451
      %7740 = vmatprep.subr.bf16.mxu0 %v6444
      %7741 = vmatpush2.bf16.msra.mxu0 %v6443
      %7742 = vmatprep.subr.bf16.mxu0 %v6436
      %7743 = vmatpush2.bf16.msra.mxu0 %v6435
      %7744 = vmatprep.subr.bf16.mxu0 %v6428
      %7745 = vmatpush2.bf16.msra.mxu0 %v6427
      %7746 = vmatprep.mubr.bf16.mxu0 %v1290
      %7747 = vmatmul.mubr.bf16.gmra.mxu0 %v1289
      %v7748 = vpop.f32.mrf.mxu0
      %v7749 = vadd.f32 %v7698, %v7748
      %v7750 = vpop.f32.mrf.mxu0
      %v7751 = vadd.f32 %v7700, %v7750
      %v7752 = vpop.f32.mrf.mxu0
      %v7753 = vadd.f32 %v7702, %v7752
      %v7754 = vpop.f32.mrf.mxu0
      %v7755 = vadd.f32 %v7704, %v7754
      %7756 = vmatprep.mubr.bf16.mxu0 %v1298
      %7757 = vmatmul.mubr.bf16.gmra.mxu0 %v1297
      %v7758 = vpop.f32.mrf.mxu0
      %v7759 = vadd.f32 %v7708, %v7758
      %v7760 = vpop.f32.mrf.mxu0
      %v7761 = vadd.f32 %v7710, %v7760
      %v7762 = vpop.f32.mrf.mxu0
      %v7763 = vpop.f32.mrf.mxu0
      %7764 = vdwg.mxu0
      %7765 = vmatprep.subr.bf16.mxu0 %v6548
      %7766 = vmatpush1.bf16.msra.mxu0 %v6547
      %7767 = vmatprep.subr.bf16.mxu0 %v6540
      %7768 = vmatpush1.bf16.msra.mxu0 %v6539
      %7769 = vmatprep.subr.bf16.mxu0 %v6532
      %7770 = vmatpush1.bf16.msra.mxu0 %v6531
      %7771 = vmatprep.subr.bf16.mxu0 %v6524
      %7772 = vmatpush1.bf16.msra.mxu0 %v6523
      %7773 = vmatprep.subr.bf16.mxu0 %v6516
      %7774 = vmatpush1.bf16.msra.mxu0 %v6515
      %7775 = vmatprep.subr.bf16.mxu0 %v6508
      %7776 = vmatpush1.bf16.msra.mxu0 %v6507
      %7777 = vmatprep.subr.bf16.mxu0 %v6500
      %7778 = vmatpush1.bf16.msra.mxu0 %v6499
      %7779 = vmatprep.subr.bf16.mxu0 %v6492
      %7780 = vmatpush1.bf16.msra.mxu0 %v6491
      %7781 = vmatprep.subr.bf16.mxu0 %v6612
      %7782 = vmatpush2.bf16.msra.mxu0 %v6611
      %7783 = vmatprep.subr.bf16.mxu0 %v6604
      %7784 = vmatpush2.bf16.msra.mxu0 %v6603
      %7785 = vmatprep.subr.bf16.mxu0 %v6596
      %7786 = vmatpush2.bf16.msra.mxu0 %v6595
      %7787 = vmatprep.subr.bf16.mxu0 %v6588
      %7788 = vmatpush2.bf16.msra.mxu0 %v6587
      %7789 = vmatprep.subr.bf16.mxu0 %v6580
      %7790 = vmatpush2.bf16.msra.mxu0 %v6579
      %7791 = vmatprep.subr.bf16.mxu0 %v6572
      %7792 = vmatpush2.bf16.msra.mxu0 %v6571
      %7793 = vmatprep.subr.bf16.mxu0 %v6564
      %7794 = vmatpush2.bf16.msra.mxu0 %v6563
      %7795 = vmatprep.subr.bf16.mxu0 %v6556
      %7796 = vmatpush2.bf16.msra.mxu0 %v6555
      %7797 = vmatprep.mubr.bf16.mxu0 %v1292
      %7798 = vmatmul.mubr.bf16.gmra.mxu0 %v1291
      %v7799 = vpop.f32.mrf.mxu0
      %v7800 = vadd.f32 %v7749, %v7799
      %v7801 = vpop.f32.mrf.mxu0
      %v7802 = vadd.f32 %v7751, %v7801
      %v7803 = vpop.f32.mrf.mxu0
      %v7804 = vadd.f32 %v7753, %v7803
      %v7805 = vpop.f32.mrf.mxu0
      %v7806 = vadd.f32 %v7755, %v7805
      %7807 = vmatprep.mubr.bf16.mxu0 %v1300
      %7808 = vmatmul.mubr.bf16.gmra.mxu0 %v1299
      %v7809 = vpop.f32.mrf.mxu0
      %v7810 = vadd.f32 %v7759, %v7809
      %v7811 = vpop.f32.mrf.mxu0
      %v7812 = vadd.f32 %v7761, %v7811
      %v7813 = vpop.f32.mrf.mxu0
      %v7814 = vpop.f32.mrf.mxu0
      %7815 = vdwg.mxu0
      %7816 = vmatprep.subr.bf16.mxu0 %v6676
      %7817 = vmatpush1.bf16.msra.mxu0 %v6675
      %7818 = vmatprep.subr.bf16.mxu0 %v6668
      %7819 = vmatpush1.bf16.msra.mxu0 %v6667
      %7820 = vmatprep.subr.bf16.mxu0 %v6660
      %7821 = vmatpush1.bf16.msra.mxu0 %v6659
      %7822 = vmatprep.subr.bf16.mxu0 %v6652
      %7823 = vmatpush1.bf16.msra.mxu0 %v6651
      %7824 = vmatprep.subr.bf16.mxu0 %v6644
      %7825 = vmatpush1.bf16.msra.mxu0 %v6643
      %7826 = vmatprep.subr.bf16.mxu0 %v6636
      %7827 = vmatpush1.bf16.msra.mxu0 %v6635
      %7828 = vmatprep.subr.bf16.mxu0 %v6628
      %7829 = vmatpush1.bf16.msra.mxu0 %v6627
      %7830 = vmatprep.subr.bf16.mxu0 %v6620
      %7831 = vmatpush1.bf16.msra.mxu0 %v6619
      %7832 = vmatprep.subr.bf16.mxu0 %v6740
      %7833 = vmatpush2.bf16.msra.mxu0 %v6739
      %7834 = vmatprep.subr.bf16.mxu0 %v6732
      %7835 = vmatpush2.bf16.msra.mxu0 %v6731
      %7836 = vmatprep.subr.bf16.mxu0 %v6724
      %7837 = vmatpush2.bf16.msra.mxu0 %v6723
      %7838 = vmatprep.subr.bf16.mxu0 %v6716
      %7839 = vmatpush2.bf16.msra.mxu0 %v6715
      %7840 = vmatprep.subr.bf16.mxu0 %v6708
      %7841 = vmatpush2.bf16.msra.mxu0 %v6707
      %7842 = vmatprep.subr.bf16.mxu0 %v6700
      %7843 = vmatpush2.bf16.msra.mxu0 %v6699
      %7844 = vmatprep.subr.bf16.mxu0 %v6692
      %7845 = vmatpush2.bf16.msra.mxu0 %v6691
      %7846 = vmatprep.subr.bf16.mxu0 %v6684
      %7847 = vmatpush2.bf16.msra.mxu0 %v6683
      %7848 = vmatprep.mubr.bf16.mxu0 %v1294
      %7849 = vmatmul.mubr.bf16.gmra.mxu0 %v1293
      %v7850 = vpop.f32.mrf.mxu0
      %v7851 = vadd.f32 %v7800, %v7850
      %v7852 = vpop.f32.mrf.mxu0
      %v7853 = vadd.f32 %v7802, %v7852
      %v7854 = vpop.f32.mrf.mxu0
      %v7855 = vadd.f32 %v7804, %v7854
      %v7856 = vpop.f32.mrf.mxu0
      %v7857 = vadd.f32 %v7806, %v7856
      %7858 = vmatprep.mubr.bf16.mxu0 %v1302
      %7859 = vmatmul.mubr.bf16.gmra.mxu0 %v1301
      %v7860 = vpop.f32.mrf.mxu0
      %v7861 = vadd.f32 %v7810, %v7860
      %v7862 = vpop.f32.mrf.mxu0
      %v7863 = vadd.f32 %v7812, %v7862
      %v7864 = vpop.f32.mrf.mxu0
      %v7865 = vpop.f32.mrf.mxu0
      %7866 = vdwg.mxu0
      %7867 = vmatprep.subr.bf16.mxu0 %v6294
      %7868 = vmatpush1.bf16.msra.mxu0 %v6293
      %7869 = vmatprep.subr.bf16.mxu0 %v6286
      %7870 = vmatpush1.bf16.msra.mxu0 %v6285
      %7871 = vmatprep.subr.bf16.mxu0 %v6278
      %7872 = vmatpush1.bf16.msra.mxu0 %v6277
      %7873 = vmatprep.subr.bf16.mxu0 %v6270
      %7874 = vmatpush1.bf16.msra.mxu0 %v6269
      %7875 = vmatprep.subr.bf16.mxu0 %v6262
      %7876 = vmatpush1.bf16.msra.mxu0 %v6261
      %7877 = vmatprep.subr.bf16.mxu0 %v6254
      %7878 = vmatpush1.bf16.msra.mxu0 %v6253
      %7879 = vmatprep.subr.bf16.mxu0 %v6246
      %7880 = vmatpush1.bf16.msra.mxu0 %v6245
      %7881 = vmatprep.subr.bf16.mxu0 %v6238
      %7882 = vmatpush1.bf16.msra.mxu0 %v6237
      %7883 = vmatprep.subr.bf16.mxu0 %v6358
      %7884 = vmatpush2.bf16.msra.mxu0 %v6357
      %7885 = vmatprep.subr.bf16.mxu0 %v6350
      %7886 = vmatpush2.bf16.msra.mxu0 %v6349
      %7887 = vmatprep.subr.bf16.mxu0 %v6342
      %7888 = vmatpush2.bf16.msra.mxu0 %v6341
      %7889 = vmatprep.subr.bf16.mxu0 %v6334
      %7890 = vmatpush2.bf16.msra.mxu0 %v6333
      %7891 = vmatprep.subr.bf16.mxu0 %v6326
      %7892 = vmatpush2.bf16.msra.mxu0 %v6325
      %7893 = vmatprep.subr.bf16.mxu0 %v6318
      %7894 = vmatpush2.bf16.msra.mxu0 %v6317
      %7895 = vmatprep.subr.bf16.mxu0 %v6310
      %7896 = vmatpush2.bf16.msra.mxu0 %v6309
      %7897 = vmatprep.subr.bf16.mxu0 %v6302
      %7898 = vmatpush2.bf16.msra.mxu0 %v6301
      %7899 = vmatprep.mubr.bf16.mxu0 %v1288
      %7900 = vmatmul.mubr.bf16.gmra.mxu0 %v1287
      %v7901 = vpop.f32.mrf.mxu0
      %v7902 = vadd.f32 %v4679, %v7901
      %v7903 = vpop.f32.mrf.mxu0
      %v7904 = vadd.f32 %v4681, %v7903
      %v7905 = vpop.f32.mrf.mxu0
      %v7906 = vadd.f32 %v4683, %v7905
      %v7907 = vpop.f32.mrf.mxu0
      %v7908 = vadd.f32 %v4685, %v7907
      %7909 = vmatprep.mubr.bf16.mxu0 %v1296
      %7910 = vmatmul.mubr.bf16.gmra.mxu0 %v1295
      %v7911 = vpop.f32.mrf.mxu0
      %v7912 = vadd.f32 %v4689, %v7911
      %v7913 = vpop.f32.mrf.mxu0
      %v7914 = vadd.f32 %v4691, %v7913
      %v7915 = vpop.f32.mrf.mxu0
      %v7916 = vpop.f32.mrf.mxu0
      %7917 = vdwg.mxu0
      %7918 = vmatprep.subr.bf16.mxu0 %v6422
      %7919 = vmatpush1.bf16.msra.mxu0 %v6421
      %7920 = vmatprep.subr.bf16.mxu0 %v6414
      %7921 = vmatpush1.bf16.msra.mxu0 %v6413
      %7922 = vmatprep.subr.bf16.mxu0 %v6406
      %7923 = vmatpush1.bf16.msra.mxu0 %v6405
      %7924 = vmatprep.subr.bf16.mxu0 %v6398
      %7925 = vmatpush1.bf16.msra.mxu0 %v6397
      %7926 = vmatprep.subr.bf16.mxu0 %v6390
      %7927 = vmatpush1.bf16.msra.mxu0 %v6389
      %7928 = vmatprep.subr.bf16.mxu0 %v6382
      %7929 = vmatpush1.bf16.msra.mxu0 %v6381
      %7930 = vmatprep.subr.bf16.mxu0 %v6374
      %7931 = vmatpush1.bf16.msra.mxu0 %v6373
      %7932 = vmatprep.subr.bf16.mxu0 %v6366
      %7933 = vmatpush1.bf16.msra.mxu0 %v6365
      %7934 = vmatprep.subr.bf16.mxu0 %v6486
      %7935 = vmatpush2.bf16.msra.mxu0 %v6485
      %7936 = vmatprep.subr.bf16.mxu0 %v6478
      %7937 = vmatpush2.bf16.msra.mxu0 %v6477
      %7938 = vmatprep.subr.bf16.mxu0 %v6470
      %7939 = vmatpush2.bf16.msra.mxu0 %v6469
      %7940 = vmatprep.subr.bf16.mxu0 %v6462
      %7941 = vmatpush2.bf16.msra.mxu0 %v6461
      %7942 = vmatprep.subr.bf16.mxu0 %v6454
      %7943 = vmatpush2.bf16.msra.mxu0 %v6453
      %7944 = vmatprep.subr.bf16.mxu0 %v6446
      %7945 = vmatpush2.bf16.msra.mxu0 %v6445
      %7946 = vmatprep.subr.bf16.mxu0 %v6438
      %7947 = vmatpush2.bf16.msra.mxu0 %v6437
      %7948 = vmatprep.subr.bf16.mxu0 %v6430
      %7949 = vmatpush2.bf16.msra.mxu0 %v6429
      %7950 = vmatprep.mubr.bf16.mxu0 %v1290
      %7951 = vmatmul.mubr.bf16.gmra.mxu0 %v1289
      %v7952 = vpop.f32.mrf.mxu0
      %v7953 = vadd.f32 %v7902, %v7952
      %v7954 = vpop.f32.mrf.mxu0
      %v7955 = vadd.f32 %v7904, %v7954
      %v7956 = vpop.f32.mrf.mxu0
      %v7957 = vadd.f32 %v7906, %v7956
      %v7958 = vpop.f32.mrf.mxu0
      %v7959 = vadd.f32 %v7908, %v7958
      %7960 = vmatprep.mubr.bf16.mxu0 %v1298
      %7961 = vmatmul.mubr.bf16.gmra.mxu0 %v1297
      %v7962 = vpop.f32.mrf.mxu0
      %v7963 = vadd.f32 %v7912, %v7962
      %v7964 = vpop.f32.mrf.mxu0
      %v7965 = vadd.f32 %v7914, %v7964
      %v7966 = vpop.f32.mrf.mxu0
      %v7967 = vpop.f32.mrf.mxu0
      %7968 = vdwg.mxu0
      %7969 = vmatprep.subr.bf16.mxu0 %v6550
      %7970 = vmatpush1.bf16.msra.mxu0 %v6549
      %7971 = vmatprep.subr.bf16.mxu0 %v6542
      %7972 = vmatpush1.bf16.msra.mxu0 %v6541
      %7973 = vmatprep.subr.bf16.mxu0 %v6534
      %7974 = vmatpush1.bf16.msra.mxu0 %v6533
      %7975 = vmatprep.subr.bf16.mxu0 %v6526
      %7976 = vmatpush1.bf16.msra.mxu0 %v6525
      %7977 = vmatprep.subr.bf16.mxu0 %v6518
      %7978 = vmatpush1.bf16.msra.mxu0 %v6517
      %7979 = vmatprep.subr.bf16.mxu0 %v6510
      %7980 = vmatpush1.bf16.msra.mxu0 %v6509
      %7981 = vmatprep.subr.bf16.mxu0 %v6502
      %7982 = vmatpush1.bf16.msra.mxu0 %v6501
      %7983 = vmatprep.subr.bf16.mxu0 %v6494
      %7984 = vmatpush1.bf16.msra.mxu0 %v6493
      %7985 = vmatprep.subr.bf16.mxu0 %v6614
      %7986 = vmatpush2.bf16.msra.mxu0 %v6613
      %7987 = vmatprep.subr.bf16.mxu0 %v6606
      %7988 = vmatpush2.bf16.msra.mxu0 %v6605
      %7989 = vmatprep.subr.bf16.mxu0 %v6598
      %7990 = vmatpush2.bf16.msra.mxu0 %v6597
      %7991 = vmatprep.subr.bf16.mxu0 %v6590
      %7992 = vmatpush2.bf16.msra.mxu0 %v6589
      %7993 = vmatprep.subr.bf16.mxu0 %v6582
      %7994 = vmatpush2.bf16.msra.mxu0 %v6581
      %7995 = vmatprep.subr.bf16.mxu0 %v6574
      %7996 = vmatpush2.bf16.msra.mxu0 %v6573
      %7997 = vmatprep.subr.bf16.mxu0 %v6566
      %7998 = vmatpush2.bf16.msra.mxu0 %v6565
      %7999 = vmatprep.subr.bf16.mxu0 %v6558
      %8000 = vmatpush2.bf16.msra.mxu0 %v6557
      %8001 = vmatprep.mubr.bf16.mxu0 %v1292
      %8002 = vmatmul.mubr.bf16.gmra.mxu0 %v1291
      %v8003 = vpop.f32.mrf.mxu0
      %v8004 = vadd.f32 %v7953, %v8003
      %v8005 = vpop.f32.mrf.mxu0
      %v8006 = vadd.f32 %v7955, %v8005
      %v8007 = vpop.f32.mrf.mxu0
      %v8008 = vadd.f32 %v7957, %v8007
      %v8009 = vpop.f32.mrf.mxu0
      %v8010 = vadd.f32 %v7959, %v8009
      %8011 = vmatprep.mubr.bf16.mxu0 %v1300
      %8012 = vmatmul.mubr.bf16.gmra.mxu0 %v1299
      %v8013 = vpop.f32.mrf.mxu0
      %v8014 = vadd.f32 %v7963, %v8013
      %v8015 = vpop.f32.mrf.mxu0
      %v8016 = vadd.f32 %v7965, %v8015
      %v8017 = vpop.f32.mrf.mxu0
      %v8018 = vpop.f32.mrf.mxu0
      %8019 = vdwg.mxu0
      %8020 = vmatprep.subr.bf16.mxu0 %v6678
      %8021 = vmatpush1.bf16.msra.mxu0 %v6677
      %8022 = vmatprep.subr.bf16.mxu0 %v6670
      %8023 = vmatpush1.bf16.msra.mxu0 %v6669
      %8024 = vmatprep.subr.bf16.mxu0 %v6662
      %8025 = vmatpush1.bf16.msra.mxu0 %v6661
      %8026 = vmatprep.subr.bf16.mxu0 %v6654
      %8027 = vmatpush1.bf16.msra.mxu0 %v6653
      %8028 = vmatprep.subr.bf16.mxu0 %v6646
      %8029 = vmatpush1.bf16.msra.mxu0 %v6645
      %8030 = vmatprep.subr.bf16.mxu0 %v6638
      %8031 = vmatpush1.bf16.msra.mxu0 %v6637
      %8032 = vmatprep.subr.bf16.mxu0 %v6630
      %8033 = vmatpush1.bf16.msra.mxu0 %v6629
      %8034 = vmatprep.subr.bf16.mxu0 %v6622
      %8035 = vmatpush1.bf16.msra.mxu0 %v6621
      %8036 = vmatprep.subr.bf16.mxu0 %v6742
      %8037 = vmatpush2.bf16.msra.mxu0 %v6741
      %8038 = vmatprep.subr.bf16.mxu0 %v6734
      %8039 = vmatpush2.bf16.msra.mxu0 %v6733
      %8040 = vmatprep.subr.bf16.mxu0 %v6726
      %8041 = vmatpush2.bf16.msra.mxu0 %v6725
      %8042 = vmatprep.subr.bf16.mxu0 %v6718
      %8043 = vmatpush2.bf16.msra.mxu0 %v6717
      %8044 = vmatprep.subr.bf16.mxu0 %v6710
      %8045 = vmatpush2.bf16.msra.mxu0 %v6709
      %8046 = vmatprep.subr.bf16.mxu0 %v6702
      %8047 = vmatpush2.bf16.msra.mxu0 %v6701
      %8048 = vmatprep.subr.bf16.mxu0 %v6694
      %8049 = vmatpush2.bf16.msra.mxu0 %v6693
      %8050 = vmatprep.subr.bf16.mxu0 %v6686
      %8051 = vmatpush2.bf16.msra.mxu0 %v6685
      %8052 = vmatprep.mubr.bf16.mxu0 %v1294
      %8053 = vmatmul.mubr.bf16.gmra.mxu0 %v1293
      %v8054 = vpop.f32.mrf.mxu0
      %v8055 = vadd.f32 %v8004, %v8054
      %v8056 = vpop.f32.mrf.mxu0
      %v8057 = vadd.f32 %v8006, %v8056
      %v8058 = vpop.f32.mrf.mxu0
      %v8059 = vadd.f32 %v8008, %v8058
      %v8060 = vpop.f32.mrf.mxu0
      %v8061 = vadd.f32 %v8010, %v8060
      %8062 = vmatprep.mubr.bf16.mxu0 %v1302
      %8063 = vmatmul.mubr.bf16.gmra.mxu0 %v1301
      %v8064 = vpop.f32.mrf.mxu0
      %v8065 = vadd.f32 %v8014, %v8064
      %v8066 = vpop.f32.mrf.mxu0
      %v8067 = vadd.f32 %v8016, %v8066
      %v8068 = vpop.f32.mrf.mxu0
      %v8069 = vpop.f32.mrf.mxu0
      %8070 = vdwg.mxu0
      %8071 = vst [vmem:[%s213] sm:$0xff] %v7443
      %8072 = vst [vmem:[%s213 + $0x8] sm:$0xff] %v7445
      %8073 = vst [vmem:[%s213 + $0x10] sm:$0xff] %v7647
      %8074 = vst [vmem:[%s213 + $0x18] sm:$0xff] %v7649
      %8075 = vst [vmem:[%s213 + $0x20] sm:$0xff] %v7851
      %8076 = vst [vmem:[%s213 + $0x28] sm:$0xff] %v7853
      %8077 = vst [vmem:[%s213 + $0x30] sm:$0xff] %v8055
      %8078 = vst [vmem:[%s213 + $0x38] sm:$0xff] %v8057
      %8079 = vst [vmem:[%s213 + $0x40] sm:$0xff] %v7447
      %8080 = vst [vmem:[%s213 + $0x48] sm:$0xff] %v7449
      %8081 = vst [vmem:[%s213 + $0x50] sm:$0xff] %v7651
      %8082 = vst [vmem:[%s213 + $0x58] sm:$0xff] %v7653
      %8083 = vst [vmem:[%s213 + $0x60] sm:$0xff] %v7855
      %8084 = vst [vmem:[%s213 + $0x68] sm:$0xff] %v7857
      %8085 = vst [vmem:[%s213 + $0x70] sm:$0xff] %v8059
      %8086 = vst [vmem:[%s213 + $0x78] sm:$0xff] %v8061
      %8087 = vst [vmem:[%s213 + $0x80] sm:$0x1] %v7453
      %8088 = vst [vmem:[%s213 + $0x88] sm:$0x1] %v7455
      %8089 = vst [vmem:[%s213 + $0x90] sm:$0x1] %v7657
      %8090 = vst [vmem:[%s213 + $0x98] sm:$0x1] %v7659
      %8091 = vst [vmem:[%s213 + $0xa0] sm:$0x1] %v7861
      %8092 = vst [vmem:[%s213 + $0xa8] sm:$0x1] %v7863
      %8093 = vst [vmem:[%s213 + $0xb0] sm:$0x1] %v8065
      %8094 = vst [vmem:[%s213 + $0xb8] sm:$0x1] %v8067
      %s8095 = smul.u32 3, %s19
      %p8096 = scmp.lt.s32.totalorder %s18, 1
      %s8097 = scalar_select %p8096, %s18, 1
      %p8098 = scmp.lt.s32.totalorder %s8095, 2
      %s8099 = scalar_select %p8098, %s8095, 2
      %s8100 = smul.addr %s8099, 8
      %s8101 = smul.addr %s8097, 24
      %s8102 = sadd.s32 %s8100, %s8101
      %s8103 = smul.addr %s8102, 8
      %s8104 = scalar_lea.vmem %s3, %s8103
      // Predicated region
      $region33: #{separator_forward.2} parent=31 // pred_check
        %p8105 = pneg %p116
      $region34: #{separator_forward.2} parent=31 // pred_check_branch
        %8107 = sbr.rel (%p8105) target = $region36
      $region35: #{separator_forward.2} parent=31 // pred_region
        %s8108 = smul.u32 3, %s19
      $region36: #{separator_forward.2} parent=31 // pred_fallthru
        _
    $region32: #{separator_forward.2} parent=5 // pred_fallthru
      _
    %p8109 = scmp.le.s32.totalorder 2, %s9
    // Predicated region
    $region37: #{separator_forward.2} parent=5 // pred_check
      %p8110 = pneg %p8109
    $region38: #{separator_forward.2} parent=5 // pred_check_branch
      %8112 = sbr.rel (%p8110) target = $region40
    $region39: #{separator_forward.2} parent=5 // pred_region
      %s8113 = ssub.s32 %s9, 2
      // Predicated region
      $region41: #{separator_forward.2} parent=39 // pred_check
        %p8114 = pneg %p122
      $region42: #{separator_forward.2} parent=39 // pred_check_branch
        %8116 = sbr.rel (%p8114) target = $region44
      $region43: #{separator_forward.2} parent=39 // pred_region
        %s8117 = smul.u32 3, %s21
        %p8118 = scmp.lt.s32.totalorder %s20, 1
        %s8119 = scalar_select %p8118, %s20, 1
        %p8120 = scmp.lt.s32.totalorder %s8117, 2
        %s8121 = scalar_select %p8120, %s8117, 2
        %s8122 = smul.addr %s8121, 8
        %s8123 = smul.addr %s8119, 24
        %s8124 = sadd.s32 %s8122, %s8123
        %s8125 = smul.addr %s8124, 8
        %s8126 = scalar_lea.vmem %s3, %s8125
      $region44: #{separator_forward.2} parent=39 // pred_fallthru
        _
    $region40: #{separator_forward.2} parent=5 // pred_fallthru
      _
  $region6: #{separator_forward.2} parent=0 // loop_footer
    %s13 = sadd.s32 1, %s9
  $region7: #{separator_forward.2} parent=0 // loop_footer_branch
    %8 = sbr.rel target = $region3
  $region8: #{separator_forward.2} parent=0 // loop_exit
    _

</llo_original>
